<compile_context>
chip_gen: v5e
topology: v5e:2x2
jax: 0.10.0
libtpu: 0.0.40
codegen_flags: <defaults>
</compile_context>

<pallas_src>
import jax
import jax.numpy as jnp
from jax import lax
from jax.experimental import pallas as pl
from jax.experimental.pallas import tpu as pltpu

_EPS = 1e-5
_GROUPS = 16


def _vmem_limit_bytes():
    """~3/4 of physical VMEM: ~96 MiB on v5e/v6e (128 MiB), ~48 MiB on v7x."""
    try:
        cap = int(pltpu.get_tpu_info().vmem_capacity_bytes)
        if cap > 0:
            return (cap * 3) // 4
    except Exception:
        pass
    return 48 * 1024 * 1024


# ---------------------------------------------------------------------------
# Conv3d 3x3x3 (stride 1, padding 1, no bias) on a flattened zero-padded
# spatial layout, with fused per-frame GroupNorm statistics and (optionally)
# the previous GroupNorm's normalize + ReLU fused into the input prologue.
#
# Layout: each frame is stored as ((H+3)*(W+2), C); data occupies padded rows
# a in [1, H], cols b in [1, W] of the (H+3, W+2) plane (1 top / 2 bottom /
# 1 left / 1 right zero border; the second bottom row keeps the tap row
# slices in bounds).  Tap (kh, kw) of temporal frame kd is then simply rows
# [kh*(W+2)+kw, kh*(W+2)+kw + H*(W+2)) of that flattened plane, and
# accumulator row q = i*(W+2)+j (j < W valid) is conv output (i, j).
# ---------------------------------------------------------------------------
def _make_conv_kernel(H, W, T, Cin, Cout, fuse_gn_relu):
    W2, H3 = W + 2, H + 3
    P2, HW2 = H3 * W2, H * W2
    K9 = 9 * Cin
    TOP = W2 + 1          # output row q = 0 lives at padded row W2 + 1
    BOT = P2 - TOP - HW2

    def body(x_refs, w_ref, emask_ref, out_ref, stats_ref,
             imask_ref=None, sc_ref=None, sh_ref=None):
        t = pl.program_id(1)
        acc = jnp.zeros((HW2, Cout), jnp.float32)
        for kd in range(3):
            src_t = t + (kd - 1)
            valid = jnp.logical_and(src_t >= 0, src_t <= T - 1)
            y = x_refs[kd][0, 0].astype(jnp.float32)            # (P2, Cin)
            if fuse_gn_relu:
                # Fused GroupNorm affine of the previous conv + ReLU; the
                # interior mask re-imposes the exact-zero border.
                y = jnp.maximum(y * sc_ref[0] + sh_ref[0], 0.0) * imask_ref[...]
            # Temporal padding=1: zero out-of-range neighbour frames.
            y = y * valid.astype(jnp.float32)
            # Nine spatial taps as contiguous row slices -> one K=9*Cin matmul.
            chunks = [y[kh * W2 + kw:kh * W2 + kw + HW2, :]
                      for kh in range(3) for kw in range(3)]
            patch = jnp.concatenate(chunks, axis=-1).astype(jnp.bfloat16)
            acc = acc + jnp.dot(patch, w_ref[kd * K9:(kd + 1) * K9, :],
                                preferred_element_type=jnp.float32)

        # Zero the two non-output columns (j in {W, W+1}) of every row group
        # so the re-emitted padding is exact and the stats only see real data.
        acc = acc * emask_ref[...]

        # Emit directly in the zero-padded flattened layout so the next conv /
        # final pass consume it without any jnp.pad round-trip.
        out_ref[0, 0, 0:TOP, :] = jnp.zeros((TOP, Cout), out_ref.dtype)
        out_ref[0, 0, TOP:TOP + HW2, :] = acc.astype(out_ref.dtype)
        out_ref[0, 0, TOP + HW2:P2, :] = jnp.zeros((BOT, Cout), out_ref.dtype)

        # Per-frame partial GroupNorm statistics from the f32 accumulator.
        stats_ref[0, 0, 0:1, :] = jnp.sum(acc, axis=0, keepdims=True)
        stats_ref[0, 0, 1:2, :] = jnp.sum(acc * acc, axis=0, keepdims=True)

    if fuse_gn_relu:
        def kernel(x0, x1, x2, w_ref, emask_ref, imask_ref, sc_ref, sh_ref,
                   out_ref, stats_ref):
            body((x0, x1, x2), w_ref, emask_ref, out_ref, stats_ref,
                 imask_ref, sc_ref, sh_ref)
    else:
        def kernel(x0, x1, x2, w_ref, emask_ref, out_ref, stats_ref):
            body((x0, x1, x2), w_ref, emask_ref, out_ref, stats_ref)
    return kernel


def _conv3x3x3(x_pad, w_mat, emask, H, W, gn=None):
    """x_pad: (N, T, (H+3)*(W+2), Cin) bf16 padded-flattened frames.
    w_mat: (27*Cin, Cout) bf16, rows ordered (kd, kh, kw, cin).
    emask: (H*(W+2), 1) f32 mask of the valid output columns.
    gn: optional (scale, shift, interior_mask) fusing the previous GroupNorm's
        normalize + ReLU into this conv's input prologue.
    Returns (conv output in the same padded-flattened layout, bf16;
             per-frame stats (N, T, 2, Cout) f32)."""
    N, T, P2, Cin = x_pad.shape
    Cout = w_mat.shape[-1]
    W2 = W + 2
    HW2 = H * W2
    fuse = gn is not None
    kernel = _make_conv_kernel(H, W, T, Cin, Cout, fuse)

    def x_spec(kd):
        def imap(n, t, kd=kd):
            # Temporal neighbours are clamped here and zeroed in-kernel, so no
            # temporally padded copy of the activation is needed in HBM.
            return (n, jnp.clip(t + kd - 1, 0, T - 1), 0, 0)
        return pl.BlockSpec((1, 1, P2, Cin), imap)

    in_specs = [x_spec(0), x_spec(1), x_spec(2),
                pl.BlockSpec((27 * Cin, Cout), lambda n, t: (0, 0)),
                pl.BlockSpec((HW2, 1), lambda n, t: (0, 0))]
    args = [x_pad, x_pad, x_pad, w_mat, emask]
    if fuse:
        scale, shift, imask = gn
        in_specs += [pl.BlockSpec((P2, 1), lambda n, t: (0, 0)),
                     pl.BlockSpec((1, 1, Cin), lambda n, t: (n, 0, 0)),
                     pl.BlockSpec((1, 1, Cin), lambda n, t: (n, 0, 0))]
        args += [imask, scale, shift]

    return pl.pallas_call(
        kernel,
        out_shape=(jax.ShapeDtypeStruct((N, T, P2, Cout), jnp.bfloat16),
                   jax.ShapeDtypeStruct((N, T, 2, Cout), jnp.float32)),
        grid=(N, T),
        in_specs=in_specs,
        out_specs=(pl.BlockSpec((1, 1, P2, Cout), lambda n, t: (n, t, 0, 0)),
                   pl.BlockSpec((1, 1, 2, Cout), lambda n, t: (n, t, 0, 0))),
        compiler_params=pltpu.CompilerParams(
            dimension_semantics=("parallel", "parallel"),
            vmem_limit_bytes=_vmem_limit_bytes()),
    )(*args)


# ---------------------------------------------------------------------------
# GroupNorm(16): per-frame partial stats -> per-channel affine (tiny JAX step,
# Welford-style combination across frames).
# ---------------------------------------------------------------------------
def _group_affine(stats, gamma, beta, hw):
    """stats: (N, T, 2, C) per-frame per-channel [sum, sum_sq] over the hw
    valid positions of each frame.  Returns (scale, shift), each (N, 1, C)."""
    N, T, _, C = stats.shape
    cg = C // _GROUPS
    cnt = jnp.float32(hw * cg)                                  # per frame/group
    s = stats[:, :, 0, :].reshape(N, T, _GROUPS, cg).sum(-1)    # (N, T, G)
    sq = stats[:, :, 1, :].reshape(N, T, _GROUPS, cg).sum(-1)
    mean_t = s / cnt
    m2_t = jnp.maximum(sq - s * s / cnt, 0.0)
    mean = jnp.mean(mean_t, axis=1)                             # (N, G)
    m2 = m2_t.sum(axis=1) + cnt * jnp.sum(
        (mean_t - mean[:, None, :]) ** 2, axis=1)
    var = m2 / (cnt * T)                                        # biased (PyTorch)
    rstd = lax.rsqrt(var + _EPS)
    mean_c = jnp.repeat(mean, cg, axis=-1)                      # (N, C)
    rstd_c = jnp.repeat(rstd, cg, axis=-1)
    scale = gamma[None, :] * rstd_c
    shift = beta[None, :] - mean_c * scale
    return (scale.reshape(N, 1, C).astype(jnp.float32),
            shift.reshape(N, 1, C).astype(jnp.float32))


# ---------------------------------------------------------------------------
# Final pass: GN2-apply + residual + ReLU, lane-dense ((W+2)*C folded lanes).
# ---------------------------------------------------------------------------
def _gn_residual_relu(c_pad, res_pad, scale, shift, H3, W2):
    N, T, P2, C = c_pad.shape
    L = W2 * C
    x = c_pad.reshape(N, T, H3, L)           # free reshape of contiguous HBM
    r = res_pad.reshape(N, T, H3, L)
    sc = jnp.tile(scale, (1, 1, W2))         # matches the (w2, c) folding
    sh = jnp.tile(shift, (1, 1, W2))

    def kernel(x_ref, r_ref, sc_ref, sh_ref, o_ref):
        y = (x_ref[0].astype(jnp.float32) * sc_ref[0] + sh_ref[0]
             + r_ref[0].astype(jnp.float32))
        o_ref[0] = jnp.maximum(y, 0.0)

    return pl.pallas_call(
        kernel,
        out_shape=jax.ShapeDtypeStruct((N, T, H3, L), jnp.float32),
        grid=(N,),
        in_specs=[pl.BlockSpec((1, T, H3, L), lambda n: (n, 0, 0, 0)),
                  pl.BlockSpec((1, T, H3, L), lambda n: (n, 0, 0, 0)),
                  pl.BlockSpec((1, 1, L), lambda n: (n, 0, 0)),
                  pl.BlockSpec((1, 1, L), lambda n: (n, 0, 0))],
        out_specs=pl.BlockSpec((1, T, H3, L), lambda n: (n, 0, 0, 0)),
        compiler_params=pltpu.CompilerParams(
            dimension_semantics=("parallel",),
            vmem_limit_bytes=_vmem_limit_bytes()),
    )(x, r, sc, sh)


# ---------------------------------------------------------------------------
# BasicBlock forward (stride=1, stride_t=1, downsample=None, spectral=False)
# ---------------------------------------------------------------------------
def basic_block_forward(x_ncdhw, params):
    """x_ncdhw: (N, C, T, H, W) float32, like PyTorch."""
    N, C, T, H, W = x_ncdhw.shape
    planes = params["w1"].shape[0]
    assert planes == C, "identity residual requires inplanes == planes"
    W2, H3 = W + 2, H + 3
    P2, HW2, HW = H3 * W2, H * W2, H * W

    # NDHWC, zero-padded spatially (1 top / 2 bottom / 1 left / 1 right) and
    # flattened to ((H+3)*(W+2), C) rows per frame.  bf16: conv MXU operand
    # and residual for the final pass.  Temporal padding is done in-kernel.
    x = jnp.transpose(x_ncdhw, (0, 2, 3, 4, 1))
    x_pad = jnp.pad(x, ((0, 0), (0, 0), (1, 2), (1, 1), (0, 0)))
    x_pad = x_pad.reshape(N, T, P2, C).astype(jnp.bfloat16)

    # Weights (Cout, Cin, kd, kh, kw) -> (kd, kh, kw, Cin, Cout) -> (27*Cin, Cout)
    # so each temporal tap is one K = 9*Cin matmul.
    def wmat(w):
        cout, cin = w.shape[0], w.shape[1]
        return (jnp.transpose(w, (2, 3, 4, 1, 0))
                .reshape(27 * cin, cout).astype(jnp.bfloat16))

    w1, w2 = wmat(params["w1"]), wmat(params["w2"])

    # Tiny masks for the padded-flattened layout.
    q = jnp.arange(HW2)
    emask = (q % W2 < W).astype(jnp.float32).reshape(HW2, 1)
    rr = jnp.arange(P2)
    row, col = rr // W2, rr % W2
    imask = ((row >= 1) & (row <= H) & (col >= 1) & (col <= W))
    imask = imask.astype(jnp.float32).reshape(P2, 1)

    # conv1 (+ fused per-frame GN1 partial statistics).
    c1, st1 = _conv3x3x3(x_pad, w1, emask, H, W)
    sc1, sh1 = _group_affine(st1, params["g1"], params["b1"], HW)

    # conv2 with GN1-normalize + ReLU fused into its input prologue
    # (+ fused per-frame GN2 partial statistics).
    c2, st2 = _conv3x3x3(c1, w2, emask, H, W, gn=(sc1, sh1, imask))
    sc2, sh2 = _group_affine(st2, params["g2"], params["b2"], HW)

    # GN2-apply + residual + ReLU (lane-dense), then de-pad + back to NCDHW.
    out_pad = _gn_residual_relu(c2, x_pad, sc2, sh2, H3, W2)
    out = out_pad.reshape(N, T, H3, W2, planes)[:, :, 1:H + 1, 1:W + 1, :]
    return jnp.transpose(out, (0, 4, 1, 2, 3))


# ---------------------------------------------------------------------------
# Plain-JAX f32 reference (validation only)
# ---------------------------------------------------------------------------
def _reference_forward(x_ncdhw, params):
    def conv(z, w):
        return lax.conv_general_dilated(
            z, w, window_strides=(1, 1, 1),
            padding=((1, 1), (1, 1), (1, 1)),
            dimension_numbers=("NCDHW", "OIDHW", "NCDHW"),
            precision=lax.Precision.HIGHEST)

    def gn(z, g, b):
        n, c = z.shape[0], z.shape[1]
        zg = z.reshape(n, _GROUPS, -1)
        m = zg.mean(-1, keepdims=True)
        v = zg.var(-1, keepdims=True)
        zn = ((zg - m) * lax.rsqrt(v + _EPS)).reshape(z.shape)
        return zn * g.reshape(1, c, 1, 1, 1) + b.reshape(1, c, 1, 1, 1)

    out = jax.nn.relu(gn(conv(x_ncdhw, params["w1"]), params["g1"], params["b1"]))
    out = gn(conv(out, params["w2"]), params["g2"], params["b2"])
    return jax.nn.relu(out + x_ncdhw)


if __name__ == "__main__":
    key = jax.random.PRNGKey(0)
    k_w1, k_w2, k_x = jax.random.split(key, 3)

    # GroupNorm(16, planes) requires channels % 16 == 0 -> use 32 channels.
    N, C, T, H, W = 2, 32, 4, 8, 8
    planes = C

    x = jax.random.normal(k_x, (N, C, T, H, W), dtype=jnp.float32)
    params = {
        "w1": 0.05 * jax.random.normal(k_w1, (planes, C, 3, 3, 3), jnp.float32),
        "g1": jnp.ones((planes,), jnp.float32),
        "b1": jnp.zeros((planes,), jnp.float32),
        "w2": 0.05 * jax.random.normal(k_w2, (planes, planes, 3, 3, 3), jnp.float32),
        "g2": jnp.ones((planes,), jnp.float32),
        "b2": jnp.zeros((planes,), jnp.float32),
    }

    out = jax.jit(basic_block_forward)(x, params)
    out = jax.block_until_ready(out)
    assert out.shape == (N, planes, T, H, W)
    assert bool(jnp.all(jnp.isfinite(out)))

    # bf16 MXU operands / bf16 intermediates -> relaxed tolerance vs f32 ref.
    ref = _reference_forward(x, params)
    assert bool(jnp.allclose(out, ref, rtol=1e-1, atol=1e-1))

    print("KERNEL_OK")
</pallas_src>

<mosaic_0001>
module attributes {stable_mosaic.version = 11 : i64} {
  func.func @kernel(%arg0: i32, %arg1: i32, %arg2: memref<1x1x110x32xbf16, #tpu.memory_space<vmem>>, %arg3: memref<1x1x110x32xbf16, #tpu.memory_space<vmem>>, %arg4: memref<1x1x110x32xbf16, #tpu.memory_space<vmem>>, %arg5: memref<864x32xbf16, #tpu.memory_space<vmem>>, %arg6: memref<80x1xf32, #tpu.memory_space<vmem>>, %arg7: memref<1x1x110x32xbf16, #tpu.memory_space<vmem>>, %arg8: memref<1x1x2x32xf32, #tpu.memory_space<vmem>>) attributes {dimension_semantics = [#tpu.dimension_semantics<parallel>, #tpu.dimension_semantics<parallel>], iteration_bounds = array<i64: 2, 4>, scalar_prefetch = 0 : i64, scratch_operands = 0 : i64, tpu.core_type = #tpu.core_type<tc>, window_params = [{transform_indices = @transform_0, window_bounds = array<i64: 1, 1, 110, 32>}, {transform_indices = @transform_1, window_bounds = array<i64: 1, 1, 110, 32>}, {transform_indices = @transform_2, window_bounds = array<i64: 1, 1, 110, 32>}, {pipeline_mode = #tpu.pipeline_mode<synchronous>, transform_indices = @transform_3, window_bounds = array<i64: 864, 32>}, {pipeline_mode = #tpu.pipeline_mode<synchronous>, transform_indices = @transform_4, window_bounds = array<i64: 80, 1>}, {transform_indices = @transform_5, window_bounds = array<i64: 1, 1, 110, 32>}, {transform_indices = @transform_6, window_bounds = array<i64: 1, 1, 2, 32>}]} {
    %cst = arith.constant 0.000000e+00 : f32
    %0 = vector.broadcast %cst : f32 to vector<80x32xf32>
    %c-1_i32 = arith.constant -1 : i32
    %1 = arith.addi %arg1, %c-1_i32 : i32
    %c0_i32 = arith.constant 0 : i32
    %2 = arith.cmpi sge, %1, %c0_i32 : i32
    %c3_i32 = arith.constant 3 : i32
    %3 = arith.cmpi sle, %1, %c3_i32 : i32
    %4 = arith.andi %2, %3 : i1
    %c0 = arith.constant 0 : index
    %c0_0 = arith.constant 0 : index
    %c0_1 = arith.constant 0 : index
    %c0_2 = arith.constant 0 : index
    %5 = vector.load %arg2[%c0, %c0_0, %c0_1, %c0_2] : memref<1x1x110x32xbf16, #tpu.memory_space<vmem>>, vector<1x1x110x32xbf16>
    %6 = vector.shape_cast %5 : vector<1x1x110x32xbf16> to vector<110x32xbf16>
    %7 = arith.extf %6 : vector<110x32xbf16> to vector<110x32xf32>
    %8 = arith.extui %4 : i1 to i32
    %9 = arith.sitofp %8 : i32 to f32
    %10 = vector.broadcast %9 : f32 to vector<110x32xf32>
    %11 = arith.mulf %7, %10 : vector<110x32xf32>
    %12 = vector.extract_strided_slice %11 {offsets = [0, 0], sizes = [80, 32], strides = [1, 1]} : vector<110x32xf32> to vector<80x32xf32>
    %13 = vector.extract_strided_slice %11 {offsets = [1, 0], sizes = [80, 32], strides = [1, 1]} : vector<110x32xf32> to vector<80x32xf32>
    %14 = vector.extract_strided_slice %11 {offsets = [2, 0], sizes = [80, 32], strides = [1, 1]} : vector<110x32xf32> to vector<80x32xf32>
    %15 = vector.extract_strided_slice %11 {offsets = [10, 0], sizes = [80, 32], strides = [1, 1]} : vector<110x32xf32> to vector<80x32xf32>
    %16 = vector.extract_strided_slice %11 {offsets = [11, 0], sizes = [80, 32], strides = [1, 1]} : vector<110x32xf32> to vector<80x32xf32>
    %17 = vector.extract_strided_slice %11 {offsets = [12, 0], sizes = [80, 32], strides = [1, 1]} : vector<110x32xf32> to vector<80x32xf32>
    %18 = vector.extract_strided_slice %11 {offsets = [20, 0], sizes = [80, 32], strides = [1, 1]} : vector<110x32xf32> to vector<80x32xf32>
    %19 = vector.extract_strided_slice %11 {offsets = [21, 0], sizes = [80, 32], strides = [1, 1]} : vector<110x32xf32> to vector<80x32xf32>
    %20 = vector.extract_strided_slice %11 {offsets = [22, 0], sizes = [80, 32], strides = [1, 1]} : vector<110x32xf32> to vector<80x32xf32>
    %21 = tpu.concatenate %12, %13, %14, %15, %16, %17, %18, %19, %20 in 1 : vector<80x32xf32>, vector<80x32xf32>, vector<80x32xf32>, vector<80x32xf32>, vector<80x32xf32>, vector<80x32xf32>, vector<80x32xf32>, vector<80x32xf32>, vector<80x32xf32> -> vector<80x288xf32>
    %22 = arith.truncf %21 : vector<80x288xf32> to vector<80x288xbf16>
    %c0_3 = arith.constant 0 : index
    %c0_4 = arith.constant 0 : index
    %23 = vector.load %arg5[%c0_3, %c0_4] : memref<864x32xbf16, #tpu.memory_space<vmem>>, vector<288x32xbf16>
    %cst_5 = arith.constant dense<0.000000e+00> : vector<80x32xf32>
    %24 = tpu.matmul %22, %23, %cst_5 {dimension_numbers = #tpu.dot_dimension_numbers<[1], [0], [0], [1], [0, 0, 1, 1], [], []>} : vector<80x288xbf16>, vector<288x32xbf16>, vector<80x32xf32> -> vector<80x32xf32>
    %25 = arith.addf %0, %24 : vector<80x32xf32>
    %c0_i32_6 = arith.constant 0 : i32
    %26 = arith.addi %arg1, %c0_i32_6 : i32
    %c0_i32_7 = arith.constant 0 : i32
    %27 = arith.cmpi sge, %26, %c0_i32_7 : i32
    %c3_i32_8 = arith.constant 3 : i32
    %28 = arith.cmpi sle, %26, %c3_i32_8 : i32
    %29 = arith.andi %27, %28 : i1
    %c0_9 = arith.constant 0 : index
    %c0_10 = arith.constant 0 : index
    %c0_11 = arith.constant 0 : index
    %c0_12 = arith.constant 0 : index
    %30 = vector.load %arg3[%c0_9, %c0_10, %c0_11, %c0_12] : memref<1x1x110x32xbf16, #tpu.memory_space<vmem>>, vector<1x1x110x32xbf16>
    %31 = vector.shape_cast %30 : vector<1x1x110x32xbf16> to vector<110x32xbf16>
    %32 = arith.extf %31 : vector<110x32xbf16> to vector<110x32xf32>
    %33 = arith.extui %29 : i1 to i32
    %34 = arith.sitofp %33 : i32 to f32
    %35 = vector.broadcast %34 : f32 to vector<110x32xf32>
    %36 = arith.mulf %32, %35 : vector<110x32xf32>
    %37 = vector.extract_strided_slice %36 {offsets = [0, 0], sizes = [80, 32], strides = [1, 1]} : vector<110x32xf32> to vector<80x32xf32>
    %38 = vector.extract_strided_slice %36 {offsets = [1, 0], sizes = [80, 32], strides = [1, 1]} : vector<110x32xf32> to vector<80x32xf32>
    %39 = vector.extract_strided_slice %36 {offsets = [2, 0], sizes = [80, 32], strides = [1, 1]} : vector<110x32xf32> to vector<80x32xf32>
    %40 = vector.extract_strided_slice %36 {offsets = [10, 0], sizes = [80, 32], strides = [1, 1]} : vector<110x32xf32> to vector<80x32xf32>
    %41 = vector.extract_strided_slice %36 {offsets = [11, 0], sizes = [80, 32], strides = [1, 1]} : vector<110x32xf32> to vector<80x32xf32>
    %42 = vector.extract_strided_slice %36 {offsets = [12, 0], sizes = [80, 32], strides = [1, 1]} : vector<110x32xf32> to vector<80x32xf32>
    %43 = vector.extract_strided_slice %36 {offsets = [20, 0], sizes = [80, 32], strides = [1, 1]} : vector<110x32xf32> to vector<80x32xf32>
    %44 = vector.extract_strided_slice %36 {offsets = [21, 0], sizes = [80, 32], strides = [1, 1]} : vector<110x32xf32> to vector<80x32xf32>
    %45 = vector.extract_strided_slice %36 {offsets = [22, 0], sizes = [80, 32], strides = [1, 1]} : vector<110x32xf32> to vector<80x32xf32>
    %46 = tpu.concatenate %37, %38, %39, %40, %41, %42, %43, %44, %45 in 1 : vector<80x32xf32>, vector<80x32xf32>, vector<80x32xf32>, vector<80x32xf32>, vector<80x32xf32>, vector<80x32xf32>, vector<80x32xf32>, vector<80x32xf32>, vector<80x32xf32> -> vector<80x288xf32>
    %47 = arith.truncf %46 : vector<80x288xf32> to vector<80x288xbf16>
    %c288 = arith.constant 288 : index
    %c0_13 = arith.constant 0 : index
    %48 = vector.load %arg5[%c288, %c0_13] : memref<864x32xbf16, #tpu.memory_space<vmem>>, vector<288x32xbf16>
    %cst_14 = arith.constant dense<0.000000e+00> : vector<80x32xf32>
    %49 = tpu.matmul %47, %48, %cst_14 {dimension_numbers = #tpu.dot_dimension_numbers<[1], [0], [0], [1], [0, 0, 1, 1], [], []>} : vector<80x288xbf16>, vector<288x32xbf16>, vector<80x32xf32> -> vector<80x32xf32>
    %50 = arith.addf %25, %49 : vector<80x32xf32>
    %c1_i32 = arith.constant 1 : i32
    %51 = arith.addi %arg1, %c1_i32 : i32
    %c0_i32_15 = arith.constant 0 : i32
    %52 = arith.cmpi sge, %51, %c0_i32_15 : i32
    %c3_i32_16 = arith.constant 3 : i32
    %53 = arith.cmpi sle, %51, %c3_i32_16 : i32
    %54 = arith.andi %52, %53 : i1
    %c0_17 = arith.constant 0 : index
    %c0_18 = arith.constant 0 : index
    %c0_19 = arith.constant 0 : index
    %c0_20 = arith.constant 0 : index
    %55 = vector.load %arg4[%c0_17, %c0_18, %c0_19, %c0_20] : memref<1x1x110x32xbf16, #tpu.memory_space<vmem>>, vector<1x1x110x32xbf16>
    %56 = vector.shape_cast %55 : vector<1x1x110x32xbf16> to vector<110x32xbf16>
    %57 = arith.extf %56 : vector<110x32xbf16> to vector<110x32xf32>
    %58 = arith.extui %54 : i1 to i32
    %59 = arith.sitofp %58 : i32 to f32
    %60 = vector.broadcast %59 : f32 to vector<110x32xf32>
    %61 = arith.mulf %57, %60 : vector<110x32xf32>
    %62 = vector.extract_strided_slice %61 {offsets = [0, 0], sizes = [80, 32], strides = [1, 1]} : vector<110x32xf32> to vector<80x32xf32>
    %63 = vector.extract_strided_slice %61 {offsets = [1, 0], sizes = [80, 32], strides = [1, 1]} : vector<110x32xf32> to vector<80x32xf32>
    %64 = vector.extract_strided_slice %61 {offsets = [2, 0], sizes = [80, 32], strides = [1, 1]} : vector<110x32xf32> to vector<80x32xf32>
    %65 = vector.extract_strided_slice %61 {offsets = [10, 0], sizes = [80, 32], strides = [1, 1]} : vector<110x32xf32> to vector<80x32xf32>
    %66 = vector.extract_strided_slice %61 {offsets = [11, 0], sizes = [80, 32], strides = [1, 1]} : vector<110x32xf32> to vector<80x32xf32>
    %67 = vector.extract_strided_slice %61 {offsets = [12, 0], sizes = [80, 32], strides = [1, 1]} : vector<110x32xf32> to vector<80x32xf32>
    %68 = vector.extract_strided_slice %61 {offsets = [20, 0], sizes = [80, 32], strides = [1, 1]} : vector<110x32xf32> to vector<80x32xf32>
    %69 = vector.extract_strided_slice %61 {offsets = [21, 0], sizes = [80, 32], strides = [1, 1]} : vector<110x32xf32> to vector<80x32xf32>
    %70 = vector.extract_strided_slice %61 {offsets = [22, 0], sizes = [80, 32], strides = [1, 1]} : vector<110x32xf32> to vector<80x32xf32>
    %71 = tpu.concatenate %62, %63, %64, %65, %66, %67, %68, %69, %70 in 1 : vector<80x32xf32>, vector<80x32xf32>, vector<80x32xf32>, vector<80x32xf32>, vector<80x32xf32>, vector<80x32xf32>, vector<80x32xf32>, vector<80x32xf32>, vector<80x32xf32> -> vector<80x288xf32>
    %72 = arith.truncf %71 : vector<80x288xf32> to vector<80x288xbf16>
    %c576 = arith.constant 576 : index
    %c0_21 = arith.constant 0 : index
    %73 = vector.load %arg5[%c576, %c0_21] : memref<864x32xbf16, #tpu.memory_space<vmem>>, vector<288x32xbf16>
    %cst_22 = arith.constant dense<0.000000e+00> : vector<80x32xf32>
    %74 = tpu.matmul %72, %73, %cst_22 {dimension_numbers = #tpu.dot_dimension_numbers<[1], [0], [0], [1], [0, 0, 1, 1], [], []>} : vector<80x288xbf16>, vector<288x32xbf16>, vector<80x32xf32> -> vector<80x32xf32>
    %75 = arith.addf %50, %74 : vector<80x32xf32>
    %c0_23 = arith.constant 0 : index
    %c0_24 = arith.constant 0 : index
    %76 = vector.load %arg6[%c0_23, %c0_24] : memref<80x1xf32, #tpu.memory_space<vmem>>, vector<80x1xf32>
    %77 = vector.broadcast %76 : vector<80x1xf32> to vector<80x32xf32>
    %78 = arith.mulf %75, %77 : vector<80x32xf32>
    %cst_25 = arith.constant 0.000000e+00 : bf16
    %79 = vector.broadcast %cst_25 : bf16 to vector<11x32xbf16>
    %c0_26 = arith.constant 0 : index
    %c0_27 = arith.constant 0 : index
    %c0_28 = arith.constant 0 : index
    %c0_29 = arith.constant 0 : index
    %80 = vector.load %arg7[%c0_26, %c0_27, %c0_28, %c0_29] : memref<1x1x110x32xbf16, #tpu.memory_space<vmem>>, vector<1x1x11x32xbf16>
    %81 = vector.shape_cast %80 : vector<1x1x11x32xbf16> to vector<11x32xbf16>
    %82 = vector.shape_cast %79 : vector<11x32xbf16> to vector<1x1x11x32xbf16>
    tpu.vector_store %arg7[%c0_26, %c0_27, %c0_28, %c0_29], %82 {strides = array<i32>} : memref<1x1x110x32xbf16, #tpu.memory_space<vmem>>, vector<1x1x11x32xbf16>,
    %83 = arith.truncf %78 : vector<80x32xf32> to vector<80x32xbf16>
    %c0_30 = arith.constant 0 : index
    %c0_31 = arith.constant 0 : index
    %c11 = arith.constant 11 : index
    %c0_32 = arith.constant 0 : index
    %84 = vector.load %arg7[%c0_30, %c0_31, %c11, %c0_32] : memref<1x1x110x32xbf16, #tpu.memory_space<vmem>>, vector<1x1x80x32xbf16>
    %85 = vector.shape_cast %84 : vector<1x1x80x32xbf16> to vector<80x32xbf16>
    %86 = vector.shape_cast %83 : vector<80x32xbf16> to vector<1x1x80x32xbf16>
    tpu.vector_store %arg7[%c0_30, %c0_31, %c11, %c0_32], %86 {strides = array<i32>} : memref<1x1x110x32xbf16, #tpu.memory_space<vmem>>, vector<1x1x80x32xbf16>,
    %cst_33 = arith.constant 0.000000e+00 : bf16
    %87 = vector.broadcast %cst_33 : bf16 to vector<19x32xbf16>
    %c0_34 = arith.constant 0 : index
    %c0_35 = arith.constant 0 : index
    %c91 = arith.constant 91 : index
    %c0_36 = arith.constant 0 : index
    %88 = vector.load %arg7[%c0_34, %c0_35, %c91, %c0_36] : memref<1x1x110x32xbf16, #tpu.memory_space<vmem>>, vector<1x1x19x32xbf16>
    %89 = vector.shape_cast %88 : vector<1x1x19x32xbf16> to vector<19x32xbf16>
    %90 = vector.shape_cast %87 : vector<19x32xbf16> to vector<1x1x19x32xbf16>
    tpu.vector_store %arg7[%c0_34, %c0_35, %c91, %c0_36], %90 {strides = array<i32>} : memref<1x1x110x32xbf16, #tpu.memory_space<vmem>>, vector<1x1x19x32xbf16>,
    %cst_37 = arith.constant dense<0.000000e+00> : vector<32xf32>
    %91 = vector.multi_reduction <add>, %78, %cst_37 [0] : vector<80x32xf32> to vector<32xf32>
    %92 = vector.shape_cast %91 : vector<32xf32> to vector<1x32xf32>
    %c0_38 = arith.constant 0 : index
    %c0_39 = arith.constant 0 : index
    %c0_40 = arith.constant 0 : index
    %c0_41 = arith.constant 0 : index
    %93 = vector.load %arg8[%c0_38, %c0_39, %c0_40, %c0_41] : memref<1x1x2x32xf32, #tpu.memory_space<vmem>>, vector<1x1x1x32xf32>
    %94 = vector.shape_cast %93 : vector<1x1x1x32xf32> to vector<1x32xf32>
    %95 = vector.shape_cast %92 : vector<1x32xf32> to vector<1x1x1x32xf32>
    tpu.vector_store %arg8[%c0_38, %c0_39, %c0_40, %c0_41], %95 {strides = array<i32>} : memref<1x1x2x32xf32, #tpu.memory_space<vmem>>, vector<1x1x1x32xf32>,
    %96 = arith.mulf %78, %78 : vector<80x32xf32>
    %cst_42 = arith.constant dense<0.000000e+00> : vector<32xf32>
    %97 = vector.multi_reduction <add>, %96, %cst_42 [0] : vector<80x32xf32> to vector<32xf32>
    %98 = vector.shape_cast %97 : vector<32xf32> to vector<1x32xf32>
    %c0_43 = arith.constant 0 : index
    %c0_44 = arith.constant 0 : index
    %c1 = arith.constant 1 : index
    %c0_45 = arith.constant 0 : index
    %99 = vector.load %arg8[%c0_43, %c0_44, %c1, %c0_45] : memref<1x1x2x32xf32, #tpu.memory_space<vmem>>, vector<1x1x1x32xf32>
    %100 = vector.shape_cast %99 : vector<1x1x1x32xf32> to vector<1x32xf32>
    %101 = vector.shape_cast %98 : vector<1x32xf32> to vector<1x1x1x32xf32>
    tpu.vector_store %arg8[%c0_43, %c0_44, %c1, %c0_45], %101 {strides = array<i32>} : memref<1x1x2x32xf32, #tpu.memory_space<vmem>>, vector<1x1x1x32xf32>,
    return
  }
  func.func @transform_0(%arg0: i32, %arg1: i32) -> (i32, i32, i32, i32) {
    %c0_i32 = arith.constant 0 : i32
    %0 = arith.addi %arg1, %c0_i32 : i32
    %c1_i32 = arith.constant 1 : i32
    %1 = arith.subi %0, %c1_i32 : i32
    %c0_i32_0 = arith.constant 0 : i32
    %c3_i32 = arith.constant 3 : i32
    %2 = arith.maxsi %c0_i32_0, %1 : i32
    %3 = arith.minsi %c3_i32, %2 : i32
    %c0_i32_1 = arith.constant 0 : i32
    %c0_i32_2 = arith.constant 0 : i32
    %c0_i32_3 = arith.constant 0 : i32
    return %arg0, %3, %c0_i32_1, %c0_i32_2 : i32, i32, i32, i32
  }
  func.func @transform_1(%arg0: i32, %arg1: i32) -> (i32, i32, i32, i32) {
    %c1_i32 = arith.constant 1 : i32
    %0 = arith.addi %arg1, %c1_i32 : i32
    %c1_i32_0 = arith.constant 1 : i32
    %1 = arith.subi %0, %c1_i32_0 : i32
    %c0_i32 = arith.constant 0 : i32
    %c3_i32 = arith.constant 3 : i32
    %2 = arith.maxsi %c0_i32, %1 : i32
    %3 = arith.minsi %c3_i32, %2 : i32
    %c0_i32_1 = arith.constant 0 : i32
    %c0_i32_2 = arith.constant 0 : i32
    %c0_i32_3 = arith.constant 0 : i32
    return %arg0, %3, %c0_i32_1, %c0_i32_2 : i32, i32, i32, i32
  }
  func.func @transform_2(%arg0: i32, %arg1: i32) -> (i32, i32, i32, i32) {
    %c2_i32 = arith.constant 2 : i32
    %0 = arith.addi %arg1, %c2_i32 : i32
    %c1_i32 = arith.constant 1 : i32
    %1 = arith.subi %0, %c1_i32 : i32
    %c0_i32 = arith.constant 0 : i32
    %c3_i32 = arith.constant 3 : i32
    %2 = arith.maxsi %c0_i32, %1 : i32
    %3 = arith.minsi %c3_i32, %2 : i32
    %c0_i32_0 = arith.constant 0 : i32
    %c0_i32_1 = arith.constant 0 : i32
    %c0_i32_2 = arith.constant 0 : i32
    return %arg0, %3, %c0_i32_0, %c0_i32_1 : i32, i32, i32, i32
  }
  func.func @transform_3(%arg0: i32, %arg1: i32) -> (i32, i32) {
    %c0_i32 = arith.constant 0 : i32
    %c0_i32_0 = arith.constant 0 : i32
    %c0_i32_1 = arith.constant 0 : i32
    return %c0_i32, %c0_i32_0 : i32, i32
  }
  func.func @transform_4(%arg0: i32, %arg1: i32) -> (i32, i32) {
    %c0_i32 = arith.constant 0 : i32
    %c0_i32_0 = arith.constant 0 : i32
    %c0_i32_1 = arith.constant 0 : i32
    return %c0_i32, %c0_i32_0 : i32, i32
  }
  func.func @transform_5(%arg0: i32, %arg1: i32) -> (i32, i32, i32, i32) {
    %c0_i32 = arith.constant 0 : i32
    %c0_i32_0 = arith.constant 0 : i32
    %c0_i32_1 = arith.constant 0 : i32
    return %arg0, %arg1, %c0_i32, %c0_i32_0 : i32, i32, i32, i32
  }
  func.func @transform_6(%arg0: i32, %arg1: i32) -> (i32, i32, i32, i32) {
    %c0_i32 = arith.constant 0 : i32
    %c0_i32_0 = arith.constant 0 : i32
    %c0_i32_1 = arith.constant 0 : i32
    return %arg0, %arg1, %c0_i32, %c0_i32_0 : i32, i32, i32, i32
  }
}

module attributes {stable_mosaic.version = 11 : i64} {
  func.func @kernel(%arg0: i32, %arg1: i32, %arg2: memref<1x1x110x32xbf16, #tpu.memory_space<vmem>>, %arg3: memref<1x1x110x32xbf16, #tpu.memory_space<vmem>>, %arg4: memref<1x1x110x32xbf16, #tpu.memory_space<vmem>>, %arg5: memref<864x32xbf16, #tpu.memory_space<vmem>>, %arg6: memref<80x1xf32, #tpu.memory_space<vmem>>, %arg7: memref<110x1xf32, #tpu.memory_space<vmem>>, %arg8: memref<1x1x32xf32, #tpu.memory_space<vmem>>, %arg9: memref<1x1x32xf32, #tpu.memory_space<vmem>>, %arg10: memref<1x1x110x32xbf16, #tpu.memory_space<vmem>>, %arg11: memref<1x1x2x32xf32, #tpu.memory_space<vmem>>) attributes {dimension_semantics = [#tpu.dimension_semantics<parallel>, #tpu.dimension_semantics<parallel>], iteration_bounds = array<i64: 2, 4>, scalar_prefetch = 0 : i64, scratch_operands = 0 : i64, tpu.core_type = #tpu.core_type<tc>, window_params = [{transform_indices = @transform_0, window_bounds = array<i64: 1, 1, 110, 32>}, {transform_indices = @transform_1, window_bounds = array<i64: 1, 1, 110, 32>}, {transform_indices = @transform_2, window_bounds = array<i64: 1, 1, 110, 32>}, {pipeline_mode = #tpu.pipeline_mode<synchronous>, transform_indices = @transform_3, window_bounds = array<i64: 864, 32>}, {pipeline_mode = #tpu.pipeline_mode<synchronous>, transform_indices = @transform_4, window_bounds = array<i64: 80, 1>}, {pipeline_mode = #tpu.pipeline_mode<synchronous>, transform_indices = @transform_5, window_bounds = array<i64: 110, 1>}, {transform_indices = @transform_6, window_bounds = array<i64: 1, 1, 32>}, {transform_indices = @transform_7, window_bounds = array<i64: 1, 1, 32>}, {transform_indices = @transform_8, window_bounds = array<i64: 1, 1, 110, 32>}, {transform_indices = @transform_9, window_bounds = array<i64: 1, 1, 2, 32>}]} {
    %cst = arith.constant 0.000000e+00 : f32
    %0 = vector.broadcast %cst : f32 to vector<80x32xf32>
    %c-1_i32 = arith.constant -1 : i32
    %1 = arith.addi %arg1, %c-1_i32 : i32
    %c0_i32 = arith.constant 0 : i32
    %2 = arith.cmpi sge, %1, %c0_i32 : i32
    %c3_i32 = arith.constant 3 : i32
    %3 = arith.cmpi sle, %1, %c3_i32 : i32
    %4 = arith.andi %2, %3 : i1
    %c0 = arith.constant 0 : index
    %c0_0 = arith.constant 0 : index
    %c0_1 = arith.constant 0 : index
    %c0_2 = arith.constant 0 : index
    %5 = vector.load %arg2[%c0, %c0_0, %c0_1, %c0_2] : memref<1x1x110x32xbf16, #tpu.memory_space<vmem>>, vector<1x1x110x32xbf16>
    %6 = vector.shape_cast %5 : vector<1x1x110x32xbf16> to vector<110x32xbf16>
    %7 = arith.extf %6 : vector<110x32xbf16> to vector<110x32xf32>
    %c0_3 = arith.constant 0 : index
    %c0_4 = arith.constant 0 : index
    %c0_5 = arith.constant 0 : index
    %8 = vector.load %arg8[%c0_3, %c0_4, %c0_5] : memref<1x1x32xf32, #tpu.memory_space<vmem>>, vector<1x1x32xf32>
    %9 = vector.shape_cast %8 : vector<1x1x32xf32> to vector<1x32xf32>
    %10 = vector.broadcast %9 : vector<1x32xf32> to vector<110x32xf32>
    %11 = arith.mulf %7, %10 : vector<110x32xf32>
    %c0_6 = arith.constant 0 : index
    %c0_7 = arith.constant 0 : index
    %c0_8 = arith.constant 0 : index
    %12 = vector.load %arg9[%c0_6, %c0_7, %c0_8] : memref<1x1x32xf32, #tpu.memory_space<vmem>>, vector<1x1x32xf32>
    %13 = vector.shape_cast %12 : vector<1x1x32xf32> to vector<1x32xf32>
    %14 = vector.broadcast %13 : vector<1x32xf32> to vector<110x32xf32>
    %15 = arith.addf %11, %14 : vector<110x32xf32>
    %cst_9 = arith.constant 0.000000e+00 : f32
    %16 = vector.broadcast %cst_9 : f32 to vector<110x32xf32>
    %17 = arith.maximumf %15, %16 : vector<110x32xf32>
    %c0_10 = arith.constant 0 : index
    %c0_11 = arith.constant 0 : index
    %18 = vector.load %arg7[%c0_10, %c0_11] : memref<110x1xf32, #tpu.memory_space<vmem>>, vector<110x1xf32>
    %19 = vector.broadcast %18 : vector<110x1xf32> to vector<110x32xf32>
    %20 = arith.mulf %17, %19 : vector<110x32xf32>
    %21 = arith.extui %4 : i1 to i32
    %22 = arith.sitofp %21 : i32 to f32
    %23 = vector.broadcast %22 : f32 to vector<110x32xf32>
    %24 = arith.mulf %20, %23 : vector<110x32xf32>
    %25 = vector.extract_strided_slice %24 {offsets = [0, 0], sizes = [80, 32], strides = [1, 1]} : vector<110x32xf32> to vector<80x32xf32>
    %26 = vector.extract_strided_slice %24 {offsets = [1, 0], sizes = [80, 32], strides = [1, 1]} : vector<110x32xf32> to vector<80x32xf32>
    %27 = vector.extract_strided_slice %24 {offsets = [2, 0], sizes = [80, 32], strides = [1, 1]} : vector<110x32xf32> to vector<80x32xf32>
    %28 = vector.extract_strided_slice %24 {offsets = [10, 0], sizes = [80, 32], strides = [1, 1]} : vector<110x32xf32> to vector<80x32xf32>
    %29 = vector.extract_strided_slice %24 {offsets = [11, 0], sizes = [80, 32], strides = [1, 1]} : vector<110x32xf32> to vector<80x32xf32>
    %30 = vector.extract_strided_slice %24 {offsets = [12, 0], sizes = [80, 32], strides = [1, 1]} : vector<110x32xf32> to vector<80x32xf32>
    %31 = vector.extract_strided_slice %24 {offsets = [20, 0], sizes = [80, 32], strides = [1, 1]} : vector<110x32xf32> to vector<80x32xf32>
    %32 = vector.extract_strided_slice %24 {offsets = [21, 0], sizes = [80, 32], strides = [1, 1]} : vector<110x32xf32> to vector<80x32xf32>
    %33 = vector.extract_strided_slice %24 {offsets = [22, 0], sizes = [80, 32], strides = [1, 1]} : vector<110x32xf32> to vector<80x32xf32>
    %34 = tpu.concatenate %25, %26, %27, %28, %29, %30, %31, %32, %33 in 1 : vector<80x32xf32>, vector<80x32xf32>, vector<80x32xf32>, vector<80x32xf32>, vector<80x32xf32>, vector<80x32xf32>, vector<80x32xf32>, vector<80x32xf32>, vector<80x32xf32> -> vector<80x288xf32>
    %35 = arith.truncf %34 : vector<80x288xf32> to vector<80x288xbf16>
    %c0_12 = arith.constant 0 : index
    %c0_13 = arith.constant 0 : index
    %36 = vector.load %arg5[%c0_12, %c0_13] : memref<864x32xbf16, #tpu.memory_space<vmem>>, vector<288x32xbf16>
    %cst_14 = arith.constant dense<0.000000e+00> : vector<80x32xf32>
    %37 = tpu.matmul %35, %36, %cst_14 {dimension_numbers = #tpu.dot_dimension_numbers<[1], [0], [0], [1], [0, 0, 1, 1], [], []>} : vector<80x288xbf16>, vector<288x32xbf16>, vector<80x32xf32> -> vector<80x32xf32>
    %38 = arith.addf %0, %37 : vector<80x32xf32>
    %c0_i32_15 = arith.constant 0 : i32
    %39 = arith.addi %arg1, %c0_i32_15 : i32
    %c0_i32_16 = arith.constant 0 : i32
    %40 = arith.cmpi sge, %39, %c0_i32_16 : i32
    %c3_i32_17 = arith.constant 3 : i32
    %41 = arith.cmpi sle, %39, %c3_i32_17 : i32
    %42 = arith.andi %40, %41 : i1
    %c0_18 = arith.constant 0 : index
    %c0_19 = arith.constant 0 : index
    %c0_20 = arith.constant 0 : index
    %c0_21 = arith.constant 0 : index
    %43 = vector.load %arg3[%c0_18, %c0_19, %c0_20, %c0_21] : memref<1x1x110x32xbf16, #tpu.memory_space<vmem>>, vector<1x1x110x32xbf16>
    %44 = vector.shape_cast %43 : vector<1x1x110x32xbf16> to vector<110x32xbf16>
    %45 = arith.extf %44 : vector<110x32xbf16> to vector<110x32xf32>
    %c0_22 = arith.constant 0 : index
    %c0_23 = arith.constant 0 : index
    %c0_24 = arith.constant 0 : index
    %46 = vector.load %arg8[%c0_22, %c0_23, %c0_24] : memref<1x1x32xf32, #tpu.memory_space<vmem>>, vector<1x1x32xf32>
    %47 = vector.shape_cast %46 : vector<1x1x32xf32> to vector<1x32xf32>
    %48 = vector.broadcast %47 : vector<1x32xf32> to vector<110x32xf32>
    %49 = arith.mulf %45, %48 : vector<110x32xf32>
    %c0_25 = arith.constant 0 : index
    %c0_26 = arith.constant 0 : index
    %c0_27 = arith.constant 0 : index
    %50 = vector.load %arg9[%c0_25, %c0_26, %c0_27] : memref<1x1x32xf32, #tpu.memory_space<vmem>>, vector<1x1x32xf32>
    %51 = vector.shape_cast %50 : vector<1x1x32xf32> to vector<1x32xf32>
    %52 = vector.broadcast %51 : vector<1x32xf32> to vector<110x32xf32>
    %53 = arith.addf %49, %52 : vector<110x32xf32>
    %cst_28 = arith.constant 0.000000e+00 : f32
    %54 = vector.broadcast %cst_28 : f32 to vector<110x32xf32>
    %55 = arith.maximumf %53, %54 : vector<110x32xf32>
    %c0_29 = arith.constant 0 : index
    %c0_30 = arith.constant 0 : index
    %56 = vector.load %arg7[%c0_29, %c0_30] : memref<110x1xf32, #tpu.memory_space<vmem>>, vector<110x1xf32>
    %57 = vector.broadcast %56 : vector<110x1xf32> to vector<110x32xf32>
    %58 = arith.mulf %55, %57 : vector<110x32xf32>
    %59 = arith.extui %42 : i1 to i32
    %60 = arith.sitofp %59 : i32 to f32
    %61 = vector.broadcast %60 : f32 to vector<110x32xf32>
    %62 = arith.mulf %58, %61 : vector<110x32xf32>
    %63 = vector.extract_strided_slice %62 {offsets = [0, 0], sizes = [80, 32], strides = [1, 1]} : vector<110x32xf32> to vector<80x32xf32>
    %64 = vector.extract_strided_slice %62 {offsets = [1, 0], sizes = [80, 32], strides = [1, 1]} : vector<110x32xf32> to vector<80x32xf32>
    %65 = vector.extract_strided_slice %62 {offsets = [2, 0], sizes = [80, 32], strides = [1, 1]} : vector<110x32xf32> to vector<80x32xf32>
    %66 = vector.extract_strided_slice %62 {offsets = [10, 0], sizes = [80, 32], strides = [1, 1]} : vector<110x32xf32> to vector<80x32xf32>
    %67 = vector.extract_strided_slice %62 {offsets = [11, 0], sizes = [80, 32], strides = [1, 1]} : vector<110x32xf32> to vector<80x32xf32>
    %68 = vector.extract_strided_slice %62 {offsets = [12, 0], sizes = [80, 32], strides = [1, 1]} : vector<110x32xf32> to vector<80x32xf32>
    %69 = vector.extract_strided_slice %62 {offsets = [20, 0], sizes = [80, 32], strides = [1, 1]} : vector<110x32xf32> to vector<80x32xf32>
    %70 = vector.extract_strided_slice %62 {offsets = [21, 0], sizes = [80, 32], strides = [1, 1]} : vector<110x32xf32> to vector<80x32xf32>
    %71 = vector.extract_strided_slice %62 {offsets = [22, 0], sizes = [80, 32], strides = [1, 1]} : vector<110x32xf32> to vector<80x32xf32>
    %72 = tpu.concatenate %63, %64, %65, %66, %67, %68, %69, %70, %71 in 1 : vector<80x32xf32>, vector<80x32xf32>, vector<80x32xf32>, vector<80x32xf32>, vector<80x32xf32>, vector<80x32xf32>, vector<80x32xf32>, vector<80x32xf32>, vector<80x32xf32> -> vector<80x288xf32>
    %73 = arith.truncf %72 : vector<80x288xf32> to vector<80x288xbf16>
    %c288 = arith.constant 288 : index
    %c0_31 = arith.constant 0 : index
    %74 = vector.load %arg5[%c288, %c0_31] : memref<864x32xbf16, #tpu.memory_space<vmem>>, vector<288x32xbf16>
    %cst_32 = arith.constant dense<0.000000e+00> : vector<80x32xf32>
    %75 = tpu.matmul %73, %74, %cst_32 {dimension_numbers = #tpu.dot_dimension_numbers<[1], [0], [0], [1], [0, 0, 1, 1], [], []>} : vector<80x288xbf16>, vector<288x32xbf16>, vector<80x32xf32> -> vector<80x32xf32>
    %76 = arith.addf %38, %75 : vector<80x32xf32>
    %c1_i32 = arith.constant 1 : i32
    %77 = arith.addi %arg1, %c1_i32 : i32
    %c0_i32_33 = arith.constant 0 : i32
    %78 = arith.cmpi sge, %77, %c0_i32_33 : i32
    %c3_i32_34 = arith.constant 3 : i32
    %79 = arith.cmpi sle, %77, %c3_i32_34 : i32
    %80 = arith.andi %78, %79 : i1
    %c0_35 = arith.constant 0 : index
    %c0_36 = arith.constant 0 : index
    %c0_37 = arith.constant 0 : index
    %c0_38 = arith.constant 0 : index
    %81 = vector.load %arg4[%c0_35, %c0_36, %c0_37, %c0_38] : memref<1x1x110x32xbf16, #tpu.memory_space<vmem>>, vector<1x1x110x32xbf16>
    %82 = vector.shape_cast %81 : vector<1x1x110x32xbf16> to vector<110x32xbf16>
    %83 = arith.extf %82 : vector<110x32xbf16> to vector<110x32xf32>
    %c0_39 = arith.constant 0 : index
    %c0_40 = arith.constant 0 : index
    %c0_41 = arith.constant 0 : index
    %84 = vector.load %arg8[%c0_39, %c0_40, %c0_41] : memref<1x1x32xf32, #tpu.memory_space<vmem>>, vector<1x1x32xf32>
    %85 = vector.shape_cast %84 : vector<1x1x32xf32> to vector<1x32xf32>
    %86 = vector.broadcast %85 : vector<1x32xf32> to vector<110x32xf32>
    %87 = arith.mulf %83, %86 : vector<110x32xf32>
    %c0_42 = arith.constant 0 : index
    %c0_43 = arith.constant 0 : index
    %c0_44 = arith.constant 0 : index
    %88 = vector.load %arg9[%c0_42, %c0_43, %c0_44] : memref<1x1x32xf32, #tpu.memory_space<vmem>>, vector<1x1x32xf32>
    %89 = vector.shape_cast %88 : vector<1x1x32xf32> to vector<1x32xf32>
    %90 = vector.broadcast %89 : vector<1x32xf32> to vector<110x32xf32>
    %91 = arith.addf %87, %90 : vector<110x32xf32>
    %cst_45 = arith.constant 0.000000e+00 : f32
    %92 = vector.broadcast %cst_45 : f32 to vector<110x32xf32>
    %93 = arith.maximumf %91, %92 : vector<110x32xf32>
    %c0_46 = arith.constant 0 : index
    %c0_47 = arith.constant 0 : index
    %94 = vector.load %arg7[%c0_46, %c0_47] : memref<110x1xf32, #tpu.memory_space<vmem>>, vector<110x1xf32>
    %95 = vector.broadcast %94 : vector<110x1xf32> to vector<110x32xf32>
    %96 = arith.mulf %93, %95 : vector<110x32xf32>
    %97 = arith.extui %80 : i1 to i32
    %98 = arith.sitofp %97 : i32 to f32
    %99 = vector.broadcast %98 : f32 to vector<110x32xf32>
    %100 = arith.mulf %96, %99 : vector<110x32xf32>
    %101 = vector.extract_strided_slice %100 {offsets = [0, 0], sizes = [80, 32], strides = [1, 1]} : vector<110x32xf32> to vector<80x32xf32>
    %102 = vector.extract_strided_slice %100 {offsets = [1, 0], sizes = [80, 32], strides = [1, 1]} : vector<110x32xf32> to vector<80x32xf32>
    %103 = vector.extract_strided_slice %100 {offsets = [2, 0], sizes = [80, 32], strides = [1, 1]} : vector<110x32xf32> to vector<80x32xf32>
    %104 = vector.extract_strided_slice %100 {offsets = [10, 0], sizes = [80, 32], strides = [1, 1]} : vector<110x32xf32> to vector<80x32xf32>
    %105 = vector.extract_strided_slice %100 {offsets = [11, 0], sizes = [80, 32], strides = [1, 1]} : vector<110x32xf32> to vector<80x32xf32>
    %106 = vector.extract_strided_slice %100 {offsets = [12, 0], sizes = [80, 32], strides = [1, 1]} : vector<110x32xf32> to vector<80x32xf32>
    %107 = vector.extract_strided_slice %100 {offsets = [20, 0], sizes = [80, 32], strides = [1, 1]} : vector<110x32xf32> to vector<80x32xf32>
    %108 = vector.extract_strided_slice %100 {offsets = [21, 0], sizes = [80, 32], strides = [1, 1]} : vector<110x32xf32> to vector<80x32xf32>
    %109 = vector.extract_strided_slice %100 {offsets = [22, 0], sizes = [80, 32], strides = [1, 1]} : vector<110x32xf32> to vector<80x32xf32>
    %110 = tpu.concatenate %101, %102, %103, %104, %105, %106, %107, %108, %109 in 1 : vector<80x32xf32>, vector<80x32xf32>, vector<80x32xf32>, vector<80x32xf32>, vector<80x32xf32>, vector<80x32xf32>, vector<80x32xf32>, vector<80x32xf32>, vector<80x32xf32> -> vector<80x288xf32>
    %111 = arith.truncf %110 : vector<80x288xf32> to vector<80x288xbf16>
    %c576 = arith.constant 576 : index
    %c0_48 = arith.constant 0 : index
    %112 = vector.load %arg5[%c576, %c0_48] : memref<864x32xbf16, #tpu.memory_space<vmem>>, vector<288x32xbf16>
    %cst_49 = arith.constant dense<0.000000e+00> : vector<80x32xf32>
    %113 = tpu.matmul %111, %112, %cst_49 {dimension_numbers = #tpu.dot_dimension_numbers<[1], [0], [0], [1], [0, 0, 1, 1], [], []>} : vector<80x288xbf16>, vector<288x32xbf16>, vector<80x32xf32> -> vector<80x32xf32>
    %114 = arith.addf %76, %113 : vector<80x32xf32>
    %c0_50 = arith.constant 0 : index
    %c0_51 = arith.constant 0 : index
    %115 = vector.load %arg6[%c0_50, %c0_51] : memref<80x1xf32, #tpu.memory_space<vmem>>, vector<80x1xf32>
    %116 = vector.broadcast %115 : vector<80x1xf32> to vector<80x32xf32>
    %117 = arith.mulf %114, %116 : vector<80x32xf32>
    %cst_52 = arith.constant 0.000000e+00 : bf16
    %118 = vector.broadcast %cst_52 : bf16 to vector<11x32xbf16>
    %c0_53 = arith.constant 0 : index
    %c0_54 = arith.constant 0 : index
    %c0_55 = arith.constant 0 : index
    %c0_56 = arith.constant 0 : index
    %119 = vector.load %arg10[%c0_53, %c0_54, %c0_55, %c0_56] : memref<1x1x110x32xbf16, #tpu.memory_space<vmem>>, vector<1x1x11x32xbf16>
    %120 = vector.shape_cast %119 : vector<1x1x11x32xbf16> to vector<11x32xbf16>
    %121 = vector.shape_cast %118 : vector<11x32xbf16> to vector<1x1x11x32xbf16>
    tpu.vector_store %arg10[%c0_53, %c0_54, %c0_55, %c0_56], %121 {strides = array<i32>} : memref<1x1x110x32xbf16, #tpu.memory_space<vmem>>, vector<1x1x11x32xbf16>,
    %122 = arith.truncf %117 : vector<80x32xf32> to vector<80x32xbf16>
    %c0_57 = arith.constant 0 : index
    %c0_58 = arith.constant 0 : index
    %c11 = arith.constant 11 : index
    %c0_59 = arith.constant 0 : index
    %123 = vector.load %arg10[%c0_57, %c0_58, %c11, %c0_59] : memref<1x1x110x32xbf16, #tpu.memory_space<vmem>>, vector<1x1x80x32xbf16>
    %124 = vector.shape_cast %123 : vector<1x1x80x32xbf16> to vector<80x32xbf16>
    %125 = vector.shape_cast %122 : vector<80x32xbf16> to vector<1x1x80x32xbf16>
    tpu.vector_store %arg10[%c0_57, %c0_58, %c11, %c0_59], %125 {strides = array<i32>} : memref<1x1x110x32xbf16, #tpu.memory_space<vmem>>, vector<1x1x80x32xbf16>,
    %cst_60 = arith.constant 0.000000e+00 : bf16
    %126 = vector.broadcast %cst_60 : bf16 to vector<19x32xbf16>
    %c0_61 = arith.constant 0 : index
    %c0_62 = arith.constant 0 : index
    %c91 = arith.constant 91 : index
    %c0_63 = arith.constant 0 : index
    %127 = vector.load %arg10[%c0_61, %c0_62, %c91, %c0_63] : memref<1x1x110x32xbf16, #tpu.memory_space<vmem>>, vector<1x1x19x32xbf16>
    %128 = vector.shape_cast %127 : vector<1x1x19x32xbf16> to vector<19x32xbf16>
    %129 = vector.shape_cast %126 : vector<19x32xbf16> to vector<1x1x19x32xbf16>
    tpu.vector_store %arg10[%c0_61, %c0_62, %c91, %c0_63], %129 {strides = array<i32>} : memref<1x1x110x32xbf16, #tpu.memory_space<vmem>>, vector<1x1x19x32xbf16>,
    %cst_64 = arith.constant dense<0.000000e+00> : vector<32xf32>
    %130 = vector.multi_reduction <add>, %117, %cst_64 [0] : vector<80x32xf32> to vector<32xf32>
    %131 = vector.shape_cast %130 : vector<32xf32> to vector<1x32xf32>
    %c0_65 = arith.constant 0 : index
    %c0_66 = arith.constant 0 : index
    %c0_67 = arith.constant 0 : index
    %c0_68 = arith.constant 0 : index
    %132 = vector.load %arg11[%c0_65, %c0_66, %c0_67, %c0_68] : memref<1x1x2x32xf32, #tpu.memory_space<vmem>>, vector<1x1x1x32xf32>
    %133 = vector.shape_cast %132 : vector<1x1x1x32xf32> to vector<1x32xf32>
    %134 = vector.shape_cast %131 : vector<1x32xf32> to vector<1x1x1x32xf32>
    tpu.vector_store %arg11[%c0_65, %c0_66, %c0_67, %c0_68], %134 {strides = array<i32>} : memref<1x1x2x32xf32, #tpu.memory_space<vmem>>, vector<1x1x1x32xf32>,
    %135 = arith.mulf %117, %117 : vector<80x32xf32>
    %cst_69 = arith.constant dense<0.000000e+00> : vector<32xf32>
    %136 = vector.multi_reduction <add>, %135, %cst_69 [0] : vector<80x32xf32> to vector<32xf32>
    %137 = vector.shape_cast %136 : vector<32xf32> to vector<1x32xf32>
    %c0_70 = arith.constant 0 : index
    %c0_71 = arith.constant 0 : index
    %c1 = arith.constant 1 : index
    %c0_72 = arith.constant 0 : index
    %138 = vector.load %arg11[%c0_70, %c0_71, %c1, %c0_72] : memref<1x1x2x32xf32, #tpu.memory_space<vmem>>, vector<1x1x1x32xf32>
    %139 = vector.shape_cast %138 : vector<1x1x1x32xf32> to vector<1x32xf32>
    %140 = vector.shape_cast %137 : vector<1x32xf32> to vector<1x1x1x32xf32>
    tpu.vector_store %arg11[%c0_70, %c0_71, %c1, %c0_72], %140 {strides = array<i32>} : memref<1x1x2x32xf32, #tpu.memory_space<vmem>>, vector<1x1x1x32xf32>,
    return
  }
  func.func @transform_0(%arg0: i32, %arg1: i32) -> (i32, i32, i32, i32) {
    %c0_i32 = arith.constant 0 : i32
    %0 = arith.addi %arg1, %c0_i32 : i32
    %c1_i32 = arith.constant 1 : i32
    %1 = arith.subi %0, %c1_i32 : i32
    %c0_i32_0 = arith.constant 0 : i32
    %c3_i32 = arith.constant 3 : i32
    %2 = arith.maxsi %c0_i32_0, %1 : i32
    %3 = arith.minsi %c3_i32, %2 : i32
    %c0_i32_1 = arith.constant 0 : i32
    %c0_i32_2 = arith.constant 0 : i32
    %c0_i32_3 = arith.constant 0 : i32
    return %arg0, %3, %c0_i32_1, %c0_i32_2 : i32, i32, i32, i32
  }
  func.func @transform_1(%arg0: i32, %arg1: i32) -> (i32, i32, i32, i32) {
    %c1_i32 = arith.constant 1 : i32
    %0 = arith.addi %arg1, %c1_i32 : i32
    %c1_i32_0 = arith.constant 1 : i32
    %1 = arith.subi %0, %c1_i32_0 : i32
    %c0_i32 = arith.constant 0 : i32
    %c3_i32 = arith.constant 3 : i32
    %2 = arith.maxsi %c0_i32, %1 : i32
    %3 = arith.minsi %c3_i32, %2 : i32
    %c0_i32_1 = arith.constant 0 : i32
    %c0_i32_2 = arith.constant 0 : i32
    %c0_i32_3 = arith.constant 0 : i32
    return %arg0, %3, %c0_i32_1, %c0_i32_2 : i32, i32, i32, i32
  }
  func.func @transform_2(%arg0: i32, %arg1: i32) -> (i32, i32, i32, i32) {
    %c2_i32 = arith.constant 2 : i32
    %0 = arith.addi %arg1, %c2_i32 : i32
    %c1_i32 = arith.constant 1 : i32
    %1 = arith.subi %0, %c1_i32 : i32
    %c0_i32 = arith.constant 0 : i32
    %c3_i32 = arith.constant 3 : i32
    %2 = arith.maxsi %c0_i32, %1 : i32
    %3 = arith.minsi %c3_i32, %2 : i32
    %c0_i32_0 = arith.constant 0 : i32
    %c0_i32_1 = arith.constant 0 : i32
    %c0_i32_2 = arith.constant 0 : i32
    return %arg0, %3, %c0_i32_0, %c0_i32_1 : i32, i32, i32, i32
  }
  func.func @transform_3(%arg0: i32, %arg1: i32) -> (i32, i32) {
    %c0_i32 = arith.constant 0 : i32
    %c0_i32_0 = arith.constant 0 : i32
    %c0_i32_1 = arith.constant 0 : i32
    return %c0_i32, %c0_i32_0 : i32, i32
  }
  func.func @transform_4(%arg0: i32, %arg1: i32) -> (i32, i32) {
    %c0_i32 = arith.constant 0 : i32
    %c0_i32_0 = arith.constant 0 : i32
    %c0_i32_1 = arith.constant 0 : i32
    return %c0_i32, %c0_i32_0 : i32, i32
  }
  func.func @transform_5(%arg0: i32, %arg1: i32) -> (i32, i32) {
    %c0_i32 = arith.constant 0 : i32
    %c0_i32_0 = arith.constant 0 : i32
    %c0_i32_1 = arith.constant 0 : i32
    return %c0_i32, %c0_i32_0 : i32, i32
  }
  func.func @transform_6(%arg0: i32, %arg1: i32) -> (i32, i32, i32) {
    %c0_i32 = arith.constant 0 : i32
    %c0_i32_0 = arith.constant 0 : i32
    %c0_i32_1 = arith.constant 0 : i32
    return %arg0, %c0_i32, %c0_i32_0 : i32, i32, i32
  }
  func.func @transform_7(%arg0: i32, %arg1: i32) -> (i32, i32, i32) {
    %c0_i32 = arith.constant 0 : i32
    %c0_i32_0 = arith.constant 0 : i32
    %c0_i32_1 = arith.constant 0 : i32
    return %arg0, %c0_i32, %c0_i32_0 : i32, i32, i32
  }
  func.func @transform_8(%arg0: i32, %arg1: i32) -> (i32, i32, i32, i32) {
    %c0_i32 = arith.constant 0 : i32
    %c0_i32_0 = arith.constant 0 : i32
    %c0_i32_1 = arith.constant 0 : i32
    return %arg0, %arg1, %c0_i32, %c0_i32_0 : i32, i32, i32, i32
  }
  func.func @transform_9(%arg0: i32, %arg1: i32) -> (i32, i32, i32, i32) {
    %c0_i32 = arith.constant 0 : i32
    %c0_i32_0 = arith.constant 0 : i32
    %c0_i32_1 = arith.constant 0 : i32
    return %arg0, %arg1, %c0_i32, %c0_i32_0 : i32, i32, i32, i32
  }
}

module attributes {stable_mosaic.version = 11 : i64} {
  func.func @kernel(%arg0: i32, %arg1: memref<1x4x11x320xbf16, #tpu.memory_space<vmem>>, %arg2: memref<1x4x11x320xbf16, #tpu.memory_space<vmem>>, %arg3: memref<1x1x320xf32, #tpu.memory_space<vmem>>, %arg4: memref<1x1x320xf32, #tpu.memory_space<vmem>>, %arg5: memref<1x4x11x320xf32, #tpu.memory_space<vmem>>) attributes {dimension_semantics = [#tpu.dimension_semantics<parallel>], iteration_bounds = array<i64: 2>, scalar_prefetch = 0 : i64, scratch_operands = 0 : i64, tpu.core_type = #tpu.core_type<tc>, window_params = [{transform_indices = @transform_0, window_bounds = array<i64: 1, 4, 11, 320>}, {transform_indices = @transform_1, window_bounds = array<i64: 1, 4, 11, 320>}, {transform_indices = @transform_2, window_bounds = array<i64: 1, 1, 320>}, {transform_indices = @transform_3, window_bounds = array<i64: 1, 1, 320>}, {transform_indices = @transform_4, window_bounds = array<i64: 1, 4, 11, 320>}]} {
    %c0 = arith.constant 0 : index
    %c0_0 = arith.constant 0 : index
    %c0_1 = arith.constant 0 : index
    %c0_2 = arith.constant 0 : index
    %0 = vector.load %arg1[%c0, %c0_0, %c0_1, %c0_2] : memref<1x4x11x320xbf16, #tpu.memory_space<vmem>>, vector<1x4x11x320xbf16>
    %1 = vector.shape_cast %0 : vector<1x4x11x320xbf16> to vector<4x11x320xbf16>
    %2 = arith.extf %1 : vector<4x11x320xbf16> to vector<4x11x320xf32>
    %c0_3 = arith.constant 0 : index
    %c0_4 = arith.constant 0 : index
    %c0_5 = arith.constant 0 : index
    %3 = vector.load %arg3[%c0_3, %c0_4, %c0_5] : memref<1x1x320xf32, #tpu.memory_space<vmem>>, vector<1x1x320xf32>
    %4 = vector.shape_cast %3 : vector<1x1x320xf32> to vector<1x320xf32>
    %5 = vector.shape_cast %4 : vector<1x320xf32> to vector<1x1x320xf32>
    %6 = vector.broadcast %5 : vector<1x1x320xf32> to vector<4x11x320xf32>
    %7 = arith.mulf %2, %6 : vector<4x11x320xf32>
    %c0_6 = arith.constant 0 : index
    %c0_7 = arith.constant 0 : index
    %c0_8 = arith.constant 0 : index
    %8 = vector.load %arg4[%c0_6, %c0_7, %c0_8] : memref<1x1x320xf32, #tpu.memory_space<vmem>>, vector<1x1x320xf32>
    %9 = vector.shape_cast %8 : vector<1x1x320xf32> to vector<1x320xf32>
    %10 = vector.shape_cast %9 : vector<1x320xf32> to vector<1x1x320xf32>
    %11 = vector.broadcast %10 : vector<1x1x320xf32> to vector<4x11x320xf32>
    %12 = arith.addf %7, %11 : vector<4x11x320xf32>
    %c0_9 = arith.constant 0 : index
    %c0_10 = arith.constant 0 : index
    %c0_11 = arith.constant 0 : index
    %c0_12 = arith.constant 0 : index
    %13 = vector.load %arg2[%c0_9, %c0_10, %c0_11, %c0_12] : memref<1x4x11x320xbf16, #tpu.memory_space<vmem>>, vector<1x4x11x320xbf16>
    %14 = vector.shape_cast %13 : vector<1x4x11x320xbf16> to vector<4x11x320xbf16>
    %15 = arith.extf %14 : vector<4x11x320xbf16> to vector<4x11x320xf32>
    %16 = arith.addf %12, %15 : vector<4x11x320xf32>
    %cst = arith.constant 0.000000e+00 : f32
    %17 = vector.broadcast %cst : f32 to vector<4x11x320xf32>
    %18 = arith.maximumf %16, %17 : vector<4x11x320xf32>
    %c0_13 = arith.constant 0 : index
    %c0_14 = arith.constant 0 : index
    %c0_15 = arith.constant 0 : index
    %c0_16 = arith.constant 0 : index
    %19 = vector.load %arg5[%c0_13, %c0_14, %c0_15, %c0_16] : memref<1x4x11x320xf32, #tpu.memory_space<vmem>>, vector<1x4x11x320xf32>
    %20 = vector.shape_cast %19 : vector<1x4x11x320xf32> to vector<4x11x320xf32>
    %21 = vector.shape_cast %18 : vector<4x11x320xf32> to vector<1x4x11x320xf32>
    tpu.vector_store %arg5[%c0_13, %c0_14, %c0_15, %c0_16], %21 {strides = array<i32>} : memref<1x4x11x320xf32, #tpu.memory_space<vmem>>, vector<1x4x11x320xf32>,
    return
  }
  func.func @transform_0(%arg0: i32) -> (i32, i32, i32, i32) {
    %c0_i32 = arith.constant 0 : i32
    %c0_i32_0 = arith.constant 0 : i32
    %c0_i32_1 = arith.constant 0 : i32
    %c0_i32_2 = arith.constant 0 : i32
    return %arg0, %c0_i32, %c0_i32_0, %c0_i32_1 : i32, i32, i32, i32
  }
  func.func @transform_1(%arg0: i32) -> (i32, i32, i32, i32) {
    %c0_i32 = arith.constant 0 : i32
    %c0_i32_0 = arith.constant 0 : i32
    %c0_i32_1 = arith.constant 0 : i32
    %c0_i32_2 = arith.constant 0 : i32
    return %arg0, %c0_i32, %c0_i32_0, %c0_i32_1 : i32, i32, i32, i32
  }
  func.func @transform_2(%arg0: i32) -> (i32, i32, i32) {
    %c0_i32 = arith.constant 0 : i32
    %c0_i32_0 = arith.constant 0 : i32
    %c0_i32_1 = arith.constant 0 : i32
    return %arg0, %c0_i32, %c0_i32_0 : i32, i32, i32
  }
  func.func @transform_3(%arg0: i32) -> (i32, i32, i32) {
    %c0_i32 = arith.constant 0 : i32
    %c0_i32_0 = arith.constant 0 : i32
    %c0_i32_1 = arith.constant 0 : i32
    return %arg0, %c0_i32, %c0_i32_0 : i32, i32, i32
  }
  func.func @transform_4(%arg0: i32) -> (i32, i32, i32, i32) {
    %c0_i32 = arith.constant 0 : i32
    %c0_i32_0 = arith.constant 0 : i32
    %c0_i32_1 = arith.constant 0 : i32
    %c0_i32_2 = arith.constant 0 : i32
    return %arg0, %c0_i32, %c0_i32_0, %c0_i32_1 : i32, i32, i32, i32
  }
}

</mosaic_0001>

<llo_original>
// kernel: basic_block_forward.5
$region0: #{basic_block_forward.5}
  #allocation0 [shape = 'u32[]', space=smem, size = 0x4, offset = 0x4, fixed_abs, tag = 'smem constant byte address 0x4 - core index']
  #allocation1 [shape = 'u32[72,128]{1,0:T(1,128)}', space=vmem, size = 0x9000, scoped, tag = 'internal scratch']
  %s0 = inlined_call_operand.vmem [shape: bf16[2,4,11,320], index: 0, kind: input, shape index: {}]
  %s1 = inlined_call_operand.vmem [shape: bf16[2,4,11,320], index: 1, kind: input, shape index: {}]
  %s2 = inlined_call_operand.vmem [shape: f32[2,1,320], index: 2, kind: input, shape index: {}]
  %s3 = inlined_call_operand.vmem [shape: f32[2,1,320], index: 3, kind: input, shape index: {}]
  %s4 = inlined_call_operand.vmem [shape: f32[2,4,11,320], index: 4, kind: output, shape index: {}]
  %s5 = sld [smem:[#allocation0]]
  $region49: #{basic_block_forward.5} parent=0
    _
  %s7 = ssub.s32 1, %s5
  %s8 = scalar_select 0, %s7, %s5
  loop: start=0, step=1, limit=4
  $region2: #{basic_block_forward.5} parent=0 // loop_pre_header
    _
  $region3: #{basic_block_forward.5} parent=0 // loop_header
    %s10 = sphi 0, %s14
    %p11 = scmp.ge.s32.totalorder %s10, 4
    %s20 = sphi 0, %s22
    %s23 = sphi 0, %s20
    %s24 = sphi 0, %s23
    %s40 = sphi 0, %s24
    %s46 = sphi 0, %s48
    %s49 = sphi 0, %s46
    %s50 = sphi 0, %s49
    %s66 = sphi 0, %s50
    %s72 = sphi 0, %s74
    %s75 = sphi 0, %s72
    %s76 = sphi 0, %s75
    %s92 = sphi 0, %s76
    %s98 = sphi 0, %s100
    %s101 = sphi 0, %s98
    %s102 = sphi 0, %s101
    %s118 = sphi 0, %s102
    %s124 = sphi 0, %s126
    %s127 = sphi 0, %s124
    %s128 = sphi 0, %s127
    %s144 = sphi 0, %s128
  $region4: #{basic_block_forward.5} parent=0 // loop_header_branch
    %13 = sbr.rel (%p11) target = $region8
  $region5: #{basic_block_forward.5} parent=0 // loop_body
    %s15 = ssub.s32 %s10, 1
    %s16 = ssub.s32 %s10, 2
    %s17 = sadd.s32 %s10, 1
    %s18 = ssub.s32 %s10, %s17
    %p19 = scmp.eq.s32.totalorder %s18, 0
    %s21 = sadd.s32 %s20, 1
    %s22 = scalar_select %p19, %s20, %s21
    %p25 = pneg %p19
    %p26 = scmp.eq.s32.totalorder %s10, 1
    %p27 = por %p25, %p26
    %p28 = scmp.ne.s32.totalorder %s20, %s23
    %p29 = scmp.eq.s32.totalorder %s10, 0
    %p30 = por %p28, %p29
    %p31 = scmp.ne.s32.totalorder %s20, %s23
    %p32 = scmp.eq.s32.totalorder %s15, 1
    %p33 = por %p31, %p32
    %p34 = scmp.ne.s32.totalorder %s23, %s24
    %p35 = scmp.eq.s32.totalorder %s15, 0
    %p36 = por %p34, %p35
    %p37 = scmp.ne.s32.totalorder %s23, %s24
    %p38 = scmp.eq.s32.totalorder %s16, 1
    %p39 = por %p37, %p38
    %p41 = scmp.ne.s32.totalorder %s24, %s40
    %p42 = scmp.eq.s32.totalorder %s16, 0
    %p43 = por %p41, %p42
    %s44 = ssub.s32 %s10, %s17
    %p45 = scmp.eq.s32.totalorder %s44, 0
    %s47 = sadd.s32 %s46, 1
    %s48 = scalar_select %p45, %s46, %s47
    %p51 = pneg %p45
    %p52 = scmp.eq.s32.totalorder %s10, 1
    %p53 = por %p51, %p52
    %p54 = scmp.ne.s32.totalorder %s46, %s49
    %p55 = scmp.eq.s32.totalorder %s10, 0
    %p56 = por %p54, %p55
    %p57 = scmp.ne.s32.totalorder %s46, %s49
    %p58 = scmp.eq.s32.totalorder %s15, 1
    %p59 = por %p57, %p58
    %p60 = scmp.ne.s32.totalorder %s49, %s50
    %p61 = scmp.eq.s32.totalorder %s15, 0
    %p62 = por %p60, %p61
    %p63 = scmp.ne.s32.totalorder %s49, %s50
    %p64 = scmp.eq.s32.totalorder %s16, 1
    %p65 = por %p63, %p64
    %p67 = scmp.ne.s32.totalorder %s50, %s66
    %p68 = scmp.eq.s32.totalorder %s16, 0
    %p69 = por %p67, %p68
    %s70 = ssub.s32 %s10, %s17
    %p71 = scmp.eq.s32.totalorder %s70, 0
    %s73 = sadd.s32 %s72, 1
    %s74 = scalar_select %p71, %s72, %s73
    %p77 = pneg %p71
    %p78 = scmp.eq.s32.totalorder %s10, 1
    %p79 = por %p77, %p78
    %p80 = scmp.ne.s32.totalorder %s72, %s75
    %p81 = scmp.eq.s32.totalorder %s10, 0
    %p82 = por %p80, %p81
    %p83 = scmp.ne.s32.totalorder %s72, %s75
    %p84 = scmp.eq.s32.totalorder %s15, 1
    %p85 = por %p83, %p84
    %p86 = scmp.ne.s32.totalorder %s75, %s76
    %p87 = scmp.eq.s32.totalorder %s15, 0
    %p88 = por %p86, %p87
    %p89 = scmp.ne.s32.totalorder %s75, %s76
    %p90 = scmp.eq.s32.totalorder %s16, 1
    %p91 = por %p89, %p90
    %p93 = scmp.ne.s32.totalorder %s76, %s92
    %p94 = scmp.eq.s32.totalorder %s16, 0
    %p95 = por %p93, %p94
    %s96 = ssub.s32 %s10, %s17
    %p97 = scmp.eq.s32.totalorder %s96, 0
    %s99 = sadd.s32 %s98, 1
    %s100 = scalar_select %p97, %s98, %s99
    %p103 = pneg %p97
    %p104 = scmp.eq.s32.totalorder %s10, 1
    %p105 = por %p103, %p104
    %p106 = scmp.ne.s32.totalorder %s98, %s101
    %p107 = scmp.eq.s32.totalorder %s10, 0
    %p108 = por %p106, %p107
    %p109 = scmp.ne.s32.totalorder %s98, %s101
    %p110 = scmp.eq.s32.totalorder %s15, 1
    %p111 = por %p109, %p110
    %p112 = scmp.ne.s32.totalorder %s101, %s102
    %p113 = scmp.eq.s32.totalorder %s15, 0
    %p114 = por %p112, %p113
    %p115 = scmp.ne.s32.totalorder %s101, %s102
    %p116 = scmp.eq.s32.totalorder %s16, 1
    %p117 = por %p115, %p116
    %p119 = scmp.ne.s32.totalorder %s102, %s118
    %p120 = scmp.eq.s32.totalorder %s16, 0
    %p121 = por %p119, %p120
    %s122 = ssub.s32 %s10, %s17
    %p123 = scmp.eq.s32.totalorder %s122, 0
    %s125 = sadd.s32 %s124, 1
    %s126 = scalar_select %p123, %s124, %s125
    %p129 = pneg %p123
    %p130 = scmp.eq.s32.totalorder %s10, 1
    %p131 = por %p129, %p130
    %p132 = scmp.ne.s32.totalorder %s124, %s127
    %p133 = scmp.eq.s32.totalorder %s10, 0
    %p134 = por %p132, %p133
    %p135 = scmp.ne.s32.totalorder %s124, %s127
    %p136 = scmp.eq.s32.totalorder %s15, 1
    %p137 = por %p135, %p136
    %p138 = scmp.ne.s32.totalorder %s127, %s128
    %p139 = scmp.eq.s32.totalorder %s15, 0
    %p140 = por %p138, %p139
    %p141 = scmp.ne.s32.totalorder %s127, %s128
    %p142 = scmp.eq.s32.totalorder %s16, 1
    %p143 = por %p141, %p142
    %p145 = scmp.ne.s32.totalorder %s128, %s144
    %p146 = scmp.eq.s32.totalorder %s16, 0
    %p147 = por %p145, %p146
    %p148 = scmp.le.s32.totalorder 1, %s10
    %p149 = scmp.lt.s32.totalorder %s10, 3
    %p150 = pnand %p148, %p149
    %p151 = pneg %p150
    // Predicated region
    $region9: #{basic_block_forward.5} parent=5 // pred_check
      _
    $region10: #{basic_block_forward.5} parent=5 // pred_check_branch
      %153 = sbr.rel (%p150) target = $region12
    $region11: #{basic_block_forward.5} parent=5 // pred_region
      %s154 = ssub.s32 %s10, 1
    $region12: #{basic_block_forward.5} parent=5 // pred_fallthru
      _
    %p155 = scmp.lt.s32.totalorder %s10, 2
    // Predicated region
    $region13: #{basic_block_forward.5} parent=5 // pred_check
      %p156 = pneg %p155
    $region14: #{basic_block_forward.5} parent=5 // pred_check_branch
      %158 = sbr.rel (%p156) target = $region16
    $region15: #{basic_block_forward.5} parent=5 // pred_region
      // Predicated region
      $region17: #{basic_block_forward.5} parent=15 // pred_check
        %p159 = pneg %p30
      $region18: #{basic_block_forward.5} parent=15 // pred_check_branch
        %161 = sbr.rel (%p159) target = $region20
      $region19: #{basic_block_forward.5} parent=15 // pred_region
        %p162 = scmp.lt.s32.totalorder %s10, 1
        %s163 = scalar_select %p162, %s10, 1
        %s164 = smul.addr %s163, 24
        %s165 = smul.addr %s164, 4
        %s166 = scalar_lea.vmem %s0, %s165
      $region20: #{basic_block_forward.5} parent=15 // pred_fallthru
        _
      // Predicated region
      $region21: #{basic_block_forward.5} parent=15 // pred_check
        %p167 = pneg %p56
      $region22: #{basic_block_forward.5} parent=15 // pred_check_branch
        %169 = sbr.rel (%p167) target = $region24
      $region23: #{basic_block_forward.5} parent=15 // pred_region
        %p170 = scmp.lt.s32.totalorder %s10, 1
        %s171 = scalar_select %p170, %s10, 1
        %s172 = smul.addr %s171, 24
        %s173 = smul.addr %s172, 4
        %s174 = scalar_lea.vmem %s1, %s173
      $region24: #{basic_block_forward.5} parent=15 // pred_fallthru
        _
      // Predicated region
      $region25: #{basic_block_forward.5} parent=15 // pred_check
        %p175 = pneg %p82
      $region26: #{basic_block_forward.5} parent=15 // pred_check_branch
        %177 = sbr.rel (%p175) target = $region28
      $region27: #{basic_block_forward.5} parent=15 // pred_region
        %p178 = scmp.lt.s32.totalorder %s10, 1
        %s179 = scalar_select %p178, %s10, 1
        %s180 = smul.addr %s179, 3
        %s181 = scalar_lea.vmem %s2, %s180
      $region28: #{basic_block_forward.5} parent=15 // pred_fallthru
        _
      // Predicated region
      $region29: #{basic_block_forward.5} parent=15 // pred_check
        %p182 = pneg %p108
      $region30: #{basic_block_forward.5} parent=15 // pred_check_branch
        %184 = sbr.rel (%p182) target = $region32
      $region31: #{basic_block_forward.5} parent=15 // pred_region
        %p185 = scmp.lt.s32.totalorder %s10, 1
        %s186 = scalar_select %p185, %s10, 1
        %s187 = smul.addr %s186, 3
        %s188 = scalar_lea.vmem %s3, %s187
      $region32: #{basic_block_forward.5} parent=15 // pred_fallthru
        _
    $region16: #{basic_block_forward.5} parent=5 // pred_fallthru
      _
    %p189 = scmp.le.s32.totalorder 1, %s10
    %p190 = scmp.lt.s32.totalorder %s10, 3
    %p191 = pnand %p189, %p190
    %p192 = pneg %p191
    // Predicated region
    $region33: #{basic_block_forward.5} parent=5 // pred_check
      _
    $region34: #{basic_block_forward.5} parent=5 // pred_check_branch
      %194 = sbr.rel (%p191) target = $region36
    $region35: #{basic_block_forward.5} parent=5 // pred_region
      %s195 = ssub.s32 %s10, 1
      %p196 = scmp.lt.s32.totalorder %s15, 1
      %s197 = scalar_select %p196, %s15, 1
      %s198 = smul.addr %s197, 24
      %s199 = smul.addr %s198, 4
      %s200 = scalar_lea.vmem %s0, %s199
      %p201 = pneg %p36
      %p202 = pneg %p33
      %p203 = scmp.lt.s32.totalorder %s15, 1
      %s204 = scalar_select %p203, %s15, 1
      %s205 = smul.addr %s204, 24
      %s206 = smul.addr %s205, 4
      %s207 = scalar_lea.vmem %s1, %s206
      %p208 = pneg %p62
      %p209 = pneg %p59
      %p210 = scmp.lt.s32.totalorder %s15, 1
      %s211 = scalar_select %p210, %s15, 1
      %s212 = smul.addr %s211, 3
      %s213 = scalar_lea.vmem %s2, %s212
      %p214 = pneg %p88
      %p215 = pneg %p85
      %p216 = scmp.lt.s32.totalorder %s15, 1
      %s217 = scalar_select %p216, %s15, 1
      %s218 = smul.addr %s217, 3
      %s219 = scalar_lea.vmem %s3, %s218
      %p220 = pneg %p114
      %p221 = pneg %p111
      %p222 = pneg %p140
      %p223 = pneg %p137
      %p224 = scmp.lt.s32.totalorder %s15, 1
      %s225 = scalar_select %p224, %s15, 1
      %s226 = smul.addr %s225, 24
      %s227 = smul.addr %s226, 8
      %s228 = scalar_lea.vmem %s4, %s227
      %p229 = scmp.lt.s32.totalorder %s15, 1
      %s230 = scalar_select %p229, %s15, 1
      %s231 = smul.addr %s230, 24
      %s232 = smul.addr %s231, 4
      %s233 = scalar_lea.vmem %s0, %s232
      %p234 = scmp.lt.s32.totalorder %s15, 1
      %s235 = scalar_select %p234, %s15, 1
      %s236 = smul.addr %s235, 24
      %s237 = smul.addr %s236, 4
      %s238 = scalar_lea.vmem %s1, %s237
      %p239 = scmp.lt.s32.totalorder %s15, 1
      %s240 = scalar_select %p239, %s15, 1
      %s241 = smul.addr %s240, 3
      %s242 = scalar_lea.vmem %s2, %s241
      %p243 = scmp.lt.s32.totalorder %s15, 1
      %s244 = scalar_select %p243, %s15, 1
      %s245 = smul.addr %s244, 3
      %s246 = scalar_lea.vmem %s3, %s245
      %p247 = scmp.lt.s32.totalorder %s15, 1
      %s248 = scalar_select %p247, %s15, 1
      %s249 = smul.addr %s248, 24
      %s250 = smul.addr %s249, 8
      %s251 = scalar_lea.vmem %s4, %s250
      %v252 = vld [vmem:[%s233] sm:$0xff]
      %v253 = vld [vmem:[%s233 + $0x8] sm:$0xf]
      %v254 = vld [vmem:[%s233 + $0xc] sm:$0x33]
      %v255 = vld [vmem:[%s233 + $0x14] sm:$0x3]
      %v256 = vld [vmem:[%s233 + $0x18] sm:$0xff]
      %v257 = vld [vmem:[%s233 + $0x20] sm:$0xf]
      %v258 = vld [vmem:[%s233 + $0x24] sm:$0x33]
      %v259 = vld [vmem:[%s233 + $0x2c] sm:$0x3]
      %v260 = vld [vmem:[%s233 + $0x30] sm:$0xff]
      %v261 = vld [vmem:[%s233 + $0x38] sm:$0xf]
      %v262 = vld [vmem:[%s233 + $0x3c] sm:$0x33]
      %v263 = vld [vmem:[%s233 + $0x44] sm:$0x3]
      %v264 = vld [vmem:[%s233 + $0x48] sm:$0xff]
      %v265 = vld [vmem:[%s233 + $0x50] sm:$0xf]
      %v266 = vld [vmem:[%s233 + $0x54] sm:$0x33]
      %v267 = vld [vmem:[%s233 + $0x5c] sm:$0x3]
      %v268 = vunpack.c.l.bf16 %v252
      %v269 = vunpack.c.h.bf16 %v252
      %v270 = vunpack.c.l.bf16 %v253
      %v271 = vunpack.c.l.bf16 %v254
      %v272 = vunpack.c.h.bf16 %v254
      %v273 = vunpack.c.l.bf16 %v255
      %v274 = vunpack.c.l.bf16 %v256
      %v275 = vunpack.c.h.bf16 %v256
      %v276 = vunpack.c.l.bf16 %v257
      %v277 = vunpack.c.l.bf16 %v258
      %v278 = vunpack.c.h.bf16 %v258
      %v279 = vunpack.c.l.bf16 %v259
      %v280 = vunpack.c.l.bf16 %v260
      %v281 = vunpack.c.h.bf16 %v260
      %v282 = vunpack.c.l.bf16 %v261
      %v283 = vunpack.c.l.bf16 %v262
      %v284 = vunpack.c.h.bf16 %v262
      %v285 = vunpack.c.l.bf16 %v263
      %v286 = vunpack.c.l.bf16 %v264
      %v287 = vunpack.c.h.bf16 %v264
      %v288 = vunpack.c.l.bf16 %v265
      %v289 = vunpack.c.l.bf16 %v266
      %v290 = vunpack.c.h.bf16 %v266
      %v291 = vunpack.c.l.bf16 %v267
      %v292 = vld [vmem:[%s242] sm:$0x7]
      %v294 = vperm.slane %v292, 0
      %v295 = vperm.slane %v292, 1
      %v296 = vperm.slane %v292, 2
      %v300 = vmul.f32 %v268, %v294
      %v301 = vmul.f32 %v269, %v295
      %v302 = vmul.f32 %v270, %v296
      %v303 = vmul.f32 %v271, %v294
      %v304 = vmul.f32 %v272, %v295
      %v305 = vmul.f32 %v273, %v296
      %v306 = vmul.f32 %v274, %v294
      %v307 = vmul.f32 %v275, %v295
      %v308 = vmul.f32 %v276, %v296
      %v309 = vmul.f32 %v277, %v294
      %v310 = vmul.f32 %v278, %v295
      %v311 = vmul.f32 %v279, %v296
      %v312 = vmul.f32 %v280, %v294
      %v313 = vmul.f32 %v281, %v295
      %v314 = vmul.f32 %v282, %v296
      %v315 = vmul.f32 %v283, %v294
      %v316 = vmul.f32 %v284, %v295
      %v317 = vmul.f32 %v285, %v296
      %v318 = vmul.f32 %v286, %v294
      %v319 = vmul.f32 %v287, %v295
      %v320 = vmul.f32 %v288, %v296
      %v321 = vmul.f32 %v289, %v294
      %v322 = vmul.f32 %v290, %v295
      %v323 = vmul.f32 %v291, %v296
      %v324 = vld [vmem:[%s246] sm:$0x7]
      %v326 = vperm.slane %v324, 0
      %v327 = vperm.slane %v324, 1
      %v328 = vperm.slane %v324, 2
      %v332 = vadd.f32 %v300, %v326
      %v333 = vadd.f32 %v301, %v327
      %v334 = vadd.f32 %v302, %v328
      %v335 = vadd.f32 %v303, %v326
      %v336 = vadd.f32 %v304, %v327
      %v337 = vadd.f32 %v305, %v328
      %v338 = vadd.f32 %v306, %v326
      %v339 = vadd.f32 %v307, %v327
      %v340 = vadd.f32 %v308, %v328
      %v341 = vadd.f32 %v309, %v326
      %v342 = vadd.f32 %v310, %v327
      %v343 = vadd.f32 %v311, %v328
      %v344 = vadd.f32 %v312, %v326
      %v345 = vadd.f32 %v313, %v327
      %v346 = vadd.f32 %v314, %v328
      %v347 = vadd.f32 %v315, %v326
      %v348 = vadd.f32 %v316, %v327
      %v349 = vadd.f32 %v317, %v328
      %v350 = vadd.f32 %v318, %v326
      %v351 = vadd.f32 %v319, %v327
      %v352 = vadd.f32 %v320, %v328
      %v353 = vadd.f32 %v321, %v326
      %v354 = vadd.f32 %v322, %v327
      %v355 = vadd.f32 %v323, %v328
      %v356 = vld [vmem:[%s238] sm:$0xff]
      %v357 = vld [vmem:[%s238 + $0x8] sm:$0xf]
      %v358 = vld [vmem:[%s238 + $0xc] sm:$0x33]
      %v359 = vld [vmem:[%s238 + $0x14] sm:$0x3]
      %v360 = vld [vmem:[%s238 + $0x18] sm:$0xff]
      %v361 = vld [vmem:[%s238 + $0x20] sm:$0xf]
      %v362 = vld [vmem:[%s238 + $0x24] sm:$0x33]
      %v363 = vld [vmem:[%s238 + $0x2c] sm:$0x3]
      %v364 = vld [vmem:[%s238 + $0x30] sm:$0xff]
      %v365 = vld [vmem:[%s238 + $0x38] sm:$0xf]
      %v366 = vld [vmem:[%s238 + $0x3c] sm:$0x33]
      %v367 = vld [vmem:[%s238 + $0x44] sm:$0x3]
      %v368 = vld [vmem:[%s238 + $0x48] sm:$0xff]
      %v369 = vld [vmem:[%s238 + $0x50] sm:$0xf]
      %v370 = vld [vmem:[%s238 + $0x54] sm:$0x33]
      %v371 = vld [vmem:[%s238 + $0x5c] sm:$0x3]
      %v372 = vunpack.c.l.bf16 %v356
      %v373 = vunpack.c.h.bf16 %v356
      %v374 = vunpack.c.l.bf16 %v357
      %v375 = vunpack.c.l.bf16 %v358
      %v376 = vunpack.c.h.bf16 %v358
      %v377 = vunpack.c.l.bf16 %v359
      %v378 = vunpack.c.l.bf16 %v360
      %v379 = vunpack.c.h.bf16 %v360
      %v380 = vunpack.c.l.bf16 %v361
      %v381 = vunpack.c.l.bf16 %v362
      %v382 = vunpack.c.h.bf16 %v362
      %v383 = vunpack.c.l.bf16 %v363
      %v384 = vunpack.c.l.bf16 %v364
      %v385 = vunpack.c.h.bf16 %v364
      %v386 = vunpack.c.l.bf16 %v365
      %v387 = vunpack.c.l.bf16 %v366
      %v388 = vunpack.c.h.bf16 %v366
      %v389 = vunpack.c.l.bf16 %v367
      %v390 = vunpack.c.l.bf16 %v368
      %v391 = vunpack.c.h.bf16 %v368
      %v392 = vunpack.c.l.bf16 %v369
      %v393 = vunpack.c.l.bf16 %v370
      %v394 = vunpack.c.h.bf16 %v370
      %v395 = vunpack.c.l.bf16 %v371
      %v396 = vadd.f32 %v332, %v372
      %v397 = vadd.f32 %v333, %v373
      %v398 = vadd.f32 %v334, %v374
      %v399 = vadd.f32 %v335, %v375
      %v400 = vadd.f32 %v336, %v376
      %v401 = vadd.f32 %v337, %v377
      %v402 = vadd.f32 %v338, %v378
      %v403 = vadd.f32 %v339, %v379
      %v404 = vadd.f32 %v340, %v380
      %v405 = vadd.f32 %v341, %v381
      %v406 = vadd.f32 %v342, %v382
      %v407 = vadd.f32 %v343, %v383
      %v408 = vadd.f32 %v344, %v384
      %v409 = vadd.f32 %v345, %v385
      %v410 = vadd.f32 %v346, %v386
      %v411 = vadd.f32 %v347, %v387
      %v412 = vadd.f32 %v348, %v388
      %v413 = vadd.f32 %v349, %v389
      %v414 = vadd.f32 %v350, %v390
      %v415 = vadd.f32 %v351, %v391
      %v416 = vadd.f32 %v352, %v392
      %v417 = vadd.f32 %v353, %v393
      %v418 = vadd.f32 %v354, %v394
      %v419 = vadd.f32 %v355, %v395
      %v420 = vmax.f32 %v396, 0.0
      %v421 = vmax.f32 %v397, 0.0
      %v422 = vmax.f32 %v398, 0.0
      %v423 = vmax.f32 %v399, 0.0
      %v424 = vmax.f32 %v400, 0.0
      %v425 = vmax.f32 %v401, 0.0
      %v426 = vmax.f32 %v402, 0.0
      %v427 = vmax.f32 %v403, 0.0
      %v428 = vmax.f32 %v404, 0.0
      %v429 = vmax.f32 %v405, 0.0
      %v430 = vmax.f32 %v406, 0.0
      %v431 = vmax.f32 %v407, 0.0
      %v432 = vmax.f32 %v408, 0.0
      %v433 = vmax.f32 %v409, 0.0
      %v434 = vmax.f32 %v410, 0.0
      %v435 = vmax.f32 %v411, 0.0
      %v436 = vmax.f32 %v412, 0.0
      %v437 = vmax.f32 %v413, 0.0
      %v438 = vmax.f32 %v414, 0.0
      %v439 = vmax.f32 %v415, 0.0
      %v440 = vmax.f32 %v416, 0.0
      %v441 = vmax.f32 %v417, 0.0
      %v442 = vmax.f32 %v418, 0.0
      %v443 = vmax.f32 %v419, 0.0
      %444 = vst [vmem:[%s251] sm:$0xff] %v420
      %445 = vst [vmem:[%s251 + $0x8] sm:$0xff] %v421
      %vm446 = vcmask 523264
      %447 = vst.msk [vmem:[%s251 + $0x10] sm:$0xff] %vm446, %v422
      %448 = vst [vmem:[%s251 + $0x18] sm:$0x7] %v423
      %449 = vst [vmem:[%s251 + $0x20] sm:$0x7] %v424
      %vm450 = vcmask 518144
      %451 = vst.msk [vmem:[%s251 + $0x28] sm:$0x7] %vm450, %v425
      %452 = vst [vmem:[%s251 + $0x30] sm:$0xff] %v426
      %453 = vst [vmem:[%s251 + $0x38] sm:$0xff] %v427
      %454 = vst.msk [vmem:[%s251 + $0x40] sm:$0xff] %vm446, %v428
      %455 = vst [vmem:[%s251 + $0x48] sm:$0x7] %v429
      %456 = vst [vmem:[%s251 + $0x50] sm:$0x7] %v430
      %457 = vst.msk [vmem:[%s251 + $0x58] sm:$0x7] %vm450, %v431
      %458 = vst [vmem:[%s251 + $0x60] sm:$0xff] %v432
      %459 = vst [vmem:[%s251 + $0x68] sm:$0xff] %v433
      %460 = vst.msk [vmem:[%s251 + $0x70] sm:$0xff] %vm446, %v434
      %461 = vst [vmem:[%s251 + $0x78] sm:$0x7] %v435
      %462 = vst [vmem:[%s251 + $0x80] sm:$0x7] %v436
      %463 = vst.msk [vmem:[%s251 + $0x88] sm:$0x7] %vm450, %v437
      %464 = vst [vmem:[%s251 + $0x90] sm:$0xff] %v438
      %465 = vst [vmem:[%s251 + $0x98] sm:$0xff] %v439
      %466 = vst.msk [vmem:[%s251 + $0xa0] sm:$0xff] %vm446, %v440
      %467 = vst [vmem:[%s251 + $0xa8] sm:$0x7] %v441
      %468 = vst [vmem:[%s251 + $0xb0] sm:$0x7] %v442
      %469 = vst.msk [vmem:[%s251 + $0xb8] sm:$0x7] %vm450, %v443
      %p470 = scmp.lt.s32.totalorder %s15, 1
      %s471 = scalar_select %p470, %s15, 1
      %s472 = smul.addr %s471, 24
      %s473 = smul.addr %s472, 8
      %s474 = scalar_lea.vmem %s4, %s473
      // Predicated region
      $region37: #{basic_block_forward.5} parent=35 // pred_check
        %p475 = pneg %p137
      $region38: #{basic_block_forward.5} parent=35 // pred_check_branch
        %477 = sbr.rel (%p475) target = $region40
      $region39: #{basic_block_forward.5} parent=35 // pred_region
        _
      $region40: #{basic_block_forward.5} parent=35 // pred_fallthru
        _
    $region36: #{basic_block_forward.5} parent=5 // pred_fallthru
      _
    %p478 = scmp.le.s32.totalorder 2, %s10
    // Predicated region
    $region41: #{basic_block_forward.5} parent=5 // pred_check
      %p479 = pneg %p478
    $region42: #{basic_block_forward.5} parent=5 // pred_check_branch
      %481 = sbr.rel (%p479) target = $region44
    $region43: #{basic_block_forward.5} parent=5 // pred_region
      %s482 = ssub.s32 %s10, 2
      // Predicated region
      $region45: #{basic_block_forward.5} parent=43 // pred_check
        %p483 = pneg %p143
      $region46: #{basic_block_forward.5} parent=43 // pred_check_branch
        %485 = sbr.rel (%p483) target = $region48
      $region47: #{basic_block_forward.5} parent=43 // pred_region
        %p486 = scmp.lt.s32.totalorder %s16, 1
        %s487 = scalar_select %p486, %s16, 1
        %s488 = smul.addr %s487, 24
        %s489 = smul.addr %s488, 8
        %s490 = scalar_lea.vmem %s4, %s489
      $region48: #{basic_block_forward.5} parent=43 // pred_fallthru
        _
    $region44: #{basic_block_forward.5} parent=5 // pred_fallthru
      _
  $region6: #{basic_block_forward.5} parent=0 // loop_footer
    %s14 = sadd.s32 1, %s10
  $region7: #{basic_block_forward.5} parent=0 // loop_footer_branch
    %9 = sbr.rel target = $region3
  $region8: #{basic_block_forward.5} parent=0 // loop_exit
    _

// kernel: basic_block_forward.4
$region0: #{basic_block_forward.4}
  #allocation0 [shape = 'u32[]', space=smem, size = 0x4, offset = 0x4, fixed_abs, tag = 'smem constant byte address 0x4 - core index']
  #allocation1 [shape = 'u32[72,128]{1,0:T(1,128)}', space=vmem, size = 0x9000, scoped, tag = 'internal scratch']
  %s0 = inlined_call_operand.vmem [shape: bf16[2,4,110,32], index: 0, kind: input, shape index: {}, may-alias: {0,1,2}]
  %s1 = inlined_call_operand.vmem [shape: bf16[2,4,110,32], index: 1, kind: input, shape index: {}, may-alias: {0,1,2}]
  %s2 = inlined_call_operand.vmem [shape: bf16[2,4,110,32], index: 2, kind: input, shape index: {}, may-alias: {0,1,2}]
  %s3 = inlined_call_operand.vmem [shape: bf16[864,32], index: 3, kind: input, shape index: {}]
  %s4 = inlined_call_operand.vmem [shape: f32[80,1], index: 4, kind: input, shape index: {}]
  %s5 = inlined_call_operand.vmem [shape: f32[110,1], index: 5, kind: input, shape index: {}]
  %s6 = inlined_call_operand.vmem [shape: f32[2,1,32], index: 6, kind: input, shape index: {}]
  %s7 = inlined_call_operand.vmem [shape: f32[2,1,32], index: 7, kind: input, shape index: {}]
  %s8 = inlined_call_operand.vmem [shape: bf16[2,4,110,32], index: 8, kind: output, shape index: {0}]
  %s9 = inlined_call_operand.vmem [shape: f32[2,4,2,32], index: 9, kind: output, shape index: {1}]
  %10 = xla_tuple %s8, %s9
  %s11 = sld [smem:[#allocation0]]
  $region73: #{basic_block_forward.4} parent=0
    _
  %s13 = ssub.s32 1, %s11
  %s14 = scalar_select 0, %s13, %s11
  loop: start=0, step=1, limit=10
  $region2: #{basic_block_forward.4} parent=0 // loop_pre_header
    _
  $region3: #{basic_block_forward.4} parent=0 // loop_header
    %s16 = sphi 0, %s20
    %p17 = scmp.ge.s32.totalorder %s16, 10
    %s23 = sphi 0, %s35
    %s24 = sphi 0, %s31
    %s25 = sphi 0, %s23
    %s26 = sphi 0, %s24
    %s27 = sphi 0, %s25
    %s28 = sphi 0, %s26
    %s50 = sphi 0, %s52
    %s53 = sphi 0, %s50
    %s54 = sphi 0, %s53
    %s70 = sphi 0, %s54
    %s86 = sphi 0, %s88
    %s89 = sphi 0, %s86
    %s90 = sphi 0, %s89
    %s106 = sphi 0, %s90
    %s124 = sphi 0, %s126
    %s127 = sphi 0, %s124
    %s128 = sphi 0, %s127
    %s144 = sphi 0, %s128
    %s148 = sphi 0, %s148
    %s150 = sphi 0, %s148
    %s151 = sphi 0, %s150
    %s165 = sphi 0, %s151
    %s169 = sphi 0, %s169
    %s171 = sphi 0, %s169
    %s172 = sphi 0, %s171
    %s186 = sphi 0, %s172
    %s190 = sphi 0, %s190
    %s192 = sphi 0, %s190
    %s193 = sphi 0, %s192
    %s207 = sphi 0, %s193
    %s213 = sphi 0, %s215
    %s216 = sphi 0, %s213
    %s217 = sphi 0, %s216
    %s233 = sphi 0, %s217
    %s239 = sphi 0, %s241
    %s242 = sphi 0, %s239
    %s243 = sphi 0, %s242
    %s259 = sphi 0, %s243
    %s267 = sphi 0, %s269
    %s270 = sphi 0, %s267
    %s271 = sphi 0, %s270
    %s287 = sphi 0, %s271
    %s295 = sphi 0, %s297
    %s298 = sphi 0, %s295
    %s299 = sphi 0, %s298
    %s315 = sphi 0, %s299
  $region4: #{basic_block_forward.4} parent=0 // loop_header_branch
    %19 = sbr.rel (%p17) target = $region8
  $region5: #{basic_block_forward.4} parent=0 // loop_body
    %s21 = ssub.s32 %s16, 1
    %s22 = ssub.s32 %s16, 2
    %s29 = sadd.s32 1, %s24
    %p30 = scmp.ge.s32.totalorder %s29, 4
    %s31 = scalar_select %p30, 0, %s29
    %s32 = sadd.s32 1, %s23
    %s33 = scalar_select %p30, %s32, %s23
    %p34 = scmp.ge.s32.totalorder %s33, 2
    %s35 = scalar_select %p34, 0, %s33
    %s36 = sadd.s32 %s24, 4294967295
    %p37 = scmp.gt.s32.totalorder %s36, 0
    %s38 = scalar_select %p37, %s36, 0
    %p39 = scmp.lt.s32.totalorder %s38, 3
    %s40 = scalar_select %p39, %s38, 3
    %s41 = sadd.s32 %s31, 4294967295
    %p42 = scmp.gt.s32.totalorder %s41, 0
    %s43 = scalar_select %p42, %s41, 0
    %p44 = scmp.lt.s32.totalorder %s43, 3
    %s45 = scalar_select %p44, %s43, 3
    %s46 = ssub.s32 %s23, %s35
    %s47 = ssub.s32 %s40, %s45
    %s48 = sor.u32 %s46, %s47
    %p49 = scmp.eq.s32.totalorder %s48, 0
    %s51 = sadd.s32 %s50, 1
    %s52 = scalar_select %p49, %s50, %s51
    %p55 = pneg %p49
    %p56 = scmp.eq.s32.totalorder %s16, 7
    %p57 = por %p55, %p56
    %p58 = scmp.ne.s32.totalorder %s50, %s53
    %p59 = scmp.eq.s32.totalorder %s16, 0
    %p60 = por %p58, %p59
    %p61 = scmp.ne.s32.totalorder %s50, %s53
    %p62 = scmp.eq.s32.totalorder %s21, 7
    %p63 = por %p61, %p62
    %p64 = scmp.ne.s32.totalorder %s53, %s54
    %p65 = scmp.eq.s32.totalorder %s21, 0
    %p66 = por %p64, %p65
    %p67 = scmp.ne.s32.totalorder %s53, %s54
    %p68 = scmp.eq.s32.totalorder %s22, 7
    %p69 = por %p67, %p68
    %p71 = scmp.ne.s32.totalorder %s54, %s70
    %p72 = scmp.eq.s32.totalorder %s22, 0
    %p73 = por %p71, %p72
    %p74 = scmp.gt.s32.totalorder %s24, 0
    %s75 = scalar_select %p74, %s24, 0
    %p76 = scmp.lt.s32.totalorder %s75, 3
    %s77 = scalar_select %p76, %s75, 3
    %p78 = scmp.gt.s32.totalorder %s31, 0
    %s79 = scalar_select %p78, %s31, 0
    %p80 = scmp.lt.s32.totalorder %s79, 3
    %s81 = scalar_select %p80, %s79, 3
    %s82 = ssub.s32 %s23, %s35
    %s83 = ssub.s32 %s77, %s81
    %s84 = sor.u32 %s82, %s83
    %p85 = scmp.eq.s32.totalorder %s84, 0
    %s87 = sadd.s32 %s86, 1
    %s88 = scalar_select %p85, %s86, %s87
    %p91 = pneg %p85
    %p92 = scmp.eq.s32.totalorder %s16, 7
    %p93 = por %p91, %p92
    %p94 = scmp.ne.s32.totalorder %s86, %s89
    %p95 = scmp.eq.s32.totalorder %s16, 0
    %p96 = por %p94, %p95
    %p97 = scmp.ne.s32.totalorder %s86, %s89
    %p98 = scmp.eq.s32.totalorder %s21, 7
    %p99 = por %p97, %p98
    %p100 = scmp.ne.s32.totalorder %s89, %s90
    %p101 = scmp.eq.s32.totalorder %s21, 0
    %p102 = por %p100, %p101
    %p103 = scmp.ne.s32.totalorder %s89, %s90
    %p104 = scmp.eq.s32.totalorder %s22, 7
    %p105 = por %p103, %p104
    %p107 = scmp.ne.s32.totalorder %s90, %s106
    %p108 = scmp.eq.s32.totalorder %s22, 0
    %p109 = por %p107, %p108
    %s110 = sadd.s32 %s24, 1
    %p111 = scmp.gt.s32.totalorder %s110, 0
    %s112 = scalar_select %p111, %s110, 0
    %p113 = scmp.lt.s32.totalorder %s112, 3
    %s114 = scalar_select %p113, %s112, 3
    %s115 = sadd.s32 %s31, 1
    %p116 = scmp.gt.s32.totalorder %s115, 0
    %s117 = scalar_select %p116, %s115, 0
    %p118 = scmp.lt.s32.totalorder %s117, 3
    %s119 = scalar_select %p118, %s117, 3
    %s120 = ssub.s32 %s23, %s35
    %s121 = ssub.s32 %s114, %s119
    %s122 = sor.u32 %s120, %s121
    %p123 = scmp.eq.s32.totalorder %s122, 0
    %s125 = sadd.s32 %s124, 1
    %s126 = scalar_select %p123, %s124, %s125
    %p129 = pneg %p123
    %p130 = scmp.eq.s32.totalorder %s16, 7
    %p131 = por %p129, %p130
    %p132 = scmp.ne.s32.totalorder %s124, %s127
    %p133 = scmp.eq.s32.totalorder %s16, 0
    %p134 = por %p132, %p133
    %p135 = scmp.ne.s32.totalorder %s124, %s127
    %p136 = scmp.eq.s32.totalorder %s21, 7
    %p137 = por %p135, %p136
    %p138 = scmp.ne.s32.totalorder %s127, %s128
    %p139 = scmp.eq.s32.totalorder %s21, 0
    %p140 = por %p138, %p139
    %p141 = scmp.ne.s32.totalorder %s127, %s128
    %p142 = scmp.eq.s32.totalorder %s22, 7
    %p143 = por %p141, %p142
    %p145 = scmp.ne.s32.totalorder %s128, %s144
    %p146 = scmp.eq.s32.totalorder %s22, 0
    %p147 = por %p145, %p146
    %s149 = sadd.s32 %s148, 1
    %p152 = scmp.eq.s32.totalorder %s16, 7
    %p153 = scmp.ne.s32.totalorder %s148, %s150
    %p154 = scmp.eq.s32.totalorder %s16, 0
    %p155 = por %p153, %p154
    %p156 = scmp.ne.s32.totalorder %s148, %s150
    %p157 = scmp.eq.s32.totalorder %s21, 7
    %p158 = por %p156, %p157
    %p159 = scmp.ne.s32.totalorder %s150, %s151
    %p160 = scmp.eq.s32.totalorder %s21, 0
    %p161 = por %p159, %p160
    %p162 = scmp.ne.s32.totalorder %s150, %s151
    %p163 = scmp.eq.s32.totalorder %s22, 7
    %p164 = por %p162, %p163
    %p166 = scmp.ne.s32.totalorder %s151, %s165
    %p167 = scmp.eq.s32.totalorder %s22, 0
    %p168 = por %p166, %p167
    %s170 = sadd.s32 %s169, 1
    %p173 = scmp.eq.s32.totalorder %s16, 7
    %p174 = scmp.ne.s32.totalorder %s169, %s171
    %p175 = scmp.eq.s32.totalorder %s16, 0
    %p176 = por %p174, %p175
    %p177 = scmp.ne.s32.totalorder %s169, %s171
    %p178 = scmp.eq.s32.totalorder %s21, 7
    %p179 = por %p177, %p178
    %p180 = scmp.ne.s32.totalorder %s171, %s172
    %p181 = scmp.eq.s32.totalorder %s21, 0
    %p182 = por %p180, %p181
    %p183 = scmp.ne.s32.totalorder %s171, %s172
    %p184 = scmp.eq.s32.totalorder %s22, 7
    %p185 = por %p183, %p184
    %p187 = scmp.ne.s32.totalorder %s172, %s186
    %p188 = scmp.eq.s32.totalorder %s22, 0
    %p189 = por %p187, %p188
    %s191 = sadd.s32 %s190, 1
    %p194 = scmp.eq.s32.totalorder %s16, 7
    %p195 = scmp.ne.s32.totalorder %s190, %s192
    %p196 = scmp.eq.s32.totalorder %s16, 0
    %p197 = por %p195, %p196
    %p198 = scmp.ne.s32.totalorder %s190, %s192
    %p199 = scmp.eq.s32.totalorder %s21, 7
    %p200 = por %p198, %p199
    %p201 = scmp.ne.s32.totalorder %s192, %s193
    %p202 = scmp.eq.s32.totalorder %s21, 0
    %p203 = por %p201, %p202
    %p204 = scmp.ne.s32.totalorder %s192, %s193
    %p205 = scmp.eq.s32.totalorder %s22, 7
    %p206 = por %p204, %p205
    %p208 = scmp.ne.s32.totalorder %s193, %s207
    %p209 = scmp.eq.s32.totalorder %s22, 0
    %p210 = por %p208, %p209
    %s211 = ssub.s32 %s23, %s35
    %p212 = scmp.eq.s32.totalorder %s211, 0
    %s214 = sadd.s32 %s213, 1
    %s215 = scalar_select %p212, %s213, %s214
    %p218 = pneg %p212
    %p219 = scmp.eq.s32.totalorder %s16, 7
    %p220 = por %p218, %p219
    %p221 = scmp.ne.s32.totalorder %s213, %s216
    %p222 = scmp.eq.s32.totalorder %s16, 0
    %p223 = por %p221, %p222
    %p224 = scmp.ne.s32.totalorder %s213, %s216
    %p225 = scmp.eq.s32.totalorder %s21, 7
    %p226 = por %p224, %p225
    %p227 = scmp.ne.s32.totalorder %s216, %s217
    %p228 = scmp.eq.s32.totalorder %s21, 0
    %p229 = por %p227, %p228
    %p230 = scmp.ne.s32.totalorder %s216, %s217
    %p231 = scmp.eq.s32.totalorder %s22, 7
    %p232 = por %p230, %p231
    %p234 = scmp.ne.s32.totalorder %s217, %s233
    %p235 = scmp.eq.s32.totalorder %s22, 0
    %p236 = por %p234, %p235
    %s237 = ssub.s32 %s23, %s35
    %p238 = scmp.eq.s32.totalorder %s237, 0
    %s240 = sadd.s32 %s239, 1
    %s241 = scalar_select %p238, %s239, %s240
    %p244 = pneg %p238
    %p245 = scmp.eq.s32.totalorder %s16, 7
    %p246 = por %p244, %p245
    %p247 = scmp.ne.s32.totalorder %s239, %s242
    %p248 = scmp.eq.s32.totalorder %s16, 0
    %p249 = por %p247, %p248
    %p250 = scmp.ne.s32.totalorder %s239, %s242
    %p251 = scmp.eq.s32.totalorder %s21, 7
    %p252 = por %p250, %p251
    %p253 = scmp.ne.s32.totalorder %s242, %s243
    %p254 = scmp.eq.s32.totalorder %s21, 0
    %p255 = por %p253, %p254
    %p256 = scmp.ne.s32.totalorder %s242, %s243
    %p257 = scmp.eq.s32.totalorder %s22, 7
    %p258 = por %p256, %p257
    %p260 = scmp.ne.s32.totalorder %s243, %s259
    %p261 = scmp.eq.s32.totalorder %s22, 0
    %p262 = por %p260, %p261
    %s263 = ssub.s32 %s23, %s35
    %s264 = ssub.s32 %s24, %s31
    %s265 = sor.u32 %s263, %s264
    %p266 = scmp.eq.s32.totalorder %s265, 0
    %s268 = sadd.s32 %s267, 1
    %s269 = scalar_select %p266, %s267, %s268
    %p272 = pneg %p266
    %p273 = scmp.eq.s32.totalorder %s16, 7
    %p274 = por %p272, %p273
    %p275 = scmp.ne.s32.totalorder %s267, %s270
    %p276 = scmp.eq.s32.totalorder %s16, 0
    %p277 = por %p275, %p276
    %p278 = scmp.ne.s32.totalorder %s267, %s270
    %p279 = scmp.eq.s32.totalorder %s21, 7
    %p280 = por %p278, %p279
    %p281 = scmp.ne.s32.totalorder %s270, %s271
    %p282 = scmp.eq.s32.totalorder %s21, 0
    %p283 = por %p281, %p282
    %p284 = scmp.ne.s32.totalorder %s270, %s271
    %p285 = scmp.eq.s32.totalorder %s22, 7
    %p286 = por %p284, %p285
    %p288 = scmp.ne.s32.totalorder %s271, %s287
    %p289 = scmp.eq.s32.totalorder %s22, 0
    %p290 = por %p288, %p289
    %s291 = ssub.s32 %s23, %s35
    %s292 = ssub.s32 %s24, %s31
    %s293 = sor.u32 %s291, %s292
    %p294 = scmp.eq.s32.totalorder %s293, 0
    %s296 = sadd.s32 %s295, 1
    %s297 = scalar_select %p294, %s295, %s296
    %p300 = pneg %p294
    %p301 = scmp.eq.s32.totalorder %s16, 7
    %p302 = por %p300, %p301
    %p303 = scmp.ne.s32.totalorder %s295, %s298
    %p304 = scmp.eq.s32.totalorder %s16, 0
    %p305 = por %p303, %p304
    %p306 = scmp.ne.s32.totalorder %s295, %s298
    %p307 = scmp.eq.s32.totalorder %s21, 7
    %p308 = por %p306, %p307
    %p309 = scmp.ne.s32.totalorder %s298, %s299
    %p310 = scmp.eq.s32.totalorder %s21, 0
    %p311 = por %p309, %p310
    %p312 = scmp.ne.s32.totalorder %s298, %s299
    %p313 = scmp.eq.s32.totalorder %s22, 7
    %p314 = por %p312, %p313
    %p316 = scmp.ne.s32.totalorder %s299, %s315
    %p317 = scmp.eq.s32.totalorder %s22, 0
    %p318 = por %p316, %p317
    %p319 = scmp.le.s32.totalorder 1, %s16
    %p320 = scmp.lt.s32.totalorder %s16, 9
    %p321 = pnand %p319, %p320
    %p322 = pneg %p321
    // Predicated region
    $region9: #{basic_block_forward.4} parent=5 // pred_check
      _
    $region10: #{basic_block_forward.4} parent=5 // pred_check_branch
      %324 = sbr.rel (%p321) target = $region12
    $region11: #{basic_block_forward.4} parent=5 // pred_region
      %s325 = ssub.s32 %s16, 1
      // Predicated region
      $region13: #{basic_block_forward.4} parent=11 // pred_check
        %p326 = pneg %p161
      $region14: #{basic_block_forward.4} parent=11 // pred_check_branch
        %328 = sbr.rel (%p326) target = $region16
      $region15: #{basic_block_forward.4} parent=11 // pred_region
        _
      $region16: #{basic_block_forward.4} parent=11 // pred_fallthru
        _
      // Predicated region
      $region17: #{basic_block_forward.4} parent=11 // pred_check
        %p329 = pneg %p182
      $region18: #{basic_block_forward.4} parent=11 // pred_check_branch
        %331 = sbr.rel (%p329) target = $region20
      $region19: #{basic_block_forward.4} parent=11 // pred_region
        _
      $region20: #{basic_block_forward.4} parent=11 // pred_fallthru
        _
      // Predicated region
      $region21: #{basic_block_forward.4} parent=11 // pred_check
        %p332 = pneg %p203
      $region22: #{basic_block_forward.4} parent=11 // pred_check_branch
        %334 = sbr.rel (%p332) target = $region24
      $region23: #{basic_block_forward.4} parent=11 // pred_region
        _
      $region24: #{basic_block_forward.4} parent=11 // pred_fallthru
        _
    $region12: #{basic_block_forward.4} parent=5 // pred_fallthru
      _
    %p335 = scmp.lt.s32.totalorder %s16, 8
    // Predicated region
    $region25: #{basic_block_forward.4} parent=5 // pred_check
      %p336 = pneg %p335
    $region26: #{basic_block_forward.4} parent=5 // pred_check_branch
      %338 = sbr.rel (%p336) target = $region28
    $region27: #{basic_block_forward.4} parent=5 // pred_region
      // Predicated region
      $region29: #{basic_block_forward.4} parent=27 // pred_check
        %p339 = pneg %p60
      $region30: #{basic_block_forward.4} parent=27 // pred_check_branch
        %341 = sbr.rel (%p339) target = $region32
      $region31: #{basic_block_forward.4} parent=27 // pred_region
        %s342 = sadd.s32 %s24, 4294967295
        %p343 = scmp.gt.s32.totalorder %s342, 0
        %s344 = scalar_select %p343, %s342, 0
        %p345 = scmp.lt.s32.totalorder %s344, 3
        %s346 = scalar_select %p345, %s344, 3
        %p347 = scmp.lt.s32.totalorder %s23, 1
        %s348 = scalar_select %p347, %s23, 1
        %p349 = scmp.lt.s32.totalorder %s346, 3
        %s350 = scalar_select %p349, %s346, 3
        %s351 = smul.addr %s350, 14
        %s352 = smul.addr %s348, 56
        %s353 = sadd.s32 %s351, %s352
        %s354 = smul.addr %s353, 4
        %s355 = scalar_lea.vmem %s0, %s354
        %s356 = sadd.s32 %s24, 4294967295
        %p357 = scmp.gt.s32.totalorder %s356, 0
        %s358 = scalar_select %p357, %s356, 0
        %p359 = scmp.lt.s32.totalorder %s358, 3
        %s360 = scalar_select %p359, %s358, 3
      $region32: #{basic_block_forward.4} parent=27 // pred_fallthru
        _
      // Predicated region
      $region33: #{basic_block_forward.4} parent=27 // pred_check
        %p361 = pneg %p96
      $region34: #{basic_block_forward.4} parent=27 // pred_check_branch
        %363 = sbr.rel (%p361) target = $region36
      $region35: #{basic_block_forward.4} parent=27 // pred_region
        %p364 = scmp.gt.s32.totalorder %s24, 0
        %s365 = scalar_select %p364, %s24, 0
        %p366 = scmp.lt.s32.totalorder %s365, 3
        %s367 = scalar_select %p366, %s365, 3
        %p368 = scmp.lt.s32.totalorder %s23, 1
        %s369 = scalar_select %p368, %s23, 1
        %p370 = scmp.lt.s32.totalorder %s367, 3
        %s371 = scalar_select %p370, %s367, 3
        %s372 = smul.addr %s371, 14
        %s373 = smul.addr %s369, 56
        %s374 = sadd.s32 %s372, %s373
        %s375 = smul.addr %s374, 4
        %s376 = scalar_lea.vmem %s1, %s375
        %p377 = scmp.gt.s32.totalorder %s24, 0
        %s378 = scalar_select %p377, %s24, 0
        %p379 = scmp.lt.s32.totalorder %s378, 3
        %s380 = scalar_select %p379, %s378, 3
      $region36: #{basic_block_forward.4} parent=27 // pred_fallthru
        _
      // Predicated region
      $region37: #{basic_block_forward.4} parent=27 // pred_check
        %p381 = pneg %p134
      $region38: #{basic_block_forward.4} parent=27 // pred_check_branch
        %383 = sbr.rel (%p381) target = $region40
      $region39: #{basic_block_forward.4} parent=27 // pred_region
        %s384 = sadd.s32 %s24, 1
        %p385 = scmp.gt.s32.totalorder %s384, 0
        %s386 = scalar_select %p385, %s384, 0
        %p387 = scmp.lt.s32.totalorder %s386, 3
        %s388 = scalar_select %p387, %s386, 3
        %p389 = scmp.lt.s32.totalorder %s23, 1
        %s390 = scalar_select %p389, %s23, 1
        %p391 = scmp.lt.s32.totalorder %s388, 3
        %s392 = scalar_select %p391, %s388, 3
        %s393 = smul.addr %s392, 14
        %s394 = smul.addr %s390, 56
        %s395 = sadd.s32 %s393, %s394
        %s396 = smul.addr %s395, 4
        %s397 = scalar_lea.vmem %s2, %s396
        %s398 = sadd.s32 %s24, 1
        %p399 = scmp.gt.s32.totalorder %s398, 0
        %s400 = scalar_select %p399, %s398, 0
        %p401 = scmp.lt.s32.totalorder %s400, 3
        %s402 = scalar_select %p401, %s400, 3
      $region40: #{basic_block_forward.4} parent=27 // pred_fallthru
        _
      // Predicated region
      $region41: #{basic_block_forward.4} parent=27 // pred_check
        %p403 = pneg %p223
      $region42: #{basic_block_forward.4} parent=27 // pred_check_branch
        %405 = sbr.rel (%p403) target = $region44
      $region43: #{basic_block_forward.4} parent=27 // pred_region
        %p406 = scmp.lt.s32.totalorder %s23, 1
        %s407 = scalar_select %p406, %s23, 1
        %s408 = scalar_lea.vmem %s6, %s407
      $region44: #{basic_block_forward.4} parent=27 // pred_fallthru
        _
      // Predicated region
      $region45: #{basic_block_forward.4} parent=27 // pred_check
        %p409 = pneg %p249
      $region46: #{basic_block_forward.4} parent=27 // pred_check_branch
        %411 = sbr.rel (%p409) target = $region48
      $region47: #{basic_block_forward.4} parent=27 // pred_region
        %p412 = scmp.lt.s32.totalorder %s23, 1
        %s413 = scalar_select %p412, %s23, 1
        %s414 = scalar_lea.vmem %s7, %s413
      $region48: #{basic_block_forward.4} parent=27 // pred_fallthru
        _
    $region28: #{basic_block_forward.4} parent=5 // pred_fallthru
      _
    %p415 = scmp.le.s32.totalorder 1, %s16
    %p416 = scmp.lt.s32.totalorder %s16, 9
    %p417 = pnand %p415, %p416
    %p418 = pneg %p417
    // Predicated region
    $region49: #{basic_block_forward.4} parent=5 // pred_check
      _
    $region50: #{basic_block_forward.4} parent=5 // pred_check_branch
      %420 = sbr.rel (%p417) target = $region52
    $region51: #{basic_block_forward.4} parent=5 // pred_region
      %s421 = ssub.s32 %s16, 1
      %s422 = sadd.s32 %s26, 4294967295
      %p423 = scmp.gt.s32.totalorder %s422, 0
      %s424 = scalar_select %p423, %s422, 0
      %p425 = scmp.lt.s32.totalorder %s424, 3
      %s426 = scalar_select %p425, %s424, 3
      %p427 = scmp.lt.s32.totalorder %s25, 1
      %s428 = scalar_select %p427, %s25, 1
      %p429 = scmp.lt.s32.totalorder %s426, 3
      %s430 = scalar_select %p429, %s426, 3
      %s431 = smul.addr %s430, 14
      %s432 = smul.addr %s428, 56
      %s433 = sadd.s32 %s431, %s432
      %s434 = smul.addr %s433, 4
      %s435 = scalar_lea.vmem %s0, %s434
      %p436 = pneg %p66
      %p437 = pneg %p63
      %p438 = scmp.gt.s32.totalorder %s26, 0
      %s439 = scalar_select %p438, %s26, 0
      %p440 = scmp.lt.s32.totalorder %s439, 3
      %s441 = scalar_select %p440, %s439, 3
      %p442 = scmp.lt.s32.totalorder %s25, 1
      %s443 = scalar_select %p442, %s25, 1
      %p444 = scmp.lt.s32.totalorder %s441, 3
      %s445 = scalar_select %p444, %s441, 3
      %s446 = smul.addr %s445, 14
      %s447 = smul.addr %s443, 56
      %s448 = sadd.s32 %s446, %s447
      %s449 = smul.addr %s448, 4
      %s450 = scalar_lea.vmem %s1, %s449
      %p451 = pneg %p102
      %p452 = pneg %p99
      %s453 = sadd.s32 %s26, 1
      %p454 = scmp.gt.s32.totalorder %s453, 0
      %s455 = scalar_select %p454, %s453, 0
      %p456 = scmp.lt.s32.totalorder %s455, 3
      %s457 = scalar_select %p456, %s455, 3
      %p458 = scmp.lt.s32.totalorder %s25, 1
      %s459 = scalar_select %p458, %s25, 1
      %p460 = scmp.lt.s32.totalorder %s457, 3
      %s461 = scalar_select %p460, %s457, 3
      %s462 = smul.addr %s461, 14
      %s463 = smul.addr %s459, 56
      %s464 = sadd.s32 %s462, %s463
      %s465 = smul.addr %s464, 4
      %s466 = scalar_lea.vmem %s2, %s465
      %p467 = pneg %p140
      %p468 = pneg %p137
      %p469 = pneg %p161
      %p470 = pneg %p158
      %p471 = pneg %p182
      %p472 = pneg %p179
      %p473 = pneg %p203
      %p474 = pneg %p200
      %p475 = scmp.lt.s32.totalorder %s25, 1
      %s476 = scalar_select %p475, %s25, 1
      %s477 = scalar_lea.vmem %s6, %s476
      %p478 = pneg %p229
      %p479 = pneg %p226
      %p480 = scmp.lt.s32.totalorder %s25, 1
      %s481 = scalar_select %p480, %s25, 1
      %s482 = scalar_lea.vmem %s7, %s481
      %p483 = pneg %p255
      %p484 = pneg %p252
      %p485 = pneg %p283
      %p486 = pneg %p280
      %p487 = scmp.lt.s32.totalorder %s25, 1
      %s488 = scalar_select %p487, %s25, 1
      %p489 = scmp.lt.s32.totalorder %s26, 3
      %s490 = scalar_select %p489, %s26, 3
      %s491 = smul.addr %s490, 14
      %s492 = smul.addr %s488, 56
      %s493 = sadd.s32 %s491, %s492
      %s494 = smul.addr %s493, 4
      %s495 = scalar_lea.vmem %s8, %s494
      %p496 = pneg %p311
      %p497 = pneg %p308
      %p498 = scmp.lt.s32.totalorder %s25, 1
      %s499 = scalar_select %p498, %s25, 1
      %p500 = scmp.lt.s32.totalorder %s26, 3
      %s501 = scalar_select %p500, %s26, 3
      %s502 = smul.addr %s499, 4
      %s503 = sadd.s32 %s501, %s502
      %s504 = smul.addr %s503, 2
      %s505 = scalar_lea.vmem %s9, %s504
      %s506 = sadd.s32 %s26, 4294967295
      %p507 = scmp.gt.s32.totalorder %s506, 0
      %s508 = scalar_select %p507, %s506, 0
      %p509 = scmp.lt.s32.totalorder %s508, 3
      %s510 = scalar_select %p509, %s508, 3
      %p511 = scmp.lt.s32.totalorder %s25, 1
      %s512 = scalar_select %p511, %s25, 1
      %p513 = scmp.lt.s32.totalorder %s510, 3
      %s514 = scalar_select %p513, %s510, 3
      %s515 = smul.addr %s514, 14
      %s516 = smul.addr %s512, 56
      %s517 = sadd.s32 %s515, %s516
      %s518 = smul.addr %s517, 4
      %s519 = scalar_lea.vmem %s0, %s518
      %s520 = sadd.s32 %s26, 4294967295
      %p521 = scmp.gt.s32.totalorder %s520, 0
      %s522 = scalar_select %p521, %s520, 0
      %p523 = scmp.lt.s32.totalorder %s522, 3
      %s524 = scalar_select %p523, %s522, 3
      %p525 = scmp.gt.s32.totalorder %s26, 0
      %s526 = scalar_select %p525, %s26, 0
      %p527 = scmp.lt.s32.totalorder %s526, 3
      %s528 = scalar_select %p527, %s526, 3
      %p529 = scmp.lt.s32.totalorder %s25, 1
      %s530 = scalar_select %p529, %s25, 1
      %p531 = scmp.lt.s32.totalorder %s528, 3
      %s532 = scalar_select %p531, %s528, 3
      %s533 = smul.addr %s532, 14
      %s534 = smul.addr %s530, 56
      %s535 = sadd.s32 %s533, %s534
      %s536 = smul.addr %s535, 4
      %s537 = scalar_lea.vmem %s1, %s536
      %p538 = scmp.gt.s32.totalorder %s26, 0
      %s539 = scalar_select %p538, %s26, 0
      %p540 = scmp.lt.s32.totalorder %s539, 3
      %s541 = scalar_select %p540, %s539, 3
      %s542 = sadd.s32 %s26, 1
      %p543 = scmp.gt.s32.totalorder %s542, 0
      %s544 = scalar_select %p543, %s542, 0
      %p545 = scmp.lt.s32.totalorder %s544, 3
      %s546 = scalar_select %p545, %s544, 3
      %p547 = scmp.lt.s32.totalorder %s25, 1
      %s548 = scalar_select %p547, %s25, 1
      %p549 = scmp.lt.s32.totalorder %s546, 3
      %s550 = scalar_select %p549, %s546, 3
      %s551 = smul.addr %s550, 14
      %s552 = smul.addr %s548, 56
      %s553 = sadd.s32 %s551, %s552
      %s554 = smul.addr %s553, 4
      %s555 = scalar_lea.vmem %s2, %s554
      %s556 = sadd.s32 %s26, 1
      %p557 = scmp.gt.s32.totalorder %s556, 0
      %s558 = scalar_select %p557, %s556, 0
      %p559 = scmp.lt.s32.totalorder %s558, 3
      %s560 = scalar_select %p559, %s558, 3
      %p561 = scmp.lt.s32.totalorder %s25, 1
      %s562 = scalar_select %p561, %s25, 1
      %s563 = scalar_lea.vmem %s6, %s562
      %p564 = scmp.lt.s32.totalorder %s25, 1
      %s565 = scalar_select %p564, %s25, 1
      %s566 = scalar_lea.vmem %s7, %s565
      %p567 = scmp.lt.s32.totalorder %s25, 1
      %s568 = scalar_select %p567, %s25, 1
      %p569 = scmp.lt.s32.totalorder %s26, 3
      %s570 = scalar_select %p569, %s26, 3
      %s571 = smul.addr %s570, 14
      %s572 = smul.addr %s568, 56
      %s573 = sadd.s32 %s571, %s572
      %s574 = smul.addr %s573, 4
      %s575 = scalar_lea.vmem %s8, %s574
      %p576 = scmp.lt.s32.totalorder %s25, 1
      %s577 = scalar_select %p576, %s25, 1
      %p578 = scmp.lt.s32.totalorder %s26, 3
      %s579 = scalar_select %p578, %s26, 3
      %s580 = smul.addr %s577, 4
      %s581 = sadd.s32 %s579, %s580
      %s582 = smul.addr %s581, 2
      %s583 = scalar_lea.vmem %s9, %s582
      %s585 = sadd.s32 %s26, 4294967295
      %p586 = scmp.ge.s32.totalorder %s585, 0
      %p587 = scmp.le.s32.totalorder %s585, 3
      %p588 = pnand %p586, %p587
      %p589 = pneg %p588
      %v590 = vld [vmem:[%s519] sm:$0xf]
      %v591 = vld [vmem:[%s519 + $0x4] sm:$0xf]
      %v592 = vld [vmem:[%s519 + $0x8] sm:$0xf]
      %v593 = vld [vmem:[%s519 + $0xc] sm:$0xf]
      %v594 = vld [vmem:[%s519 + $0x10] sm:$0xf]
      %v595 = vld [vmem:[%s519 + $0x14] sm:$0xf]
      %v596 = vld [vmem:[%s519 + $0x18] sm:$0xf]
      %v597 = vld [vmem:[%s519 + $0x1c] sm:$0xf]
      %v598 = vld [vmem:[%s519 + $0x20] sm:$0xf]
      %v599 = vld [vmem:[%s519 + $0x24] sm:$0xf]
      %v600 = vld [vmem:[%s519 + $0x28] sm:$0xf]
      %v601 = vld [vmem:[%s519 + $0x2c] sm:$0xf]
      %v602 = vld [vmem:[%s519 + $0x30] sm:$0xf]
      %v603 = vunpack.c.l.bf16 %v590
      %v604 = vunpack.c.l.bf16 %v591
      %v605 = vunpack.c.l.bf16 %v592
      %v606 = vunpack.c.l.bf16 %v593
      %v607 = vunpack.c.l.bf16 %v594
      %v608 = vunpack.c.l.bf16 %v595
      %v609 = vunpack.c.l.bf16 %v596
      %v610 = vunpack.c.l.bf16 %v597
      %v611 = vunpack.c.l.bf16 %v598
      %v612 = vunpack.c.l.bf16 %v599
      %v613 = vunpack.c.l.bf16 %v600
      %v614 = vunpack.c.l.bf16 %v601
      %v615 = vunpack.c.l.bf16 %v602
      %v616 = vld [vmem:[%s563] sm:$0x1]
      %v618 = vperm.slane %v616, 0
      %v620 = vmul.f32 %v603, %v618
      %v621 = vmul.f32 %v604, %v618
      %v622 = vmul.f32 %v605, %v618
      %v623 = vmul.f32 %v606, %v618
      %v624 = vmul.f32 %v607, %v618
      %v625 = vmul.f32 %v608, %v618
      %v626 = vmul.f32 %v609, %v618
      %v627 = vmul.f32 %v610, %v618
      %v628 = vmul.f32 %v611, %v618
      %v629 = vmul.f32 %v612, %v618
      %v630 = vmul.f32 %v613, %v618
      %v631 = vmul.f32 %v614, %v618
      %v632 = vmul.f32 %v615, %v618
      %v633 = vld [vmem:[%s566] sm:$0x1]
      %v635 = vperm.slane %v633, 0
      %v637 = vadd.f32 %v620, %v635
      %v638 = vadd.f32 %v621, %v635
      %v639 = vadd.f32 %v622, %v635
      %v640 = vadd.f32 %v623, %v635
      %v641 = vadd.f32 %v624, %v635
      %v642 = vadd.f32 %v625, %v635
      %v643 = vadd.f32 %v626, %v635
      %v644 = vadd.f32 %v627, %v635
      %v645 = vadd.f32 %v628, %v635
      %v646 = vadd.f32 %v629, %v635
      %v647 = vadd.f32 %v630, %v635
      %v648 = vadd.f32 %v631, %v635
      %v649 = vadd.f32 %v632, %v635
      %v650 = vmax.f32 %v637, 0.0
      %v651 = vmax.f32 %v638, 0.0
      %v652 = vmax.f32 %v639, 0.0
      %v653 = vmax.f32 %v640, 0.0
      %v654 = vmax.f32 %v641, 0.0
      %v655 = vmax.f32 %v642, 0.0
      %v656 = vmax.f32 %v643, 0.0
      %v657 = vmax.f32 %v644, 0.0
      %v658 = vmax.f32 %v645, 0.0
      %v659 = vmax.f32 %v646, 0.0
      %v660 = vmax.f32 %v647, 0.0
      %v661 = vmax.f32 %v648, 0.0
      %v662 = vmax.f32 %v649, 0.0
      %v663 = vld [vmem:[%s5] sm:$0xff]
      %v664 = vld [vmem:[%s5 + $0x8] sm:$0xff]
      %v665 = vld [vmem:[%s5 + $0x10] sm:$0xff]
      %v666 = vld [vmem:[%s5 + $0x18] sm:$0xff]
      %v667 = vld [vmem:[%s5 + $0x20] sm:$0xff]
      %v668 = vld [vmem:[%s5 + $0x28] sm:$0xff]
      %v669 = vld [vmem:[%s5 + $0x30] sm:$0xff]
      %v670 = vld [vmem:[%s5 + $0x38] sm:$0xff]
      %v671 = vld [vmem:[%s5 + $0x40] sm:$0xff]
      %v672 = vld [vmem:[%s5 + $0x48] sm:$0xff]
      %v673 = vld [vmem:[%s5 + $0x50] sm:$0xff]
      %v674 = vld [vmem:[%s5 + $0x58] sm:$0xff]
      %v675 = vld [vmem:[%s5 + $0x60] sm:$0xff]
      %677 = vset.pattern.permute.xlu0 0
      %678 = vperm.xlu0 %677, %v663
      %v679 = vpop.permute.xlu0 %678
      %682 = vset.pattern.permute.xlu0 0
      %683 = vperm.xlu0 %682, %v664
      %v684 = vpop.permute.xlu0 %683
      %687 = vset.pattern.permute.xlu0 0
      %688 = vperm.xlu0 %687, %v665
      %v689 = vpop.permute.xlu0 %688
      %692 = vset.pattern.permute.xlu0 0
      %693 = vperm.xlu0 %692, %v666
      %v694 = vpop.permute.xlu0 %693
      %697 = vset.pattern.permute.xlu0 0
      %698 = vperm.xlu0 %697, %v667
      %v699 = vpop.permute.xlu0 %698
      %702 = vset.pattern.permute.xlu0 0
      %703 = vperm.xlu0 %702, %v668
      %v704 = vpop.permute.xlu0 %703
      %707 = vset.pattern.permute.xlu0 0
      %708 = vperm.xlu0 %707, %v669
      %v709 = vpop.permute.xlu0 %708
      %712 = vset.pattern.permute.xlu0 0
      %713 = vperm.xlu0 %712, %v670
      %v714 = vpop.permute.xlu0 %713
      %717 = vset.pattern.permute.xlu0 0
      %718 = vperm.xlu0 %717, %v671
      %v719 = vpop.permute.xlu0 %718
      %722 = vset.pattern.permute.xlu0 0
      %723 = vperm.xlu0 %722, %v672
      %v724 = vpop.permute.xlu0 %723
      %727 = vset.pattern.permute.xlu0 0
      %728 = vperm.xlu0 %727, %v673
      %v729 = vpop.permute.xlu0 %728
      %732 = vset.pattern.permute.xlu0 0
      %733 = vperm.xlu0 %732, %v674
      %v734 = vpop.permute.xlu0 %733
      %737 = vset.pattern.permute.xlu0 0
      %738 = vperm.xlu0 %737, %v675
      %v739 = vpop.permute.xlu0 %738
      %v741 = vmul.f32 %v650, %v679
      %v742 = vmul.f32 %v651, %v684
      %v743 = vmul.f32 %v652, %v689
      %v744 = vmul.f32 %v653, %v694
      %v745 = vmul.f32 %v654, %v699
      %v746 = vmul.f32 %v655, %v704
      %v747 = vmul.f32 %v656, %v709
      %v748 = vmul.f32 %v657, %v714
      %v749 = vmul.f32 %v658, %v719
      %v750 = vmul.f32 %v659, %v724
      %v751 = vmul.f32 %v660, %v729
      %v752 = vmul.f32 %v661, %v734
      %v753 = vmul.f32 %v662, %v739
      %s754 = scalar_select %p589, 1, 0
      %s755 = scvt.s32.f32 %s754
      %v756 = vstv %s755
      %v757 = vmul.f32 %v741, %v756
      %v758 = vmul.f32 %v742, %v756
      %v759 = vmul.f32 %v743, %v756
      %v760 = vmul.f32 %v744, %v756
      %v761 = vmul.f32 %v745, %v756
      %v762 = vmul.f32 %v746, %v756
      %v763 = vmul.f32 %v747, %v756
      %v764 = vmul.f32 %v748, %v756
      %v765 = vmul.f32 %v749, %v756
      %v766 = vmul.f32 %v750, %v756
      %v767 = vmul.f32 %v751, %v756
      %v768 = vmul.f32 %v752, %v756
      %v769 = vmul.f32 %v753, %v756
      %vm781 = vcmask 1046528
      %v782 = vrot.slane %v757, 1
      %v783 = vrot.slane %v758, 1
      %v784 = vsel %vm781, %v782, %v783
      %v785 = vrot.slane %v759, 1
      %v786 = vsel %vm781, %v783, %v785
      %v787 = vrot.slane %v760, 1
      %v788 = vsel %vm781, %v785, %v787
      %v789 = vrot.slane %v761, 1
      %v790 = vsel %vm781, %v787, %v789
      %v791 = vrot.slane %v762, 1
      %v792 = vsel %vm781, %v789, %v791
      %v793 = vrot.slane %v763, 1
      %v794 = vsel %vm781, %v791, %v793
      %v795 = vrot.slane %v764, 1
      %v796 = vsel %vm781, %v793, %v795
      %v797 = vrot.slane %v765, 1
      %v798 = vsel %vm781, %v795, %v797
      %v799 = vrot.slane %v766, 1
      %v800 = vsel %vm781, %v797, %v799
      %v801 = vrot.slane %v767, 1
      %v802 = vsel %vm781, %v799, %v801
      %803 = vrot.lane.b32.xlu0 %v784, 32
      %v804 = vpop.permute.xlu0 %803
      %805 = vrot.lane.b32.xlu0 %v786, 32
      %v806 = vpop.permute.xlu0 %805
      %807 = vrot.lane.b32.xlu0 %v788, 32
      %v808 = vpop.permute.xlu0 %807
      %809 = vrot.lane.b32.xlu0 %v790, 32
      %v810 = vpop.permute.xlu0 %809
      %811 = vrot.lane.b32.xlu0 %v792, 32
      %v812 = vpop.permute.xlu0 %811
      %813 = vrot.lane.b32.xlu0 %v794, 32
      %v814 = vpop.permute.xlu0 %813
      %815 = vrot.lane.b32.xlu0 %v796, 32
      %v816 = vpop.permute.xlu0 %815
      %817 = vrot.lane.b32.xlu0 %v798, 32
      %v818 = vpop.permute.xlu0 %817
      %819 = vrot.lane.b32.xlu0 %v800, 32
      %v820 = vpop.permute.xlu0 %819
      %821 = vrot.lane.b32.xlu0 %v802, 32
      %v822 = vpop.permute.xlu0 %821
      %vm833 = vcmask 1045504
      %v834 = vrot.slane %v757, 2
      %v835 = vrot.slane %v758, 2
      %v836 = vsel %vm833, %v834, %v835
      %v837 = vrot.slane %v759, 2
      %v838 = vsel %vm833, %v835, %v837
      %v839 = vrot.slane %v760, 2
      %v840 = vsel %vm833, %v837, %v839
      %v841 = vrot.slane %v761, 2
      %v842 = vsel %vm833, %v839, %v841
      %v843 = vrot.slane %v762, 2
      %v844 = vsel %vm833, %v841, %v843
      %v845 = vrot.slane %v763, 2
      %v846 = vsel %vm833, %v843, %v845
      %v847 = vrot.slane %v764, 2
      %v848 = vsel %vm833, %v845, %v847
      %v849 = vrot.slane %v765, 2
      %v850 = vsel %vm833, %v847, %v849
      %v851 = vrot.slane %v766, 2
      %v852 = vsel %vm833, %v849, %v851
      %v853 = vrot.slane %v767, 2
      %v854 = vsel %vm833, %v851, %v853
      %855 = vrot.lane.b32.xlu0 %v836, 64
      %v856 = vpop.permute.xlu0 %855
      %857 = vrot.lane.b32.xlu0 %v838, 64
      %v858 = vpop.permute.xlu0 %857
      %859 = vrot.lane.b32.xlu0 %v840, 64
      %v860 = vpop.permute.xlu0 %859
      %861 = vrot.lane.b32.xlu0 %v842, 64
      %v862 = vpop.permute.xlu0 %861
      %863 = vrot.lane.b32.xlu0 %v844, 64
      %v864 = vpop.permute.xlu0 %863
      %865 = vrot.lane.b32.xlu0 %v846, 64
      %v866 = vpop.permute.xlu0 %865
      %867 = vrot.lane.b32.xlu0 %v848, 64
      %v868 = vpop.permute.xlu0 %867
      %869 = vrot.lane.b32.xlu0 %v850, 64
      %v870 = vpop.permute.xlu0 %869
      %871 = vrot.lane.b32.xlu0 %v852, 64
      %v872 = vpop.permute.xlu0 %871
      %873 = vrot.lane.b32.xlu0 %v854, 64
      %v874 = vpop.permute.xlu0 %873
      %v886 = vrot.slane %v768, 2
      %v887 = vsel %vm833, %v853, %v886
      %888 = vrot.lane.b32.xlu0 %v838, 96
      %v889 = vpop.permute.xlu0 %888
      %890 = vrot.lane.b32.xlu0 %v840, 96
      %v891 = vpop.permute.xlu0 %890
      %892 = vrot.lane.b32.xlu0 %v842, 96
      %v893 = vpop.permute.xlu0 %892
      %894 = vrot.lane.b32.xlu0 %v844, 96
      %v895 = vpop.permute.xlu0 %894
      %896 = vrot.lane.b32.xlu0 %v846, 96
      %v897 = vpop.permute.xlu0 %896
      %898 = vrot.lane.b32.xlu0 %v848, 96
      %v899 = vpop.permute.xlu0 %898
      %900 = vrot.lane.b32.xlu0 %v850, 96
      %v901 = vpop.permute.xlu0 %900
      %902 = vrot.lane.b32.xlu0 %v852, 96
      %v903 = vpop.permute.xlu0 %902
      %904 = vrot.lane.b32.xlu0 %v854, 96
      %v905 = vpop.permute.xlu0 %904
      %906 = vrot.lane.b32.xlu0 %v887, 96
      %v907 = vpop.permute.xlu0 %906
      %vm918 = vcmask 1044480
      %v919 = vrot.slane %v758, 3
      %v920 = vrot.slane %v759, 3
      %v921 = vsel %vm918, %v919, %v920
      %v922 = vrot.slane %v760, 3
      %v923 = vsel %vm918, %v920, %v922
      %v924 = vrot.slane %v761, 3
      %v925 = vsel %vm918, %v922, %v924
      %v926 = vrot.slane %v762, 3
      %v927 = vsel %vm918, %v924, %v926
      %v928 = vrot.slane %v763, 3
      %v929 = vsel %vm918, %v926, %v928
      %v930 = vrot.slane %v764, 3
      %v931 = vsel %vm918, %v928, %v930
      %v932 = vrot.slane %v765, 3
      %v933 = vsel %vm918, %v930, %v932
      %v934 = vrot.slane %v766, 3
      %v935 = vsel %vm918, %v932, %v934
      %v936 = vrot.slane %v767, 3
      %v937 = vsel %vm918, %v934, %v936
      %v938 = vrot.slane %v768, 3
      %v939 = vsel %vm918, %v936, %v938
      %vm950 = vcmask 1043456
      %v951 = vrot.slane %v758, 4
      %v952 = vrot.slane %v759, 4
      %v953 = vsel %vm950, %v951, %v952
      %v954 = vrot.slane %v760, 4
      %v955 = vsel %vm950, %v952, %v954
      %v956 = vrot.slane %v761, 4
      %v957 = vsel %vm950, %v954, %v956
      %v958 = vrot.slane %v762, 4
      %v959 = vsel %vm950, %v956, %v958
      %v960 = vrot.slane %v763, 4
      %v961 = vsel %vm950, %v958, %v960
      %v962 = vrot.slane %v764, 4
      %v963 = vsel %vm950, %v960, %v962
      %v964 = vrot.slane %v765, 4
      %v965 = vsel %vm950, %v962, %v964
      %v966 = vrot.slane %v766, 4
      %v967 = vsel %vm950, %v964, %v966
      %v968 = vrot.slane %v767, 4
      %v969 = vsel %vm950, %v966, %v968
      %v970 = vrot.slane %v768, 4
      %v971 = vsel %vm950, %v968, %v970
      %972 = vrot.lane.b32.xlu0 %v953, 32
      %v973 = vpop.permute.xlu0 %972
      %974 = vrot.lane.b32.xlu0 %v955, 32
      %v975 = vpop.permute.xlu0 %974
      %976 = vrot.lane.b32.xlu0 %v957, 32
      %v977 = vpop.permute.xlu0 %976
      %978 = vrot.lane.b32.xlu0 %v959, 32
      %v979 = vpop.permute.xlu0 %978
      %980 = vrot.lane.b32.xlu0 %v961, 32
      %v981 = vpop.permute.xlu0 %980
      %982 = vrot.lane.b32.xlu0 %v963, 32
      %v983 = vpop.permute.xlu0 %982
      %984 = vrot.lane.b32.xlu0 %v965, 32
      %v985 = vpop.permute.xlu0 %984
      %986 = vrot.lane.b32.xlu0 %v967, 32
      %v987 = vpop.permute.xlu0 %986
      %988 = vrot.lane.b32.xlu0 %v969, 32
      %v989 = vpop.permute.xlu0 %988
      %990 = vrot.lane.b32.xlu0 %v971, 32
      %v991 = vpop.permute.xlu0 %990
      %v1003 = vrot.slane %v769, 4
      %v1004 = vsel %vm950, %v970, %v1003
      %1005 = vrot.lane.b32.xlu0 %v955, 64
      %v1006 = vpop.permute.xlu0 %1005
      %1007 = vrot.lane.b32.xlu0 %v957, 64
      %v1008 = vpop.permute.xlu0 %1007
      %1009 = vrot.lane.b32.xlu0 %v959, 64
      %v1010 = vpop.permute.xlu0 %1009
      %1011 = vrot.lane.b32.xlu0 %v961, 64
      %v1012 = vpop.permute.xlu0 %1011
      %1013 = vrot.lane.b32.xlu0 %v963, 64
      %v1014 = vpop.permute.xlu0 %1013
      %1015 = vrot.lane.b32.xlu0 %v965, 64
      %v1016 = vpop.permute.xlu0 %1015
      %1017 = vrot.lane.b32.xlu0 %v967, 64
      %v1018 = vpop.permute.xlu0 %1017
      %1019 = vrot.lane.b32.xlu0 %v969, 64
      %v1020 = vpop.permute.xlu0 %1019
      %1021 = vrot.lane.b32.xlu0 %v971, 64
      %v1022 = vpop.permute.xlu0 %1021
      %1023 = vrot.lane.b32.xlu0 %v1004, 64
      %v1024 = vpop.permute.xlu0 %1023
      %vm1035 = vcmask 1042432
      %v1036 = vrot.slane %v759, 5
      %v1037 = vrot.slane %v760, 5
      %v1038 = vsel %vm1035, %v1036, %v1037
      %v1039 = vrot.slane %v761, 5
      %v1040 = vsel %vm1035, %v1037, %v1039
      %v1041 = vrot.slane %v762, 5
      %v1042 = vsel %vm1035, %v1039, %v1041
      %v1043 = vrot.slane %v763, 5
      %v1044 = vsel %vm1035, %v1041, %v1043
      %v1045 = vrot.slane %v764, 5
      %v1046 = vsel %vm1035, %v1043, %v1045
      %v1047 = vrot.slane %v765, 5
      %v1048 = vsel %vm1035, %v1045, %v1047
      %v1049 = vrot.slane %v766, 5
      %v1050 = vsel %vm1035, %v1047, %v1049
      %v1051 = vrot.slane %v767, 5
      %v1052 = vsel %vm1035, %v1049, %v1051
      %v1053 = vrot.slane %v768, 5
      %v1054 = vsel %vm1035, %v1051, %v1053
      %v1055 = vrot.slane %v769, 5
      %v1056 = vsel %vm1035, %v1053, %v1055
      %1057 = vrot.lane.b32.xlu0 %v1038, 96
      %v1058 = vpop.permute.xlu0 %1057
      %1059 = vrot.lane.b32.xlu0 %v1040, 96
      %v1060 = vpop.permute.xlu0 %1059
      %1061 = vrot.lane.b32.xlu0 %v1042, 96
      %v1062 = vpop.permute.xlu0 %1061
      %1063 = vrot.lane.b32.xlu0 %v1044, 96
      %v1064 = vpop.permute.xlu0 %1063
      %1065 = vrot.lane.b32.xlu0 %v1046, 96
      %v1066 = vpop.permute.xlu0 %1065
      %1067 = vrot.lane.b32.xlu0 %v1048, 96
      %v1068 = vpop.permute.xlu0 %1067
      %1069 = vrot.lane.b32.xlu0 %v1050, 96
      %v1070 = vpop.permute.xlu0 %1069
      %1071 = vrot.lane.b32.xlu0 %v1052, 96
      %v1072 = vpop.permute.xlu0 %1071
      %1073 = vrot.lane.b32.xlu0 %v1054, 96
      %v1074 = vpop.permute.xlu0 %1073
      %1075 = vrot.lane.b32.xlu0 %v1056, 96
      %v1076 = vpop.permute.xlu0 %1075
      %vm1087 = vcmask 1041408
      %v1088 = vrot.slane %v759, 6
      %v1089 = vrot.slane %v760, 6
      %v1090 = vsel %vm1087, %v1088, %v1089
      %v1091 = vrot.slane %v761, 6
      %v1092 = vsel %vm1087, %v1089, %v1091
      %v1093 = vrot.slane %v762, 6
      %v1094 = vsel %vm1087, %v1091, %v1093
      %v1095 = vrot.slane %v763, 6
      %v1096 = vsel %vm1087, %v1093, %v1095
      %v1097 = vrot.slane %v764, 6
      %v1098 = vsel %vm1087, %v1095, %v1097
      %v1099 = vrot.slane %v765, 6
      %v1100 = vsel %vm1087, %v1097, %v1099
      %v1101 = vrot.slane %v766, 6
      %v1102 = vsel %vm1087, %v1099, %v1101
      %v1103 = vrot.slane %v767, 6
      %v1104 = vsel %vm1087, %v1101, %v1103
      %v1105 = vrot.slane %v768, 6
      %v1106 = vsel %vm1087, %v1103, %v1105
      %v1107 = vrot.slane %v769, 6
      %v1108 = vsel %vm1087, %v1105, %v1107
      %vm1119 = vcmask 261120
      %v1120 = vsel %vm1119, %v757, %v804
      %v1121 = vsel %vm1119, %v758, %v806
      %v1122 = vsel %vm1119, %v759, %v808
      %v1123 = vsel %vm1119, %v760, %v810
      %v1124 = vsel %vm1119, %v761, %v812
      %v1125 = vsel %vm1119, %v762, %v814
      %v1126 = vsel %vm1119, %v763, %v816
      %v1127 = vsel %vm1119, %v764, %v818
      %v1128 = vsel %vm1119, %v765, %v820
      %v1129 = vsel %vm1119, %v766, %v822
      %vm1130 = vcmask 523264
      %v1131 = vsel %vm1130, %v1120, %v856
      %v1132 = vsel %vm1130, %v1121, %v858
      %v1133 = vsel %vm1130, %v1122, %v860
      %v1134 = vsel %vm1130, %v1123, %v862
      %v1135 = vsel %vm1130, %v1124, %v864
      %v1136 = vsel %vm1130, %v1125, %v866
      %v1137 = vsel %vm1130, %v1126, %v868
      %v1138 = vsel %vm1130, %v1127, %v870
      %v1139 = vsel %vm1130, %v1128, %v872
      %v1140 = vsel %vm1130, %v1129, %v874
      %vm1141 = vcmask 785408
      %v1142 = vsel %vm1141, %v1131, %v889
      %v1143 = vsel %vm1141, %v1132, %v891
      %v1144 = vsel %vm1141, %v1133, %v893
      %v1145 = vsel %vm1141, %v1134, %v895
      %v1146 = vsel %vm1141, %v1135, %v897
      %v1147 = vsel %vm1141, %v1136, %v899
      %v1148 = vsel %vm1141, %v1137, %v901
      %v1149 = vsel %vm1141, %v1138, %v903
      %v1150 = vsel %vm1141, %v1139, %v905
      %v1151 = vsel %vm1141, %v1140, %v907
      %v1152 = vsel %vm1119, %v921, %v973
      %v1153 = vsel %vm1119, %v923, %v975
      %v1154 = vsel %vm1119, %v925, %v977
      %v1155 = vsel %vm1119, %v927, %v979
      %v1156 = vsel %vm1119, %v929, %v981
      %v1157 = vsel %vm1119, %v931, %v983
      %v1158 = vsel %vm1119, %v933, %v985
      %v1159 = vsel %vm1119, %v935, %v987
      %v1160 = vsel %vm1119, %v937, %v989
      %v1161 = vsel %vm1119, %v939, %v991
      %v1162 = vsel %vm1130, %v1152, %v1006
      %v1163 = vsel %vm1130, %v1153, %v1008
      %v1164 = vsel %vm1130, %v1154, %v1010
      %v1165 = vsel %vm1130, %v1155, %v1012
      %v1166 = vsel %vm1130, %v1156, %v1014
      %v1167 = vsel %vm1130, %v1157, %v1016
      %v1168 = vsel %vm1130, %v1158, %v1018
      %v1169 = vsel %vm1130, %v1159, %v1020
      %v1170 = vsel %vm1130, %v1160, %v1022
      %v1171 = vsel %vm1130, %v1161, %v1024
      %v1172 = vsel %vm1141, %v1162, %v1058
      %v1173 = vsel %vm1141, %v1163, %v1060
      %v1174 = vsel %vm1141, %v1164, %v1062
      %v1175 = vsel %vm1141, %v1165, %v1064
      %v1176 = vsel %vm1141, %v1166, %v1066
      %v1177 = vsel %vm1141, %v1167, %v1068
      %v1178 = vsel %vm1141, %v1168, %v1070
      %v1179 = vsel %vm1141, %v1169, %v1072
      %v1180 = vsel %vm1141, %v1170, %v1074
      %v1181 = vsel %vm1141, %v1171, %v1076
      %v1182 = vpack.c.bf16 %v1143, %v1142
      %v1183 = vpack.c.bf16 %v1173, %v1172
      %v1184 = vpack.c.bf16 %v1092, %v1090
      %v1185 = vpack.c.bf16 %v1145, %v1144
      %v1186 = vpack.c.bf16 %v1175, %v1174
      %v1187 = vpack.c.bf16 %v1096, %v1094
      %v1188 = vpack.c.bf16 %v1147, %v1146
      %v1189 = vpack.c.bf16 %v1177, %v1176
      %v1190 = vpack.c.bf16 %v1100, %v1098
      %v1191 = vpack.c.bf16 %v1149, %v1148
      %v1192 = vpack.c.bf16 %v1179, %v1178
      %v1193 = vpack.c.bf16 %v1104, %v1102
      %v1194 = vpack.c.bf16 %v1151, %v1150
      %v1195 = vpack.c.bf16 %v1181, %v1180
      %v1196 = vpack.c.bf16 %v1108, %v1106
      %v1197 = vld [vmem:[%s3] sm:$0xf]
      %v1198 = vld [vmem:[%s3 + $0x4] sm:$0xf]
      %v1199 = vld [vmem:[%s3 + $0x8] sm:$0xf]
      %v1200 = vld [vmem:[%s3 + $0xc] sm:$0xf]
      %v1201 = vld [vmem:[%s3 + $0x10] sm:$0xf]
      %v1202 = vld [vmem:[%s3 + $0x14] sm:$0xf]
      %v1203 = vld [vmem:[%s3 + $0x18] sm:$0xf]
      %v1204 = vld [vmem:[%s3 + $0x1c] sm:$0xf]
      %v1205 = vld [vmem:[%s3 + $0x20] sm:$0xf]
      %v1206 = vld [vmem:[%s3 + $0x24] sm:$0xf]
      %v1207 = vld [vmem:[%s3 + $0x28] sm:$0xf]
      %v1208 = vld [vmem:[%s3 + $0x2c] sm:$0xf]
      %v1209 = vld [vmem:[%s3 + $0x30] sm:$0xf]
      %v1210 = vld [vmem:[%s3 + $0x34] sm:$0xf]
      %v1211 = vld [vmem:[%s3 + $0x38] sm:$0xf]
      %v1212 = vld [vmem:[%s3 + $0x3c] sm:$0xf]
      %v1213 = vld [vmem:[%s3 + $0x40] sm:$0xf]
      %v1214 = vld [vmem:[%s3 + $0x44] sm:$0xf]
      %v1215 = vld [vmem:[%s3 + $0x48] sm:$0xf]
      %v1216 = vld [vmem:[%s3 + $0x4c] sm:$0xf]
      %v1217 = vld [vmem:[%s3 + $0x50] sm:$0xf]
      %v1218 = vld [vmem:[%s3 + $0x54] sm:$0xf]
      %v1219 = vld [vmem:[%s3 + $0x58] sm:$0xf]
      %v1220 = vld [vmem:[%s3 + $0x5c] sm:$0xf]
      %v1221 = vld [vmem:[%s3 + $0x60] sm:$0xf]
      %v1222 = vld [vmem:[%s3 + $0x64] sm:$0xf]
      %v1223 = vld [vmem:[%s3 + $0x68] sm:$0xf]
      %v1224 = vld [vmem:[%s3 + $0x6c] sm:$0xf]
      %v1225 = vld [vmem:[%s3 + $0x70] sm:$0xf]
      %v1226 = vld [vmem:[%s3 + $0x74] sm:$0xf]
      %v1227 = vld [vmem:[%s3 + $0x78] sm:$0xf]
      %v1228 = vld [vmem:[%s3 + $0x7c] sm:$0xf]
      %v1229 = vld [vmem:[%s3 + $0x80] sm:$0xf]
      %v1230 = vld [vmem:[%s3 + $0x84] sm:$0xf]
      %v1231 = vld [vmem:[%s3 + $0x88] sm:$0xf]
      %v1232 = vld [vmem:[%s3 + $0x8c] sm:$0xf]
      %p1233 = scmp.ge.s32.totalorder %s26, 0
      %p1234 = scmp.le.s32.totalorder %s26, 3
      %p1235 = pnand %p1233, %p1234
      %p1236 = pneg %p1235
      %v1237 = vld [vmem:[%s537] sm:$0xf]
      %v1238 = vld [vmem:[%s537 + $0x4] sm:$0xf]
      %v1239 = vld [vmem:[%s537 + $0x8] sm:$0xf]
      %v1240 = vld [vmem:[%s537 + $0xc] sm:$0xf]
      %v1241 = vld [vmem:[%s537 + $0x10] sm:$0xf]
      %v1242 = vld [vmem:[%s537 + $0x14] sm:$0xf]
      %v1243 = vld [vmem:[%s537 + $0x18] sm:$0xf]
      %v1244 = vld [vmem:[%s537 + $0x1c] sm:$0xf]
      %v1245 = vld [vmem:[%s537 + $0x20] sm:$0xf]
      %v1246 = vld [vmem:[%s537 + $0x24] sm:$0xf]
      %v1247 = vld [vmem:[%s537 + $0x28] sm:$0xf]
      %v1248 = vld [vmem:[%s537 + $0x2c] sm:$0xf]
      %v1249 = vld [vmem:[%s537 + $0x30] sm:$0xf]
      %v1250 = vunpack.c.l.bf16 %v1237
      %v1251 = vunpack.c.l.bf16 %v1238
      %v1252 = vunpack.c.l.bf16 %v1239
      %v1253 = vunpack.c.l.bf16 %v1240
      %v1254 = vunpack.c.l.bf16 %v1241
      %v1255 = vunpack.c.l.bf16 %v1242
      %v1256 = vunpack.c.l.bf16 %v1243
      %v1257 = vunpack.c.l.bf16 %v1244
      %v1258 = vunpack.c.l.bf16 %v1245
      %v1259 = vunpack.c.l.bf16 %v1246
      %v1260 = vunpack.c.l.bf16 %v1247
      %v1261 = vunpack.c.l.bf16 %v1248
      %v1262 = vunpack.c.l.bf16 %v1249
      %v1263 = vmul.f32 %v1250, %v618
      %v1264 = vmul.f32 %v1251, %v618
      %v1265 = vmul.f32 %v1252, %v618
      %v1266 = vmul.f32 %v1253, %v618
      %v1267 = vmul.f32 %v1254, %v618
      %v1268 = vmul.f32 %v1255, %v618
      %v1269 = vmul.f32 %v1256, %v618
      %v1270 = vmul.f32 %v1257, %v618
      %v1271 = vmul.f32 %v1258, %v618
      %v1272 = vmul.f32 %v1259, %v618
      %v1273 = vmul.f32 %v1260, %v618
      %v1274 = vmul.f32 %v1261, %v618
      %v1275 = vmul.f32 %v1262, %v618
      %v1276 = vadd.f32 %v1263, %v635
      %v1277 = vadd.f32 %v1264, %v635
      %v1278 = vadd.f32 %v1265, %v635
      %v1279 = vadd.f32 %v1266, %v635
      %v1280 = vadd.f32 %v1267, %v635
      %v1281 = vadd.f32 %v1268, %v635
      %v1282 = vadd.f32 %v1269, %v635
      %v1283 = vadd.f32 %v1270, %v635
      %v1284 = vadd.f32 %v1271, %v635
      %v1285 = vadd.f32 %v1272, %v635
      %v1286 = vadd.f32 %v1273, %v635
      %v1287 = vadd.f32 %v1274, %v635
      %v1288 = vadd.f32 %v1275, %v635
      %v1289 = vmax.f32 %v1276, 0.0
      %v1290 = vmax.f32 %v1277, 0.0
      %v1291 = vmax.f32 %v1278, 0.0
      %v1292 = vmax.f32 %v1279, 0.0
      %v1293 = vmax.f32 %v1280, 0.0
      %v1294 = vmax.f32 %v1281, 0.0
      %v1295 = vmax.f32 %v1282, 0.0
      %v1296 = vmax.f32 %v1283, 0.0
      %v1297 = vmax.f32 %v1284, 0.0
      %v1298 = vmax.f32 %v1285, 0.0
      %v1299 = vmax.f32 %v1286, 0.0
      %v1300 = vmax.f32 %v1287, 0.0
      %v1301 = vmax.f32 %v1288, 0.0
      %v1302 = vmul.f32 %v1289, %v679
      %v1303 = vmul.f32 %v1290, %v684
      %v1304 = vmul.f32 %v1291, %v689
      %v1305 = vmul.f32 %v1292, %v694
      %v1306 = vmul.f32 %v1293, %v699
      %v1307 = vmul.f32 %v1294, %v704
      %v1308 = vmul.f32 %v1295, %v709
      %v1309 = vmul.f32 %v1296, %v714
      %v1310 = vmul.f32 %v1297, %v719
      %v1311 = vmul.f32 %v1298, %v724
      %v1312 = vmul.f32 %v1299, %v729
      %v1313 = vmul.f32 %v1300, %v734
      %v1314 = vmul.f32 %v1301, %v739
      %s1315 = scalar_select %p1236, 1, 0
      %s1316 = scvt.s32.f32 %s1315
      %v1317 = vstv %s1316
      %v1318 = vmul.f32 %v1302, %v1317
      %v1319 = vmul.f32 %v1303, %v1317
      %v1320 = vmul.f32 %v1304, %v1317
      %v1321 = vmul.f32 %v1305, %v1317
      %v1322 = vmul.f32 %v1306, %v1317
      %v1323 = vmul.f32 %v1307, %v1317
      %v1324 = vmul.f32 %v1308, %v1317
      %v1325 = vmul.f32 %v1309, %v1317
      %v1326 = vmul.f32 %v1310, %v1317
      %v1327 = vmul.f32 %v1311, %v1317
      %v1328 = vmul.f32 %v1312, %v1317
      %v1329 = vmul.f32 %v1313, %v1317
      %v1330 = vmul.f32 %v1314, %v1317
      %v1342 = vrot.slane %v1318, 1
      %v1343 = vrot.slane %v1319, 1
      %v1344 = vsel %vm781, %v1342, %v1343
      %v1345 = vrot.slane %v1320, 1
      %v1346 = vsel %vm781, %v1343, %v1345
      %v1347 = vrot.slane %v1321, 1
      %v1348 = vsel %vm781, %v1345, %v1347
      %v1349 = vrot.slane %v1322, 1
      %v1350 = vsel %vm781, %v1347, %v1349
      %v1351 = vrot.slane %v1323, 1
      %v1352 = vsel %vm781, %v1349, %v1351
      %v1353 = vrot.slane %v1324, 1
      %v1354 = vsel %vm781, %v1351, %v1353
      %v1355 = vrot.slane %v1325, 1
      %v1356 = vsel %vm781, %v1353, %v1355
      %v1357 = vrot.slane %v1326, 1
      %v1358 = vsel %vm781, %v1355, %v1357
      %v1359 = vrot.slane %v1327, 1
      %v1360 = vsel %vm781, %v1357, %v1359
      %v1361 = vrot.slane %v1328, 1
      %v1362 = vsel %vm781, %v1359, %v1361
      %1363 = vrot.lane.b32.xlu0 %v1344, 32
      %v1364 = vpop.permute.xlu0 %1363
      %1365 = vrot.lane.b32.xlu0 %v1346, 32
      %v1366 = vpop.permute.xlu0 %1365
      %1367 = vrot.lane.b32.xlu0 %v1348, 32
      %v1368 = vpop.permute.xlu0 %1367
      %1369 = vrot.lane.b32.xlu0 %v1350, 32
      %v1370 = vpop.permute.xlu0 %1369
      %1371 = vrot.lane.b32.xlu0 %v1352, 32
      %v1372 = vpop.permute.xlu0 %1371
      %1373 = vrot.lane.b32.xlu0 %v1354, 32
      %v1374 = vpop.permute.xlu0 %1373
      %1375 = vrot.lane.b32.xlu0 %v1356, 32
      %v1376 = vpop.permute.xlu0 %1375
      %1377 = vrot.lane.b32.xlu0 %v1358, 32
      %v1378 = vpop.permute.xlu0 %1377
      %1379 = vrot.lane.b32.xlu0 %v1360, 32
      %v1380 = vpop.permute.xlu0 %1379
      %1381 = vrot.lane.b32.xlu0 %v1362, 32
      %v1382 = vpop.permute.xlu0 %1381
      %v1393 = vrot.slane %v1318, 2
      %v1394 = vrot.slane %v1319, 2
      %v1395 = vsel %vm833, %v1393, %v1394
      %v1396 = vrot.slane %v1320, 2
      %v1397 = vsel %vm833, %v1394, %v1396
      %v1398 = vrot.slane %v1321, 2
      %v1399 = vsel %vm833, %v1396, %v1398
      %v1400 = vrot.slane %v1322, 2
      %v1401 = vsel %vm833, %v1398, %v1400
      %v1402 = vrot.slane %v1323, 2
      %v1403 = vsel %vm833, %v1400, %v1402
      %v1404 = vrot.slane %v1324, 2
      %v1405 = vsel %vm833, %v1402, %v1404
      %v1406 = vrot.slane %v1325, 2
      %v1407 = vsel %vm833, %v1404, %v1406
      %v1408 = vrot.slane %v1326, 2
      %v1409 = vsel %vm833, %v1406, %v1408
      %v1410 = vrot.slane %v1327, 2
      %v1411 = vsel %vm833, %v1408, %v1410
      %v1412 = vrot.slane %v1328, 2
      %v1413 = vsel %vm833, %v1410, %v1412
      %1414 = vrot.lane.b32.xlu0 %v1395, 64
      %v1415 = vpop.permute.xlu0 %1414
      %1416 = vrot.lane.b32.xlu0 %v1397, 64
      %v1417 = vpop.permute.xlu0 %1416
      %1418 = vrot.lane.b32.xlu0 %v1399, 64
      %v1419 = vpop.permute.xlu0 %1418
      %1420 = vrot.lane.b32.xlu0 %v1401, 64
      %v1421 = vpop.permute.xlu0 %1420
      %1422 = vrot.lane.b32.xlu0 %v1403, 64
      %v1423 = vpop.permute.xlu0 %1422
      %1424 = vrot.lane.b32.xlu0 %v1405, 64
      %v1425 = vpop.permute.xlu0 %1424
      %1426 = vrot.lane.b32.xlu0 %v1407, 64
      %v1427 = vpop.permute.xlu0 %1426
      %1428 = vrot.lane.b32.xlu0 %v1409, 64
      %v1429 = vpop.permute.xlu0 %1428
      %1430 = vrot.lane.b32.xlu0 %v1411, 64
      %v1431 = vpop.permute.xlu0 %1430
      %1432 = vrot.lane.b32.xlu0 %v1413, 64
      %v1433 = vpop.permute.xlu0 %1432
      %v1445 = vrot.slane %v1329, 2
      %v1446 = vsel %vm833, %v1412, %v1445
      %1447 = vrot.lane.b32.xlu0 %v1397, 96
      %v1448 = vpop.permute.xlu0 %1447
      %1449 = vrot.lane.b32.xlu0 %v1399, 96
      %v1450 = vpop.permute.xlu0 %1449
      %1451 = vrot.lane.b32.xlu0 %v1401, 96
      %v1452 = vpop.permute.xlu0 %1451
      %1453 = vrot.lane.b32.xlu0 %v1403, 96
      %v1454 = vpop.permute.xlu0 %1453
      %1455 = vrot.lane.b32.xlu0 %v1405, 96
      %v1456 = vpop.permute.xlu0 %1455
      %1457 = vrot.lane.b32.xlu0 %v1407, 96
      %v1458 = vpop.permute.xlu0 %1457
      %1459 = vrot.lane.b32.xlu0 %v1409, 96
      %v1460 = vpop.permute.xlu0 %1459
      %1461 = vrot.lane.b32.xlu0 %v1411, 96
      %v1462 = vpop.permute.xlu0 %1461
      %1463 = vrot.lane.b32.xlu0 %v1413, 96
      %v1464 = vpop.permute.xlu0 %1463
      %1465 = vrot.lane.b32.xlu0 %v1446, 96
      %v1466 = vpop.permute.xlu0 %1465
      %v1477 = vrot.slane %v1319, 3
      %v1478 = vrot.slane %v1320, 3
      %v1479 = vsel %vm918, %v1477, %v1478
      %v1480 = vrot.slane %v1321, 3
      %v1481 = vsel %vm918, %v1478, %v1480
      %v1482 = vrot.slane %v1322, 3
      %v1483 = vsel %vm918, %v1480, %v1482
      %v1484 = vrot.slane %v1323, 3
      %v1485 = vsel %vm918, %v1482, %v1484
      %v1486 = vrot.slane %v1324, 3
      %v1487 = vsel %vm918, %v1484, %v1486
      %v1488 = vrot.slane %v1325, 3
      %v1489 = vsel %vm918, %v1486, %v1488
      %v1490 = vrot.slane %v1326, 3
      %v1491 = vsel %vm918, %v1488, %v1490
      %v1492 = vrot.slane %v1327, 3
      %v1493 = vsel %vm918, %v1490, %v1492
      %v1494 = vrot.slane %v1328, 3
      %v1495 = vsel %vm918, %v1492, %v1494
      %v1496 = vrot.slane %v1329, 3
      %v1497 = vsel %vm918, %v1494, %v1496
      %v1508 = vrot.slane %v1319, 4
      %v1509 = vrot.slane %v1320, 4
      %v1510 = vsel %vm950, %v1508, %v1509
      %v1511 = vrot.slane %v1321, 4
      %v1512 = vsel %vm950, %v1509, %v1511
      %v1513 = vrot.slane %v1322, 4
      %v1514 = vsel %vm950, %v1511, %v1513
      %v1515 = vrot.slane %v1323, 4
      %v1516 = vsel %vm950, %v1513, %v1515
      %v1517 = vrot.slane %v1324, 4
      %v1518 = vsel %vm950, %v1515, %v1517
      %v1519 = vrot.slane %v1325, 4
      %v1520 = vsel %vm950, %v1517, %v1519
      %v1521 = vrot.slane %v1326, 4
      %v1522 = vsel %vm950, %v1519, %v1521
      %v1523 = vrot.slane %v1327, 4
      %v1524 = vsel %vm950, %v1521, %v1523
      %v1525 = vrot.slane %v1328, 4
      %v1526 = vsel %vm950, %v1523, %v1525
      %v1527 = vrot.slane %v1329, 4
      %v1528 = vsel %vm950, %v1525, %v1527
      %1529 = vrot.lane.b32.xlu0 %v1510, 32
      %v1530 = vpop.permute.xlu0 %1529
      %1531 = vrot.lane.b32.xlu0 %v1512, 32
      %v1532 = vpop.permute.xlu0 %1531
      %1533 = vrot.lane.b32.xlu0 %v1514, 32
      %v1534 = vpop.permute.xlu0 %1533
      %1535 = vrot.lane.b32.xlu0 %v1516, 32
      %v1536 = vpop.permute.xlu0 %1535
      %1537 = vrot.lane.b32.xlu0 %v1518, 32
      %v1538 = vpop.permute.xlu0 %1537
      %1539 = vrot.lane.b32.xlu0 %v1520, 32
      %v1540 = vpop.permute.xlu0 %1539
      %1541 = vrot.lane.b32.xlu0 %v1522, 32
      %v1542 = vpop.permute.xlu0 %1541
      %1543 = vrot.lane.b32.xlu0 %v1524, 32
      %v1544 = vpop.permute.xlu0 %1543
      %1545 = vrot.lane.b32.xlu0 %v1526, 32
      %v1546 = vpop.permute.xlu0 %1545
      %1547 = vrot.lane.b32.xlu0 %v1528, 32
      %v1548 = vpop.permute.xlu0 %1547
      %v1560 = vrot.slane %v1330, 4
      %v1561 = vsel %vm950, %v1527, %v1560
      %1562 = vrot.lane.b32.xlu0 %v1512, 64
      %v1563 = vpop.permute.xlu0 %1562
      %1564 = vrot.lane.b32.xlu0 %v1514, 64
      %v1565 = vpop.permute.xlu0 %1564
      %1566 = vrot.lane.b32.xlu0 %v1516, 64
      %v1567 = vpop.permute.xlu0 %1566
      %1568 = vrot.lane.b32.xlu0 %v1518, 64
      %v1569 = vpop.permute.xlu0 %1568
      %1570 = vrot.lane.b32.xlu0 %v1520, 64
      %v1571 = vpop.permute.xlu0 %1570
      %1572 = vrot.lane.b32.xlu0 %v1522, 64
      %v1573 = vpop.permute.xlu0 %1572
      %1574 = vrot.lane.b32.xlu0 %v1524, 64
      %v1575 = vpop.permute.xlu0 %1574
      %1576 = vrot.lane.b32.xlu0 %v1526, 64
      %v1577 = vpop.permute.xlu0 %1576
      %1578 = vrot.lane.b32.xlu0 %v1528, 64
      %v1579 = vpop.permute.xlu0 %1578
      %1580 = vrot.lane.b32.xlu0 %v1561, 64
      %v1581 = vpop.permute.xlu0 %1580
      %v1592 = vrot.slane %v1320, 5
      %v1593 = vrot.slane %v1321, 5
      %v1594 = vsel %vm1035, %v1592, %v1593
      %v1595 = vrot.slane %v1322, 5
      %v1596 = vsel %vm1035, %v1593, %v1595
      %v1597 = vrot.slane %v1323, 5
      %v1598 = vsel %vm1035, %v1595, %v1597
      %v1599 = vrot.slane %v1324, 5
      %v1600 = vsel %vm1035, %v1597, %v1599
      %v1601 = vrot.slane %v1325, 5
      %v1602 = vsel %vm1035, %v1599, %v1601
      %v1603 = vrot.slane %v1326, 5
      %v1604 = vsel %vm1035, %v1601, %v1603
      %v1605 = vrot.slane %v1327, 5
      %v1606 = vsel %vm1035, %v1603, %v1605
      %v1607 = vrot.slane %v1328, 5
      %v1608 = vsel %vm1035, %v1605, %v1607
      %v1609 = vrot.slane %v1329, 5
      %v1610 = vsel %vm1035, %v1607, %v1609
      %v1611 = vrot.slane %v1330, 5
      %v1612 = vsel %vm1035, %v1609, %v1611
      %1613 = vrot.lane.b32.xlu0 %v1594, 96
      %v1614 = vpop.permute.xlu0 %1613
      %1615 = vrot.lane.b32.xlu0 %v1596, 96
      %v1616 = vpop.permute.xlu0 %1615
      %1617 = vrot.lane.b32.xlu0 %v1598, 96
      %v1618 = vpop.permute.xlu0 %1617
      %1619 = vrot.lane.b32.xlu0 %v1600, 96
      %v1620 = vpop.permute.xlu0 %1619
      %1621 = vrot.lane.b32.xlu0 %v1602, 96
      %v1622 = vpop.permute.xlu0 %1621
      %1623 = vrot.lane.b32.xlu0 %v1604, 96
      %v1624 = vpop.permute.xlu0 %1623
      %1625 = vrot.lane.b32.xlu0 %v1606, 96
      %v1626 = vpop.permute.xlu0 %1625
      %1627 = vrot.lane.b32.xlu0 %v1608, 96
      %v1628 = vpop.permute.xlu0 %1627
      %1629 = vrot.lane.b32.xlu0 %v1610, 96
      %v1630 = vpop.permute.xlu0 %1629
      %1631 = vrot.lane.b32.xlu0 %v1612, 96
      %v1632 = vpop.permute.xlu0 %1631
      %v1643 = vrot.slane %v1320, 6
      %v1644 = vrot.slane %v1321, 6
      %v1645 = vsel %vm1087, %v1643, %v1644
      %v1646 = vrot.slane %v1322, 6
      %v1647 = vsel %vm1087, %v1644, %v1646
      %v1648 = vrot.slane %v1323, 6
      %v1649 = vsel %vm1087, %v1646, %v1648
      %v1650 = vrot.slane %v1324, 6
      %v1651 = vsel %vm1087, %v1648, %v1650
      %v1652 = vrot.slane %v1325, 6
      %v1653 = vsel %vm1087, %v1650, %v1652
      %v1654 = vrot.slane %v1326, 6
      %v1655 = vsel %vm1087, %v1652, %v1654
      %v1656 = vrot.slane %v1327, 6
      %v1657 = vsel %vm1087, %v1654, %v1656
      %v1658 = vrot.slane %v1328, 6
      %v1659 = vsel %vm1087, %v1656, %v1658
      %v1660 = vrot.slane %v1329, 6
      %v1661 = vsel %vm1087, %v1658, %v1660
      %v1662 = vrot.slane %v1330, 6
      %v1663 = vsel %vm1087, %v1660, %v1662
      %v1674 = vsel %vm1119, %v1318, %v1364
      %v1675 = vsel %vm1119, %v1319, %v1366
      %v1676 = vsel %vm1119, %v1320, %v1368
      %v1677 = vsel %vm1119, %v1321, %v1370
      %v1678 = vsel %vm1119, %v1322, %v1372
      %v1679 = vsel %vm1119, %v1323, %v1374
      %v1680 = vsel %vm1119, %v1324, %v1376
      %v1681 = vsel %vm1119, %v1325, %v1378
      %v1682 = vsel %vm1119, %v1326, %v1380
      %v1683 = vsel %vm1119, %v1327, %v1382
      %v1684 = vsel %vm1130, %v1674, %v1415
      %v1685 = vsel %vm1130, %v1675, %v1417
      %v1686 = vsel %vm1130, %v1676, %v1419
      %v1687 = vsel %vm1130, %v1677, %v1421
      %v1688 = vsel %vm1130, %v1678, %v1423
      %v1689 = vsel %vm1130, %v1679, %v1425
      %v1690 = vsel %vm1130, %v1680, %v1427
      %v1691 = vsel %vm1130, %v1681, %v1429
      %v1692 = vsel %vm1130, %v1682, %v1431
      %v1693 = vsel %vm1130, %v1683, %v1433
      %v1694 = vsel %vm1141, %v1684, %v1448
      %v1695 = vsel %vm1141, %v1685, %v1450
      %v1696 = vsel %vm1141, %v1686, %v1452
      %v1697 = vsel %vm1141, %v1687, %v1454
      %v1698 = vsel %vm1141, %v1688, %v1456
      %v1699 = vsel %vm1141, %v1689, %v1458
      %v1700 = vsel %vm1141, %v1690, %v1460
      %v1701 = vsel %vm1141, %v1691, %v1462
      %v1702 = vsel %vm1141, %v1692, %v1464
      %v1703 = vsel %vm1141, %v1693, %v1466
      %v1704 = vsel %vm1119, %v1479, %v1530
      %v1705 = vsel %vm1119, %v1481, %v1532
      %v1706 = vsel %vm1119, %v1483, %v1534
      %v1707 = vsel %vm1119, %v1485, %v1536
      %v1708 = vsel %vm1119, %v1487, %v1538
      %v1709 = vsel %vm1119, %v1489, %v1540
      %v1710 = vsel %vm1119, %v1491, %v1542
      %v1711 = vsel %vm1119, %v1493, %v1544
      %v1712 = vsel %vm1119, %v1495, %v1546
      %v1713 = vsel %vm1119, %v1497, %v1548
      %v1714 = vsel %vm1130, %v1704, %v1563
      %v1715 = vsel %vm1130, %v1705, %v1565
      %v1716 = vsel %vm1130, %v1706, %v1567
      %v1717 = vsel %vm1130, %v1707, %v1569
      %v1718 = vsel %vm1130, %v1708, %v1571
      %v1719 = vsel %vm1130, %v1709, %v1573
      %v1720 = vsel %vm1130, %v1710, %v1575
      %v1721 = vsel %vm1130, %v1711, %v1577
      %v1722 = vsel %vm1130, %v1712, %v1579
      %v1723 = vsel %vm1130, %v1713, %v1581
      %v1724 = vsel %vm1141, %v1714, %v1614
      %v1725 = vsel %vm1141, %v1715, %v1616
      %v1726 = vsel %vm1141, %v1716, %v1618
      %v1727 = vsel %vm1141, %v1717, %v1620
      %v1728 = vsel %vm1141, %v1718, %v1622
      %v1729 = vsel %vm1141, %v1719, %v1624
      %v1730 = vsel %vm1141, %v1720, %v1626
      %v1731 = vsel %vm1141, %v1721, %v1628
      %v1732 = vsel %vm1141, %v1722, %v1630
      %v1733 = vsel %vm1141, %v1723, %v1632
      %v1734 = vpack.c.bf16 %v1695, %v1694
      %v1735 = vpack.c.bf16 %v1725, %v1724
      %v1736 = vpack.c.bf16 %v1647, %v1645
      %v1737 = vpack.c.bf16 %v1697, %v1696
      %v1738 = vpack.c.bf16 %v1727, %v1726
      %v1739 = vpack.c.bf16 %v1651, %v1649
      %v1740 = vpack.c.bf16 %v1699, %v1698
      %v1741 = vpack.c.bf16 %v1729, %v1728
      %v1742 = vpack.c.bf16 %v1655, %v1653
      %v1743 = vpack.c.bf16 %v1701, %v1700
      %v1744 = vpack.c.bf16 %v1731, %v1730
      %v1745 = vpack.c.bf16 %v1659, %v1657
      %v1746 = vpack.c.bf16 %v1703, %v1702
      %v1747 = vpack.c.bf16 %v1733, %v1732
      %v1748 = vpack.c.bf16 %v1663, %v1661
      %v1749 = vld [vmem:[%s3 + $0x90] sm:$0xf]
      %v1750 = vld [vmem:[%s3 + $0x94] sm:$0xf]
      %v1751 = vld [vmem:[%s3 + $0x98] sm:$0xf]
      %v1752 = vld [vmem:[%s3 + $0x9c] sm:$0xf]
      %v1753 = vld [vmem:[%s3 + $0xa0] sm:$0xf]
      %v1754 = vld [vmem:[%s3 + $0xa4] sm:$0xf]
      %v1755 = vld [vmem:[%s3 + $0xa8] sm:$0xf]
      %v1756 = vld [vmem:[%s3 + $0xac] sm:$0xf]
      %v1757 = vld [vmem:[%s3 + $0xb0] sm:$0xf]
      %v1758 = vld [vmem:[%s3 + $0xb4] sm:$0xf]
      %v1759 = vld [vmem:[%s3 + $0xb8] sm:$0xf]
      %v1760 = vld [vmem:[%s3 + $0xbc] sm:$0xf]
      %v1761 = vld [vmem:[%s3 + $0xc0] sm:$0xf]
      %v1762 = vld [vmem:[%s3 + $0xc4] sm:$0xf]
      %v1763 = vld [vmem:[%s3 + $0xc8] sm:$0xf]
      %v1764 = vld [vmem:[%s3 + $0xcc] sm:$0xf]
      %v1765 = vld [vmem:[%s3 + $0xd0] sm:$0xf]
      %v1766 = vld [vmem:[%s3 + $0xd4] sm:$0xf]
      %v1767 = vld [vmem:[%s3 + $0xd8] sm:$0xf]
      %v1768 = vld [vmem:[%s3 + $0xdc] sm:$0xf]
      %v1769 = vld [vmem:[%s3 + $0xe0] sm:$0xf]
      %v1770 = vld [vmem:[%s3 + $0xe4] sm:$0xf]
      %v1771 = vld [vmem:[%s3 + $0xe8] sm:$0xf]
      %v1772 = vld [vmem:[%s3 + $0xec] sm:$0xf]
      %v1773 = vld [vmem:[%s3 + $0xf0] sm:$0xf]
      %v1774 = vld [vmem:[%s3 + $0xf4] sm:$0xf]
      %v1775 = vld [vmem:[%s3 + $0xf8] sm:$0xf]
      %v1776 = vld [vmem:[%s3 + $0xfc] sm:$0xf]
      %v1777 = vld [vmem:[%s3 + $0x100] sm:$0xf]
      %v1778 = vld [vmem:[%s3 + $0x104] sm:$0xf]
      %v1779 = vld [vmem:[%s3 + $0x108] sm:$0xf]
      %v1780 = vld [vmem:[%s3 + $0x10c] sm:$0xf]
      %v1781 = vld [vmem:[%s3 + $0x110] sm:$0xf]
      %v1782 = vld [vmem:[%s3 + $0x114] sm:$0xf]
      %v1783 = vld [vmem:[%s3 + $0x118] sm:$0xf]
      %v1784 = vld [vmem:[%s3 + $0x11c] sm:$0xf]
      %v1821 = vunpack.c.l.b16 %v1749
      %v1822 = vunpack.c.l.b16 %v1750
      %v1823 = vunpack.c.l.b16 %v1751
      %v1824 = vunpack.c.l.b16 %v1752
      %v1825 = vunpack.c.l.b16 %v1753
      %v1826 = vunpack.c.l.b16 %v1754
      %v1827 = vunpack.c.l.b16 %v1755
      %v1828 = vunpack.c.l.b16 %v1756
      %v1829 = vunpack.c.l.b16 %v1757
      %v1830 = vunpack.c.l.b16 %v1758
      %v1831 = vunpack.c.l.b16 %v1759
      %v1832 = vunpack.c.l.b16 %v1760
      %v1833 = vunpack.c.l.b16 %v1761
      %v1834 = vunpack.c.l.b16 %v1762
      %v1835 = vunpack.c.l.b16 %v1763
      %v1836 = vunpack.c.l.b16 %v1764
      %v1837 = vunpack.c.l.b16 %v1765
      %v1838 = vunpack.c.l.b16 %v1766
      %v1839 = vunpack.c.l.b16 %v1767
      %v1840 = vunpack.c.l.b16 %v1768
      %v1841 = vunpack.c.l.b16 %v1769
      %v1842 = vunpack.c.l.b16 %v1770
      %v1843 = vunpack.c.l.b16 %v1771
      %v1844 = vunpack.c.l.b16 %v1772
      %v1845 = vunpack.c.l.b16 %v1773
      %v1846 = vunpack.c.l.b16 %v1774
      %v1847 = vunpack.c.l.b16 %v1775
      %v1848 = vunpack.c.l.b16 %v1776
      %v1849 = vunpack.c.l.b16 %v1777
      %v1850 = vunpack.c.l.b16 %v1778
      %v1851 = vunpack.c.l.b16 %v1779
      %v1852 = vunpack.c.l.b16 %v1780
      %v1853 = vunpack.c.l.b16 %v1781
      %v1854 = vunpack.c.l.b16 %v1782
      %v1855 = vunpack.c.l.b16 %v1783
      %v1856 = vunpack.c.l.b16 %v1784
      %v1857 = vpack.c.b16 %v1822, %v1821
      %v1858 = vpack.c.b16 %v1824, %v1823
      %v1859 = vpack.c.b16 %v1826, %v1825
      %v1860 = vpack.c.b16 %v1828, %v1827
      %v1861 = vpack.c.b16 %v1830, %v1829
      %v1862 = vpack.c.b16 %v1832, %v1831
      %v1863 = vpack.c.b16 %v1834, %v1833
      %v1864 = vpack.c.b16 %v1836, %v1835
      %v1865 = vpack.c.b16 %v1838, %v1837
      %v1866 = vpack.c.b16 %v1840, %v1839
      %v1867 = vpack.c.b16 %v1842, %v1841
      %v1868 = vpack.c.b16 %v1844, %v1843
      %v1869 = vpack.c.b16 %v1846, %v1845
      %v1870 = vpack.c.b16 %v1848, %v1847
      %v1871 = vpack.c.b16 %v1850, %v1849
      %v1872 = vpack.c.b16 %v1852, %v1851
      %v1873 = vpack.c.b16 %v1854, %v1853
      %v1874 = vpack.c.b16 %v1856, %v1855
      %v1894 = vsel %vm1119, %v1736, 0
      %v1897 = vsel %vm1119, %v1739, 0
      %v1900 = vsel %vm1119, %v1742, 0
      %v1903 = vsel %vm1119, %v1745, 0
      %v1906 = vsel %vm1119, %v1748, 0
      %1908 = vmatpush.bf16.msra.mxu0 %v1864
      %1909 = vmatpush.bf16.msra.mxu0 %v1863
      %1910 = vmatpush.bf16.msra.mxu0 %v1862
      %1911 = vmatpush.bf16.msra.mxu0 %v1861
      %1912 = vmatpush.bf16.msra.mxu0 %v1860
      %1913 = vmatpush.bf16.msra.mxu0 %v1859
      %1914 = vmatpush.bf16.msra.mxu0 %v1858
      %1915 = vmatpush.bf16.msra.mxu0 %v1857
      %1916 = vmatmul.bf16.gmra.mxu0 %v1734
      %v1917 = vpop.f32.mrf.mxu0
      %v1918 = vadd.f32 0.0, %v1917
      %v1919 = vpop.f32.mrf.mxu0
      %v1920 = vadd.f32 0.0, %v1919
      %1921 = vmatmul.bf16.gmra.mxu0 %v1737
      %v1922 = vpop.f32.mrf.mxu0
      %v1923 = vadd.f32 0.0, %v1922
      %v1924 = vpop.f32.mrf.mxu0
      %v1925 = vadd.f32 0.0, %v1924
      %1926 = vmatmul.bf16.gmra.mxu0 %v1740
      %v1927 = vpop.f32.mrf.mxu0
      %v1928 = vadd.f32 0.0, %v1927
      %v1929 = vpop.f32.mrf.mxu0
      %v1930 = vadd.f32 0.0, %v1929
      %1931 = vmatmul.bf16.gmra.mxu0 %v1743
      %v1932 = vpop.f32.mrf.mxu0
      %v1933 = vadd.f32 0.0, %v1932
      %v1934 = vpop.f32.mrf.mxu0
      %v1935 = vadd.f32 0.0, %v1934
      %1936 = vmatmul.bf16.gmra.mxu0 %v1746
      %v1937 = vpop.f32.mrf.mxu0
      %v1938 = vadd.f32 0.0, %v1937
      %v1939 = vpop.f32.mrf.mxu0
      %v1940 = vadd.f32 0.0, %v1939
      %1941 = vdwg.mxu0
      %1942 = vmatpush.bf16.msra.mxu0 %v1872
      %1943 = vmatpush.bf16.msra.mxu0 %v1871
      %1944 = vmatpush.bf16.msra.mxu0 %v1870
      %1945 = vmatpush.bf16.msra.mxu0 %v1869
      %1946 = vmatpush.bf16.msra.mxu0 %v1868
      %1947 = vmatpush.bf16.msra.mxu0 %v1867
      %1948 = vmatpush.bf16.msra.mxu0 %v1866
      %1949 = vmatpush.bf16.msra.mxu0 %v1865
      %1950 = vmatmul.bf16.gmra.mxu0 %v1735
      %v1951 = vpop.f32.mrf.mxu0
      %v1952 = vadd.f32 %v1918, %v1951
      %v1953 = vpop.f32.mrf.mxu0
      %v1954 = vadd.f32 %v1920, %v1953
      %1955 = vmatmul.bf16.gmra.mxu0 %v1738
      %v1956 = vpop.f32.mrf.mxu0
      %v1957 = vadd.f32 %v1923, %v1956
      %v1958 = vpop.f32.mrf.mxu0
      %v1959 = vadd.f32 %v1925, %v1958
      %1960 = vmatmul.bf16.gmra.mxu0 %v1741
      %v1961 = vpop.f32.mrf.mxu0
      %v1962 = vadd.f32 %v1928, %v1961
      %v1963 = vpop.f32.mrf.mxu0
      %v1964 = vadd.f32 %v1930, %v1963
      %1965 = vmatmul.bf16.gmra.mxu0 %v1744
      %v1966 = vpop.f32.mrf.mxu0
      %v1967 = vadd.f32 %v1933, %v1966
      %v1968 = vpop.f32.mrf.mxu0
      %v1969 = vadd.f32 %v1935, %v1968
      %1970 = vmatmul.bf16.gmra.mxu0 %v1747
      %v1971 = vpop.f32.mrf.mxu0
      %v1972 = vadd.f32 %v1938, %v1971
      %v1973 = vpop.f32.mrf.mxu0
      %v1974 = vadd.f32 %v1940, %v1973
      %1975 = vdwg.mxu0
      %1976 = vmatpush.bf16.msra.mxu0 0
      %1977 = vmatpush.bf16.msra.mxu0 0
      %1978 = vmatpush.bf16.msra.mxu0 0
      %1979 = vmatpush.bf16.msra.mxu0 0
      %1980 = vmatpush.bf16.msra.mxu0 0
      %1981 = vmatpush.bf16.msra.mxu0 0
      %1982 = vmatpush.bf16.msra.mxu0 %v1874
      %1983 = vmatpush.bf16.msra.mxu0 %v1873
      %1984 = vmatmul.bf16.gmra.mxu0 %v1894
      %v1985 = vpop.f32.mrf.mxu0
      %v1986 = vadd.f32 %v1952, %v1985
      %v1987 = vpop.f32.mrf.mxu0
      %v1988 = vadd.f32 %v1954, %v1987
      %1989 = vmatmul.bf16.gmra.mxu0 %v1897
      %v1990 = vpop.f32.mrf.mxu0
      %v1991 = vadd.f32 %v1957, %v1990
      %v1992 = vpop.f32.mrf.mxu0
      %v1993 = vadd.f32 %v1959, %v1992
      %1994 = vmatmul.bf16.gmra.mxu0 %v1900
      %v1995 = vpop.f32.mrf.mxu0
      %v1996 = vadd.f32 %v1962, %v1995
      %v1997 = vpop.f32.mrf.mxu0
      %v1998 = vadd.f32 %v1964, %v1997
      %1999 = vmatmul.bf16.gmra.mxu0 %v1903
      %v2000 = vpop.f32.mrf.mxu0
      %v2001 = vadd.f32 %v1967, %v2000
      %v2002 = vpop.f32.mrf.mxu0
      %v2003 = vadd.f32 %v1969, %v2002
      %2004 = vmatmul.bf16.gmra.mxu0 %v1906
      %v2005 = vpop.f32.mrf.mxu0
      %v2006 = vadd.f32 %v1972, %v2005
      %v2007 = vpop.f32.mrf.mxu0
      %v2008 = vadd.f32 %v1974, %v2007
      %2009 = vdwg.mxu0
      %v2046 = vunpack.c.l.b16 %v1197
      %v2047 = vunpack.c.l.b16 %v1198
      %v2048 = vunpack.c.l.b16 %v1199
      %v2049 = vunpack.c.l.b16 %v1200
      %v2050 = vunpack.c.l.b16 %v1201
      %v2051 = vunpack.c.l.b16 %v1202
      %v2052 = vunpack.c.l.b16 %v1203
      %v2053 = vunpack.c.l.b16 %v1204
      %v2054 = vunpack.c.l.b16 %v1205
      %v2055 = vunpack.c.l.b16 %v1206
      %v2056 = vunpack.c.l.b16 %v1207
      %v2057 = vunpack.c.l.b16 %v1208
      %v2058 = vunpack.c.l.b16 %v1209
      %v2059 = vunpack.c.l.b16 %v1210
      %v2060 = vunpack.c.l.b16 %v1211
      %v2061 = vunpack.c.l.b16 %v1212
      %v2062 = vunpack.c.l.b16 %v1213
      %v2063 = vunpack.c.l.b16 %v1214
      %v2064 = vunpack.c.l.b16 %v1215
      %v2065 = vunpack.c.l.b16 %v1216
      %v2066 = vunpack.c.l.b16 %v1217
      %v2067 = vunpack.c.l.b16 %v1218
      %v2068 = vunpack.c.l.b16 %v1219
      %v2069 = vunpack.c.l.b16 %v1220
      %v2070 = vunpack.c.l.b16 %v1221
      %v2071 = vunpack.c.l.b16 %v1222
      %v2072 = vunpack.c.l.b16 %v1223
      %v2073 = vunpack.c.l.b16 %v1224
      %v2074 = vunpack.c.l.b16 %v1225
      %v2075 = vunpack.c.l.b16 %v1226
      %v2076 = vunpack.c.l.b16 %v1227
      %v2077 = vunpack.c.l.b16 %v1228
      %v2078 = vunpack.c.l.b16 %v1229
      %v2079 = vunpack.c.l.b16 %v1230
      %v2080 = vunpack.c.l.b16 %v1231
      %v2081 = vunpack.c.l.b16 %v1232
      %v2082 = vpack.c.b16 %v2047, %v2046
      %v2083 = vpack.c.b16 %v2049, %v2048
      %v2084 = vpack.c.b16 %v2051, %v2050
      %v2085 = vpack.c.b16 %v2053, %v2052
      %v2086 = vpack.c.b16 %v2055, %v2054
      %v2087 = vpack.c.b16 %v2057, %v2056
      %v2088 = vpack.c.b16 %v2059, %v2058
      %v2089 = vpack.c.b16 %v2061, %v2060
      %v2090 = vpack.c.b16 %v2063, %v2062
      %v2091 = vpack.c.b16 %v2065, %v2064
      %v2092 = vpack.c.b16 %v2067, %v2066
      %v2093 = vpack.c.b16 %v2069, %v2068
      %v2094 = vpack.c.b16 %v2071, %v2070
      %v2095 = vpack.c.b16 %v2073, %v2072
      %v2096 = vpack.c.b16 %v2075, %v2074
      %v2097 = vpack.c.b16 %v2077, %v2076
      %v2098 = vpack.c.b16 %v2079, %v2078
      %v2099 = vpack.c.b16 %v2081, %v2080
      %v2119 = vsel %vm1119, %v1184, 0
      %v2122 = vsel %vm1119, %v1187, 0
      %v2125 = vsel %vm1119, %v1190, 0
      %v2128 = vsel %vm1119, %v1193, 0
      %v2131 = vsel %vm1119, %v1196, 0
      %2133 = vmatpush.bf16.msra.mxu0 %v2089
      %2134 = vmatpush.bf16.msra.mxu0 %v2088
      %2135 = vmatpush.bf16.msra.mxu0 %v2087
      %2136 = vmatpush.bf16.msra.mxu0 %v2086
      %2137 = vmatpush.bf16.msra.mxu0 %v2085
      %2138 = vmatpush.bf16.msra.mxu0 %v2084
      %2139 = vmatpush.bf16.msra.mxu0 %v2083
      %2140 = vmatpush.bf16.msra.mxu0 %v2082
      %2141 = vmatmul.bf16.gmra.mxu0 %v1182
      %v2142 = vpop.f32.mrf.mxu0
      %v2143 = vadd.f32 %v1986, %v2142
      %v2144 = vpop.f32.mrf.mxu0
      %v2145 = vadd.f32 %v1988, %v2144
      %2146 = vmatmul.bf16.gmra.mxu0 %v1185
      %v2147 = vpop.f32.mrf.mxu0
      %v2148 = vadd.f32 %v1991, %v2147
      %v2149 = vpop.f32.mrf.mxu0
      %v2150 = vadd.f32 %v1993, %v2149
      %2151 = vmatmul.bf16.gmra.mxu0 %v1188
      %v2152 = vpop.f32.mrf.mxu0
      %v2153 = vadd.f32 %v1996, %v2152
      %v2154 = vpop.f32.mrf.mxu0
      %v2155 = vadd.f32 %v1998, %v2154
      %2156 = vmatmul.bf16.gmra.mxu0 %v1191
      %v2157 = vpop.f32.mrf.mxu0
      %v2158 = vadd.f32 %v2001, %v2157
      %v2159 = vpop.f32.mrf.mxu0
      %v2160 = vadd.f32 %v2003, %v2159
      %2161 = vmatmul.bf16.gmra.mxu0 %v1194
      %v2162 = vpop.f32.mrf.mxu0
      %v2163 = vadd.f32 %v2006, %v2162
      %v2164 = vpop.f32.mrf.mxu0
      %v2165 = vadd.f32 %v2008, %v2164
      %2166 = vdwg.mxu0
      %2167 = vmatpush.bf16.msra.mxu0 %v2097
      %2168 = vmatpush.bf16.msra.mxu0 %v2096
      %2169 = vmatpush.bf16.msra.mxu0 %v2095
      %2170 = vmatpush.bf16.msra.mxu0 %v2094
      %2171 = vmatpush.bf16.msra.mxu0 %v2093
      %2172 = vmatpush.bf16.msra.mxu0 %v2092
      %2173 = vmatpush.bf16.msra.mxu0 %v2091
      %2174 = vmatpush.bf16.msra.mxu0 %v2090
      %2175 = vmatmul.bf16.gmra.mxu0 %v1183
      %v2176 = vpop.f32.mrf.mxu0
      %v2177 = vadd.f32 %v2143, %v2176
      %v2178 = vpop.f32.mrf.mxu0
      %v2179 = vadd.f32 %v2145, %v2178
      %2180 = vmatmul.bf16.gmra.mxu0 %v1186
      %v2181 = vpop.f32.mrf.mxu0
      %v2182 = vadd.f32 %v2148, %v2181
      %v2183 = vpop.f32.mrf.mxu0
      %v2184 = vadd.f32 %v2150, %v2183
      %2185 = vmatmul.bf16.gmra.mxu0 %v1189
      %v2186 = vpop.f32.mrf.mxu0
      %v2187 = vadd.f32 %v2153, %v2186
      %v2188 = vpop.f32.mrf.mxu0
      %v2189 = vadd.f32 %v2155, %v2188
      %2190 = vmatmul.bf16.gmra.mxu0 %v1192
      %v2191 = vpop.f32.mrf.mxu0
      %v2192 = vadd.f32 %v2158, %v2191
      %v2193 = vpop.f32.mrf.mxu0
      %v2194 = vadd.f32 %v2160, %v2193
      %2195 = vmatmul.bf16.gmra.mxu0 %v1195
      %v2196 = vpop.f32.mrf.mxu0
      %v2197 = vadd.f32 %v2163, %v2196
      %v2198 = vpop.f32.mrf.mxu0
      %v2199 = vadd.f32 %v2165, %v2198
      %2200 = vdwg.mxu0
      %2201 = vmatpush.bf16.msra.mxu0 0
      %2202 = vmatpush.bf16.msra.mxu0 0
      %2203 = vmatpush.bf16.msra.mxu0 0
      %2204 = vmatpush.bf16.msra.mxu0 0
      %2205 = vmatpush.bf16.msra.mxu0 0
      %2206 = vmatpush.bf16.msra.mxu0 0
      %2207 = vmatpush.bf16.msra.mxu0 %v2099
      %2208 = vmatpush.bf16.msra.mxu0 %v2098
      %2209 = vmatmul.bf16.gmra.mxu0 %v2119
      %v2210 = vpop.f32.mrf.mxu0
      %v2211 = vadd.f32 %v2177, %v2210
      %v2212 = vpop.f32.mrf.mxu0
      %v2213 = vadd.f32 %v2179, %v2212
      %2214 = vmatmul.bf16.gmra.mxu0 %v2122
      %v2215 = vpop.f32.mrf.mxu0
      %v2216 = vadd.f32 %v2182, %v2215
      %v2217 = vpop.f32.mrf.mxu0
      %v2218 = vadd.f32 %v2184, %v2217
      %2219 = vmatmul.bf16.gmra.mxu0 %v2125
      %v2220 = vpop.f32.mrf.mxu0
      %v2221 = vadd.f32 %v2187, %v2220
      %v2222 = vpop.f32.mrf.mxu0
      %v2223 = vadd.f32 %v2189, %v2222
      %2224 = vmatmul.bf16.gmra.mxu0 %v2128
      %v2225 = vpop.f32.mrf.mxu0
      %v2226 = vadd.f32 %v2192, %v2225
      %v2227 = vpop.f32.mrf.mxu0
      %v2228 = vadd.f32 %v2194, %v2227
      %2229 = vmatmul.bf16.gmra.mxu0 %v2131
      %v2230 = vpop.f32.mrf.mxu0
      %v2231 = vadd.f32 %v2197, %v2230
      %v2232 = vpop.f32.mrf.mxu0
      %v2233 = vadd.f32 %v2199, %v2232
      %2234 = vdwg.mxu0
      %s2235 = sadd.s32 %s26, 1
      %p2236 = scmp.ge.s32.totalorder %s2235, 0
      %p2237 = scmp.le.s32.totalorder %s2235, 3
      %p2238 = pnand %p2236, %p2237
      %p2239 = pneg %p2238
      %v2240 = vld [vmem:[%s555] sm:$0xf]
      %v2241 = vld [vmem:[%s555 + $0x4] sm:$0xf]
      %v2242 = vld [vmem:[%s555 + $0x8] sm:$0xf]
      %v2243 = vld [vmem:[%s555 + $0xc] sm:$0xf]
      %v2244 = vld [vmem:[%s555 + $0x10] sm:$0xf]
      %v2245 = vld [vmem:[%s555 + $0x14] sm:$0xf]
      %v2246 = vld [vmem:[%s555 + $0x18] sm:$0xf]
      %v2247 = vld [vmem:[%s555 + $0x1c] sm:$0xf]
      %v2248 = vld [vmem:[%s555 + $0x20] sm:$0xf]
      %v2249 = vld [vmem:[%s555 + $0x24] sm:$0xf]
      %v2250 = vld [vmem:[%s555 + $0x28] sm:$0xf]
      %v2251 = vld [vmem:[%s555 + $0x2c] sm:$0xf]
      %v2252 = vld [vmem:[%s555 + $0x30] sm:$0xf]
      %v2253 = vunpack.c.l.bf16 %v2240
      %v2254 = vunpack.c.l.bf16 %v2241
      %v2255 = vunpack.c.l.bf16 %v2242
      %v2256 = vunpack.c.l.bf16 %v2243
      %v2257 = vunpack.c.l.bf16 %v2244
      %v2258 = vunpack.c.l.bf16 %v2245
      %v2259 = vunpack.c.l.bf16 %v2246
      %v2260 = vunpack.c.l.bf16 %v2247
      %v2261 = vunpack.c.l.bf16 %v2248
      %v2262 = vunpack.c.l.bf16 %v2249
      %v2263 = vunpack.c.l.bf16 %v2250
      %v2264 = vunpack.c.l.bf16 %v2251
      %v2265 = vunpack.c.l.bf16 %v2252
      %v2266 = vmul.f32 %v2253, %v618
      %v2267 = vmul.f32 %v2254, %v618
      %v2268 = vmul.f32 %v2255, %v618
      %v2269 = vmul.f32 %v2256, %v618
      %v2270 = vmul.f32 %v2257, %v618
      %v2271 = vmul.f32 %v2258, %v618
      %v2272 = vmul.f32 %v2259, %v618
      %v2273 = vmul.f32 %v2260, %v618
      %v2274 = vmul.f32 %v2261, %v618
      %v2275 = vmul.f32 %v2262, %v618
      %v2276 = vmul.f32 %v2263, %v618
      %v2277 = vmul.f32 %v2264, %v618
      %v2278 = vmul.f32 %v2265, %v618
      %v2279 = vadd.f32 %v2266, %v635
      %v2280 = vadd.f32 %v2267, %v635
      %v2281 = vadd.f32 %v2268, %v635
      %v2282 = vadd.f32 %v2269, %v635
      %v2283 = vadd.f32 %v2270, %v635
      %v2284 = vadd.f32 %v2271, %v635
      %v2285 = vadd.f32 %v2272, %v635
      %v2286 = vadd.f32 %v2273, %v635
      %v2287 = vadd.f32 %v2274, %v635
      %v2288 = vadd.f32 %v2275, %v635
      %v2289 = vadd.f32 %v2276, %v635
      %v2290 = vadd.f32 %v2277, %v635
      %v2291 = vadd.f32 %v2278, %v635
      %v2292 = vmax.f32 %v2279, 0.0
      %v2293 = vmax.f32 %v2280, 0.0
      %v2294 = vmax.f32 %v2281, 0.0
      %v2295 = vmax.f32 %v2282, 0.0
      %v2296 = vmax.f32 %v2283, 0.0
      %v2297 = vmax.f32 %v2284, 0.0
      %v2298 = vmax.f32 %v2285, 0.0
      %v2299 = vmax.f32 %v2286, 0.0
      %v2300 = vmax.f32 %v2287, 0.0
      %v2301 = vmax.f32 %v2288, 0.0
      %v2302 = vmax.f32 %v2289, 0.0
      %v2303 = vmax.f32 %v2290, 0.0
      %v2304 = vmax.f32 %v2291, 0.0
      %v2305 = vmul.f32 %v2292, %v679
      %v2306 = vmul.f32 %v2293, %v684
      %v2307 = vmul.f32 %v2294, %v689
      %v2308 = vmul.f32 %v2295, %v694
      %v2309 = vmul.f32 %v2296, %v699
      %v2310 = vmul.f32 %v2297, %v704
      %v2311 = vmul.f32 %v2298, %v709
      %v2312 = vmul.f32 %v2299, %v714
      %v2313 = vmul.f32 %v2300, %v719
      %v2314 = vmul.f32 %v2301, %v724
      %v2315 = vmul.f32 %v2302, %v729
      %v2316 = vmul.f32 %v2303, %v734
      %v2317 = vmul.f32 %v2304, %v739
      %s2318 = scalar_select %p2239, 1, 0
      %s2319 = scvt.s32.f32 %s2318
      %v2320 = vstv %s2319
      %v2321 = vmul.f32 %v2305, %v2320
      %v2322 = vmul.f32 %v2306, %v2320
      %v2323 = vmul.f32 %v2307, %v2320
      %v2324 = vmul.f32 %v2308, %v2320
      %v2325 = vmul.f32 %v2309, %v2320
      %v2326 = vmul.f32 %v2310, %v2320
      %v2327 = vmul.f32 %v2311, %v2320
      %v2328 = vmul.f32 %v2312, %v2320
      %v2329 = vmul.f32 %v2313, %v2320
      %v2330 = vmul.f32 %v2314, %v2320
      %v2331 = vmul.f32 %v2315, %v2320
      %v2332 = vmul.f32 %v2316, %v2320
      %v2333 = vmul.f32 %v2317, %v2320
      %v2345 = vrot.slane %v2321, 1
      %v2346 = vrot.slane %v2322, 1
      %v2347 = vsel %vm781, %v2345, %v2346
      %v2348 = vrot.slane %v2323, 1
      %v2349 = vsel %vm781, %v2346, %v2348
      %v2350 = vrot.slane %v2324, 1
      %v2351 = vsel %vm781, %v2348, %v2350
      %v2352 = vrot.slane %v2325, 1
      %v2353 = vsel %vm781, %v2350, %v2352
      %v2354 = vrot.slane %v2326, 1
      %v2355 = vsel %vm781, %v2352, %v2354
      %v2356 = vrot.slane %v2327, 1
      %v2357 = vsel %vm781, %v2354, %v2356
      %v2358 = vrot.slane %v2328, 1
      %v2359 = vsel %vm781, %v2356, %v2358
      %v2360 = vrot.slane %v2329, 1
      %v2361 = vsel %vm781, %v2358, %v2360
      %v2362 = vrot.slane %v2330, 1
      %v2363 = vsel %vm781, %v2360, %v2362
      %v2364 = vrot.slane %v2331, 1
      %v2365 = vsel %vm781, %v2362, %v2364
      %2366 = vrot.lane.b32.xlu0 %v2347, 32
      %v2367 = vpop.permute.xlu0 %2366
      %2368 = vrot.lane.b32.xlu0 %v2349, 32
      %v2369 = vpop.permute.xlu0 %2368
      %2370 = vrot.lane.b32.xlu0 %v2351, 32
      %v2371 = vpop.permute.xlu0 %2370
      %2372 = vrot.lane.b32.xlu0 %v2353, 32
      %v2373 = vpop.permute.xlu0 %2372
      %2374 = vrot.lane.b32.xlu0 %v2355, 32
      %v2375 = vpop.permute.xlu0 %2374
      %2376 = vrot.lane.b32.xlu0 %v2357, 32
      %v2377 = vpop.permute.xlu0 %2376
      %2378 = vrot.lane.b32.xlu0 %v2359, 32
      %v2379 = vpop.permute.xlu0 %2378
      %2380 = vrot.lane.b32.xlu0 %v2361, 32
      %v2381 = vpop.permute.xlu0 %2380
      %2382 = vrot.lane.b32.xlu0 %v2363, 32
      %v2383 = vpop.permute.xlu0 %2382
      %2384 = vrot.lane.b32.xlu0 %v2365, 32
      %v2385 = vpop.permute.xlu0 %2384
      %v2396 = vrot.slane %v2321, 2
      %v2397 = vrot.slane %v2322, 2
      %v2398 = vsel %vm833, %v2396, %v2397
      %v2399 = vrot.slane %v2323, 2
      %v2400 = vsel %vm833, %v2397, %v2399
      %v2401 = vrot.slane %v2324, 2
      %v2402 = vsel %vm833, %v2399, %v2401
      %v2403 = vrot.slane %v2325, 2
      %v2404 = vsel %vm833, %v2401, %v2403
      %v2405 = vrot.slane %v2326, 2
      %v2406 = vsel %vm833, %v2403, %v2405
      %v2407 = vrot.slane %v2327, 2
      %v2408 = vsel %vm833, %v2405, %v2407
      %v2409 = vrot.slane %v2328, 2
      %v2410 = vsel %vm833, %v2407, %v2409
      %v2411 = vrot.slane %v2329, 2
      %v2412 = vsel %vm833, %v2409, %v2411
      %v2413 = vrot.slane %v2330, 2
      %v2414 = vsel %vm833, %v2411, %v2413
      %v2415 = vrot.slane %v2331, 2
      %v2416 = vsel %vm833, %v2413, %v2415
      %2417 = vrot.lane.b32.xlu0 %v2398, 64
      %v2418 = vpop.permute.xlu0 %2417
      %2419 = vrot.lane.b32.xlu0 %v2400, 64
      %v2420 = vpop.permute.xlu0 %2419
      %2421 = vrot.lane.b32.xlu0 %v2402, 64
      %v2422 = vpop.permute.xlu0 %2421
      %2423 = vrot.lane.b32.xlu0 %v2404, 64
      %v2424 = vpop.permute.xlu0 %2423
      %2425 = vrot.lane.b32.xlu0 %v2406, 64
      %v2426 = vpop.permute.xlu0 %2425
      %2427 = vrot.lane.b32.xlu0 %v2408, 64
      %v2428 = vpop.permute.xlu0 %2427
      %2429 = vrot.lane.b32.xlu0 %v2410, 64
      %v2430 = vpop.permute.xlu0 %2429
      %2431 = vrot.lane.b32.xlu0 %v2412, 64
      %v2432 = vpop.permute.xlu0 %2431
      %2433 = vrot.lane.b32.xlu0 %v2414, 64
      %v2434 = vpop.permute.xlu0 %2433
      %2435 = vrot.lane.b32.xlu0 %v2416, 64
      %v2436 = vpop.permute.xlu0 %2435
      %v2448 = vrot.slane %v2332, 2
      %v2449 = vsel %vm833, %v2415, %v2448
      %2450 = vrot.lane.b32.xlu0 %v2400, 96
      %v2451 = vpop.permute.xlu0 %2450
      %2452 = vrot.lane.b32.xlu0 %v2402, 96
      %v2453 = vpop.permute.xlu0 %2452
      %2454 = vrot.lane.b32.xlu0 %v2404, 96
      %v2455 = vpop.permute.xlu0 %2454
      %2456 = vrot.lane.b32.xlu0 %v2406, 96
      %v2457 = vpop.permute.xlu0 %2456
      %2458 = vrot.lane.b32.xlu0 %v2408, 96
      %v2459 = vpop.permute.xlu0 %2458
      %2460 = vrot.lane.b32.xlu0 %v2410, 96
      %v2461 = vpop.permute.xlu0 %2460
      %2462 = vrot.lane.b32.xlu0 %v2412, 96
      %v2463 = vpop.permute.xlu0 %2462
      %2464 = vrot.lane.b32.xlu0 %v2414, 96
      %v2465 = vpop.permute.xlu0 %2464
      %2466 = vrot.lane.b32.xlu0 %v2416, 96
      %v2467 = vpop.permute.xlu0 %2466
      %2468 = vrot.lane.b32.xlu0 %v2449, 96
      %v2469 = vpop.permute.xlu0 %2468
      %v2480 = vrot.slane %v2322, 3
      %v2481 = vrot.slane %v2323, 3
      %v2482 = vsel %vm918, %v2480, %v2481
      %v2483 = vrot.slane %v2324, 3
      %v2484 = vsel %vm918, %v2481, %v2483
      %v2485 = vrot.slane %v2325, 3
      %v2486 = vsel %vm918, %v2483, %v2485
      %v2487 = vrot.slane %v2326, 3
      %v2488 = vsel %vm918, %v2485, %v2487
      %v2489 = vrot.slane %v2327, 3
      %v2490 = vsel %vm918, %v2487, %v2489
      %v2491 = vrot.slane %v2328, 3
      %v2492 = vsel %vm918, %v2489, %v2491
      %v2493 = vrot.slane %v2329, 3
      %v2494 = vsel %vm918, %v2491, %v2493
      %v2495 = vrot.slane %v2330, 3
      %v2496 = vsel %vm918, %v2493, %v2495
      %v2497 = vrot.slane %v2331, 3
      %v2498 = vsel %vm918, %v2495, %v2497
      %v2499 = vrot.slane %v2332, 3
      %v2500 = vsel %vm918, %v2497, %v2499
      %v2511 = vrot.slane %v2322, 4
      %v2512 = vrot.slane %v2323, 4
      %v2513 = vsel %vm950, %v2511, %v2512
      %v2514 = vrot.slane %v2324, 4
      %v2515 = vsel %vm950, %v2512, %v2514
      %v2516 = vrot.slane %v2325, 4
      %v2517 = vsel %vm950, %v2514, %v2516
      %v2518 = vrot.slane %v2326, 4
      %v2519 = vsel %vm950, %v2516, %v2518
      %v2520 = vrot.slane %v2327, 4
      %v2521 = vsel %vm950, %v2518, %v2520
      %v2522 = vrot.slane %v2328, 4
      %v2523 = vsel %vm950, %v2520, %v2522
      %v2524 = vrot.slane %v2329, 4
      %v2525 = vsel %vm950, %v2522, %v2524
      %v2526 = vrot.slane %v2330, 4
      %v2527 = vsel %vm950, %v2524, %v2526
      %v2528 = vrot.slane %v2331, 4
      %v2529 = vsel %vm950, %v2526, %v2528
      %v2530 = vrot.slane %v2332, 4
      %v2531 = vsel %vm950, %v2528, %v2530
      %2532 = vrot.lane.b32.xlu0 %v2513, 32
      %v2533 = vpop.permute.xlu0 %2532
      %2534 = vrot.lane.b32.xlu0 %v2515, 32
      %v2535 = vpop.permute.xlu0 %2534
      %2536 = vrot.lane.b32.xlu0 %v2517, 32
      %v2537 = vpop.permute.xlu0 %2536
      %2538 = vrot.lane.b32.xlu0 %v2519, 32
      %v2539 = vpop.permute.xlu0 %2538
      %2540 = vrot.lane.b32.xlu0 %v2521, 32
      %v2541 = vpop.permute.xlu0 %2540
      %2542 = vrot.lane.b32.xlu0 %v2523, 32
      %v2543 = vpop.permute.xlu0 %2542
      %2544 = vrot.lane.b32.xlu0 %v2525, 32
      %v2545 = vpop.permute.xlu0 %2544
      %2546 = vrot.lane.b32.xlu0 %v2527, 32
      %v2547 = vpop.permute.xlu0 %2546
      %2548 = vrot.lane.b32.xlu0 %v2529, 32
      %v2549 = vpop.permute.xlu0 %2548
      %2550 = vrot.lane.b32.xlu0 %v2531, 32
      %v2551 = vpop.permute.xlu0 %2550
      %v2563 = vrot.slane %v2333, 4
      %v2564 = vsel %vm950, %v2530, %v2563
      %2565 = vrot.lane.b32.xlu0 %v2515, 64
      %v2566 = vpop.permute.xlu0 %2565
      %2567 = vrot.lane.b32.xlu0 %v2517, 64
      %v2568 = vpop.permute.xlu0 %2567
      %2569 = vrot.lane.b32.xlu0 %v2519, 64
      %v2570 = vpop.permute.xlu0 %2569
      %2571 = vrot.lane.b32.xlu0 %v2521, 64
      %v2572 = vpop.permute.xlu0 %2571
      %2573 = vrot.lane.b32.xlu0 %v2523, 64
      %v2574 = vpop.permute.xlu0 %2573
      %2575 = vrot.lane.b32.xlu0 %v2525, 64
      %v2576 = vpop.permute.xlu0 %2575
      %2577 = vrot.lane.b32.xlu0 %v2527, 64
      %v2578 = vpop.permute.xlu0 %2577
      %2579 = vrot.lane.b32.xlu0 %v2529, 64
      %v2580 = vpop.permute.xlu0 %2579
      %2581 = vrot.lane.b32.xlu0 %v2531, 64
      %v2582 = vpop.permute.xlu0 %2581
      %2583 = vrot.lane.b32.xlu0 %v2564, 64
      %v2584 = vpop.permute.xlu0 %2583
      %v2595 = vrot.slane %v2323, 5
      %v2596 = vrot.slane %v2324, 5
      %v2597 = vsel %vm1035, %v2595, %v2596
      %v2598 = vrot.slane %v2325, 5
      %v2599 = vsel %vm1035, %v2596, %v2598
      %v2600 = vrot.slane %v2326, 5
      %v2601 = vsel %vm1035, %v2598, %v2600
      %v2602 = vrot.slane %v2327, 5
      %v2603 = vsel %vm1035, %v2600, %v2602
      %v2604 = vrot.slane %v2328, 5
      %v2605 = vsel %vm1035, %v2602, %v2604
      %v2606 = vrot.slane %v2329, 5
      %v2607 = vsel %vm1035, %v2604, %v2606
      %v2608 = vrot.slane %v2330, 5
      %v2609 = vsel %vm1035, %v2606, %v2608
      %v2610 = vrot.slane %v2331, 5
      %v2611 = vsel %vm1035, %v2608, %v2610
      %v2612 = vrot.slane %v2332, 5
      %v2613 = vsel %vm1035, %v2610, %v2612
      %v2614 = vrot.slane %v2333, 5
      %v2615 = vsel %vm1035, %v2612, %v2614
      %2616 = vrot.lane.b32.xlu0 %v2597, 96
      %v2617 = vpop.permute.xlu0 %2616
      %2618 = vrot.lane.b32.xlu0 %v2599, 96
      %v2619 = vpop.permute.xlu0 %2618
      %2620 = vrot.lane.b32.xlu0 %v2601, 96
      %v2621 = vpop.permute.xlu0 %2620
      %2622 = vrot.lane.b32.xlu0 %v2603, 96
      %v2623 = vpop.permute.xlu0 %2622
      %2624 = vrot.lane.b32.xlu0 %v2605, 96
      %v2625 = vpop.permute.xlu0 %2624
      %2626 = vrot.lane.b32.xlu0 %v2607, 96
      %v2627 = vpop.permute.xlu0 %2626
      %2628 = vrot.lane.b32.xlu0 %v2609, 96
      %v2629 = vpop.permute.xlu0 %2628
      %2630 = vrot.lane.b32.xlu0 %v2611, 96
      %v2631 = vpop.permute.xlu0 %2630
      %2632 = vrot.lane.b32.xlu0 %v2613, 96
      %v2633 = vpop.permute.xlu0 %2632
      %2634 = vrot.lane.b32.xlu0 %v2615, 96
      %v2635 = vpop.permute.xlu0 %2634
      %v2646 = vrot.slane %v2323, 6
      %v2647 = vrot.slane %v2324, 6
      %v2648 = vsel %vm1087, %v2646, %v2647
      %v2649 = vrot.slane %v2325, 6
      %v2650 = vsel %vm1087, %v2647, %v2649
      %v2651 = vrot.slane %v2326, 6
      %v2652 = vsel %vm1087, %v2649, %v2651
      %v2653 = vrot.slane %v2327, 6
      %v2654 = vsel %vm1087, %v2651, %v2653
      %v2655 = vrot.slane %v2328, 6
      %v2656 = vsel %vm1087, %v2653, %v2655
      %v2657 = vrot.slane %v2329, 6
      %v2658 = vsel %vm1087, %v2655, %v2657
      %v2659 = vrot.slane %v2330, 6
      %v2660 = vsel %vm1087, %v2657, %v2659
      %v2661 = vrot.slane %v2331, 6
      %v2662 = vsel %vm1087, %v2659, %v2661
      %v2663 = vrot.slane %v2332, 6
      %v2664 = vsel %vm1087, %v2661, %v2663
      %v2665 = vrot.slane %v2333, 6
      %v2666 = vsel %vm1087, %v2663, %v2665
      %v2677 = vsel %vm1119, %v2321, %v2367
      %v2678 = vsel %vm1119, %v2322, %v2369
      %v2679 = vsel %vm1119, %v2323, %v2371
      %v2680 = vsel %vm1119, %v2324, %v2373
      %v2681 = vsel %vm1119, %v2325, %v2375
      %v2682 = vsel %vm1119, %v2326, %v2377
      %v2683 = vsel %vm1119, %v2327, %v2379
      %v2684 = vsel %vm1119, %v2328, %v2381
      %v2685 = vsel %vm1119, %v2329, %v2383
      %v2686 = vsel %vm1119, %v2330, %v2385
      %v2687 = vsel %vm1130, %v2677, %v2418
      %v2688 = vsel %vm1130, %v2678, %v2420
      %v2689 = vsel %vm1130, %v2679, %v2422
      %v2690 = vsel %vm1130, %v2680, %v2424
      %v2691 = vsel %vm1130, %v2681, %v2426
      %v2692 = vsel %vm1130, %v2682, %v2428
      %v2693 = vsel %vm1130, %v2683, %v2430
      %v2694 = vsel %vm1130, %v2684, %v2432
      %v2695 = vsel %vm1130, %v2685, %v2434
      %v2696 = vsel %vm1130, %v2686, %v2436
      %v2697 = vsel %vm1141, %v2687, %v2451
      %v2698 = vsel %vm1141, %v2688, %v2453
      %v2699 = vsel %vm1141, %v2689, %v2455
      %v2700 = vsel %vm1141, %v2690, %v2457
      %v2701 = vsel %vm1141, %v2691, %v2459
      %v2702 = vsel %vm1141, %v2692, %v2461
      %v2703 = vsel %vm1141, %v2693, %v2463
      %v2704 = vsel %vm1141, %v2694, %v2465
      %v2705 = vsel %vm1141, %v2695, %v2467
      %v2706 = vsel %vm1141, %v2696, %v2469
      %v2707 = vsel %vm1119, %v2482, %v2533
      %v2708 = vsel %vm1119, %v2484, %v2535
      %v2709 = vsel %vm1119, %v2486, %v2537
      %v2710 = vsel %vm1119, %v2488, %v2539
      %v2711 = vsel %vm1119, %v2490, %v2541
      %v2712 = vsel %vm1119, %v2492, %v2543
      %v2713 = vsel %vm1119, %v2494, %v2545
      %v2714 = vsel %vm1119, %v2496, %v2547
      %v2715 = vsel %vm1119, %v2498, %v2549
      %v2716 = vsel %vm1119, %v2500, %v2551
      %v2717 = vsel %vm1130, %v2707, %v2566
      %v2718 = vsel %vm1130, %v2708, %v2568
      %v2719 = vsel %vm1130, %v2709, %v2570
      %v2720 = vsel %vm1130, %v2710, %v2572
      %v2721 = vsel %vm1130, %v2711, %v2574
      %v2722 = vsel %vm1130, %v2712, %v2576
      %v2723 = vsel %vm1130, %v2713, %v2578
      %v2724 = vsel %vm1130, %v2714, %v2580
      %v2725 = vsel %vm1130, %v2715, %v2582
      %v2726 = vsel %vm1130, %v2716, %v2584
      %v2727 = vsel %vm1141, %v2717, %v2617
      %v2728 = vsel %vm1141, %v2718, %v2619
      %v2729 = vsel %vm1141, %v2719, %v2621
      %v2730 = vsel %vm1141, %v2720, %v2623
      %v2731 = vsel %vm1141, %v2721, %v2625
      %v2732 = vsel %vm1141, %v2722, %v2627
      %v2733 = vsel %vm1141, %v2723, %v2629
      %v2734 = vsel %vm1141, %v2724, %v2631
      %v2735 = vsel %vm1141, %v2725, %v2633
      %v2736 = vsel %vm1141, %v2726, %v2635
      %v2737 = vpack.c.bf16 %v2698, %v2697
      %v2738 = vpack.c.bf16 %v2728, %v2727
      %v2739 = vpack.c.bf16 %v2650, %v2648
      %v2740 = vpack.c.bf16 %v2700, %v2699
      %v2741 = vpack.c.bf16 %v2730, %v2729
      %v2742 = vpack.c.bf16 %v2654, %v2652
      %v2743 = vpack.c.bf16 %v2702, %v2701
      %v2744 = vpack.c.bf16 %v2732, %v2731
      %v2745 = vpack.c.bf16 %v2658, %v2656
      %v2746 = vpack.c.bf16 %v2704, %v2703
      %v2747 = vpack.c.bf16 %v2734, %v2733
      %v2748 = vpack.c.bf16 %v2662, %v2660
      %v2749 = vpack.c.bf16 %v2706, %v2705
      %v2750 = vpack.c.bf16 %v2736, %v2735
      %v2751 = vpack.c.bf16 %v2666, %v2664
      %v2752 = vld [vmem:[%s3 + $0x120] sm:$0xf]
      %v2753 = vld [vmem:[%s3 + $0x124] sm:$0xf]
      %v2754 = vld [vmem:[%s3 + $0x128] sm:$0xf]
      %v2755 = vld [vmem:[%s3 + $0x12c] sm:$0xf]
      %v2756 = vld [vmem:[%s3 + $0x130] sm:$0xf]
      %v2757 = vld [vmem:[%s3 + $0x134] sm:$0xf]
      %v2758 = vld [vmem:[%s3 + $0x138] sm:$0xf]
      %v2759 = vld [vmem:[%s3 + $0x13c] sm:$0xf]
      %v2760 = vld [vmem:[%s3 + $0x140] sm:$0xf]
      %v2761 = vld [vmem:[%s3 + $0x144] sm:$0xf]
      %v2762 = vld [vmem:[%s3 + $0x148] sm:$0xf]
      %v2763 = vld [vmem:[%s3 + $0x14c] sm:$0xf]
      %v2764 = vld [vmem:[%s3 + $0x150] sm:$0xf]
      %v2765 = vld [vmem:[%s3 + $0x154] sm:$0xf]
      %v2766 = vld [vmem:[%s3 + $0x158] sm:$0xf]
      %v2767 = vld [vmem:[%s3 + $0x15c] sm:$0xf]
      %v2768 = vld [vmem:[%s3 + $0x160] sm:$0xf]
      %v2769 = vld [vmem:[%s3 + $0x164] sm:$0xf]
      %v2770 = vld [vmem:[%s3 + $0x168] sm:$0xf]
      %v2771 = vld [vmem:[%s3 + $0x16c] sm:$0xf]
      %v2772 = vld [vmem:[%s3 + $0x170] sm:$0xf]
      %v2773 = vld [vmem:[%s3 + $0x174] sm:$0xf]
      %v2774 = vld [vmem:[%s3 + $0x178] sm:$0xf]
      %v2775 = vld [vmem:[%s3 + $0x17c] sm:$0xf]
      %v2776 = vld [vmem:[%s3 + $0x180] sm:$0xf]
      %v2777 = vld [vmem:[%s3 + $0x184] sm:$0xf]
      %v2778 = vld [vmem:[%s3 + $0x188] sm:$0xf]
      %v2779 = vld [vmem:[%s3 + $0x18c] sm:$0xf]
      %v2780 = vld [vmem:[%s3 + $0x190] sm:$0xf]
      %v2781 = vld [vmem:[%s3 + $0x194] sm:$0xf]
      %v2782 = vld [vmem:[%s3 + $0x198] sm:$0xf]
      %v2783 = vld [vmem:[%s3 + $0x19c] sm:$0xf]
      %v2784 = vld [vmem:[%s3 + $0x1a0] sm:$0xf]
      %v2785 = vld [vmem:[%s3 + $0x1a4] sm:$0xf]
      %v2786 = vld [vmem:[%s3 + $0x1a8] sm:$0xf]
      %v2787 = vld [vmem:[%s3 + $0x1ac] sm:$0xf]
      %v2824 = vunpack.c.l.b16 %v2752
      %v2825 = vunpack.c.l.b16 %v2753
      %v2826 = vunpack.c.l.b16 %v2754
      %v2827 = vunpack.c.l.b16 %v2755
      %v2828 = vunpack.c.l.b16 %v2756
      %v2829 = vunpack.c.l.b16 %v2757
      %v2830 = vunpack.c.l.b16 %v2758
      %v2831 = vunpack.c.l.b16 %v2759
      %v2832 = vunpack.c.l.b16 %v2760
      %v2833 = vunpack.c.l.b16 %v2761
      %v2834 = vunpack.c.l.b16 %v2762
      %v2835 = vunpack.c.l.b16 %v2763
      %v2836 = vunpack.c.l.b16 %v2764
      %v2837 = vunpack.c.l.b16 %v2765
      %v2838 = vunpack.c.l.b16 %v2766
      %v2839 = vunpack.c.l.b16 %v2767
      %v2840 = vunpack.c.l.b16 %v2768
      %v2841 = vunpack.c.l.b16 %v2769
      %v2842 = vunpack.c.l.b16 %v2770
      %v2843 = vunpack.c.l.b16 %v2771
      %v2844 = vunpack.c.l.b16 %v2772
      %v2845 = vunpack.c.l.b16 %v2773
      %v2846 = vunpack.c.l.b16 %v2774
      %v2847 = vunpack.c.l.b16 %v2775
      %v2848 = vunpack.c.l.b16 %v2776
      %v2849 = vunpack.c.l.b16 %v2777
      %v2850 = vunpack.c.l.b16 %v2778
      %v2851 = vunpack.c.l.b16 %v2779
      %v2852 = vunpack.c.l.b16 %v2780
      %v2853 = vunpack.c.l.b16 %v2781
      %v2854 = vunpack.c.l.b16 %v2782
      %v2855 = vunpack.c.l.b16 %v2783
      %v2856 = vunpack.c.l.b16 %v2784
      %v2857 = vunpack.c.l.b16 %v2785
      %v2858 = vunpack.c.l.b16 %v2786
      %v2859 = vunpack.c.l.b16 %v2787
      %v2860 = vpack.c.b16 %v2825, %v2824
      %v2861 = vpack.c.b16 %v2827, %v2826
      %v2862 = vpack.c.b16 %v2829, %v2828
      %v2863 = vpack.c.b16 %v2831, %v2830
      %v2864 = vpack.c.b16 %v2833, %v2832
      %v2865 = vpack.c.b16 %v2835, %v2834
      %v2866 = vpack.c.b16 %v2837, %v2836
      %v2867 = vpack.c.b16 %v2839, %v2838
      %v2868 = vpack.c.b16 %v2841, %v2840
      %v2869 = vpack.c.b16 %v2843, %v2842
      %v2870 = vpack.c.b16 %v2845, %v2844
      %v2871 = vpack.c.b16 %v2847, %v2846
      %v2872 = vpack.c.b16 %v2849, %v2848
      %v2873 = vpack.c.b16 %v2851, %v2850
      %v2874 = vpack.c.b16 %v2853, %v2852
      %v2875 = vpack.c.b16 %v2855, %v2854
      %v2876 = vpack.c.b16 %v2857, %v2856
      %v2877 = vpack.c.b16 %v2859, %v2858
      %v2897 = vsel %vm1119, %v2739, 0
      %v2900 = vsel %vm1119, %v2742, 0
      %v2903 = vsel %vm1119, %v2745, 0
      %v2906 = vsel %vm1119, %v2748, 0
      %v2909 = vsel %vm1119, %v2751, 0
      %2911 = vmatpush.bf16.msra.mxu0 %v2867
      %2912 = vmatpush.bf16.msra.mxu0 %v2866
      %2913 = vmatpush.bf16.msra.mxu0 %v2865
      %2914 = vmatpush.bf16.msra.mxu0 %v2864
      %2915 = vmatpush.bf16.msra.mxu0 %v2863
      %2916 = vmatpush.bf16.msra.mxu0 %v2862
      %2917 = vmatpush.bf16.msra.mxu0 %v2861
      %2918 = vmatpush.bf16.msra.mxu0 %v2860
      %2919 = vmatmul.bf16.gmra.mxu0 %v2737
      %v2920 = vpop.f32.mrf.mxu0
      %v2921 = vadd.f32 0.0, %v2920
      %v2922 = vpop.f32.mrf.mxu0
      %v2923 = vadd.f32 0.0, %v2922
      %2924 = vmatmul.bf16.gmra.mxu0 %v2740
      %v2925 = vpop.f32.mrf.mxu0
      %v2926 = vadd.f32 0.0, %v2925
      %v2927 = vpop.f32.mrf.mxu0
      %v2928 = vadd.f32 0.0, %v2927
      %2929 = vmatmul.bf16.gmra.mxu0 %v2743
      %v2930 = vpop.f32.mrf.mxu0
      %v2931 = vadd.f32 0.0, %v2930
      %v2932 = vpop.f32.mrf.mxu0
      %v2933 = vadd.f32 0.0, %v2932
      %2934 = vmatmul.bf16.gmra.mxu0 %v2746
      %v2935 = vpop.f32.mrf.mxu0
      %v2936 = vadd.f32 0.0, %v2935
      %v2937 = vpop.f32.mrf.mxu0
      %v2938 = vadd.f32 0.0, %v2937
      %2939 = vmatmul.bf16.gmra.mxu0 %v2749
      %v2940 = vpop.f32.mrf.mxu0
      %v2941 = vadd.f32 0.0, %v2940
      %v2942 = vpop.f32.mrf.mxu0
      %v2943 = vadd.f32 0.0, %v2942
      %2944 = vdwg.mxu0
      %2945 = vmatpush.bf16.msra.mxu0 %v2875
      %2946 = vmatpush.bf16.msra.mxu0 %v2874
      %2947 = vmatpush.bf16.msra.mxu0 %v2873
      %2948 = vmatpush.bf16.msra.mxu0 %v2872
      %2949 = vmatpush.bf16.msra.mxu0 %v2871
      %2950 = vmatpush.bf16.msra.mxu0 %v2870
      %2951 = vmatpush.bf16.msra.mxu0 %v2869
      %2952 = vmatpush.bf16.msra.mxu0 %v2868
      %2953 = vmatmul.bf16.gmra.mxu0 %v2738
      %v2954 = vpop.f32.mrf.mxu0
      %v2955 = vadd.f32 %v2921, %v2954
      %v2956 = vpop.f32.mrf.mxu0
      %v2957 = vadd.f32 %v2923, %v2956
      %2958 = vmatmul.bf16.gmra.mxu0 %v2741
      %v2959 = vpop.f32.mrf.mxu0
      %v2960 = vadd.f32 %v2926, %v2959
      %v2961 = vpop.f32.mrf.mxu0
      %v2962 = vadd.f32 %v2928, %v2961
      %2963 = vmatmul.bf16.gmra.mxu0 %v2744
      %v2964 = vpop.f32.mrf.mxu0
      %v2965 = vadd.f32 %v2931, %v2964
      %v2966 = vpop.f32.mrf.mxu0
      %v2967 = vadd.f32 %v2933, %v2966
      %2968 = vmatmul.bf16.gmra.mxu0 %v2747
      %v2969 = vpop.f32.mrf.mxu0
      %v2970 = vadd.f32 %v2936, %v2969
      %v2971 = vpop.f32.mrf.mxu0
      %v2972 = vadd.f32 %v2938, %v2971
      %2973 = vmatmul.bf16.gmra.mxu0 %v2750
      %v2974 = vpop.f32.mrf.mxu0
      %v2975 = vadd.f32 %v2941, %v2974
      %v2976 = vpop.f32.mrf.mxu0
      %v2977 = vadd.f32 %v2943, %v2976
      %2978 = vdwg.mxu0
      %2979 = vmatpush.bf16.msra.mxu0 0
      %2980 = vmatpush.bf16.msra.mxu0 0
      %2981 = vmatpush.bf16.msra.mxu0 0
      %2982 = vmatpush.bf16.msra.mxu0 0
      %2983 = vmatpush.bf16.msra.mxu0 0
      %2984 = vmatpush.bf16.msra.mxu0 0
      %2985 = vmatpush.bf16.msra.mxu0 %v2877
      %2986 = vmatpush.bf16.msra.mxu0 %v2876
      %2987 = vmatmul.bf16.gmra.mxu0 %v2897
      %v2988 = vpop.f32.mrf.mxu0
      %v2989 = vadd.f32 %v2955, %v2988
      %v2990 = vpop.f32.mrf.mxu0
      %v2991 = vadd.f32 %v2957, %v2990
      %2992 = vmatmul.bf16.gmra.mxu0 %v2900
      %v2993 = vpop.f32.mrf.mxu0
      %v2994 = vadd.f32 %v2960, %v2993
      %v2995 = vpop.f32.mrf.mxu0
      %v2996 = vadd.f32 %v2962, %v2995
      %2997 = vmatmul.bf16.gmra.mxu0 %v2903
      %v2998 = vpop.f32.mrf.mxu0
      %v2999 = vadd.f32 %v2965, %v2998
      %v3000 = vpop.f32.mrf.mxu0
      %v3001 = vadd.f32 %v2967, %v3000
      %3002 = vmatmul.bf16.gmra.mxu0 %v2906
      %v3003 = vpop.f32.mrf.mxu0
      %v3004 = vadd.f32 %v2970, %v3003
      %v3005 = vpop.f32.mrf.mxu0
      %v3006 = vadd.f32 %v2972, %v3005
      %3007 = vmatmul.bf16.gmra.mxu0 %v2909
      %v3008 = vpop.f32.mrf.mxu0
      %v3009 = vadd.f32 %v2975, %v3008
      %v3010 = vpop.f32.mrf.mxu0
      %v3011 = vadd.f32 %v2977, %v3010
      %3012 = vdwg.mxu0
      %v3013 = vadd.f32 %v2211, %v2989
      %v3014 = vadd.f32 %v2213, %v2991
      %v3015 = vadd.f32 %v2216, %v2994
      %v3016 = vadd.f32 %v2218, %v2996
      %v3017 = vadd.f32 %v2221, %v2999
      %v3018 = vadd.f32 %v2223, %v3001
      %v3019 = vadd.f32 %v2226, %v3004
      %v3020 = vadd.f32 %v2228, %v3006
      %v3021 = vadd.f32 %v2231, %v3009
      %v3022 = vadd.f32 %v2233, %v3011
      %v3023 = vld [vmem:[%s4] sm:$0xff]
      %v3024 = vld [vmem:[%s4 + $0x8] sm:$0xff]
      %v3025 = vld [vmem:[%s4 + $0x10] sm:$0xff]
      %v3026 = vld [vmem:[%s4 + $0x18] sm:$0xff]
      %v3027 = vld [vmem:[%s4 + $0x20] sm:$0xff]
      %v3028 = vld [vmem:[%s4 + $0x28] sm:$0xff]
      %v3029 = vld [vmem:[%s4 + $0x30] sm:$0xff]
      %v3030 = vld [vmem:[%s4 + $0x38] sm:$0xff]
      %v3031 = vld [vmem:[%s4 + $0x40] sm:$0xff]
      %v3032 = vld [vmem:[%s4 + $0x48] sm:$0xff]
      %3034 = vset.pattern.permute.xlu0 0
      %3035 = vperm.xlu0 %3034, %v3023
      %v3036 = vpop.permute.xlu0 %3035
      %3039 = vset.pattern.permute.xlu0 0
      %3040 = vperm.xlu0 %3039, %v3024
      %v3041 = vpop.permute.xlu0 %3040
      %3044 = vset.pattern.permute.xlu0 0
      %3045 = vperm.xlu0 %3044, %v3025
      %v3046 = vpop.permute.xlu0 %3045
      %3049 = vset.pattern.permute.xlu0 0
      %3050 = vperm.xlu0 %3049, %v3026
      %v3051 = vpop.permute.xlu0 %3050
      %3054 = vset.pattern.permute.xlu0 0
      %3055 = vperm.xlu0 %3054, %v3027
      %v3056 = vpop.permute.xlu0 %3055
      %3059 = vset.pattern.permute.xlu0 0
      %3060 = vperm.xlu0 %3059, %v3028
      %v3061 = vpop.permute.xlu0 %3060
      %3064 = vset.pattern.permute.xlu0 0
      %3065 = vperm.xlu0 %3064, %v3029
      %v3066 = vpop.permute.xlu0 %3065
      %3069 = vset.pattern.permute.xlu0 0
      %3070 = vperm.xlu0 %3069, %v3030
      %v3071 = vpop.permute.xlu0 %3070
      %3074 = vset.pattern.permute.xlu0 0
      %3075 = vperm.xlu0 %3074, %v3031
      %v3076 = vpop.permute.xlu0 %3075
      %3079 = vset.pattern.permute.xlu0 0
      %3080 = vperm.xlu0 %3079, %v3032
      %v3081 = vpop.permute.xlu0 %3080
      %v3083 = vmul.f32 %v3013, %v3036
      %v3084 = vmul.f32 %v3014, %v3041
      %v3085 = vmul.f32 %v3015, %v3046
      %v3086 = vmul.f32 %v3016, %v3051
      %v3087 = vmul.f32 %v3017, %v3056
      %v3088 = vmul.f32 %v3018, %v3061
      %v3089 = vmul.f32 %v3019, %v3066
      %v3090 = vmul.f32 %v3020, %v3071
      %v3091 = vmul.f32 %v3021, %v3076
      %v3092 = vmul.f32 %v3022, %v3081
      %vm3093 = vcmask 257024
      %3094 = vst.msk [vmem:[%s575] sm:$0xf] %vm3093, 0
      %vm3095 = vcmask 254976
      %vm3096 = vsmask.f32 1280
      %vm3097 = vmand %vm3095, %vm3096
      %v3098 = vld [vmem:[%s575 + $0x4] sm:$0x3]
      %v3099 = vsel %vm3097, 0, %v3098
      %3100 = vst [vmem:[%s575 + $0x4] sm:$0x3] %v3099
      %v3101 = vpack.c.bf16 %v3083, %v3083
      %v3102 = vpack.c.bf16 %v3084, %v3084
      %v3103 = vpack.c.bf16 %v3085, %v3085
      %v3104 = vpack.c.bf16 %v3086, %v3086
      %v3105 = vpack.c.bf16 %v3087, %v3087
      %v3106 = vpack.c.bf16 %v3088, %v3088
      %v3107 = vpack.c.bf16 %v3089, %v3089
      %v3108 = vpack.c.bf16 %v3090, %v3090
      %v3109 = vpack.c.bf16 %v3091, %v3091
      %v3110 = vpack.c.bf16 %v3092, %v3092
      %vm3111 = vsmask.f32 5392
      %vm3112 = vmor %vm3096, %vm3111
      %v3114 = vshrl.u32 %v3101, 16
      %v3116 = vrot.slane %v3114, 6
      %v3117 = vshll.u32 %v3101, 16
      %v3119 = vrot.slane %v3117, 7
      %v3120 = vor.u32 %v3116, %v3119
      %v3121 = vrot.slane %v3120, 4
      %v3123 = vshrl.u32 %v3102, 16
      %v3125 = vrot.slane %v3123, 6
      %v3126 = vshll.u32 %v3102, 16
      %v3128 = vrot.slane %v3126, 7
      %v3129 = vor.u32 %v3125, %v3128
      %v3130 = vsel %vm3112, %v3121, %v3129
      %v3131 = vrot.slane %v3129, 4
      %v3133 = vshrl.u32 %v3103, 16
      %v3135 = vrot.slane %v3133, 6
      %v3136 = vshll.u32 %v3103, 16
      %v3138 = vrot.slane %v3136, 7
      %v3139 = vor.u32 %v3135, %v3138
      %v3140 = vsel %vm3112, %v3131, %v3139
      %v3141 = vrot.slane %v3139, 4
      %v3143 = vshrl.u32 %v3104, 16
      %v3145 = vrot.slane %v3143, 6
      %v3146 = vshll.u32 %v3104, 16
      %v3148 = vrot.slane %v3146, 7
      %v3149 = vor.u32 %v3145, %v3148
      %v3150 = vsel %vm3112, %v3141, %v3149
      %v3151 = vrot.slane %v3149, 4
      %v3153 = vshrl.u32 %v3105, 16
      %v3155 = vrot.slane %v3153, 6
      %v3156 = vshll.u32 %v3105, 16
      %v3158 = vrot.slane %v3156, 7
      %v3159 = vor.u32 %v3155, %v3158
      %v3160 = vsel %vm3112, %v3151, %v3159
      %v3161 = vrot.slane %v3159, 4
      %v3163 = vshrl.u32 %v3106, 16
      %v3165 = vrot.slane %v3163, 6
      %v3166 = vshll.u32 %v3106, 16
      %v3168 = vrot.slane %v3166, 7
      %v3169 = vor.u32 %v3165, %v3168
      %v3170 = vsel %vm3112, %v3161, %v3169
      %v3171 = vrot.slane %v3169, 4
      %v3173 = vshrl.u32 %v3107, 16
      %v3175 = vrot.slane %v3173, 6
      %v3176 = vshll.u32 %v3107, 16
      %v3178 = vrot.slane %v3176, 7
      %v3179 = vor.u32 %v3175, %v3178
      %v3180 = vsel %vm3112, %v3171, %v3179
      %v3181 = vrot.slane %v3179, 4
      %v3183 = vshrl.u32 %v3108, 16
      %v3185 = vrot.slane %v3183, 6
      %v3186 = vshll.u32 %v3108, 16
      %v3188 = vrot.slane %v3186, 7
      %v3189 = vor.u32 %v3185, %v3188
      %v3190 = vsel %vm3112, %v3181, %v3189
      %v3191 = vrot.slane %v3189, 4
      %v3193 = vshrl.u32 %v3109, 16
      %v3195 = vrot.slane %v3193, 6
      %v3196 = vshll.u32 %v3109, 16
      %v3198 = vrot.slane %v3196, 7
      %v3199 = vor.u32 %v3195, %v3198
      %v3200 = vsel %vm3112, %v3191, %v3199
      %v3201 = vrot.slane %v3199, 4
      %v3203 = vshrl.u32 %v3110, 16
      %v3205 = vrot.slane %v3203, 6
      %v3206 = vshll.u32 %v3110, 16
      %v3208 = vrot.slane %v3206, 7
      %v3209 = vor.u32 %v3205, %v3208
      %v3210 = vsel %vm3112, %v3201, %v3209
      %v3211 = vrot.slane %v3209, 4
      %vm3223 = vcmask 257025
      %vm3224 = vsmask.f32 7942
      %vm3225 = vmand %vm3223, %vm3224
      %v3226 = vld [vmem:[%s575 + $0x4] sm:$0xe]
      %v3227 = vsel %vm3225, %v3120, %v3226
      %3228 = vst [vmem:[%s575 + $0x4] sm:$0xe] %v3227
      %3229 = vst.msk [vmem:[%s575 + $0x8] sm:$0xf] %vm3093, %v3130
      %3230 = vst.msk [vmem:[%s575 + $0xc] sm:$0xf] %vm3093, %v3140
      %3231 = vst.msk [vmem:[%s575 + $0x10] sm:$0xf] %vm3093, %v3150
      %3232 = vst.msk [vmem:[%s575 + $0x14] sm:$0xf] %vm3093, %v3160
      %3233 = vst.msk [vmem:[%s575 + $0x18] sm:$0xf] %vm3093, %v3170
      %3234 = vst.msk [vmem:[%s575 + $0x1c] sm:$0xf] %vm3093, %v3180
      %3235 = vst.msk [vmem:[%s575 + $0x20] sm:$0xf] %vm3093, %v3190
      %3236 = vst.msk [vmem:[%s575 + $0x24] sm:$0xf] %vm3093, %v3200
      %3237 = vst.msk [vmem:[%s575 + $0x28] sm:$0xf] %vm3093, %v3210
      %v3238 = vld [vmem:[%s575 + $0x2c] sm:$0x3]
      %v3239 = vsel %vm3097, %v3211, %v3238
      %3240 = vst [vmem:[%s575 + $0x2c] sm:$0x3] %v3239
      %v3241 = vld [vmem:[%s575 + $0x2c] sm:$0xe]
      %v3242 = vsel %vm3225, 0, %v3241
      %3243 = vst [vmem:[%s575 + $0x2c] sm:$0xe] %v3242
      %3244 = vst.msk [vmem:[%s575 + $0x30] sm:$0xf] %vm3093, 0
      %vm3245 = vcmask 256000
      %3246 = vst.msk [vmem:[%s575 + $0x34] sm:$0x7] %vm3245, 0
      %v3247 = vsel %vm1119, %v3083, 0.0
      %v3248 = vsel %vm1119, %v3084, 0.0
      %v3249 = vadd.f32 %v3247, %v3248
      %v3250 = vsel %vm1119, %v3085, 0.0
      %v3251 = vadd.f32 %v3249, %v3250
      %v3252 = vsel %vm1119, %v3086, 0.0
      %v3253 = vadd.f32 %v3251, %v3252
      %v3254 = vsel %vm1119, %v3087, 0.0
      %v3255 = vadd.f32 %v3253, %v3254
      %v3256 = vsel %vm1119, %v3088, 0.0
      %v3257 = vadd.f32 %v3255, %v3256
      %v3258 = vsel %vm1119, %v3089, 0.0
      %v3259 = vadd.f32 %v3257, %v3258
      %v3260 = vsel %vm1119, %v3090, 0.0
      %v3261 = vadd.f32 %v3259, %v3260
      %v3262 = vsel %vm1119, %v3091, 0.0
      %v3263 = vadd.f32 %v3261, %v3262
      %v3264 = vsel %vm1119, %v3092, 0.0
      %v3265 = vadd.f32 %v3263, %v3264
      %v3266 = vrot.slane %v3265, 4
      %v3267 = vadd.f32 %v3265, %v3266
      %v3268 = vrot.slane %v3267, 2
      %v3269 = vadd.f32 %v3267, %v3268
      %v3270 = vrot.slane %v3269, 1
      %v3271 = vadd.f32 %v3269, %v3270
      %vm3272 = vcmask 253952
      %3273 = vst.msk [vmem:[%s583] sm:$0x1] %vm3272, %v3271
      %v3274 = vmul.f32 %v3083, %v3083
      %v3275 = vmul.f32 %v3084, %v3084
      %v3276 = vmul.f32 %v3085, %v3085
      %v3277 = vmul.f32 %v3086, %v3086
      %v3278 = vmul.f32 %v3087, %v3087
      %v3279 = vmul.f32 %v3088, %v3088
      %v3280 = vmul.f32 %v3089, %v3089
      %v3281 = vmul.f32 %v3090, %v3090
      %v3282 = vmul.f32 %v3091, %v3091
      %v3283 = vmul.f32 %v3092, %v3092
      %v3284 = vsel %vm1119, %v3274, 0.0
      %v3285 = vsel %vm1119, %v3275, 0.0
      %v3286 = vadd.f32 %v3284, %v3285
      %v3287 = vsel %vm1119, %v3276, 0.0
      %v3288 = vadd.f32 %v3286, %v3287
      %v3289 = vsel %vm1119, %v3277, 0.0
      %v3290 = vadd.f32 %v3288, %v3289
      %v3291 = vsel %vm1119, %v3278, 0.0
      %v3292 = vadd.f32 %v3290, %v3291
      %v3293 = vsel %vm1119, %v3279, 0.0
      %v3294 = vadd.f32 %v3292, %v3293
      %v3295 = vsel %vm1119, %v3280, 0.0
      %v3296 = vadd.f32 %v3294, %v3295
      %v3297 = vsel %vm1119, %v3281, 0.0
      %v3298 = vadd.f32 %v3296, %v3297
      %v3299 = vsel %vm1119, %v3282, 0.0
      %v3300 = vadd.f32 %v3298, %v3299
      %v3301 = vsel %vm1119, %v3283, 0.0
      %v3302 = vadd.f32 %v3300, %v3301
      %v3303 = vrot.slane %v3302, 4
      %v3304 = vadd.f32 %v3302, %v3303
      %v3305 = vrot.slane %v3304, 2
      %v3306 = vadd.f32 %v3304, %v3305
      %v3307 = vrot.slane %v3306, 1
      %v3308 = vadd.f32 %v3306, %v3307
      %3309 = vst.msk [vmem:[%s583 + $0x1] sm:$0x1] %vm3272, %v3308
      %p3310 = scmp.lt.s32.totalorder %s25, 1
      %s3311 = scalar_select %p3310, %s25, 1
      %p3312 = scmp.lt.s32.totalorder %s26, 3
      %s3313 = scalar_select %p3312, %s26, 3
      %s3314 = smul.addr %s3313, 14
      %s3315 = smul.addr %s3311, 56
      %s3316 = sadd.s32 %s3314, %s3315
      %s3317 = smul.addr %s3316, 4
      %s3318 = scalar_lea.vmem %s8, %s3317
      %p3319 = scmp.lt.s32.totalorder %s25, 1
      %s3320 = scalar_select %p3319, %s25, 1
      %p3321 = scmp.lt.s32.totalorder %s26, 3
      %s3322 = scalar_select %p3321, %s26, 3
      %s3323 = smul.addr %s3320, 4
      %s3324 = sadd.s32 %s3322, %s3323
      %s3325 = smul.addr %s3324, 2
      %s3326 = scalar_lea.vmem %s9, %s3325
      // Predicated region
      $region53: #{basic_block_forward.4} parent=51 // pred_check
        %p3327 = pneg %p280
      $region54: #{basic_block_forward.4} parent=51 // pred_check_branch
        %3329 = sbr.rel (%p3327) target = $region56
      $region55: #{basic_block_forward.4} parent=51 // pred_region
        _
      $region56: #{basic_block_forward.4} parent=51 // pred_fallthru
        _
      // Predicated region
      $region57: #{basic_block_forward.4} parent=51 // pred_check
        %p3330 = pneg %p308
      $region58: #{basic_block_forward.4} parent=51 // pred_check_branch
        %3332 = sbr.rel (%p3330) target = $region60
      $region59: #{basic_block_forward.4} parent=51 // pred_region
        _
      $region60: #{basic_block_forward.4} parent=51 // pred_fallthru
        _
    $region52: #{basic_block_forward.4} parent=5 // pred_fallthru
      _
    %p3333 = scmp.le.s32.totalorder 2, %s16
    // Predicated region
    $region61: #{basic_block_forward.4} parent=5 // pred_check
      %p3334 = pneg %p3333
    $region62: #{basic_block_forward.4} parent=5 // pred_check_branch
      %3336 = sbr.rel (%p3334) target = $region64
    $region63: #{basic_block_forward.4} parent=5 // pred_region
      %s3337 = ssub.s32 %s16, 2
      // Predicated region
      $region65: #{basic_block_forward.4} parent=63 // pred_check
        %p3338 = pneg %p286
      $region66: #{basic_block_forward.4} parent=63 // pred_check_branch
        %3340 = sbr.rel (%p3338) target = $region68
      $region67: #{basic_block_forward.4} parent=63 // pred_region
        %p3341 = scmp.lt.s32.totalorder %s27, 1
        %s3342 = scalar_select %p3341, %s27, 1
        %p3343 = scmp.lt.s32.totalorder %s28, 3
        %s3344 = scalar_select %p3343, %s28, 3
        %s3345 = smul.addr %s3344, 14
        %s3346 = smul.addr %s3342, 56
        %s3347 = sadd.s32 %s3345, %s3346
        %s3348 = smul.addr %s3347, 4
        %s3349 = scalar_lea.vmem %s8, %s3348
      $region68: #{basic_block_forward.4} parent=63 // pred_fallthru
        _
      // Predicated region
      $region69: #{basic_block_forward.4} parent=63 // pred_check
        %p3350 = pneg %p314
      $region70: #{basic_block_forward.4} parent=63 // pred_check_branch
        %3352 = sbr.rel (%p3350) target = $region72
      $region71: #{basic_block_forward.4} parent=63 // pred_region
        %p3353 = scmp.lt.s32.totalorder %s27, 1
        %s3354 = scalar_select %p3353, %s27, 1
        %p3355 = scmp.lt.s32.totalorder %s28, 3
        %s3356 = scalar_select %p3355, %s28, 3
        %s3357 = smul.addr %s3354, 4
        %s3358 = sadd.s32 %s3356, %s3357
        %s3359 = smul.addr %s3358, 2
        %s3360 = scalar_lea.vmem %s9, %s3359
      $region72: #{basic_block_forward.4} parent=63 // pred_fallthru
        _
    $region64: #{basic_block_forward.4} parent=5 // pred_fallthru
      _
  $region6: #{basic_block_forward.4} parent=0 // loop_footer
    %s20 = sadd.s32 1, %s16
  $region7: #{basic_block_forward.4} parent=0 // loop_footer_branch
    %15 = sbr.rel target = $region3
  $region8: #{basic_block_forward.4} parent=0 // loop_exit
    _

// kernel: basic_block_forward.3
$region0: #{basic_block_forward.3}
  #allocation0 [shape = 'u32[]', space=smem, size = 0x4, offset = 0x4, fixed_abs, tag = 'smem constant byte address 0x4 - core index']
  #allocation1 [shape = 'u32[72,128]{1,0:T(1,128)}', space=vmem, size = 0x9000, scoped, tag = 'internal scratch']
  %s0 = inlined_call_operand.vmem [shape: bf16[2,4,110,32], index: 0, kind: input, shape index: {}, may-alias: {0,1,2}]
  %s1 = inlined_call_operand.vmem [shape: bf16[2,4,110,32], index: 1, kind: input, shape index: {}, may-alias: {0,1,2}]
  %s2 = inlined_call_operand.vmem [shape: bf16[2,4,110,32], index: 2, kind: input, shape index: {}, may-alias: {0,1,2}]
  %s3 = inlined_call_operand.vmem [shape: bf16[864,32], index: 3, kind: input, shape index: {}]
  %s4 = inlined_call_operand.vmem [shape: f32[80,1], index: 4, kind: input, shape index: {}]
  %s5 = inlined_call_operand.vmem [shape: bf16[2,4,110,32], index: 5, kind: output, shape index: {0}]
  %s6 = inlined_call_operand.vmem [shape: f32[2,4,2,32], index: 6, kind: output, shape index: {1}]
  %7 = xla_tuple %s5, %s6
  %s8 = sld [smem:[#allocation0]]
  $region61: #{basic_block_forward.3} parent=0
    _
  %s10 = ssub.s32 1, %s8
  %s11 = scalar_select 0, %s10, %s8
  loop: start=0, step=1, limit=10
  $region2: #{basic_block_forward.3} parent=0 // loop_pre_header
    _
  $region3: #{basic_block_forward.3} parent=0 // loop_header
    %s13 = sphi 0, %s17
    %p14 = scmp.ge.s32.totalorder %s13, 10
    %s20 = sphi 0, %s32
    %s21 = sphi 0, %s28
    %s22 = sphi 0, %s20
    %s23 = sphi 0, %s21
    %s24 = sphi 0, %s22
    %s25 = sphi 0, %s23
    %s47 = sphi 0, %s49
    %s50 = sphi 0, %s47
    %s51 = sphi 0, %s50
    %s67 = sphi 0, %s51
    %s83 = sphi 0, %s85
    %s86 = sphi 0, %s83
    %s87 = sphi 0, %s86
    %s103 = sphi 0, %s87
    %s121 = sphi 0, %s123
    %s124 = sphi 0, %s121
    %s125 = sphi 0, %s124
    %s141 = sphi 0, %s125
    %s145 = sphi 0, %s145
    %s147 = sphi 0, %s145
    %s148 = sphi 0, %s147
    %s162 = sphi 0, %s148
    %s166 = sphi 0, %s166
    %s168 = sphi 0, %s166
    %s169 = sphi 0, %s168
    %s183 = sphi 0, %s169
    %s191 = sphi 0, %s193
    %s194 = sphi 0, %s191
    %s195 = sphi 0, %s194
    %s211 = sphi 0, %s195
    %s219 = sphi 0, %s221
    %s222 = sphi 0, %s219
    %s223 = sphi 0, %s222
    %s239 = sphi 0, %s223
  $region4: #{basic_block_forward.3} parent=0 // loop_header_branch
    %16 = sbr.rel (%p14) target = $region8
  $region5: #{basic_block_forward.3} parent=0 // loop_body
    %s18 = ssub.s32 %s13, 1
    %s19 = ssub.s32 %s13, 2
    %s26 = sadd.s32 1, %s21
    %p27 = scmp.ge.s32.totalorder %s26, 4
    %s28 = scalar_select %p27, 0, %s26
    %s29 = sadd.s32 1, %s20
    %s30 = scalar_select %p27, %s29, %s20
    %p31 = scmp.ge.s32.totalorder %s30, 2
    %s32 = scalar_select %p31, 0, %s30
    %s33 = sadd.s32 %s21, 4294967295
    %p34 = scmp.gt.s32.totalorder %s33, 0
    %s35 = scalar_select %p34, %s33, 0
    %p36 = scmp.lt.s32.totalorder %s35, 3
    %s37 = scalar_select %p36, %s35, 3
    %s38 = sadd.s32 %s28, 4294967295
    %p39 = scmp.gt.s32.totalorder %s38, 0
    %s40 = scalar_select %p39, %s38, 0
    %p41 = scmp.lt.s32.totalorder %s40, 3
    %s42 = scalar_select %p41, %s40, 3
    %s43 = ssub.s32 %s20, %s32
    %s44 = ssub.s32 %s37, %s42
    %s45 = sor.u32 %s43, %s44
    %p46 = scmp.eq.s32.totalorder %s45, 0
    %s48 = sadd.s32 %s47, 1
    %s49 = scalar_select %p46, %s47, %s48
    %p52 = pneg %p46
    %p53 = scmp.eq.s32.totalorder %s13, 7
    %p54 = por %p52, %p53
    %p55 = scmp.ne.s32.totalorder %s47, %s50
    %p56 = scmp.eq.s32.totalorder %s13, 0
    %p57 = por %p55, %p56
    %p58 = scmp.ne.s32.totalorder %s47, %s50
    %p59 = scmp.eq.s32.totalorder %s18, 7
    %p60 = por %p58, %p59
    %p61 = scmp.ne.s32.totalorder %s50, %s51
    %p62 = scmp.eq.s32.totalorder %s18, 0
    %p63 = por %p61, %p62
    %p64 = scmp.ne.s32.totalorder %s50, %s51
    %p65 = scmp.eq.s32.totalorder %s19, 7
    %p66 = por %p64, %p65
    %p68 = scmp.ne.s32.totalorder %s51, %s67
    %p69 = scmp.eq.s32.totalorder %s19, 0
    %p70 = por %p68, %p69
    %p71 = scmp.gt.s32.totalorder %s21, 0
    %s72 = scalar_select %p71, %s21, 0
    %p73 = scmp.lt.s32.totalorder %s72, 3
    %s74 = scalar_select %p73, %s72, 3
    %p75 = scmp.gt.s32.totalorder %s28, 0
    %s76 = scalar_select %p75, %s28, 0
    %p77 = scmp.lt.s32.totalorder %s76, 3
    %s78 = scalar_select %p77, %s76, 3
    %s79 = ssub.s32 %s20, %s32
    %s80 = ssub.s32 %s74, %s78
    %s81 = sor.u32 %s79, %s80
    %p82 = scmp.eq.s32.totalorder %s81, 0
    %s84 = sadd.s32 %s83, 1
    %s85 = scalar_select %p82, %s83, %s84
    %p88 = pneg %p82
    %p89 = scmp.eq.s32.totalorder %s13, 7
    %p90 = por %p88, %p89
    %p91 = scmp.ne.s32.totalorder %s83, %s86
    %p92 = scmp.eq.s32.totalorder %s13, 0
    %p93 = por %p91, %p92
    %p94 = scmp.ne.s32.totalorder %s83, %s86
    %p95 = scmp.eq.s32.totalorder %s18, 7
    %p96 = por %p94, %p95
    %p97 = scmp.ne.s32.totalorder %s86, %s87
    %p98 = scmp.eq.s32.totalorder %s18, 0
    %p99 = por %p97, %p98
    %p100 = scmp.ne.s32.totalorder %s86, %s87
    %p101 = scmp.eq.s32.totalorder %s19, 7
    %p102 = por %p100, %p101
    %p104 = scmp.ne.s32.totalorder %s87, %s103
    %p105 = scmp.eq.s32.totalorder %s19, 0
    %p106 = por %p104, %p105
    %s107 = sadd.s32 %s21, 1
    %p108 = scmp.gt.s32.totalorder %s107, 0
    %s109 = scalar_select %p108, %s107, 0
    %p110 = scmp.lt.s32.totalorder %s109, 3
    %s111 = scalar_select %p110, %s109, 3
    %s112 = sadd.s32 %s28, 1
    %p113 = scmp.gt.s32.totalorder %s112, 0
    %s114 = scalar_select %p113, %s112, 0
    %p115 = scmp.lt.s32.totalorder %s114, 3
    %s116 = scalar_select %p115, %s114, 3
    %s117 = ssub.s32 %s20, %s32
    %s118 = ssub.s32 %s111, %s116
    %s119 = sor.u32 %s117, %s118
    %p120 = scmp.eq.s32.totalorder %s119, 0
    %s122 = sadd.s32 %s121, 1
    %s123 = scalar_select %p120, %s121, %s122
    %p126 = pneg %p120
    %p127 = scmp.eq.s32.totalorder %s13, 7
    %p128 = por %p126, %p127
    %p129 = scmp.ne.s32.totalorder %s121, %s124
    %p130 = scmp.eq.s32.totalorder %s13, 0
    %p131 = por %p129, %p130
    %p132 = scmp.ne.s32.totalorder %s121, %s124
    %p133 = scmp.eq.s32.totalorder %s18, 7
    %p134 = por %p132, %p133
    %p135 = scmp.ne.s32.totalorder %s124, %s125
    %p136 = scmp.eq.s32.totalorder %s18, 0
    %p137 = por %p135, %p136
    %p138 = scmp.ne.s32.totalorder %s124, %s125
    %p139 = scmp.eq.s32.totalorder %s19, 7
    %p140 = por %p138, %p139
    %p142 = scmp.ne.s32.totalorder %s125, %s141
    %p143 = scmp.eq.s32.totalorder %s19, 0
    %p144 = por %p142, %p143
    %s146 = sadd.s32 %s145, 1
    %p149 = scmp.eq.s32.totalorder %s13, 7
    %p150 = scmp.ne.s32.totalorder %s145, %s147
    %p151 = scmp.eq.s32.totalorder %s13, 0
    %p152 = por %p150, %p151
    %p153 = scmp.ne.s32.totalorder %s145, %s147
    %p154 = scmp.eq.s32.totalorder %s18, 7
    %p155 = por %p153, %p154
    %p156 = scmp.ne.s32.totalorder %s147, %s148
    %p157 = scmp.eq.s32.totalorder %s18, 0
    %p158 = por %p156, %p157
    %p159 = scmp.ne.s32.totalorder %s147, %s148
    %p160 = scmp.eq.s32.totalorder %s19, 7
    %p161 = por %p159, %p160
    %p163 = scmp.ne.s32.totalorder %s148, %s162
    %p164 = scmp.eq.s32.totalorder %s19, 0
    %p165 = por %p163, %p164
    %s167 = sadd.s32 %s166, 1
    %p170 = scmp.eq.s32.totalorder %s13, 7
    %p171 = scmp.ne.s32.totalorder %s166, %s168
    %p172 = scmp.eq.s32.totalorder %s13, 0
    %p173 = por %p171, %p172
    %p174 = scmp.ne.s32.totalorder %s166, %s168
    %p175 = scmp.eq.s32.totalorder %s18, 7
    %p176 = por %p174, %p175
    %p177 = scmp.ne.s32.totalorder %s168, %s169
    %p178 = scmp.eq.s32.totalorder %s18, 0
    %p179 = por %p177, %p178
    %p180 = scmp.ne.s32.totalorder %s168, %s169
    %p181 = scmp.eq.s32.totalorder %s19, 7
    %p182 = por %p180, %p181
    %p184 = scmp.ne.s32.totalorder %s169, %s183
    %p185 = scmp.eq.s32.totalorder %s19, 0
    %p186 = por %p184, %p185
    %s187 = ssub.s32 %s20, %s32
    %s188 = ssub.s32 %s21, %s28
    %s189 = sor.u32 %s187, %s188
    %p190 = scmp.eq.s32.totalorder %s189, 0
    %s192 = sadd.s32 %s191, 1
    %s193 = scalar_select %p190, %s191, %s192
    %p196 = pneg %p190
    %p197 = scmp.eq.s32.totalorder %s13, 7
    %p198 = por %p196, %p197
    %p199 = scmp.ne.s32.totalorder %s191, %s194
    %p200 = scmp.eq.s32.totalorder %s13, 0
    %p201 = por %p199, %p200
    %p202 = scmp.ne.s32.totalorder %s191, %s194
    %p203 = scmp.eq.s32.totalorder %s18, 7
    %p204 = por %p202, %p203
    %p205 = scmp.ne.s32.totalorder %s194, %s195
    %p206 = scmp.eq.s32.totalorder %s18, 0
    %p207 = por %p205, %p206
    %p208 = scmp.ne.s32.totalorder %s194, %s195
    %p209 = scmp.eq.s32.totalorder %s19, 7
    %p210 = por %p208, %p209
    %p212 = scmp.ne.s32.totalorder %s195, %s211
    %p213 = scmp.eq.s32.totalorder %s19, 0
    %p214 = por %p212, %p213
    %s215 = ssub.s32 %s20, %s32
    %s216 = ssub.s32 %s21, %s28
    %s217 = sor.u32 %s215, %s216
    %p218 = scmp.eq.s32.totalorder %s217, 0
    %s220 = sadd.s32 %s219, 1
    %s221 = scalar_select %p218, %s219, %s220
    %p224 = pneg %p218
    %p225 = scmp.eq.s32.totalorder %s13, 7
    %p226 = por %p224, %p225
    %p227 = scmp.ne.s32.totalorder %s219, %s222
    %p228 = scmp.eq.s32.totalorder %s13, 0
    %p229 = por %p227, %p228
    %p230 = scmp.ne.s32.totalorder %s219, %s222
    %p231 = scmp.eq.s32.totalorder %s18, 7
    %p232 = por %p230, %p231
    %p233 = scmp.ne.s32.totalorder %s222, %s223
    %p234 = scmp.eq.s32.totalorder %s18, 0
    %p235 = por %p233, %p234
    %p236 = scmp.ne.s32.totalorder %s222, %s223
    %p237 = scmp.eq.s32.totalorder %s19, 7
    %p238 = por %p236, %p237
    %p240 = scmp.ne.s32.totalorder %s223, %s239
    %p241 = scmp.eq.s32.totalorder %s19, 0
    %p242 = por %p240, %p241
    %p243 = scmp.le.s32.totalorder 1, %s13
    %p244 = scmp.lt.s32.totalorder %s13, 9
    %p245 = pnand %p243, %p244
    %p246 = pneg %p245
    // Predicated region
    $region9: #{basic_block_forward.3} parent=5 // pred_check
      _
    $region10: #{basic_block_forward.3} parent=5 // pred_check_branch
      %248 = sbr.rel (%p245) target = $region12
    $region11: #{basic_block_forward.3} parent=5 // pred_region
      %s249 = ssub.s32 %s13, 1
      // Predicated region
      $region13: #{basic_block_forward.3} parent=11 // pred_check
        %p250 = pneg %p158
      $region14: #{basic_block_forward.3} parent=11 // pred_check_branch
        %252 = sbr.rel (%p250) target = $region16
      $region15: #{basic_block_forward.3} parent=11 // pred_region
        _
      $region16: #{basic_block_forward.3} parent=11 // pred_fallthru
        _
      // Predicated region
      $region17: #{basic_block_forward.3} parent=11 // pred_check
        %p253 = pneg %p179
      $region18: #{basic_block_forward.3} parent=11 // pred_check_branch
        %255 = sbr.rel (%p253) target = $region20
      $region19: #{basic_block_forward.3} parent=11 // pred_region
        _
      $region20: #{basic_block_forward.3} parent=11 // pred_fallthru
        _
    $region12: #{basic_block_forward.3} parent=5 // pred_fallthru
      _
    %p256 = scmp.lt.s32.totalorder %s13, 8
    // Predicated region
    $region21: #{basic_block_forward.3} parent=5 // pred_check
      %p257 = pneg %p256
    $region22: #{basic_block_forward.3} parent=5 // pred_check_branch
      %259 = sbr.rel (%p257) target = $region24
    $region23: #{basic_block_forward.3} parent=5 // pred_region
      // Predicated region
      $region25: #{basic_block_forward.3} parent=23 // pred_check
        %p260 = pneg %p57
      $region26: #{basic_block_forward.3} parent=23 // pred_check_branch
        %262 = sbr.rel (%p260) target = $region28
      $region27: #{basic_block_forward.3} parent=23 // pred_region
        %s263 = sadd.s32 %s21, 4294967295
        %p264 = scmp.gt.s32.totalorder %s263, 0
        %s265 = scalar_select %p264, %s263, 0
        %p266 = scmp.lt.s32.totalorder %s265, 3
        %s267 = scalar_select %p266, %s265, 3
        %p268 = scmp.lt.s32.totalorder %s20, 1
        %s269 = scalar_select %p268, %s20, 1
        %p270 = scmp.lt.s32.totalorder %s267, 3
        %s271 = scalar_select %p270, %s267, 3
        %s272 = smul.addr %s271, 14
        %s273 = smul.addr %s269, 56
        %s274 = sadd.s32 %s272, %s273
        %s275 = smul.addr %s274, 4
        %s276 = scalar_lea.vmem %s0, %s275
        %s277 = sadd.s32 %s21, 4294967295
        %p278 = scmp.gt.s32.totalorder %s277, 0
        %s279 = scalar_select %p278, %s277, 0
        %p280 = scmp.lt.s32.totalorder %s279, 3
        %s281 = scalar_select %p280, %s279, 3
      $region28: #{basic_block_forward.3} parent=23 // pred_fallthru
        _
      // Predicated region
      $region29: #{basic_block_forward.3} parent=23 // pred_check
        %p282 = pneg %p93
      $region30: #{basic_block_forward.3} parent=23 // pred_check_branch
        %284 = sbr.rel (%p282) target = $region32
      $region31: #{basic_block_forward.3} parent=23 // pred_region
        %p285 = scmp.gt.s32.totalorder %s21, 0
        %s286 = scalar_select %p285, %s21, 0
        %p287 = scmp.lt.s32.totalorder %s286, 3
        %s288 = scalar_select %p287, %s286, 3
        %p289 = scmp.lt.s32.totalorder %s20, 1
        %s290 = scalar_select %p289, %s20, 1
        %p291 = scmp.lt.s32.totalorder %s288, 3
        %s292 = scalar_select %p291, %s288, 3
        %s293 = smul.addr %s292, 14
        %s294 = smul.addr %s290, 56
        %s295 = sadd.s32 %s293, %s294
        %s296 = smul.addr %s295, 4
        %s297 = scalar_lea.vmem %s1, %s296
        %p298 = scmp.gt.s32.totalorder %s21, 0
        %s299 = scalar_select %p298, %s21, 0
        %p300 = scmp.lt.s32.totalorder %s299, 3
        %s301 = scalar_select %p300, %s299, 3
      $region32: #{basic_block_forward.3} parent=23 // pred_fallthru
        _
      // Predicated region
      $region33: #{basic_block_forward.3} parent=23 // pred_check
        %p302 = pneg %p131
      $region34: #{basic_block_forward.3} parent=23 // pred_check_branch
        %304 = sbr.rel (%p302) target = $region36
      $region35: #{basic_block_forward.3} parent=23 // pred_region
        %s305 = sadd.s32 %s21, 1
        %p306 = scmp.gt.s32.totalorder %s305, 0
        %s307 = scalar_select %p306, %s305, 0
        %p308 = scmp.lt.s32.totalorder %s307, 3
        %s309 = scalar_select %p308, %s307, 3
        %p310 = scmp.lt.s32.totalorder %s20, 1
        %s311 = scalar_select %p310, %s20, 1
        %p312 = scmp.lt.s32.totalorder %s309, 3
        %s313 = scalar_select %p312, %s309, 3
        %s314 = smul.addr %s313, 14
        %s315 = smul.addr %s311, 56
        %s316 = sadd.s32 %s314, %s315
        %s317 = smul.addr %s316, 4
        %s318 = scalar_lea.vmem %s2, %s317
        %s319 = sadd.s32 %s21, 1
        %p320 = scmp.gt.s32.totalorder %s319, 0
        %s321 = scalar_select %p320, %s319, 0
        %p322 = scmp.lt.s32.totalorder %s321, 3
        %s323 = scalar_select %p322, %s321, 3
      $region36: #{basic_block_forward.3} parent=23 // pred_fallthru
        _
    $region24: #{basic_block_forward.3} parent=5 // pred_fallthru
      _
    %p324 = scmp.le.s32.totalorder 1, %s13
    %p325 = scmp.lt.s32.totalorder %s13, 9
    %p326 = pnand %p324, %p325
    %p327 = pneg %p326
    // Predicated region
    $region37: #{basic_block_forward.3} parent=5 // pred_check
      _
    $region38: #{basic_block_forward.3} parent=5 // pred_check_branch
      %329 = sbr.rel (%p326) target = $region40
    $region39: #{basic_block_forward.3} parent=5 // pred_region
      %s330 = ssub.s32 %s13, 1
      %s331 = sadd.s32 %s23, 4294967295
      %p332 = scmp.gt.s32.totalorder %s331, 0
      %s333 = scalar_select %p332, %s331, 0
      %p334 = scmp.lt.s32.totalorder %s333, 3
      %s335 = scalar_select %p334, %s333, 3
      %p336 = scmp.lt.s32.totalorder %s22, 1
      %s337 = scalar_select %p336, %s22, 1
      %p338 = scmp.lt.s32.totalorder %s335, 3
      %s339 = scalar_select %p338, %s335, 3
      %s340 = smul.addr %s339, 14
      %s341 = smul.addr %s337, 56
      %s342 = sadd.s32 %s340, %s341
      %s343 = smul.addr %s342, 4
      %s344 = scalar_lea.vmem %s0, %s343
      %p345 = pneg %p63
      %p346 = pneg %p60
      %p347 = scmp.gt.s32.totalorder %s23, 0
      %s348 = scalar_select %p347, %s23, 0
      %p349 = scmp.lt.s32.totalorder %s348, 3
      %s350 = scalar_select %p349, %s348, 3
      %p351 = scmp.lt.s32.totalorder %s22, 1
      %s352 = scalar_select %p351, %s22, 1
      %p353 = scmp.lt.s32.totalorder %s350, 3
      %s354 = scalar_select %p353, %s350, 3
      %s355 = smul.addr %s354, 14
      %s356 = smul.addr %s352, 56
      %s357 = sadd.s32 %s355, %s356
      %s358 = smul.addr %s357, 4
      %s359 = scalar_lea.vmem %s1, %s358
      %p360 = pneg %p99
      %p361 = pneg %p96
      %s362 = sadd.s32 %s23, 1
      %p363 = scmp.gt.s32.totalorder %s362, 0
      %s364 = scalar_select %p363, %s362, 0
      %p365 = scmp.lt.s32.totalorder %s364, 3
      %s366 = scalar_select %p365, %s364, 3
      %p367 = scmp.lt.s32.totalorder %s22, 1
      %s368 = scalar_select %p367, %s22, 1
      %p369 = scmp.lt.s32.totalorder %s366, 3
      %s370 = scalar_select %p369, %s366, 3
      %s371 = smul.addr %s370, 14
      %s372 = smul.addr %s368, 56
      %s373 = sadd.s32 %s371, %s372
      %s374 = smul.addr %s373, 4
      %s375 = scalar_lea.vmem %s2, %s374
      %p376 = pneg %p137
      %p377 = pneg %p134
      %p378 = pneg %p158
      %p379 = pneg %p155
      %p380 = pneg %p179
      %p381 = pneg %p176
      %p382 = pneg %p207
      %p383 = pneg %p204
      %p384 = scmp.lt.s32.totalorder %s22, 1
      %s385 = scalar_select %p384, %s22, 1
      %p386 = scmp.lt.s32.totalorder %s23, 3
      %s387 = scalar_select %p386, %s23, 3
      %s388 = smul.addr %s387, 14
      %s389 = smul.addr %s385, 56
      %s390 = sadd.s32 %s388, %s389
      %s391 = smul.addr %s390, 4
      %s392 = scalar_lea.vmem %s5, %s391
      %p393 = pneg %p235
      %p394 = pneg %p232
      %p395 = scmp.lt.s32.totalorder %s22, 1
      %s396 = scalar_select %p395, %s22, 1
      %p397 = scmp.lt.s32.totalorder %s23, 3
      %s398 = scalar_select %p397, %s23, 3
      %s399 = smul.addr %s396, 4
      %s400 = sadd.s32 %s398, %s399
      %s401 = smul.addr %s400, 2
      %s402 = scalar_lea.vmem %s6, %s401
      %s403 = sadd.s32 %s23, 4294967295
      %p404 = scmp.gt.s32.totalorder %s403, 0
      %s405 = scalar_select %p404, %s403, 0
      %p406 = scmp.lt.s32.totalorder %s405, 3
      %s407 = scalar_select %p406, %s405, 3
      %p408 = scmp.lt.s32.totalorder %s22, 1
      %s409 = scalar_select %p408, %s22, 1
      %p410 = scmp.lt.s32.totalorder %s407, 3
      %s411 = scalar_select %p410, %s407, 3
      %s412 = smul.addr %s411, 14
      %s413 = smul.addr %s409, 56
      %s414 = sadd.s32 %s412, %s413
      %s415 = smul.addr %s414, 4
      %s416 = scalar_lea.vmem %s0, %s415
      %s417 = sadd.s32 %s23, 4294967295
      %p418 = scmp.gt.s32.totalorder %s417, 0
      %s419 = scalar_select %p418, %s417, 0
      %p420 = scmp.lt.s32.totalorder %s419, 3
      %s421 = scalar_select %p420, %s419, 3
      %p422 = scmp.gt.s32.totalorder %s23, 0
      %s423 = scalar_select %p422, %s23, 0
      %p424 = scmp.lt.s32.totalorder %s423, 3
      %s425 = scalar_select %p424, %s423, 3
      %p426 = scmp.lt.s32.totalorder %s22, 1
      %s427 = scalar_select %p426, %s22, 1
      %p428 = scmp.lt.s32.totalorder %s425, 3
      %s429 = scalar_select %p428, %s425, 3
      %s430 = smul.addr %s429, 14
      %s431 = smul.addr %s427, 56
      %s432 = sadd.s32 %s430, %s431
      %s433 = smul.addr %s432, 4
      %s434 = scalar_lea.vmem %s1, %s433
      %p435 = scmp.gt.s32.totalorder %s23, 0
      %s436 = scalar_select %p435, %s23, 0
      %p437 = scmp.lt.s32.totalorder %s436, 3
      %s438 = scalar_select %p437, %s436, 3
      %s439 = sadd.s32 %s23, 1
      %p440 = scmp.gt.s32.totalorder %s439, 0
      %s441 = scalar_select %p440, %s439, 0
      %p442 = scmp.lt.s32.totalorder %s441, 3
      %s443 = scalar_select %p442, %s441, 3
      %p444 = scmp.lt.s32.totalorder %s22, 1
      %s445 = scalar_select %p444, %s22, 1
      %p446 = scmp.lt.s32.totalorder %s443, 3
      %s447 = scalar_select %p446, %s443, 3
      %s448 = smul.addr %s447, 14
      %s449 = smul.addr %s445, 56
      %s450 = sadd.s32 %s448, %s449
      %s451 = smul.addr %s450, 4
      %s452 = scalar_lea.vmem %s2, %s451
      %s453 = sadd.s32 %s23, 1
      %p454 = scmp.gt.s32.totalorder %s453, 0
      %s455 = scalar_select %p454, %s453, 0
      %p456 = scmp.lt.s32.totalorder %s455, 3
      %s457 = scalar_select %p456, %s455, 3
      %p458 = scmp.lt.s32.totalorder %s22, 1
      %s459 = scalar_select %p458, %s22, 1
      %p460 = scmp.lt.s32.totalorder %s23, 3
      %s461 = scalar_select %p460, %s23, 3
      %s462 = smul.addr %s461, 14
      %s463 = smul.addr %s459, 56
      %s464 = sadd.s32 %s462, %s463
      %s465 = smul.addr %s464, 4
      %s466 = scalar_lea.vmem %s5, %s465
      %p467 = scmp.lt.s32.totalorder %s22, 1
      %s468 = scalar_select %p467, %s22, 1
      %p469 = scmp.lt.s32.totalorder %s23, 3
      %s470 = scalar_select %p469, %s23, 3
      %s471 = smul.addr %s468, 4
      %s472 = sadd.s32 %s470, %s471
      %s473 = smul.addr %s472, 2
      %s474 = scalar_lea.vmem %s6, %s473
      %s476 = sadd.s32 %s23, 4294967295
      %p477 = scmp.ge.s32.totalorder %s476, 0
      %p478 = scmp.le.s32.totalorder %s476, 3
      %p479 = pnand %p477, %p478
      %p480 = pneg %p479
      %v481 = vld [vmem:[%s416] sm:$0xf]
      %v482 = vld [vmem:[%s416 + $0x4] sm:$0xf]
      %v483 = vld [vmem:[%s416 + $0x8] sm:$0xf]
      %v484 = vld [vmem:[%s416 + $0xc] sm:$0xf]
      %v485 = vld [vmem:[%s416 + $0x10] sm:$0xf]
      %v486 = vld [vmem:[%s416 + $0x14] sm:$0xf]
      %v487 = vld [vmem:[%s416 + $0x18] sm:$0xf]
      %v488 = vld [vmem:[%s416 + $0x1c] sm:$0xf]
      %v489 = vld [vmem:[%s416 + $0x20] sm:$0xf]
      %v490 = vld [vmem:[%s416 + $0x24] sm:$0xf]
      %v491 = vld [vmem:[%s416 + $0x28] sm:$0xf]
      %v492 = vld [vmem:[%s416 + $0x2c] sm:$0xf]
      %v493 = vld [vmem:[%s416 + $0x30] sm:$0xf]
      %v494 = vunpack.c.l.bf16 %v481
      %v495 = vunpack.c.l.bf16 %v482
      %v496 = vunpack.c.l.bf16 %v483
      %v497 = vunpack.c.l.bf16 %v484
      %v498 = vunpack.c.l.bf16 %v485
      %v499 = vunpack.c.l.bf16 %v486
      %v500 = vunpack.c.l.bf16 %v487
      %v501 = vunpack.c.l.bf16 %v488
      %v502 = vunpack.c.l.bf16 %v489
      %v503 = vunpack.c.l.bf16 %v490
      %v504 = vunpack.c.l.bf16 %v491
      %v505 = vunpack.c.l.bf16 %v492
      %v506 = vunpack.c.l.bf16 %v493
      %s507 = scalar_select %p480, 1, 0
      %s508 = scvt.s32.f32 %s507
      %v509 = vstv %s508
      %v510 = vmul.f32 %v494, %v509
      %v511 = vmul.f32 %v495, %v509
      %v512 = vmul.f32 %v496, %v509
      %v513 = vmul.f32 %v497, %v509
      %v514 = vmul.f32 %v498, %v509
      %v515 = vmul.f32 %v499, %v509
      %v516 = vmul.f32 %v500, %v509
      %v517 = vmul.f32 %v501, %v509
      %v518 = vmul.f32 %v502, %v509
      %v519 = vmul.f32 %v503, %v509
      %v520 = vmul.f32 %v504, %v509
      %v521 = vmul.f32 %v505, %v509
      %v522 = vmul.f32 %v506, %v509
      %vm534 = vcmask 1046528
      %v535 = vrot.slane %v510, 1
      %v536 = vrot.slane %v511, 1
      %v537 = vsel %vm534, %v535, %v536
      %v538 = vrot.slane %v512, 1
      %v539 = vsel %vm534, %v536, %v538
      %v540 = vrot.slane %v513, 1
      %v541 = vsel %vm534, %v538, %v540
      %v542 = vrot.slane %v514, 1
      %v543 = vsel %vm534, %v540, %v542
      %v544 = vrot.slane %v515, 1
      %v545 = vsel %vm534, %v542, %v544
      %v546 = vrot.slane %v516, 1
      %v547 = vsel %vm534, %v544, %v546
      %v548 = vrot.slane %v517, 1
      %v549 = vsel %vm534, %v546, %v548
      %v550 = vrot.slane %v518, 1
      %v551 = vsel %vm534, %v548, %v550
      %v552 = vrot.slane %v519, 1
      %v553 = vsel %vm534, %v550, %v552
      %v554 = vrot.slane %v520, 1
      %v555 = vsel %vm534, %v552, %v554
      %556 = vrot.lane.b32.xlu0 %v537, 32
      %v557 = vpop.permute.xlu0 %556
      %558 = vrot.lane.b32.xlu0 %v539, 32
      %v559 = vpop.permute.xlu0 %558
      %560 = vrot.lane.b32.xlu0 %v541, 32
      %v561 = vpop.permute.xlu0 %560
      %562 = vrot.lane.b32.xlu0 %v543, 32
      %v563 = vpop.permute.xlu0 %562
      %564 = vrot.lane.b32.xlu0 %v545, 32
      %v565 = vpop.permute.xlu0 %564
      %566 = vrot.lane.b32.xlu0 %v547, 32
      %v567 = vpop.permute.xlu0 %566
      %568 = vrot.lane.b32.xlu0 %v549, 32
      %v569 = vpop.permute.xlu0 %568
      %570 = vrot.lane.b32.xlu0 %v551, 32
      %v571 = vpop.permute.xlu0 %570
      %572 = vrot.lane.b32.xlu0 %v553, 32
      %v573 = vpop.permute.xlu0 %572
      %574 = vrot.lane.b32.xlu0 %v555, 32
      %v575 = vpop.permute.xlu0 %574
      %vm586 = vcmask 1045504
      %v587 = vrot.slane %v510, 2
      %v588 = vrot.slane %v511, 2
      %v589 = vsel %vm586, %v587, %v588
      %v590 = vrot.slane %v512, 2
      %v591 = vsel %vm586, %v588, %v590
      %v592 = vrot.slane %v513, 2
      %v593 = vsel %vm586, %v590, %v592
      %v594 = vrot.slane %v514, 2
      %v595 = vsel %vm586, %v592, %v594
      %v596 = vrot.slane %v515, 2
      %v597 = vsel %vm586, %v594, %v596
      %v598 = vrot.slane %v516, 2
      %v599 = vsel %vm586, %v596, %v598
      %v600 = vrot.slane %v517, 2
      %v601 = vsel %vm586, %v598, %v600
      %v602 = vrot.slane %v518, 2
      %v603 = vsel %vm586, %v600, %v602
      %v604 = vrot.slane %v519, 2
      %v605 = vsel %vm586, %v602, %v604
      %v606 = vrot.slane %v520, 2
      %v607 = vsel %vm586, %v604, %v606
      %608 = vrot.lane.b32.xlu0 %v589, 64
      %v609 = vpop.permute.xlu0 %608
      %610 = vrot.lane.b32.xlu0 %v591, 64
      %v611 = vpop.permute.xlu0 %610
      %612 = vrot.lane.b32.xlu0 %v593, 64
      %v613 = vpop.permute.xlu0 %612
      %614 = vrot.lane.b32.xlu0 %v595, 64
      %v615 = vpop.permute.xlu0 %614
      %616 = vrot.lane.b32.xlu0 %v597, 64
      %v617 = vpop.permute.xlu0 %616
      %618 = vrot.lane.b32.xlu0 %v599, 64
      %v619 = vpop.permute.xlu0 %618
      %620 = vrot.lane.b32.xlu0 %v601, 64
      %v621 = vpop.permute.xlu0 %620
      %622 = vrot.lane.b32.xlu0 %v603, 64
      %v623 = vpop.permute.xlu0 %622
      %624 = vrot.lane.b32.xlu0 %v605, 64
      %v625 = vpop.permute.xlu0 %624
      %626 = vrot.lane.b32.xlu0 %v607, 64
      %v627 = vpop.permute.xlu0 %626
      %v639 = vrot.slane %v521, 2
      %v640 = vsel %vm586, %v606, %v639
      %641 = vrot.lane.b32.xlu0 %v591, 96
      %v642 = vpop.permute.xlu0 %641
      %643 = vrot.lane.b32.xlu0 %v593, 96
      %v644 = vpop.permute.xlu0 %643
      %645 = vrot.lane.b32.xlu0 %v595, 96
      %v646 = vpop.permute.xlu0 %645
      %647 = vrot.lane.b32.xlu0 %v597, 96
      %v648 = vpop.permute.xlu0 %647
      %649 = vrot.lane.b32.xlu0 %v599, 96
      %v650 = vpop.permute.xlu0 %649
      %651 = vrot.lane.b32.xlu0 %v601, 96
      %v652 = vpop.permute.xlu0 %651
      %653 = vrot.lane.b32.xlu0 %v603, 96
      %v654 = vpop.permute.xlu0 %653
      %655 = vrot.lane.b32.xlu0 %v605, 96
      %v656 = vpop.permute.xlu0 %655
      %657 = vrot.lane.b32.xlu0 %v607, 96
      %v658 = vpop.permute.xlu0 %657
      %659 = vrot.lane.b32.xlu0 %v640, 96
      %v660 = vpop.permute.xlu0 %659
      %vm671 = vcmask 1044480
      %v672 = vrot.slane %v511, 3
      %v673 = vrot.slane %v512, 3
      %v674 = vsel %vm671, %v672, %v673
      %v675 = vrot.slane %v513, 3
      %v676 = vsel %vm671, %v673, %v675
      %v677 = vrot.slane %v514, 3
      %v678 = vsel %vm671, %v675, %v677
      %v679 = vrot.slane %v515, 3
      %v680 = vsel %vm671, %v677, %v679
      %v681 = vrot.slane %v516, 3
      %v682 = vsel %vm671, %v679, %v681
      %v683 = vrot.slane %v517, 3
      %v684 = vsel %vm671, %v681, %v683
      %v685 = vrot.slane %v518, 3
      %v686 = vsel %vm671, %v683, %v685
      %v687 = vrot.slane %v519, 3
      %v688 = vsel %vm671, %v685, %v687
      %v689 = vrot.slane %v520, 3
      %v690 = vsel %vm671, %v687, %v689
      %v691 = vrot.slane %v521, 3
      %v692 = vsel %vm671, %v689, %v691
      %vm703 = vcmask 1043456
      %v704 = vrot.slane %v511, 4
      %v705 = vrot.slane %v512, 4
      %v706 = vsel %vm703, %v704, %v705
      %v707 = vrot.slane %v513, 4
      %v708 = vsel %vm703, %v705, %v707
      %v709 = vrot.slane %v514, 4
      %v710 = vsel %vm703, %v707, %v709
      %v711 = vrot.slane %v515, 4
      %v712 = vsel %vm703, %v709, %v711
      %v713 = vrot.slane %v516, 4
      %v714 = vsel %vm703, %v711, %v713
      %v715 = vrot.slane %v517, 4
      %v716 = vsel %vm703, %v713, %v715
      %v717 = vrot.slane %v518, 4
      %v718 = vsel %vm703, %v715, %v717
      %v719 = vrot.slane %v519, 4
      %v720 = vsel %vm703, %v717, %v719
      %v721 = vrot.slane %v520, 4
      %v722 = vsel %vm703, %v719, %v721
      %v723 = vrot.slane %v521, 4
      %v724 = vsel %vm703, %v721, %v723
      %725 = vrot.lane.b32.xlu0 %v706, 32
      %v726 = vpop.permute.xlu0 %725
      %727 = vrot.lane.b32.xlu0 %v708, 32
      %v728 = vpop.permute.xlu0 %727
      %729 = vrot.lane.b32.xlu0 %v710, 32
      %v730 = vpop.permute.xlu0 %729
      %731 = vrot.lane.b32.xlu0 %v712, 32
      %v732 = vpop.permute.xlu0 %731
      %733 = vrot.lane.b32.xlu0 %v714, 32
      %v734 = vpop.permute.xlu0 %733
      %735 = vrot.lane.b32.xlu0 %v716, 32
      %v736 = vpop.permute.xlu0 %735
      %737 = vrot.lane.b32.xlu0 %v718, 32
      %v738 = vpop.permute.xlu0 %737
      %739 = vrot.lane.b32.xlu0 %v720, 32
      %v740 = vpop.permute.xlu0 %739
      %741 = vrot.lane.b32.xlu0 %v722, 32
      %v742 = vpop.permute.xlu0 %741
      %743 = vrot.lane.b32.xlu0 %v724, 32
      %v744 = vpop.permute.xlu0 %743
      %v756 = vrot.slane %v522, 4
      %v757 = vsel %vm703, %v723, %v756
      %758 = vrot.lane.b32.xlu0 %v708, 64
      %v759 = vpop.permute.xlu0 %758
      %760 = vrot.lane.b32.xlu0 %v710, 64
      %v761 = vpop.permute.xlu0 %760
      %762 = vrot.lane.b32.xlu0 %v712, 64
      %v763 = vpop.permute.xlu0 %762
      %764 = vrot.lane.b32.xlu0 %v714, 64
      %v765 = vpop.permute.xlu0 %764
      %766 = vrot.lane.b32.xlu0 %v716, 64
      %v767 = vpop.permute.xlu0 %766
      %768 = vrot.lane.b32.xlu0 %v718, 64
      %v769 = vpop.permute.xlu0 %768
      %770 = vrot.lane.b32.xlu0 %v720, 64
      %v771 = vpop.permute.xlu0 %770
      %772 = vrot.lane.b32.xlu0 %v722, 64
      %v773 = vpop.permute.xlu0 %772
      %774 = vrot.lane.b32.xlu0 %v724, 64
      %v775 = vpop.permute.xlu0 %774
      %776 = vrot.lane.b32.xlu0 %v757, 64
      %v777 = vpop.permute.xlu0 %776
      %vm788 = vcmask 1042432
      %v789 = vrot.slane %v512, 5
      %v790 = vrot.slane %v513, 5
      %v791 = vsel %vm788, %v789, %v790
      %v792 = vrot.slane %v514, 5
      %v793 = vsel %vm788, %v790, %v792
      %v794 = vrot.slane %v515, 5
      %v795 = vsel %vm788, %v792, %v794
      %v796 = vrot.slane %v516, 5
      %v797 = vsel %vm788, %v794, %v796
      %v798 = vrot.slane %v517, 5
      %v799 = vsel %vm788, %v796, %v798
      %v800 = vrot.slane %v518, 5
      %v801 = vsel %vm788, %v798, %v800
      %v802 = vrot.slane %v519, 5
      %v803 = vsel %vm788, %v800, %v802
      %v804 = vrot.slane %v520, 5
      %v805 = vsel %vm788, %v802, %v804
      %v806 = vrot.slane %v521, 5
      %v807 = vsel %vm788, %v804, %v806
      %v808 = vrot.slane %v522, 5
      %v809 = vsel %vm788, %v806, %v808
      %810 = vrot.lane.b32.xlu0 %v791, 96
      %v811 = vpop.permute.xlu0 %810
      %812 = vrot.lane.b32.xlu0 %v793, 96
      %v813 = vpop.permute.xlu0 %812
      %814 = vrot.lane.b32.xlu0 %v795, 96
      %v815 = vpop.permute.xlu0 %814
      %816 = vrot.lane.b32.xlu0 %v797, 96
      %v817 = vpop.permute.xlu0 %816
      %818 = vrot.lane.b32.xlu0 %v799, 96
      %v819 = vpop.permute.xlu0 %818
      %820 = vrot.lane.b32.xlu0 %v801, 96
      %v821 = vpop.permute.xlu0 %820
      %822 = vrot.lane.b32.xlu0 %v803, 96
      %v823 = vpop.permute.xlu0 %822
      %824 = vrot.lane.b32.xlu0 %v805, 96
      %v825 = vpop.permute.xlu0 %824
      %826 = vrot.lane.b32.xlu0 %v807, 96
      %v827 = vpop.permute.xlu0 %826
      %828 = vrot.lane.b32.xlu0 %v809, 96
      %v829 = vpop.permute.xlu0 %828
      %vm840 = vcmask 1041408
      %v841 = vrot.slane %v512, 6
      %v842 = vrot.slane %v513, 6
      %v843 = vsel %vm840, %v841, %v842
      %v844 = vrot.slane %v514, 6
      %v845 = vsel %vm840, %v842, %v844
      %v846 = vrot.slane %v515, 6
      %v847 = vsel %vm840, %v844, %v846
      %v848 = vrot.slane %v516, 6
      %v849 = vsel %vm840, %v846, %v848
      %v850 = vrot.slane %v517, 6
      %v851 = vsel %vm840, %v848, %v850
      %v852 = vrot.slane %v518, 6
      %v853 = vsel %vm840, %v850, %v852
      %v854 = vrot.slane %v519, 6
      %v855 = vsel %vm840, %v852, %v854
      %v856 = vrot.slane %v520, 6
      %v857 = vsel %vm840, %v854, %v856
      %v858 = vrot.slane %v521, 6
      %v859 = vsel %vm840, %v856, %v858
      %v860 = vrot.slane %v522, 6
      %v861 = vsel %vm840, %v858, %v860
      %vm872 = vcmask 261120
      %v873 = vsel %vm872, %v510, %v557
      %v874 = vsel %vm872, %v511, %v559
      %v875 = vsel %vm872, %v512, %v561
      %v876 = vsel %vm872, %v513, %v563
      %v877 = vsel %vm872, %v514, %v565
      %v878 = vsel %vm872, %v515, %v567
      %v879 = vsel %vm872, %v516, %v569
      %v880 = vsel %vm872, %v517, %v571
      %v881 = vsel %vm872, %v518, %v573
      %v882 = vsel %vm872, %v519, %v575
      %vm883 = vcmask 523264
      %v884 = vsel %vm883, %v873, %v609
      %v885 = vsel %vm883, %v874, %v611
      %v886 = vsel %vm883, %v875, %v613
      %v887 = vsel %vm883, %v876, %v615
      %v888 = vsel %vm883, %v877, %v617
      %v889 = vsel %vm883, %v878, %v619
      %v890 = vsel %vm883, %v879, %v621
      %v891 = vsel %vm883, %v880, %v623
      %v892 = vsel %vm883, %v881, %v625
      %v893 = vsel %vm883, %v882, %v627
      %vm894 = vcmask 785408
      %v895 = vsel %vm894, %v884, %v642
      %v896 = vsel %vm894, %v885, %v644
      %v897 = vsel %vm894, %v886, %v646
      %v898 = vsel %vm894, %v887, %v648
      %v899 = vsel %vm894, %v888, %v650
      %v900 = vsel %vm894, %v889, %v652
      %v901 = vsel %vm894, %v890, %v654
      %v902 = vsel %vm894, %v891, %v656
      %v903 = vsel %vm894, %v892, %v658
      %v904 = vsel %vm894, %v893, %v660
      %v905 = vsel %vm872, %v674, %v726
      %v906 = vsel %vm872, %v676, %v728
      %v907 = vsel %vm872, %v678, %v730
      %v908 = vsel %vm872, %v680, %v732
      %v909 = vsel %vm872, %v682, %v734
      %v910 = vsel %vm872, %v684, %v736
      %v911 = vsel %vm872, %v686, %v738
      %v912 = vsel %vm872, %v688, %v740
      %v913 = vsel %vm872, %v690, %v742
      %v914 = vsel %vm872, %v692, %v744
      %v915 = vsel %vm883, %v905, %v759
      %v916 = vsel %vm883, %v906, %v761
      %v917 = vsel %vm883, %v907, %v763
      %v918 = vsel %vm883, %v908, %v765
      %v919 = vsel %vm883, %v909, %v767
      %v920 = vsel %vm883, %v910, %v769
      %v921 = vsel %vm883, %v911, %v771
      %v922 = vsel %vm883, %v912, %v773
      %v923 = vsel %vm883, %v913, %v775
      %v924 = vsel %vm883, %v914, %v777
      %v925 = vsel %vm894, %v915, %v811
      %v926 = vsel %vm894, %v916, %v813
      %v927 = vsel %vm894, %v917, %v815
      %v928 = vsel %vm894, %v918, %v817
      %v929 = vsel %vm894, %v919, %v819
      %v930 = vsel %vm894, %v920, %v821
      %v931 = vsel %vm894, %v921, %v823
      %v932 = vsel %vm894, %v922, %v825
      %v933 = vsel %vm894, %v923, %v827
      %v934 = vsel %vm894, %v924, %v829
      %v935 = vpack.c.bf16 %v896, %v895
      %v936 = vpack.c.bf16 %v926, %v925
      %v937 = vpack.c.bf16 %v845, %v843
      %v938 = vpack.c.bf16 %v898, %v897
      %v939 = vpack.c.bf16 %v928, %v927
      %v940 = vpack.c.bf16 %v849, %v847
      %v941 = vpack.c.bf16 %v900, %v899
      %v942 = vpack.c.bf16 %v930, %v929
      %v943 = vpack.c.bf16 %v853, %v851
      %v944 = vpack.c.bf16 %v902, %v901
      %v945 = vpack.c.bf16 %v932, %v931
      %v946 = vpack.c.bf16 %v857, %v855
      %v947 = vpack.c.bf16 %v904, %v903
      %v948 = vpack.c.bf16 %v934, %v933
      %v949 = vpack.c.bf16 %v861, %v859
      %v950 = vld [vmem:[%s3] sm:$0xf]
      %v951 = vld [vmem:[%s3 + $0x4] sm:$0xf]
      %v952 = vld [vmem:[%s3 + $0x8] sm:$0xf]
      %v953 = vld [vmem:[%s3 + $0xc] sm:$0xf]
      %v954 = vld [vmem:[%s3 + $0x10] sm:$0xf]
      %v955 = vld [vmem:[%s3 + $0x14] sm:$0xf]
      %v956 = vld [vmem:[%s3 + $0x18] sm:$0xf]
      %v957 = vld [vmem:[%s3 + $0x1c] sm:$0xf]
      %v958 = vld [vmem:[%s3 + $0x20] sm:$0xf]
      %v959 = vld [vmem:[%s3 + $0x24] sm:$0xf]
      %v960 = vld [vmem:[%s3 + $0x28] sm:$0xf]
      %v961 = vld [vmem:[%s3 + $0x2c] sm:$0xf]
      %v962 = vld [vmem:[%s3 + $0x30] sm:$0xf]
      %v963 = vld [vmem:[%s3 + $0x34] sm:$0xf]
      %v964 = vld [vmem:[%s3 + $0x38] sm:$0xf]
      %v965 = vld [vmem:[%s3 + $0x3c] sm:$0xf]
      %v966 = vld [vmem:[%s3 + $0x40] sm:$0xf]
      %v967 = vld [vmem:[%s3 + $0x44] sm:$0xf]
      %v968 = vld [vmem:[%s3 + $0x48] sm:$0xf]
      %v969 = vld [vmem:[%s3 + $0x4c] sm:$0xf]
      %v970 = vld [vmem:[%s3 + $0x50] sm:$0xf]
      %v971 = vld [vmem:[%s3 + $0x54] sm:$0xf]
      %v972 = vld [vmem:[%s3 + $0x58] sm:$0xf]
      %v973 = vld [vmem:[%s3 + $0x5c] sm:$0xf]
      %v974 = vld [vmem:[%s3 + $0x60] sm:$0xf]
      %v975 = vld [vmem:[%s3 + $0x64] sm:$0xf]
      %v976 = vld [vmem:[%s3 + $0x68] sm:$0xf]
      %v977 = vld [vmem:[%s3 + $0x6c] sm:$0xf]
      %v978 = vld [vmem:[%s3 + $0x70] sm:$0xf]
      %v979 = vld [vmem:[%s3 + $0x74] sm:$0xf]
      %v980 = vld [vmem:[%s3 + $0x78] sm:$0xf]
      %v981 = vld [vmem:[%s3 + $0x7c] sm:$0xf]
      %v982 = vld [vmem:[%s3 + $0x80] sm:$0xf]
      %v983 = vld [vmem:[%s3 + $0x84] sm:$0xf]
      %v984 = vld [vmem:[%s3 + $0x88] sm:$0xf]
      %v985 = vld [vmem:[%s3 + $0x8c] sm:$0xf]
      %p986 = scmp.ge.s32.totalorder %s23, 0
      %p987 = scmp.le.s32.totalorder %s23, 3
      %p988 = pnand %p986, %p987
      %p989 = pneg %p988
      %v990 = vld [vmem:[%s434] sm:$0xf]
      %v991 = vld [vmem:[%s434 + $0x4] sm:$0xf]
      %v992 = vld [vmem:[%s434 + $0x8] sm:$0xf]
      %v993 = vld [vmem:[%s434 + $0xc] sm:$0xf]
      %v994 = vld [vmem:[%s434 + $0x10] sm:$0xf]
      %v995 = vld [vmem:[%s434 + $0x14] sm:$0xf]
      %v996 = vld [vmem:[%s434 + $0x18] sm:$0xf]
      %v997 = vld [vmem:[%s434 + $0x1c] sm:$0xf]
      %v998 = vld [vmem:[%s434 + $0x20] sm:$0xf]
      %v999 = vld [vmem:[%s434 + $0x24] sm:$0xf]
      %v1000 = vld [vmem:[%s434 + $0x28] sm:$0xf]
      %v1001 = vld [vmem:[%s434 + $0x2c] sm:$0xf]
      %v1002 = vld [vmem:[%s434 + $0x30] sm:$0xf]
      %v1003 = vunpack.c.l.bf16 %v990
      %v1004 = vunpack.c.l.bf16 %v991
      %v1005 = vunpack.c.l.bf16 %v992
      %v1006 = vunpack.c.l.bf16 %v993
      %v1007 = vunpack.c.l.bf16 %v994
      %v1008 = vunpack.c.l.bf16 %v995
      %v1009 = vunpack.c.l.bf16 %v996
      %v1010 = vunpack.c.l.bf16 %v997
      %v1011 = vunpack.c.l.bf16 %v998
      %v1012 = vunpack.c.l.bf16 %v999
      %v1013 = vunpack.c.l.bf16 %v1000
      %v1014 = vunpack.c.l.bf16 %v1001
      %v1015 = vunpack.c.l.bf16 %v1002
      %s1016 = scalar_select %p989, 1, 0
      %s1017 = scvt.s32.f32 %s1016
      %v1018 = vstv %s1017
      %v1019 = vmul.f32 %v1003, %v1018
      %v1020 = vmul.f32 %v1004, %v1018
      %v1021 = vmul.f32 %v1005, %v1018
      %v1022 = vmul.f32 %v1006, %v1018
      %v1023 = vmul.f32 %v1007, %v1018
      %v1024 = vmul.f32 %v1008, %v1018
      %v1025 = vmul.f32 %v1009, %v1018
      %v1026 = vmul.f32 %v1010, %v1018
      %v1027 = vmul.f32 %v1011, %v1018
      %v1028 = vmul.f32 %v1012, %v1018
      %v1029 = vmul.f32 %v1013, %v1018
      %v1030 = vmul.f32 %v1014, %v1018
      %v1031 = vmul.f32 %v1015, %v1018
      %v1043 = vrot.slane %v1019, 1
      %v1044 = vrot.slane %v1020, 1
      %v1045 = vsel %vm534, %v1043, %v1044
      %v1046 = vrot.slane %v1021, 1
      %v1047 = vsel %vm534, %v1044, %v1046
      %v1048 = vrot.slane %v1022, 1
      %v1049 = vsel %vm534, %v1046, %v1048
      %v1050 = vrot.slane %v1023, 1
      %v1051 = vsel %vm534, %v1048, %v1050
      %v1052 = vrot.slane %v1024, 1
      %v1053 = vsel %vm534, %v1050, %v1052
      %v1054 = vrot.slane %v1025, 1
      %v1055 = vsel %vm534, %v1052, %v1054
      %v1056 = vrot.slane %v1026, 1
      %v1057 = vsel %vm534, %v1054, %v1056
      %v1058 = vrot.slane %v1027, 1
      %v1059 = vsel %vm534, %v1056, %v1058
      %v1060 = vrot.slane %v1028, 1
      %v1061 = vsel %vm534, %v1058, %v1060
      %v1062 = vrot.slane %v1029, 1
      %v1063 = vsel %vm534, %v1060, %v1062
      %1064 = vrot.lane.b32.xlu0 %v1045, 32
      %v1065 = vpop.permute.xlu0 %1064
      %1066 = vrot.lane.b32.xlu0 %v1047, 32
      %v1067 = vpop.permute.xlu0 %1066
      %1068 = vrot.lane.b32.xlu0 %v1049, 32
      %v1069 = vpop.permute.xlu0 %1068
      %1070 = vrot.lane.b32.xlu0 %v1051, 32
      %v1071 = vpop.permute.xlu0 %1070
      %1072 = vrot.lane.b32.xlu0 %v1053, 32
      %v1073 = vpop.permute.xlu0 %1072
      %1074 = vrot.lane.b32.xlu0 %v1055, 32
      %v1075 = vpop.permute.xlu0 %1074
      %1076 = vrot.lane.b32.xlu0 %v1057, 32
      %v1077 = vpop.permute.xlu0 %1076
      %1078 = vrot.lane.b32.xlu0 %v1059, 32
      %v1079 = vpop.permute.xlu0 %1078
      %1080 = vrot.lane.b32.xlu0 %v1061, 32
      %v1081 = vpop.permute.xlu0 %1080
      %1082 = vrot.lane.b32.xlu0 %v1063, 32
      %v1083 = vpop.permute.xlu0 %1082
      %v1094 = vrot.slane %v1019, 2
      %v1095 = vrot.slane %v1020, 2
      %v1096 = vsel %vm586, %v1094, %v1095
      %v1097 = vrot.slane %v1021, 2
      %v1098 = vsel %vm586, %v1095, %v1097
      %v1099 = vrot.slane %v1022, 2
      %v1100 = vsel %vm586, %v1097, %v1099
      %v1101 = vrot.slane %v1023, 2
      %v1102 = vsel %vm586, %v1099, %v1101
      %v1103 = vrot.slane %v1024, 2
      %v1104 = vsel %vm586, %v1101, %v1103
      %v1105 = vrot.slane %v1025, 2
      %v1106 = vsel %vm586, %v1103, %v1105
      %v1107 = vrot.slane %v1026, 2
      %v1108 = vsel %vm586, %v1105, %v1107
      %v1109 = vrot.slane %v1027, 2
      %v1110 = vsel %vm586, %v1107, %v1109
      %v1111 = vrot.slane %v1028, 2
      %v1112 = vsel %vm586, %v1109, %v1111
      %v1113 = vrot.slane %v1029, 2
      %v1114 = vsel %vm586, %v1111, %v1113
      %1115 = vrot.lane.b32.xlu0 %v1096, 64
      %v1116 = vpop.permute.xlu0 %1115
      %1117 = vrot.lane.b32.xlu0 %v1098, 64
      %v1118 = vpop.permute.xlu0 %1117
      %1119 = vrot.lane.b32.xlu0 %v1100, 64
      %v1120 = vpop.permute.xlu0 %1119
      %1121 = vrot.lane.b32.xlu0 %v1102, 64
      %v1122 = vpop.permute.xlu0 %1121
      %1123 = vrot.lane.b32.xlu0 %v1104, 64
      %v1124 = vpop.permute.xlu0 %1123
      %1125 = vrot.lane.b32.xlu0 %v1106, 64
      %v1126 = vpop.permute.xlu0 %1125
      %1127 = vrot.lane.b32.xlu0 %v1108, 64
      %v1128 = vpop.permute.xlu0 %1127
      %1129 = vrot.lane.b32.xlu0 %v1110, 64
      %v1130 = vpop.permute.xlu0 %1129
      %1131 = vrot.lane.b32.xlu0 %v1112, 64
      %v1132 = vpop.permute.xlu0 %1131
      %1133 = vrot.lane.b32.xlu0 %v1114, 64
      %v1134 = vpop.permute.xlu0 %1133
      %v1146 = vrot.slane %v1030, 2
      %v1147 = vsel %vm586, %v1113, %v1146
      %1148 = vrot.lane.b32.xlu0 %v1098, 96
      %v1149 = vpop.permute.xlu0 %1148
      %1150 = vrot.lane.b32.xlu0 %v1100, 96
      %v1151 = vpop.permute.xlu0 %1150
      %1152 = vrot.lane.b32.xlu0 %v1102, 96
      %v1153 = vpop.permute.xlu0 %1152
      %1154 = vrot.lane.b32.xlu0 %v1104, 96
      %v1155 = vpop.permute.xlu0 %1154
      %1156 = vrot.lane.b32.xlu0 %v1106, 96
      %v1157 = vpop.permute.xlu0 %1156
      %1158 = vrot.lane.b32.xlu0 %v1108, 96
      %v1159 = vpop.permute.xlu0 %1158
      %1160 = vrot.lane.b32.xlu0 %v1110, 96
      %v1161 = vpop.permute.xlu0 %1160
      %1162 = vrot.lane.b32.xlu0 %v1112, 96
      %v1163 = vpop.permute.xlu0 %1162
      %1164 = vrot.lane.b32.xlu0 %v1114, 96
      %v1165 = vpop.permute.xlu0 %1164
      %1166 = vrot.lane.b32.xlu0 %v1147, 96
      %v1167 = vpop.permute.xlu0 %1166
      %v1178 = vrot.slane %v1020, 3
      %v1179 = vrot.slane %v1021, 3
      %v1180 = vsel %vm671, %v1178, %v1179
      %v1181 = vrot.slane %v1022, 3
      %v1182 = vsel %vm671, %v1179, %v1181
      %v1183 = vrot.slane %v1023, 3
      %v1184 = vsel %vm671, %v1181, %v1183
      %v1185 = vrot.slane %v1024, 3
      %v1186 = vsel %vm671, %v1183, %v1185
      %v1187 = vrot.slane %v1025, 3
      %v1188 = vsel %vm671, %v1185, %v1187
      %v1189 = vrot.slane %v1026, 3
      %v1190 = vsel %vm671, %v1187, %v1189
      %v1191 = vrot.slane %v1027, 3
      %v1192 = vsel %vm671, %v1189, %v1191
      %v1193 = vrot.slane %v1028, 3
      %v1194 = vsel %vm671, %v1191, %v1193
      %v1195 = vrot.slane %v1029, 3
      %v1196 = vsel %vm671, %v1193, %v1195
      %v1197 = vrot.slane %v1030, 3
      %v1198 = vsel %vm671, %v1195, %v1197
      %v1209 = vrot.slane %v1020, 4
      %v1210 = vrot.slane %v1021, 4
      %v1211 = vsel %vm703, %v1209, %v1210
      %v1212 = vrot.slane %v1022, 4
      %v1213 = vsel %vm703, %v1210, %v1212
      %v1214 = vrot.slane %v1023, 4
      %v1215 = vsel %vm703, %v1212, %v1214
      %v1216 = vrot.slane %v1024, 4
      %v1217 = vsel %vm703, %v1214, %v1216
      %v1218 = vrot.slane %v1025, 4
      %v1219 = vsel %vm703, %v1216, %v1218
      %v1220 = vrot.slane %v1026, 4
      %v1221 = vsel %vm703, %v1218, %v1220
      %v1222 = vrot.slane %v1027, 4
      %v1223 = vsel %vm703, %v1220, %v1222
      %v1224 = vrot.slane %v1028, 4
      %v1225 = vsel %vm703, %v1222, %v1224
      %v1226 = vrot.slane %v1029, 4
      %v1227 = vsel %vm703, %v1224, %v1226
      %v1228 = vrot.slane %v1030, 4
      %v1229 = vsel %vm703, %v1226, %v1228
      %1230 = vrot.lane.b32.xlu0 %v1211, 32
      %v1231 = vpop.permute.xlu0 %1230
      %1232 = vrot.lane.b32.xlu0 %v1213, 32
      %v1233 = vpop.permute.xlu0 %1232
      %1234 = vrot.lane.b32.xlu0 %v1215, 32
      %v1235 = vpop.permute.xlu0 %1234
      %1236 = vrot.lane.b32.xlu0 %v1217, 32
      %v1237 = vpop.permute.xlu0 %1236
      %1238 = vrot.lane.b32.xlu0 %v1219, 32
      %v1239 = vpop.permute.xlu0 %1238
      %1240 = vrot.lane.b32.xlu0 %v1221, 32
      %v1241 = vpop.permute.xlu0 %1240
      %1242 = vrot.lane.b32.xlu0 %v1223, 32
      %v1243 = vpop.permute.xlu0 %1242
      %1244 = vrot.lane.b32.xlu0 %v1225, 32
      %v1245 = vpop.permute.xlu0 %1244
      %1246 = vrot.lane.b32.xlu0 %v1227, 32
      %v1247 = vpop.permute.xlu0 %1246
      %1248 = vrot.lane.b32.xlu0 %v1229, 32
      %v1249 = vpop.permute.xlu0 %1248
      %v1261 = vrot.slane %v1031, 4
      %v1262 = vsel %vm703, %v1228, %v1261
      %1263 = vrot.lane.b32.xlu0 %v1213, 64
      %v1264 = vpop.permute.xlu0 %1263
      %1265 = vrot.lane.b32.xlu0 %v1215, 64
      %v1266 = vpop.permute.xlu0 %1265
      %1267 = vrot.lane.b32.xlu0 %v1217, 64
      %v1268 = vpop.permute.xlu0 %1267
      %1269 = vrot.lane.b32.xlu0 %v1219, 64
      %v1270 = vpop.permute.xlu0 %1269
      %1271 = vrot.lane.b32.xlu0 %v1221, 64
      %v1272 = vpop.permute.xlu0 %1271
      %1273 = vrot.lane.b32.xlu0 %v1223, 64
      %v1274 = vpop.permute.xlu0 %1273
      %1275 = vrot.lane.b32.xlu0 %v1225, 64
      %v1276 = vpop.permute.xlu0 %1275
      %1277 = vrot.lane.b32.xlu0 %v1227, 64
      %v1278 = vpop.permute.xlu0 %1277
      %1279 = vrot.lane.b32.xlu0 %v1229, 64
      %v1280 = vpop.permute.xlu0 %1279
      %1281 = vrot.lane.b32.xlu0 %v1262, 64
      %v1282 = vpop.permute.xlu0 %1281
      %v1293 = vrot.slane %v1021, 5
      %v1294 = vrot.slane %v1022, 5
      %v1295 = vsel %vm788, %v1293, %v1294
      %v1296 = vrot.slane %v1023, 5
      %v1297 = vsel %vm788, %v1294, %v1296
      %v1298 = vrot.slane %v1024, 5
      %v1299 = vsel %vm788, %v1296, %v1298
      %v1300 = vrot.slane %v1025, 5
      %v1301 = vsel %vm788, %v1298, %v1300
      %v1302 = vrot.slane %v1026, 5
      %v1303 = vsel %vm788, %v1300, %v1302
      %v1304 = vrot.slane %v1027, 5
      %v1305 = vsel %vm788, %v1302, %v1304
      %v1306 = vrot.slane %v1028, 5
      %v1307 = vsel %vm788, %v1304, %v1306
      %v1308 = vrot.slane %v1029, 5
      %v1309 = vsel %vm788, %v1306, %v1308
      %v1310 = vrot.slane %v1030, 5
      %v1311 = vsel %vm788, %v1308, %v1310
      %v1312 = vrot.slane %v1031, 5
      %v1313 = vsel %vm788, %v1310, %v1312
      %1314 = vrot.lane.b32.xlu0 %v1295, 96
      %v1315 = vpop.permute.xlu0 %1314
      %1316 = vrot.lane.b32.xlu0 %v1297, 96
      %v1317 = vpop.permute.xlu0 %1316
      %1318 = vrot.lane.b32.xlu0 %v1299, 96
      %v1319 = vpop.permute.xlu0 %1318
      %1320 = vrot.lane.b32.xlu0 %v1301, 96
      %v1321 = vpop.permute.xlu0 %1320
      %1322 = vrot.lane.b32.xlu0 %v1303, 96
      %v1323 = vpop.permute.xlu0 %1322
      %1324 = vrot.lane.b32.xlu0 %v1305, 96
      %v1325 = vpop.permute.xlu0 %1324
      %1326 = vrot.lane.b32.xlu0 %v1307, 96
      %v1327 = vpop.permute.xlu0 %1326
      %1328 = vrot.lane.b32.xlu0 %v1309, 96
      %v1329 = vpop.permute.xlu0 %1328
      %1330 = vrot.lane.b32.xlu0 %v1311, 96
      %v1331 = vpop.permute.xlu0 %1330
      %1332 = vrot.lane.b32.xlu0 %v1313, 96
      %v1333 = vpop.permute.xlu0 %1332
      %v1344 = vrot.slane %v1021, 6
      %v1345 = vrot.slane %v1022, 6
      %v1346 = vsel %vm840, %v1344, %v1345
      %v1347 = vrot.slane %v1023, 6
      %v1348 = vsel %vm840, %v1345, %v1347
      %v1349 = vrot.slane %v1024, 6
      %v1350 = vsel %vm840, %v1347, %v1349
      %v1351 = vrot.slane %v1025, 6
      %v1352 = vsel %vm840, %v1349, %v1351
      %v1353 = vrot.slane %v1026, 6
      %v1354 = vsel %vm840, %v1351, %v1353
      %v1355 = vrot.slane %v1027, 6
      %v1356 = vsel %vm840, %v1353, %v1355
      %v1357 = vrot.slane %v1028, 6
      %v1358 = vsel %vm840, %v1355, %v1357
      %v1359 = vrot.slane %v1029, 6
      %v1360 = vsel %vm840, %v1357, %v1359
      %v1361 = vrot.slane %v1030, 6
      %v1362 = vsel %vm840, %v1359, %v1361
      %v1363 = vrot.slane %v1031, 6
      %v1364 = vsel %vm840, %v1361, %v1363
      %v1375 = vsel %vm872, %v1019, %v1065
      %v1376 = vsel %vm872, %v1020, %v1067
      %v1377 = vsel %vm872, %v1021, %v1069
      %v1378 = vsel %vm872, %v1022, %v1071
      %v1379 = vsel %vm872, %v1023, %v1073
      %v1380 = vsel %vm872, %v1024, %v1075
      %v1381 = vsel %vm872, %v1025, %v1077
      %v1382 = vsel %vm872, %v1026, %v1079
      %v1383 = vsel %vm872, %v1027, %v1081
      %v1384 = vsel %vm872, %v1028, %v1083
      %v1385 = vsel %vm883, %v1375, %v1116
      %v1386 = vsel %vm883, %v1376, %v1118
      %v1387 = vsel %vm883, %v1377, %v1120
      %v1388 = vsel %vm883, %v1378, %v1122
      %v1389 = vsel %vm883, %v1379, %v1124
      %v1390 = vsel %vm883, %v1380, %v1126
      %v1391 = vsel %vm883, %v1381, %v1128
      %v1392 = vsel %vm883, %v1382, %v1130
      %v1393 = vsel %vm883, %v1383, %v1132
      %v1394 = vsel %vm883, %v1384, %v1134
      %v1395 = vsel %vm894, %v1385, %v1149
      %v1396 = vsel %vm894, %v1386, %v1151
      %v1397 = vsel %vm894, %v1387, %v1153
      %v1398 = vsel %vm894, %v1388, %v1155
      %v1399 = vsel %vm894, %v1389, %v1157
      %v1400 = vsel %vm894, %v1390, %v1159
      %v1401 = vsel %vm894, %v1391, %v1161
      %v1402 = vsel %vm894, %v1392, %v1163
      %v1403 = vsel %vm894, %v1393, %v1165
      %v1404 = vsel %vm894, %v1394, %v1167
      %v1405 = vsel %vm872, %v1180, %v1231
      %v1406 = vsel %vm872, %v1182, %v1233
      %v1407 = vsel %vm872, %v1184, %v1235
      %v1408 = vsel %vm872, %v1186, %v1237
      %v1409 = vsel %vm872, %v1188, %v1239
      %v1410 = vsel %vm872, %v1190, %v1241
      %v1411 = vsel %vm872, %v1192, %v1243
      %v1412 = vsel %vm872, %v1194, %v1245
      %v1413 = vsel %vm872, %v1196, %v1247
      %v1414 = vsel %vm872, %v1198, %v1249
      %v1415 = vsel %vm883, %v1405, %v1264
      %v1416 = vsel %vm883, %v1406, %v1266
      %v1417 = vsel %vm883, %v1407, %v1268
      %v1418 = vsel %vm883, %v1408, %v1270
      %v1419 = vsel %vm883, %v1409, %v1272
      %v1420 = vsel %vm883, %v1410, %v1274
      %v1421 = vsel %vm883, %v1411, %v1276
      %v1422 = vsel %vm883, %v1412, %v1278
      %v1423 = vsel %vm883, %v1413, %v1280
      %v1424 = vsel %vm883, %v1414, %v1282
      %v1425 = vsel %vm894, %v1415, %v1315
      %v1426 = vsel %vm894, %v1416, %v1317
      %v1427 = vsel %vm894, %v1417, %v1319
      %v1428 = vsel %vm894, %v1418, %v1321
      %v1429 = vsel %vm894, %v1419, %v1323
      %v1430 = vsel %vm894, %v1420, %v1325
      %v1431 = vsel %vm894, %v1421, %v1327
      %v1432 = vsel %vm894, %v1422, %v1329
      %v1433 = vsel %vm894, %v1423, %v1331
      %v1434 = vsel %vm894, %v1424, %v1333
      %v1435 = vpack.c.bf16 %v1396, %v1395
      %v1436 = vpack.c.bf16 %v1426, %v1425
      %v1437 = vpack.c.bf16 %v1348, %v1346
      %v1438 = vpack.c.bf16 %v1398, %v1397
      %v1439 = vpack.c.bf16 %v1428, %v1427
      %v1440 = vpack.c.bf16 %v1352, %v1350
      %v1441 = vpack.c.bf16 %v1400, %v1399
      %v1442 = vpack.c.bf16 %v1430, %v1429
      %v1443 = vpack.c.bf16 %v1356, %v1354
      %v1444 = vpack.c.bf16 %v1402, %v1401
      %v1445 = vpack.c.bf16 %v1432, %v1431
      %v1446 = vpack.c.bf16 %v1360, %v1358
      %v1447 = vpack.c.bf16 %v1404, %v1403
      %v1448 = vpack.c.bf16 %v1434, %v1433
      %v1449 = vpack.c.bf16 %v1364, %v1362
      %v1450 = vld [vmem:[%s3 + $0x90] sm:$0xf]
      %v1451 = vld [vmem:[%s3 + $0x94] sm:$0xf]
      %v1452 = vld [vmem:[%s3 + $0x98] sm:$0xf]
      %v1453 = vld [vmem:[%s3 + $0x9c] sm:$0xf]
      %v1454 = vld [vmem:[%s3 + $0xa0] sm:$0xf]
      %v1455 = vld [vmem:[%s3 + $0xa4] sm:$0xf]
      %v1456 = vld [vmem:[%s3 + $0xa8] sm:$0xf]
      %v1457 = vld [vmem:[%s3 + $0xac] sm:$0xf]
      %v1458 = vld [vmem:[%s3 + $0xb0] sm:$0xf]
      %v1459 = vld [vmem:[%s3 + $0xb4] sm:$0xf]
      %v1460 = vld [vmem:[%s3 + $0xb8] sm:$0xf]
      %v1461 = vld [vmem:[%s3 + $0xbc] sm:$0xf]
      %v1462 = vld [vmem:[%s3 + $0xc0] sm:$0xf]
      %v1463 = vld [vmem:[%s3 + $0xc4] sm:$0xf]
      %v1464 = vld [vmem:[%s3 + $0xc8] sm:$0xf]
      %v1465 = vld [vmem:[%s3 + $0xcc] sm:$0xf]
      %v1466 = vld [vmem:[%s3 + $0xd0] sm:$0xf]
      %v1467 = vld [vmem:[%s3 + $0xd4] sm:$0xf]
      %v1468 = vld [vmem:[%s3 + $0xd8] sm:$0xf]
      %v1469 = vld [vmem:[%s3 + $0xdc] sm:$0xf]
      %v1470 = vld [vmem:[%s3 + $0xe0] sm:$0xf]
      %v1471 = vld [vmem:[%s3 + $0xe4] sm:$0xf]
      %v1472 = vld [vmem:[%s3 + $0xe8] sm:$0xf]
      %v1473 = vld [vmem:[%s3 + $0xec] sm:$0xf]
      %v1474 = vld [vmem:[%s3 + $0xf0] sm:$0xf]
      %v1475 = vld [vmem:[%s3 + $0xf4] sm:$0xf]
      %v1476 = vld [vmem:[%s3 + $0xf8] sm:$0xf]
      %v1477 = vld [vmem:[%s3 + $0xfc] sm:$0xf]
      %v1478 = vld [vmem:[%s3 + $0x100] sm:$0xf]
      %v1479 = vld [vmem:[%s3 + $0x104] sm:$0xf]
      %v1480 = vld [vmem:[%s3 + $0x108] sm:$0xf]
      %v1481 = vld [vmem:[%s3 + $0x10c] sm:$0xf]
      %v1482 = vld [vmem:[%s3 + $0x110] sm:$0xf]
      %v1483 = vld [vmem:[%s3 + $0x114] sm:$0xf]
      %v1484 = vld [vmem:[%s3 + $0x118] sm:$0xf]
      %v1485 = vld [vmem:[%s3 + $0x11c] sm:$0xf]
      %v1522 = vunpack.c.l.b16 %v1450
      %v1523 = vunpack.c.l.b16 %v1451
      %v1524 = vunpack.c.l.b16 %v1452
      %v1525 = vunpack.c.l.b16 %v1453
      %v1526 = vunpack.c.l.b16 %v1454
      %v1527 = vunpack.c.l.b16 %v1455
      %v1528 = vunpack.c.l.b16 %v1456
      %v1529 = vunpack.c.l.b16 %v1457
      %v1530 = vunpack.c.l.b16 %v1458
      %v1531 = vunpack.c.l.b16 %v1459
      %v1532 = vunpack.c.l.b16 %v1460
      %v1533 = vunpack.c.l.b16 %v1461
      %v1534 = vunpack.c.l.b16 %v1462
      %v1535 = vunpack.c.l.b16 %v1463
      %v1536 = vunpack.c.l.b16 %v1464
      %v1537 = vunpack.c.l.b16 %v1465
      %v1538 = vunpack.c.l.b16 %v1466
      %v1539 = vunpack.c.l.b16 %v1467
      %v1540 = vunpack.c.l.b16 %v1468
      %v1541 = vunpack.c.l.b16 %v1469
      %v1542 = vunpack.c.l.b16 %v1470
      %v1543 = vunpack.c.l.b16 %v1471
      %v1544 = vunpack.c.l.b16 %v1472
      %v1545 = vunpack.c.l.b16 %v1473
      %v1546 = vunpack.c.l.b16 %v1474
      %v1547 = vunpack.c.l.b16 %v1475
      %v1548 = vunpack.c.l.b16 %v1476
      %v1549 = vunpack.c.l.b16 %v1477
      %v1550 = vunpack.c.l.b16 %v1478
      %v1551 = vunpack.c.l.b16 %v1479
      %v1552 = vunpack.c.l.b16 %v1480
      %v1553 = vunpack.c.l.b16 %v1481
      %v1554 = vunpack.c.l.b16 %v1482
      %v1555 = vunpack.c.l.b16 %v1483
      %v1556 = vunpack.c.l.b16 %v1484
      %v1557 = vunpack.c.l.b16 %v1485
      %v1558 = vpack.c.b16 %v1523, %v1522
      %v1559 = vpack.c.b16 %v1525, %v1524
      %v1560 = vpack.c.b16 %v1527, %v1526
      %v1561 = vpack.c.b16 %v1529, %v1528
      %v1562 = vpack.c.b16 %v1531, %v1530
      %v1563 = vpack.c.b16 %v1533, %v1532
      %v1564 = vpack.c.b16 %v1535, %v1534
      %v1565 = vpack.c.b16 %v1537, %v1536
      %v1566 = vpack.c.b16 %v1539, %v1538
      %v1567 = vpack.c.b16 %v1541, %v1540
      %v1568 = vpack.c.b16 %v1543, %v1542
      %v1569 = vpack.c.b16 %v1545, %v1544
      %v1570 = vpack.c.b16 %v1547, %v1546
      %v1571 = vpack.c.b16 %v1549, %v1548
      %v1572 = vpack.c.b16 %v1551, %v1550
      %v1573 = vpack.c.b16 %v1553, %v1552
      %v1574 = vpack.c.b16 %v1555, %v1554
      %v1575 = vpack.c.b16 %v1557, %v1556
      %v1595 = vsel %vm872, %v1437, 0
      %v1598 = vsel %vm872, %v1440, 0
      %v1601 = vsel %vm872, %v1443, 0
      %v1604 = vsel %vm872, %v1446, 0
      %v1607 = vsel %vm872, %v1449, 0
      %1609 = vmatpush.bf16.msra.mxu0 %v1565
      %1610 = vmatpush.bf16.msra.mxu0 %v1564
      %1611 = vmatpush.bf16.msra.mxu0 %v1563
      %1612 = vmatpush.bf16.msra.mxu0 %v1562
      %1613 = vmatpush.bf16.msra.mxu0 %v1561
      %1614 = vmatpush.bf16.msra.mxu0 %v1560
      %1615 = vmatpush.bf16.msra.mxu0 %v1559
      %1616 = vmatpush.bf16.msra.mxu0 %v1558
      %1617 = vmatmul.bf16.gmra.mxu0 %v1435
      %v1618 = vpop.f32.mrf.mxu0
      %v1619 = vadd.f32 0.0, %v1618
      %v1620 = vpop.f32.mrf.mxu0
      %v1621 = vadd.f32 0.0, %v1620
      %1622 = vmatmul.bf16.gmra.mxu0 %v1438
      %v1623 = vpop.f32.mrf.mxu0
      %v1624 = vadd.f32 0.0, %v1623
      %v1625 = vpop.f32.mrf.mxu0
      %v1626 = vadd.f32 0.0, %v1625
      %1627 = vmatmul.bf16.gmra.mxu0 %v1441
      %v1628 = vpop.f32.mrf.mxu0
      %v1629 = vadd.f32 0.0, %v1628
      %v1630 = vpop.f32.mrf.mxu0
      %v1631 = vadd.f32 0.0, %v1630
      %1632 = vmatmul.bf16.gmra.mxu0 %v1444
      %v1633 = vpop.f32.mrf.mxu0
      %v1634 = vadd.f32 0.0, %v1633
      %v1635 = vpop.f32.mrf.mxu0
      %v1636 = vadd.f32 0.0, %v1635
      %1637 = vmatmul.bf16.gmra.mxu0 %v1447
      %v1638 = vpop.f32.mrf.mxu0
      %v1639 = vadd.f32 0.0, %v1638
      %v1640 = vpop.f32.mrf.mxu0
      %v1641 = vadd.f32 0.0, %v1640
      %1642 = vdwg.mxu0
      %1643 = vmatpush.bf16.msra.mxu0 %v1573
      %1644 = vmatpush.bf16.msra.mxu0 %v1572
      %1645 = vmatpush.bf16.msra.mxu0 %v1571
      %1646 = vmatpush.bf16.msra.mxu0 %v1570
      %1647 = vmatpush.bf16.msra.mxu0 %v1569
      %1648 = vmatpush.bf16.msra.mxu0 %v1568
      %1649 = vmatpush.bf16.msra.mxu0 %v1567
      %1650 = vmatpush.bf16.msra.mxu0 %v1566
      %1651 = vmatmul.bf16.gmra.mxu0 %v1436
      %v1652 = vpop.f32.mrf.mxu0
      %v1653 = vadd.f32 %v1619, %v1652
      %v1654 = vpop.f32.mrf.mxu0
      %v1655 = vadd.f32 %v1621, %v1654
      %1656 = vmatmul.bf16.gmra.mxu0 %v1439
      %v1657 = vpop.f32.mrf.mxu0
      %v1658 = vadd.f32 %v1624, %v1657
      %v1659 = vpop.f32.mrf.mxu0
      %v1660 = vadd.f32 %v1626, %v1659
      %1661 = vmatmul.bf16.gmra.mxu0 %v1442
      %v1662 = vpop.f32.mrf.mxu0
      %v1663 = vadd.f32 %v1629, %v1662
      %v1664 = vpop.f32.mrf.mxu0
      %v1665 = vadd.f32 %v1631, %v1664
      %1666 = vmatmul.bf16.gmra.mxu0 %v1445
      %v1667 = vpop.f32.mrf.mxu0
      %v1668 = vadd.f32 %v1634, %v1667
      %v1669 = vpop.f32.mrf.mxu0
      %v1670 = vadd.f32 %v1636, %v1669
      %1671 = vmatmul.bf16.gmra.mxu0 %v1448
      %v1672 = vpop.f32.mrf.mxu0
      %v1673 = vadd.f32 %v1639, %v1672
      %v1674 = vpop.f32.mrf.mxu0
      %v1675 = vadd.f32 %v1641, %v1674
      %1676 = vdwg.mxu0
      %1677 = vmatpush.bf16.msra.mxu0 0
      %1678 = vmatpush.bf16.msra.mxu0 0
      %1679 = vmatpush.bf16.msra.mxu0 0
      %1680 = vmatpush.bf16.msra.mxu0 0
      %1681 = vmatpush.bf16.msra.mxu0 0
      %1682 = vmatpush.bf16.msra.mxu0 0
      %1683 = vmatpush.bf16.msra.mxu0 %v1575
      %1684 = vmatpush.bf16.msra.mxu0 %v1574
      %1685 = vmatmul.bf16.gmra.mxu0 %v1595
      %v1686 = vpop.f32.mrf.mxu0
      %v1687 = vadd.f32 %v1653, %v1686
      %v1688 = vpop.f32.mrf.mxu0
      %v1689 = vadd.f32 %v1655, %v1688
      %1690 = vmatmul.bf16.gmra.mxu0 %v1598
      %v1691 = vpop.f32.mrf.mxu0
      %v1692 = vadd.f32 %v1658, %v1691
      %v1693 = vpop.f32.mrf.mxu0
      %v1694 = vadd.f32 %v1660, %v1693
      %1695 = vmatmul.bf16.gmra.mxu0 %v1601
      %v1696 = vpop.f32.mrf.mxu0
      %v1697 = vadd.f32 %v1663, %v1696
      %v1698 = vpop.f32.mrf.mxu0
      %v1699 = vadd.f32 %v1665, %v1698
      %1700 = vmatmul.bf16.gmra.mxu0 %v1604
      %v1701 = vpop.f32.mrf.mxu0
      %v1702 = vadd.f32 %v1668, %v1701
      %v1703 = vpop.f32.mrf.mxu0
      %v1704 = vadd.f32 %v1670, %v1703
      %1705 = vmatmul.bf16.gmra.mxu0 %v1607
      %v1706 = vpop.f32.mrf.mxu0
      %v1707 = vadd.f32 %v1673, %v1706
      %v1708 = vpop.f32.mrf.mxu0
      %v1709 = vadd.f32 %v1675, %v1708
      %1710 = vdwg.mxu0
      %v1747 = vunpack.c.l.b16 %v950
      %v1748 = vunpack.c.l.b16 %v951
      %v1749 = vunpack.c.l.b16 %v952
      %v1750 = vunpack.c.l.b16 %v953
      %v1751 = vunpack.c.l.b16 %v954
      %v1752 = vunpack.c.l.b16 %v955
      %v1753 = vunpack.c.l.b16 %v956
      %v1754 = vunpack.c.l.b16 %v957
      %v1755 = vunpack.c.l.b16 %v958
      %v1756 = vunpack.c.l.b16 %v959
      %v1757 = vunpack.c.l.b16 %v960
      %v1758 = vunpack.c.l.b16 %v961
      %v1759 = vunpack.c.l.b16 %v962
      %v1760 = vunpack.c.l.b16 %v963
      %v1761 = vunpack.c.l.b16 %v964
      %v1762 = vunpack.c.l.b16 %v965
      %v1763 = vunpack.c.l.b16 %v966
      %v1764 = vunpack.c.l.b16 %v967
      %v1765 = vunpack.c.l.b16 %v968
      %v1766 = vunpack.c.l.b16 %v969
      %v1767 = vunpack.c.l.b16 %v970
      %v1768 = vunpack.c.l.b16 %v971
      %v1769 = vunpack.c.l.b16 %v972
      %v1770 = vunpack.c.l.b16 %v973
      %v1771 = vunpack.c.l.b16 %v974
      %v1772 = vunpack.c.l.b16 %v975
      %v1773 = vunpack.c.l.b16 %v976
      %v1774 = vunpack.c.l.b16 %v977
      %v1775 = vunpack.c.l.b16 %v978
      %v1776 = vunpack.c.l.b16 %v979
      %v1777 = vunpack.c.l.b16 %v980
      %v1778 = vunpack.c.l.b16 %v981
      %v1779 = vunpack.c.l.b16 %v982
      %v1780 = vunpack.c.l.b16 %v983
      %v1781 = vunpack.c.l.b16 %v984
      %v1782 = vunpack.c.l.b16 %v985
      %v1783 = vpack.c.b16 %v1748, %v1747
      %v1784 = vpack.c.b16 %v1750, %v1749
      %v1785 = vpack.c.b16 %v1752, %v1751
      %v1786 = vpack.c.b16 %v1754, %v1753
      %v1787 = vpack.c.b16 %v1756, %v1755
      %v1788 = vpack.c.b16 %v1758, %v1757
      %v1789 = vpack.c.b16 %v1760, %v1759
      %v1790 = vpack.c.b16 %v1762, %v1761
      %v1791 = vpack.c.b16 %v1764, %v1763
      %v1792 = vpack.c.b16 %v1766, %v1765
      %v1793 = vpack.c.b16 %v1768, %v1767
      %v1794 = vpack.c.b16 %v1770, %v1769
      %v1795 = vpack.c.b16 %v1772, %v1771
      %v1796 = vpack.c.b16 %v1774, %v1773
      %v1797 = vpack.c.b16 %v1776, %v1775
      %v1798 = vpack.c.b16 %v1778, %v1777
      %v1799 = vpack.c.b16 %v1780, %v1779
      %v1800 = vpack.c.b16 %v1782, %v1781
      %v1820 = vsel %vm872, %v937, 0
      %v1823 = vsel %vm872, %v940, 0
      %v1826 = vsel %vm872, %v943, 0
      %v1829 = vsel %vm872, %v946, 0
      %v1832 = vsel %vm872, %v949, 0
      %1834 = vmatpush.bf16.msra.mxu0 %v1790
      %1835 = vmatpush.bf16.msra.mxu0 %v1789
      %1836 = vmatpush.bf16.msra.mxu0 %v1788
      %1837 = vmatpush.bf16.msra.mxu0 %v1787
      %1838 = vmatpush.bf16.msra.mxu0 %v1786
      %1839 = vmatpush.bf16.msra.mxu0 %v1785
      %1840 = vmatpush.bf16.msra.mxu0 %v1784
      %1841 = vmatpush.bf16.msra.mxu0 %v1783
      %1842 = vmatmul.bf16.gmra.mxu0 %v935
      %v1843 = vpop.f32.mrf.mxu0
      %v1844 = vadd.f32 %v1687, %v1843
      %v1845 = vpop.f32.mrf.mxu0
      %v1846 = vadd.f32 %v1689, %v1845
      %1847 = vmatmul.bf16.gmra.mxu0 %v938
      %v1848 = vpop.f32.mrf.mxu0
      %v1849 = vadd.f32 %v1692, %v1848
      %v1850 = vpop.f32.mrf.mxu0
      %v1851 = vadd.f32 %v1694, %v1850
      %1852 = vmatmul.bf16.gmra.mxu0 %v941
      %v1853 = vpop.f32.mrf.mxu0
      %v1854 = vadd.f32 %v1697, %v1853
      %v1855 = vpop.f32.mrf.mxu0
      %v1856 = vadd.f32 %v1699, %v1855
      %1857 = vmatmul.bf16.gmra.mxu0 %v944
      %v1858 = vpop.f32.mrf.mxu0
      %v1859 = vadd.f32 %v1702, %v1858
      %v1860 = vpop.f32.mrf.mxu0
      %v1861 = vadd.f32 %v1704, %v1860
      %1862 = vmatmul.bf16.gmra.mxu0 %v947
      %v1863 = vpop.f32.mrf.mxu0
      %v1864 = vadd.f32 %v1707, %v1863
      %v1865 = vpop.f32.mrf.mxu0
      %v1866 = vadd.f32 %v1709, %v1865
      %1867 = vdwg.mxu0
      %1868 = vmatpush.bf16.msra.mxu0 %v1798
      %1869 = vmatpush.bf16.msra.mxu0 %v1797
      %1870 = vmatpush.bf16.msra.mxu0 %v1796
      %1871 = vmatpush.bf16.msra.mxu0 %v1795
      %1872 = vmatpush.bf16.msra.mxu0 %v1794
      %1873 = vmatpush.bf16.msra.mxu0 %v1793
      %1874 = vmatpush.bf16.msra.mxu0 %v1792
      %1875 = vmatpush.bf16.msra.mxu0 %v1791
      %1876 = vmatmul.bf16.gmra.mxu0 %v936
      %v1877 = vpop.f32.mrf.mxu0
      %v1878 = vadd.f32 %v1844, %v1877
      %v1879 = vpop.f32.mrf.mxu0
      %v1880 = vadd.f32 %v1846, %v1879
      %1881 = vmatmul.bf16.gmra.mxu0 %v939
      %v1882 = vpop.f32.mrf.mxu0
      %v1883 = vadd.f32 %v1849, %v1882
      %v1884 = vpop.f32.mrf.mxu0
      %v1885 = vadd.f32 %v1851, %v1884
      %1886 = vmatmul.bf16.gmra.mxu0 %v942
      %v1887 = vpop.f32.mrf.mxu0
      %v1888 = vadd.f32 %v1854, %v1887
      %v1889 = vpop.f32.mrf.mxu0
      %v1890 = vadd.f32 %v1856, %v1889
      %1891 = vmatmul.bf16.gmra.mxu0 %v945
      %v1892 = vpop.f32.mrf.mxu0
      %v1893 = vadd.f32 %v1859, %v1892
      %v1894 = vpop.f32.mrf.mxu0
      %v1895 = vadd.f32 %v1861, %v1894
      %1896 = vmatmul.bf16.gmra.mxu0 %v948
      %v1897 = vpop.f32.mrf.mxu0
      %v1898 = vadd.f32 %v1864, %v1897
      %v1899 = vpop.f32.mrf.mxu0
      %v1900 = vadd.f32 %v1866, %v1899
      %1901 = vdwg.mxu0
      %1902 = vmatpush.bf16.msra.mxu0 0
      %1903 = vmatpush.bf16.msra.mxu0 0
      %1904 = vmatpush.bf16.msra.mxu0 0
      %1905 = vmatpush.bf16.msra.mxu0 0
      %1906 = vmatpush.bf16.msra.mxu0 0
      %1907 = vmatpush.bf16.msra.mxu0 0
      %1908 = vmatpush.bf16.msra.mxu0 %v1800
      %1909 = vmatpush.bf16.msra.mxu0 %v1799
      %1910 = vmatmul.bf16.gmra.mxu0 %v1820
      %v1911 = vpop.f32.mrf.mxu0
      %v1912 = vadd.f32 %v1878, %v1911
      %v1913 = vpop.f32.mrf.mxu0
      %v1914 = vadd.f32 %v1880, %v1913
      %1915 = vmatmul.bf16.gmra.mxu0 %v1823
      %v1916 = vpop.f32.mrf.mxu0
      %v1917 = vadd.f32 %v1883, %v1916
      %v1918 = vpop.f32.mrf.mxu0
      %v1919 = vadd.f32 %v1885, %v1918
      %1920 = vmatmul.bf16.gmra.mxu0 %v1826
      %v1921 = vpop.f32.mrf.mxu0
      %v1922 = vadd.f32 %v1888, %v1921
      %v1923 = vpop.f32.mrf.mxu0
      %v1924 = vadd.f32 %v1890, %v1923
      %1925 = vmatmul.bf16.gmra.mxu0 %v1829
      %v1926 = vpop.f32.mrf.mxu0
      %v1927 = vadd.f32 %v1893, %v1926
      %v1928 = vpop.f32.mrf.mxu0
      %v1929 = vadd.f32 %v1895, %v1928
      %1930 = vmatmul.bf16.gmra.mxu0 %v1832
      %v1931 = vpop.f32.mrf.mxu0
      %v1932 = vadd.f32 %v1898, %v1931
      %v1933 = vpop.f32.mrf.mxu0
      %v1934 = vadd.f32 %v1900, %v1933
      %1935 = vdwg.mxu0
      %s1936 = sadd.s32 %s23, 1
      %p1937 = scmp.ge.s32.totalorder %s1936, 0
      %p1938 = scmp.le.s32.totalorder %s1936, 3
      %p1939 = pnand %p1937, %p1938
      %p1940 = pneg %p1939
      %v1941 = vld [vmem:[%s452] sm:$0xf]
      %v1942 = vld [vmem:[%s452 + $0x4] sm:$0xf]
      %v1943 = vld [vmem:[%s452 + $0x8] sm:$0xf]
      %v1944 = vld [vmem:[%s452 + $0xc] sm:$0xf]
      %v1945 = vld [vmem:[%s452 + $0x10] sm:$0xf]
      %v1946 = vld [vmem:[%s452 + $0x14] sm:$0xf]
      %v1947 = vld [vmem:[%s452 + $0x18] sm:$0xf]
      %v1948 = vld [vmem:[%s452 + $0x1c] sm:$0xf]
      %v1949 = vld [vmem:[%s452 + $0x20] sm:$0xf]
      %v1950 = vld [vmem:[%s452 + $0x24] sm:$0xf]
      %v1951 = vld [vmem:[%s452 + $0x28] sm:$0xf]
      %v1952 = vld [vmem:[%s452 + $0x2c] sm:$0xf]
      %v1953 = vld [vmem:[%s452 + $0x30] sm:$0xf]
      %v1954 = vunpack.c.l.bf16 %v1941
      %v1955 = vunpack.c.l.bf16 %v1942
      %v1956 = vunpack.c.l.bf16 %v1943
      %v1957 = vunpack.c.l.bf16 %v1944
      %v1958 = vunpack.c.l.bf16 %v1945
      %v1959 = vunpack.c.l.bf16 %v1946
      %v1960 = vunpack.c.l.bf16 %v1947
      %v1961 = vunpack.c.l.bf16 %v1948
      %v1962 = vunpack.c.l.bf16 %v1949
      %v1963 = vunpack.c.l.bf16 %v1950
      %v1964 = vunpack.c.l.bf16 %v1951
      %v1965 = vunpack.c.l.bf16 %v1952
      %v1966 = vunpack.c.l.bf16 %v1953
      %s1967 = scalar_select %p1940, 1, 0
      %s1968 = scvt.s32.f32 %s1967
      %v1969 = vstv %s1968
      %v1970 = vmul.f32 %v1954, %v1969
      %v1971 = vmul.f32 %v1955, %v1969
      %v1972 = vmul.f32 %v1956, %v1969
      %v1973 = vmul.f32 %v1957, %v1969
      %v1974 = vmul.f32 %v1958, %v1969
      %v1975 = vmul.f32 %v1959, %v1969
      %v1976 = vmul.f32 %v1960, %v1969
      %v1977 = vmul.f32 %v1961, %v1969
      %v1978 = vmul.f32 %v1962, %v1969
      %v1979 = vmul.f32 %v1963, %v1969
      %v1980 = vmul.f32 %v1964, %v1969
      %v1981 = vmul.f32 %v1965, %v1969
      %v1982 = vmul.f32 %v1966, %v1969
      %v1994 = vrot.slane %v1970, 1
      %v1995 = vrot.slane %v1971, 1
      %v1996 = vsel %vm534, %v1994, %v1995
      %v1997 = vrot.slane %v1972, 1
      %v1998 = vsel %vm534, %v1995, %v1997
      %v1999 = vrot.slane %v1973, 1
      %v2000 = vsel %vm534, %v1997, %v1999
      %v2001 = vrot.slane %v1974, 1
      %v2002 = vsel %vm534, %v1999, %v2001
      %v2003 = vrot.slane %v1975, 1
      %v2004 = vsel %vm534, %v2001, %v2003
      %v2005 = vrot.slane %v1976, 1
      %v2006 = vsel %vm534, %v2003, %v2005
      %v2007 = vrot.slane %v1977, 1
      %v2008 = vsel %vm534, %v2005, %v2007
      %v2009 = vrot.slane %v1978, 1
      %v2010 = vsel %vm534, %v2007, %v2009
      %v2011 = vrot.slane %v1979, 1
      %v2012 = vsel %vm534, %v2009, %v2011
      %v2013 = vrot.slane %v1980, 1
      %v2014 = vsel %vm534, %v2011, %v2013
      %2015 = vrot.lane.b32.xlu0 %v1996, 32
      %v2016 = vpop.permute.xlu0 %2015
      %2017 = vrot.lane.b32.xlu0 %v1998, 32
      %v2018 = vpop.permute.xlu0 %2017
      %2019 = vrot.lane.b32.xlu0 %v2000, 32
      %v2020 = vpop.permute.xlu0 %2019
      %2021 = vrot.lane.b32.xlu0 %v2002, 32
      %v2022 = vpop.permute.xlu0 %2021
      %2023 = vrot.lane.b32.xlu0 %v2004, 32
      %v2024 = vpop.permute.xlu0 %2023
      %2025 = vrot.lane.b32.xlu0 %v2006, 32
      %v2026 = vpop.permute.xlu0 %2025
      %2027 = vrot.lane.b32.xlu0 %v2008, 32
      %v2028 = vpop.permute.xlu0 %2027
      %2029 = vrot.lane.b32.xlu0 %v2010, 32
      %v2030 = vpop.permute.xlu0 %2029
      %2031 = vrot.lane.b32.xlu0 %v2012, 32
      %v2032 = vpop.permute.xlu0 %2031
      %2033 = vrot.lane.b32.xlu0 %v2014, 32
      %v2034 = vpop.permute.xlu0 %2033
      %v2045 = vrot.slane %v1970, 2
      %v2046 = vrot.slane %v1971, 2
      %v2047 = vsel %vm586, %v2045, %v2046
      %v2048 = vrot.slane %v1972, 2
      %v2049 = vsel %vm586, %v2046, %v2048
      %v2050 = vrot.slane %v1973, 2
      %v2051 = vsel %vm586, %v2048, %v2050
      %v2052 = vrot.slane %v1974, 2
      %v2053 = vsel %vm586, %v2050, %v2052
      %v2054 = vrot.slane %v1975, 2
      %v2055 = vsel %vm586, %v2052, %v2054
      %v2056 = vrot.slane %v1976, 2
      %v2057 = vsel %vm586, %v2054, %v2056
      %v2058 = vrot.slane %v1977, 2
      %v2059 = vsel %vm586, %v2056, %v2058
      %v2060 = vrot.slane %v1978, 2
      %v2061 = vsel %vm586, %v2058, %v2060
      %v2062 = vrot.slane %v1979, 2
      %v2063 = vsel %vm586, %v2060, %v2062
      %v2064 = vrot.slane %v1980, 2
      %v2065 = vsel %vm586, %v2062, %v2064
      %2066 = vrot.lane.b32.xlu0 %v2047, 64
      %v2067 = vpop.permute.xlu0 %2066
      %2068 = vrot.lane.b32.xlu0 %v2049, 64
      %v2069 = vpop.permute.xlu0 %2068
      %2070 = vrot.lane.b32.xlu0 %v2051, 64
      %v2071 = vpop.permute.xlu0 %2070
      %2072 = vrot.lane.b32.xlu0 %v2053, 64
      %v2073 = vpop.permute.xlu0 %2072
      %2074 = vrot.lane.b32.xlu0 %v2055, 64
      %v2075 = vpop.permute.xlu0 %2074
      %2076 = vrot.lane.b32.xlu0 %v2057, 64
      %v2077 = vpop.permute.xlu0 %2076
      %2078 = vrot.lane.b32.xlu0 %v2059, 64
      %v2079 = vpop.permute.xlu0 %2078
      %2080 = vrot.lane.b32.xlu0 %v2061, 64
      %v2081 = vpop.permute.xlu0 %2080
      %2082 = vrot.lane.b32.xlu0 %v2063, 64
      %v2083 = vpop.permute.xlu0 %2082
      %2084 = vrot.lane.b32.xlu0 %v2065, 64
      %v2085 = vpop.permute.xlu0 %2084
      %v2097 = vrot.slane %v1981, 2
      %v2098 = vsel %vm586, %v2064, %v2097
      %2099 = vrot.lane.b32.xlu0 %v2049, 96
      %v2100 = vpop.permute.xlu0 %2099
      %2101 = vrot.lane.b32.xlu0 %v2051, 96
      %v2102 = vpop.permute.xlu0 %2101
      %2103 = vrot.lane.b32.xlu0 %v2053, 96
      %v2104 = vpop.permute.xlu0 %2103
      %2105 = vrot.lane.b32.xlu0 %v2055, 96
      %v2106 = vpop.permute.xlu0 %2105
      %2107 = vrot.lane.b32.xlu0 %v2057, 96
      %v2108 = vpop.permute.xlu0 %2107
      %2109 = vrot.lane.b32.xlu0 %v2059, 96
      %v2110 = vpop.permute.xlu0 %2109
      %2111 = vrot.lane.b32.xlu0 %v2061, 96
      %v2112 = vpop.permute.xlu0 %2111
      %2113 = vrot.lane.b32.xlu0 %v2063, 96
      %v2114 = vpop.permute.xlu0 %2113
      %2115 = vrot.lane.b32.xlu0 %v2065, 96
      %v2116 = vpop.permute.xlu0 %2115
      %2117 = vrot.lane.b32.xlu0 %v2098, 96
      %v2118 = vpop.permute.xlu0 %2117
      %v2129 = vrot.slane %v1971, 3
      %v2130 = vrot.slane %v1972, 3
      %v2131 = vsel %vm671, %v2129, %v2130
      %v2132 = vrot.slane %v1973, 3
      %v2133 = vsel %vm671, %v2130, %v2132
      %v2134 = vrot.slane %v1974, 3
      %v2135 = vsel %vm671, %v2132, %v2134
      %v2136 = vrot.slane %v1975, 3
      %v2137 = vsel %vm671, %v2134, %v2136
      %v2138 = vrot.slane %v1976, 3
      %v2139 = vsel %vm671, %v2136, %v2138
      %v2140 = vrot.slane %v1977, 3
      %v2141 = vsel %vm671, %v2138, %v2140
      %v2142 = vrot.slane %v1978, 3
      %v2143 = vsel %vm671, %v2140, %v2142
      %v2144 = vrot.slane %v1979, 3
      %v2145 = vsel %vm671, %v2142, %v2144
      %v2146 = vrot.slane %v1980, 3
      %v2147 = vsel %vm671, %v2144, %v2146
      %v2148 = vrot.slane %v1981, 3
      %v2149 = vsel %vm671, %v2146, %v2148
      %v2160 = vrot.slane %v1971, 4
      %v2161 = vrot.slane %v1972, 4
      %v2162 = vsel %vm703, %v2160, %v2161
      %v2163 = vrot.slane %v1973, 4
      %v2164 = vsel %vm703, %v2161, %v2163
      %v2165 = vrot.slane %v1974, 4
      %v2166 = vsel %vm703, %v2163, %v2165
      %v2167 = vrot.slane %v1975, 4
      %v2168 = vsel %vm703, %v2165, %v2167
      %v2169 = vrot.slane %v1976, 4
      %v2170 = vsel %vm703, %v2167, %v2169
      %v2171 = vrot.slane %v1977, 4
      %v2172 = vsel %vm703, %v2169, %v2171
      %v2173 = vrot.slane %v1978, 4
      %v2174 = vsel %vm703, %v2171, %v2173
      %v2175 = vrot.slane %v1979, 4
      %v2176 = vsel %vm703, %v2173, %v2175
      %v2177 = vrot.slane %v1980, 4
      %v2178 = vsel %vm703, %v2175, %v2177
      %v2179 = vrot.slane %v1981, 4
      %v2180 = vsel %vm703, %v2177, %v2179
      %2181 = vrot.lane.b32.xlu0 %v2162, 32
      %v2182 = vpop.permute.xlu0 %2181
      %2183 = vrot.lane.b32.xlu0 %v2164, 32
      %v2184 = vpop.permute.xlu0 %2183
      %2185 = vrot.lane.b32.xlu0 %v2166, 32
      %v2186 = vpop.permute.xlu0 %2185
      %2187 = vrot.lane.b32.xlu0 %v2168, 32
      %v2188 = vpop.permute.xlu0 %2187
      %2189 = vrot.lane.b32.xlu0 %v2170, 32
      %v2190 = vpop.permute.xlu0 %2189
      %2191 = vrot.lane.b32.xlu0 %v2172, 32
      %v2192 = vpop.permute.xlu0 %2191
      %2193 = vrot.lane.b32.xlu0 %v2174, 32
      %v2194 = vpop.permute.xlu0 %2193
      %2195 = vrot.lane.b32.xlu0 %v2176, 32
      %v2196 = vpop.permute.xlu0 %2195
      %2197 = vrot.lane.b32.xlu0 %v2178, 32
      %v2198 = vpop.permute.xlu0 %2197
      %2199 = vrot.lane.b32.xlu0 %v2180, 32
      %v2200 = vpop.permute.xlu0 %2199
      %v2212 = vrot.slane %v1982, 4
      %v2213 = vsel %vm703, %v2179, %v2212
      %2214 = vrot.lane.b32.xlu0 %v2164, 64
      %v2215 = vpop.permute.xlu0 %2214
      %2216 = vrot.lane.b32.xlu0 %v2166, 64
      %v2217 = vpop.permute.xlu0 %2216
      %2218 = vrot.lane.b32.xlu0 %v2168, 64
      %v2219 = vpop.permute.xlu0 %2218
      %2220 = vrot.lane.b32.xlu0 %v2170, 64
      %v2221 = vpop.permute.xlu0 %2220
      %2222 = vrot.lane.b32.xlu0 %v2172, 64
      %v2223 = vpop.permute.xlu0 %2222
      %2224 = vrot.lane.b32.xlu0 %v2174, 64
      %v2225 = vpop.permute.xlu0 %2224
      %2226 = vrot.lane.b32.xlu0 %v2176, 64
      %v2227 = vpop.permute.xlu0 %2226
      %2228 = vrot.lane.b32.xlu0 %v2178, 64
      %v2229 = vpop.permute.xlu0 %2228
      %2230 = vrot.lane.b32.xlu0 %v2180, 64
      %v2231 = vpop.permute.xlu0 %2230
      %2232 = vrot.lane.b32.xlu0 %v2213, 64
      %v2233 = vpop.permute.xlu0 %2232
      %v2244 = vrot.slane %v1972, 5
      %v2245 = vrot.slane %v1973, 5
      %v2246 = vsel %vm788, %v2244, %v2245
      %v2247 = vrot.slane %v1974, 5
      %v2248 = vsel %vm788, %v2245, %v2247
      %v2249 = vrot.slane %v1975, 5
      %v2250 = vsel %vm788, %v2247, %v2249
      %v2251 = vrot.slane %v1976, 5
      %v2252 = vsel %vm788, %v2249, %v2251
      %v2253 = vrot.slane %v1977, 5
      %v2254 = vsel %vm788, %v2251, %v2253
      %v2255 = vrot.slane %v1978, 5
      %v2256 = vsel %vm788, %v2253, %v2255
      %v2257 = vrot.slane %v1979, 5
      %v2258 = vsel %vm788, %v2255, %v2257
      %v2259 = vrot.slane %v1980, 5
      %v2260 = vsel %vm788, %v2257, %v2259
      %v2261 = vrot.slane %v1981, 5
      %v2262 = vsel %vm788, %v2259, %v2261
      %v2263 = vrot.slane %v1982, 5
      %v2264 = vsel %vm788, %v2261, %v2263
      %2265 = vrot.lane.b32.xlu0 %v2246, 96
      %v2266 = vpop.permute.xlu0 %2265
      %2267 = vrot.lane.b32.xlu0 %v2248, 96
      %v2268 = vpop.permute.xlu0 %2267
      %2269 = vrot.lane.b32.xlu0 %v2250, 96
      %v2270 = vpop.permute.xlu0 %2269
      %2271 = vrot.lane.b32.xlu0 %v2252, 96
      %v2272 = vpop.permute.xlu0 %2271
      %2273 = vrot.lane.b32.xlu0 %v2254, 96
      %v2274 = vpop.permute.xlu0 %2273
      %2275 = vrot.lane.b32.xlu0 %v2256, 96
      %v2276 = vpop.permute.xlu0 %2275
      %2277 = vrot.lane.b32.xlu0 %v2258, 96
      %v2278 = vpop.permute.xlu0 %2277
      %2279 = vrot.lane.b32.xlu0 %v2260, 96
      %v2280 = vpop.permute.xlu0 %2279
      %2281 = vrot.lane.b32.xlu0 %v2262, 96
      %v2282 = vpop.permute.xlu0 %2281
      %2283 = vrot.lane.b32.xlu0 %v2264, 96
      %v2284 = vpop.permute.xlu0 %2283
      %v2295 = vrot.slane %v1972, 6
      %v2296 = vrot.slane %v1973, 6
      %v2297 = vsel %vm840, %v2295, %v2296
      %v2298 = vrot.slane %v1974, 6
      %v2299 = vsel %vm840, %v2296, %v2298
      %v2300 = vrot.slane %v1975, 6
      %v2301 = vsel %vm840, %v2298, %v2300
      %v2302 = vrot.slane %v1976, 6
      %v2303 = vsel %vm840, %v2300, %v2302
      %v2304 = vrot.slane %v1977, 6
      %v2305 = vsel %vm840, %v2302, %v2304
      %v2306 = vrot.slane %v1978, 6
      %v2307 = vsel %vm840, %v2304, %v2306
      %v2308 = vrot.slane %v1979, 6
      %v2309 = vsel %vm840, %v2306, %v2308
      %v2310 = vrot.slane %v1980, 6
      %v2311 = vsel %vm840, %v2308, %v2310
      %v2312 = vrot.slane %v1981, 6
      %v2313 = vsel %vm840, %v2310, %v2312
      %v2314 = vrot.slane %v1982, 6
      %v2315 = vsel %vm840, %v2312, %v2314
      %v2326 = vsel %vm872, %v1970, %v2016
      %v2327 = vsel %vm872, %v1971, %v2018
      %v2328 = vsel %vm872, %v1972, %v2020
      %v2329 = vsel %vm872, %v1973, %v2022
      %v2330 = vsel %vm872, %v1974, %v2024
      %v2331 = vsel %vm872, %v1975, %v2026
      %v2332 = vsel %vm872, %v1976, %v2028
      %v2333 = vsel %vm872, %v1977, %v2030
      %v2334 = vsel %vm872, %v1978, %v2032
      %v2335 = vsel %vm872, %v1979, %v2034
      %v2336 = vsel %vm883, %v2326, %v2067
      %v2337 = vsel %vm883, %v2327, %v2069
      %v2338 = vsel %vm883, %v2328, %v2071
      %v2339 = vsel %vm883, %v2329, %v2073
      %v2340 = vsel %vm883, %v2330, %v2075
      %v2341 = vsel %vm883, %v2331, %v2077
      %v2342 = vsel %vm883, %v2332, %v2079
      %v2343 = vsel %vm883, %v2333, %v2081
      %v2344 = vsel %vm883, %v2334, %v2083
      %v2345 = vsel %vm883, %v2335, %v2085
      %v2346 = vsel %vm894, %v2336, %v2100
      %v2347 = vsel %vm894, %v2337, %v2102
      %v2348 = vsel %vm894, %v2338, %v2104
      %v2349 = vsel %vm894, %v2339, %v2106
      %v2350 = vsel %vm894, %v2340, %v2108
      %v2351 = vsel %vm894, %v2341, %v2110
      %v2352 = vsel %vm894, %v2342, %v2112
      %v2353 = vsel %vm894, %v2343, %v2114
      %v2354 = vsel %vm894, %v2344, %v2116
      %v2355 = vsel %vm894, %v2345, %v2118
      %v2356 = vsel %vm872, %v2131, %v2182
      %v2357 = vsel %vm872, %v2133, %v2184
      %v2358 = vsel %vm872, %v2135, %v2186
      %v2359 = vsel %vm872, %v2137, %v2188
      %v2360 = vsel %vm872, %v2139, %v2190
      %v2361 = vsel %vm872, %v2141, %v2192
      %v2362 = vsel %vm872, %v2143, %v2194
      %v2363 = vsel %vm872, %v2145, %v2196
      %v2364 = vsel %vm872, %v2147, %v2198
      %v2365 = vsel %vm872, %v2149, %v2200
      %v2366 = vsel %vm883, %v2356, %v2215
      %v2367 = vsel %vm883, %v2357, %v2217
      %v2368 = vsel %vm883, %v2358, %v2219
      %v2369 = vsel %vm883, %v2359, %v2221
      %v2370 = vsel %vm883, %v2360, %v2223
      %v2371 = vsel %vm883, %v2361, %v2225
      %v2372 = vsel %vm883, %v2362, %v2227
      %v2373 = vsel %vm883, %v2363, %v2229
      %v2374 = vsel %vm883, %v2364, %v2231
      %v2375 = vsel %vm883, %v2365, %v2233
      %v2376 = vsel %vm894, %v2366, %v2266
      %v2377 = vsel %vm894, %v2367, %v2268
      %v2378 = vsel %vm894, %v2368, %v2270
      %v2379 = vsel %vm894, %v2369, %v2272
      %v2380 = vsel %vm894, %v2370, %v2274
      %v2381 = vsel %vm894, %v2371, %v2276
      %v2382 = vsel %vm894, %v2372, %v2278
      %v2383 = vsel %vm894, %v2373, %v2280
      %v2384 = vsel %vm894, %v2374, %v2282
      %v2385 = vsel %vm894, %v2375, %v2284
      %v2386 = vpack.c.bf16 %v2347, %v2346
      %v2387 = vpack.c.bf16 %v2377, %v2376
      %v2388 = vpack.c.bf16 %v2299, %v2297
      %v2389 = vpack.c.bf16 %v2349, %v2348
      %v2390 = vpack.c.bf16 %v2379, %v2378
      %v2391 = vpack.c.bf16 %v2303, %v2301
      %v2392 = vpack.c.bf16 %v2351, %v2350
      %v2393 = vpack.c.bf16 %v2381, %v2380
      %v2394 = vpack.c.bf16 %v2307, %v2305
      %v2395 = vpack.c.bf16 %v2353, %v2352
      %v2396 = vpack.c.bf16 %v2383, %v2382
      %v2397 = vpack.c.bf16 %v2311, %v2309
      %v2398 = vpack.c.bf16 %v2355, %v2354
      %v2399 = vpack.c.bf16 %v2385, %v2384
      %v2400 = vpack.c.bf16 %v2315, %v2313
      %v2401 = vld [vmem:[%s3 + $0x120] sm:$0xf]
      %v2402 = vld [vmem:[%s3 + $0x124] sm:$0xf]
      %v2403 = vld [vmem:[%s3 + $0x128] sm:$0xf]
      %v2404 = vld [vmem:[%s3 + $0x12c] sm:$0xf]
      %v2405 = vld [vmem:[%s3 + $0x130] sm:$0xf]
      %v2406 = vld [vmem:[%s3 + $0x134] sm:$0xf]
      %v2407 = vld [vmem:[%s3 + $0x138] sm:$0xf]
      %v2408 = vld [vmem:[%s3 + $0x13c] sm:$0xf]
      %v2409 = vld [vmem:[%s3 + $0x140] sm:$0xf]
      %v2410 = vld [vmem:[%s3 + $0x144] sm:$0xf]
      %v2411 = vld [vmem:[%s3 + $0x148] sm:$0xf]
      %v2412 = vld [vmem:[%s3 + $0x14c] sm:$0xf]
      %v2413 = vld [vmem:[%s3 + $0x150] sm:$0xf]
      %v2414 = vld [vmem:[%s3 + $0x154] sm:$0xf]
      %v2415 = vld [vmem:[%s3 + $0x158] sm:$0xf]
      %v2416 = vld [vmem:[%s3 + $0x15c] sm:$0xf]
      %v2417 = vld [vmem:[%s3 + $0x160] sm:$0xf]
      %v2418 = vld [vmem:[%s3 + $0x164] sm:$0xf]
      %v2419 = vld [vmem:[%s3 + $0x168] sm:$0xf]
      %v2420 = vld [vmem:[%s3 + $0x16c] sm:$0xf]
      %v2421 = vld [vmem:[%s3 + $0x170] sm:$0xf]
      %v2422 = vld [vmem:[%s3 + $0x174] sm:$0xf]
      %v2423 = vld [vmem:[%s3 + $0x178] sm:$0xf]
      %v2424 = vld [vmem:[%s3 + $0x17c] sm:$0xf]
      %v2425 = vld [vmem:[%s3 + $0x180] sm:$0xf]
      %v2426 = vld [vmem:[%s3 + $0x184] sm:$0xf]
      %v2427 = vld [vmem:[%s3 + $0x188] sm:$0xf]
      %v2428 = vld [vmem:[%s3 + $0x18c] sm:$0xf]
      %v2429 = vld [vmem:[%s3 + $0x190] sm:$0xf]
      %v2430 = vld [vmem:[%s3 + $0x194] sm:$0xf]
      %v2431 = vld [vmem:[%s3 + $0x198] sm:$0xf]
      %v2432 = vld [vmem:[%s3 + $0x19c] sm:$0xf]
      %v2433 = vld [vmem:[%s3 + $0x1a0] sm:$0xf]
      %v2434 = vld [vmem:[%s3 + $0x1a4] sm:$0xf]
      %v2435 = vld [vmem:[%s3 + $0x1a8] sm:$0xf]
      %v2436 = vld [vmem:[%s3 + $0x1ac] sm:$0xf]
      %v2473 = vunpack.c.l.b16 %v2401
      %v2474 = vunpack.c.l.b16 %v2402
      %v2475 = vunpack.c.l.b16 %v2403
      %v2476 = vunpack.c.l.b16 %v2404
      %v2477 = vunpack.c.l.b16 %v2405
      %v2478 = vunpack.c.l.b16 %v2406
      %v2479 = vunpack.c.l.b16 %v2407
      %v2480 = vunpack.c.l.b16 %v2408
      %v2481 = vunpack.c.l.b16 %v2409
      %v2482 = vunpack.c.l.b16 %v2410
      %v2483 = vunpack.c.l.b16 %v2411
      %v2484 = vunpack.c.l.b16 %v2412
      %v2485 = vunpack.c.l.b16 %v2413
      %v2486 = vunpack.c.l.b16 %v2414
      %v2487 = vunpack.c.l.b16 %v2415
      %v2488 = vunpack.c.l.b16 %v2416
      %v2489 = vunpack.c.l.b16 %v2417
      %v2490 = vunpack.c.l.b16 %v2418
      %v2491 = vunpack.c.l.b16 %v2419
      %v2492 = vunpack.c.l.b16 %v2420
      %v2493 = vunpack.c.l.b16 %v2421
      %v2494 = vunpack.c.l.b16 %v2422
      %v2495 = vunpack.c.l.b16 %v2423
      %v2496 = vunpack.c.l.b16 %v2424
      %v2497 = vunpack.c.l.b16 %v2425
      %v2498 = vunpack.c.l.b16 %v2426
      %v2499 = vunpack.c.l.b16 %v2427
      %v2500 = vunpack.c.l.b16 %v2428
      %v2501 = vunpack.c.l.b16 %v2429
      %v2502 = vunpack.c.l.b16 %v2430
      %v2503 = vunpack.c.l.b16 %v2431
      %v2504 = vunpack.c.l.b16 %v2432
      %v2505 = vunpack.c.l.b16 %v2433
      %v2506 = vunpack.c.l.b16 %v2434
      %v2507 = vunpack.c.l.b16 %v2435
      %v2508 = vunpack.c.l.b16 %v2436
      %v2509 = vpack.c.b16 %v2474, %v2473
      %v2510 = vpack.c.b16 %v2476, %v2475
      %v2511 = vpack.c.b16 %v2478, %v2477
      %v2512 = vpack.c.b16 %v2480, %v2479
      %v2513 = vpack.c.b16 %v2482, %v2481
      %v2514 = vpack.c.b16 %v2484, %v2483
      %v2515 = vpack.c.b16 %v2486, %v2485
      %v2516 = vpack.c.b16 %v2488, %v2487
      %v2517 = vpack.c.b16 %v2490, %v2489
      %v2518 = vpack.c.b16 %v2492, %v2491
      %v2519 = vpack.c.b16 %v2494, %v2493
      %v2520 = vpack.c.b16 %v2496, %v2495
      %v2521 = vpack.c.b16 %v2498, %v2497
      %v2522 = vpack.c.b16 %v2500, %v2499
      %v2523 = vpack.c.b16 %v2502, %v2501
      %v2524 = vpack.c.b16 %v2504, %v2503
      %v2525 = vpack.c.b16 %v2506, %v2505
      %v2526 = vpack.c.b16 %v2508, %v2507
      %v2546 = vsel %vm872, %v2388, 0
      %v2549 = vsel %vm872, %v2391, 0
      %v2552 = vsel %vm872, %v2394, 0
      %v2555 = vsel %vm872, %v2397, 0
      %v2558 = vsel %vm872, %v2400, 0
      %2560 = vmatpush.bf16.msra.mxu0 %v2516
      %2561 = vmatpush.bf16.msra.mxu0 %v2515
      %2562 = vmatpush.bf16.msra.mxu0 %v2514
      %2563 = vmatpush.bf16.msra.mxu0 %v2513
      %2564 = vmatpush.bf16.msra.mxu0 %v2512
      %2565 = vmatpush.bf16.msra.mxu0 %v2511
      %2566 = vmatpush.bf16.msra.mxu0 %v2510
      %2567 = vmatpush.bf16.msra.mxu0 %v2509
      %2568 = vmatmul.bf16.gmra.mxu0 %v2386
      %v2569 = vpop.f32.mrf.mxu0
      %v2570 = vadd.f32 0.0, %v2569
      %v2571 = vpop.f32.mrf.mxu0
      %v2572 = vadd.f32 0.0, %v2571
      %2573 = vmatmul.bf16.gmra.mxu0 %v2389
      %v2574 = vpop.f32.mrf.mxu0
      %v2575 = vadd.f32 0.0, %v2574
      %v2576 = vpop.f32.mrf.mxu0
      %v2577 = vadd.f32 0.0, %v2576
      %2578 = vmatmul.bf16.gmra.mxu0 %v2392
      %v2579 = vpop.f32.mrf.mxu0
      %v2580 = vadd.f32 0.0, %v2579
      %v2581 = vpop.f32.mrf.mxu0
      %v2582 = vadd.f32 0.0, %v2581
      %2583 = vmatmul.bf16.gmra.mxu0 %v2395
      %v2584 = vpop.f32.mrf.mxu0
      %v2585 = vadd.f32 0.0, %v2584
      %v2586 = vpop.f32.mrf.mxu0
      %v2587 = vadd.f32 0.0, %v2586
      %2588 = vmatmul.bf16.gmra.mxu0 %v2398
      %v2589 = vpop.f32.mrf.mxu0
      %v2590 = vadd.f32 0.0, %v2589
      %v2591 = vpop.f32.mrf.mxu0
      %v2592 = vadd.f32 0.0, %v2591
      %2593 = vdwg.mxu0
      %2594 = vmatpush.bf16.msra.mxu0 %v2524
      %2595 = vmatpush.bf16.msra.mxu0 %v2523
      %2596 = vmatpush.bf16.msra.mxu0 %v2522
      %2597 = vmatpush.bf16.msra.mxu0 %v2521
      %2598 = vmatpush.bf16.msra.mxu0 %v2520
      %2599 = vmatpush.bf16.msra.mxu0 %v2519
      %2600 = vmatpush.bf16.msra.mxu0 %v2518
      %2601 = vmatpush.bf16.msra.mxu0 %v2517
      %2602 = vmatmul.bf16.gmra.mxu0 %v2387
      %v2603 = vpop.f32.mrf.mxu0
      %v2604 = vadd.f32 %v2570, %v2603
      %v2605 = vpop.f32.mrf.mxu0
      %v2606 = vadd.f32 %v2572, %v2605
      %2607 = vmatmul.bf16.gmra.mxu0 %v2390
      %v2608 = vpop.f32.mrf.mxu0
      %v2609 = vadd.f32 %v2575, %v2608
      %v2610 = vpop.f32.mrf.mxu0
      %v2611 = vadd.f32 %v2577, %v2610
      %2612 = vmatmul.bf16.gmra.mxu0 %v2393
      %v2613 = vpop.f32.mrf.mxu0
      %v2614 = vadd.f32 %v2580, %v2613
      %v2615 = vpop.f32.mrf.mxu0
      %v2616 = vadd.f32 %v2582, %v2615
      %2617 = vmatmul.bf16.gmra.mxu0 %v2396
      %v2618 = vpop.f32.mrf.mxu0
      %v2619 = vadd.f32 %v2585, %v2618
      %v2620 = vpop.f32.mrf.mxu0
      %v2621 = vadd.f32 %v2587, %v2620
      %2622 = vmatmul.bf16.gmra.mxu0 %v2399
      %v2623 = vpop.f32.mrf.mxu0
      %v2624 = vadd.f32 %v2590, %v2623
      %v2625 = vpop.f32.mrf.mxu0
      %v2626 = vadd.f32 %v2592, %v2625
      %2627 = vdwg.mxu0
      %2628 = vmatpush.bf16.msra.mxu0 0
      %2629 = vmatpush.bf16.msra.mxu0 0
      %2630 = vmatpush.bf16.msra.mxu0 0
      %2631 = vmatpush.bf16.msra.mxu0 0
      %2632 = vmatpush.bf16.msra.mxu0 0
      %2633 = vmatpush.bf16.msra.mxu0 0
      %2634 = vmatpush.bf16.msra.mxu0 %v2526
      %2635 = vmatpush.bf16.msra.mxu0 %v2525
      %2636 = vmatmul.bf16.gmra.mxu0 %v2546
      %v2637 = vpop.f32.mrf.mxu0
      %v2638 = vadd.f32 %v2604, %v2637
      %v2639 = vpop.f32.mrf.mxu0
      %v2640 = vadd.f32 %v2606, %v2639
      %2641 = vmatmul.bf16.gmra.mxu0 %v2549
      %v2642 = vpop.f32.mrf.mxu0
      %v2643 = vadd.f32 %v2609, %v2642
      %v2644 = vpop.f32.mrf.mxu0
      %v2645 = vadd.f32 %v2611, %v2644
      %2646 = vmatmul.bf16.gmra.mxu0 %v2552
      %v2647 = vpop.f32.mrf.mxu0
      %v2648 = vadd.f32 %v2614, %v2647
      %v2649 = vpop.f32.mrf.mxu0
      %v2650 = vadd.f32 %v2616, %v2649
      %2651 = vmatmul.bf16.gmra.mxu0 %v2555
      %v2652 = vpop.f32.mrf.mxu0
      %v2653 = vadd.f32 %v2619, %v2652
      %v2654 = vpop.f32.mrf.mxu0
      %v2655 = vadd.f32 %v2621, %v2654
      %2656 = vmatmul.bf16.gmra.mxu0 %v2558
      %v2657 = vpop.f32.mrf.mxu0
      %v2658 = vadd.f32 %v2624, %v2657
      %v2659 = vpop.f32.mrf.mxu0
      %v2660 = vadd.f32 %v2626, %v2659
      %2661 = vdwg.mxu0
      %v2662 = vadd.f32 %v1912, %v2638
      %v2663 = vadd.f32 %v1914, %v2640
      %v2664 = vadd.f32 %v1917, %v2643
      %v2665 = vadd.f32 %v1919, %v2645
      %v2666 = vadd.f32 %v1922, %v2648
      %v2667 = vadd.f32 %v1924, %v2650
      %v2668 = vadd.f32 %v1927, %v2653
      %v2669 = vadd.f32 %v1929, %v2655
      %v2670 = vadd.f32 %v1932, %v2658
      %v2671 = vadd.f32 %v1934, %v2660
      %v2672 = vld [vmem:[%s4] sm:$0xff]
      %v2673 = vld [vmem:[%s4 + $0x8] sm:$0xff]
      %v2674 = vld [vmem:[%s4 + $0x10] sm:$0xff]
      %v2675 = vld [vmem:[%s4 + $0x18] sm:$0xff]
      %v2676 = vld [vmem:[%s4 + $0x20] sm:$0xff]
      %v2677 = vld [vmem:[%s4 + $0x28] sm:$0xff]
      %v2678 = vld [vmem:[%s4 + $0x30] sm:$0xff]
      %v2679 = vld [vmem:[%s4 + $0x38] sm:$0xff]
      %v2680 = vld [vmem:[%s4 + $0x40] sm:$0xff]
      %v2681 = vld [vmem:[%s4 + $0x48] sm:$0xff]
      %2683 = vset.pattern.permute.xlu0 0
      %2684 = vperm.xlu0 %2683, %v2672
      %v2685 = vpop.permute.xlu0 %2684
      %2688 = vset.pattern.permute.xlu0 0
      %2689 = vperm.xlu0 %2688, %v2673
      %v2690 = vpop.permute.xlu0 %2689
      %2693 = vset.pattern.permute.xlu0 0
      %2694 = vperm.xlu0 %2693, %v2674
      %v2695 = vpop.permute.xlu0 %2694
      %2698 = vset.pattern.permute.xlu0 0
      %2699 = vperm.xlu0 %2698, %v2675
      %v2700 = vpop.permute.xlu0 %2699
      %2703 = vset.pattern.permute.xlu0 0
      %2704 = vperm.xlu0 %2703, %v2676
      %v2705 = vpop.permute.xlu0 %2704
      %2708 = vset.pattern.permute.xlu0 0
      %2709 = vperm.xlu0 %2708, %v2677
      %v2710 = vpop.permute.xlu0 %2709
      %2713 = vset.pattern.permute.xlu0 0
      %2714 = vperm.xlu0 %2713, %v2678
      %v2715 = vpop.permute.xlu0 %2714
      %2718 = vset.pattern.permute.xlu0 0
      %2719 = vperm.xlu0 %2718, %v2679
      %v2720 = vpop.permute.xlu0 %2719
      %2723 = vset.pattern.permute.xlu0 0
      %2724 = vperm.xlu0 %2723, %v2680
      %v2725 = vpop.permute.xlu0 %2724
      %2728 = vset.pattern.permute.xlu0 0
      %2729 = vperm.xlu0 %2728, %v2681
      %v2730 = vpop.permute.xlu0 %2729
      %v2732 = vmul.f32 %v2662, %v2685
      %v2733 = vmul.f32 %v2663, %v2690
      %v2734 = vmul.f32 %v2664, %v2695
      %v2735 = vmul.f32 %v2665, %v2700
      %v2736 = vmul.f32 %v2666, %v2705
      %v2737 = vmul.f32 %v2667, %v2710
      %v2738 = vmul.f32 %v2668, %v2715
      %v2739 = vmul.f32 %v2669, %v2720
      %v2740 = vmul.f32 %v2670, %v2725
      %v2741 = vmul.f32 %v2671, %v2730
      %vm2742 = vcmask 257024
      %2743 = vst.msk [vmem:[%s466] sm:$0xf] %vm2742, 0
      %vm2744 = vcmask 254976
      %vm2745 = vsmask.f32 1280
      %vm2746 = vmand %vm2744, %vm2745
      %v2747 = vld [vmem:[%s466 + $0x4] sm:$0x3]
      %v2748 = vsel %vm2746, 0, %v2747
      %2749 = vst [vmem:[%s466 + $0x4] sm:$0x3] %v2748
      %v2750 = vpack.c.bf16 %v2732, %v2732
      %v2751 = vpack.c.bf16 %v2733, %v2733
      %v2752 = vpack.c.bf16 %v2734, %v2734
      %v2753 = vpack.c.bf16 %v2735, %v2735
      %v2754 = vpack.c.bf16 %v2736, %v2736
      %v2755 = vpack.c.bf16 %v2737, %v2737
      %v2756 = vpack.c.bf16 %v2738, %v2738
      %v2757 = vpack.c.bf16 %v2739, %v2739
      %v2758 = vpack.c.bf16 %v2740, %v2740
      %v2759 = vpack.c.bf16 %v2741, %v2741
      %vm2760 = vsmask.f32 5392
      %vm2761 = vmor %vm2745, %vm2760
      %v2763 = vshrl.u32 %v2750, 16
      %v2765 = vrot.slane %v2763, 6
      %v2766 = vshll.u32 %v2750, 16
      %v2768 = vrot.slane %v2766, 7
      %v2769 = vor.u32 %v2765, %v2768
      %v2770 = vrot.slane %v2769, 4
      %v2772 = vshrl.u32 %v2751, 16
      %v2774 = vrot.slane %v2772, 6
      %v2775 = vshll.u32 %v2751, 16
      %v2777 = vrot.slane %v2775, 7
      %v2778 = vor.u32 %v2774, %v2777
      %v2779 = vsel %vm2761, %v2770, %v2778
      %v2780 = vrot.slane %v2778, 4
      %v2782 = vshrl.u32 %v2752, 16
      %v2784 = vrot.slane %v2782, 6
      %v2785 = vshll.u32 %v2752, 16
      %v2787 = vrot.slane %v2785, 7
      %v2788 = vor.u32 %v2784, %v2787
      %v2789 = vsel %vm2761, %v2780, %v2788
      %v2790 = vrot.slane %v2788, 4
      %v2792 = vshrl.u32 %v2753, 16
      %v2794 = vrot.slane %v2792, 6
      %v2795 = vshll.u32 %v2753, 16
      %v2797 = vrot.slane %v2795, 7
      %v2798 = vor.u32 %v2794, %v2797
      %v2799 = vsel %vm2761, %v2790, %v2798
      %v2800 = vrot.slane %v2798, 4
      %v2802 = vshrl.u32 %v2754, 16
      %v2804 = vrot.slane %v2802, 6
      %v2805 = vshll.u32 %v2754, 16
      %v2807 = vrot.slane %v2805, 7
      %v2808 = vor.u32 %v2804, %v2807
      %v2809 = vsel %vm2761, %v2800, %v2808
      %v2810 = vrot.slane %v2808, 4
      %v2812 = vshrl.u32 %v2755, 16
      %v2814 = vrot.slane %v2812, 6
      %v2815 = vshll.u32 %v2755, 16
      %v2817 = vrot.slane %v2815, 7
      %v2818 = vor.u32 %v2814, %v2817
      %v2819 = vsel %vm2761, %v2810, %v2818
      %v2820 = vrot.slane %v2818, 4
      %v2822 = vshrl.u32 %v2756, 16
      %v2824 = vrot.slane %v2822, 6
      %v2825 = vshll.u32 %v2756, 16
      %v2827 = vrot.slane %v2825, 7
      %v2828 = vor.u32 %v2824, %v2827
      %v2829 = vsel %vm2761, %v2820, %v2828
      %v2830 = vrot.slane %v2828, 4
      %v2832 = vshrl.u32 %v2757, 16
      %v2834 = vrot.slane %v2832, 6
      %v2835 = vshll.u32 %v2757, 16
      %v2837 = vrot.slane %v2835, 7
      %v2838 = vor.u32 %v2834, %v2837
      %v2839 = vsel %vm2761, %v2830, %v2838
      %v2840 = vrot.slane %v2838, 4
      %v2842 = vshrl.u32 %v2758, 16
      %v2844 = vrot.slane %v2842, 6
      %v2845 = vshll.u32 %v2758, 16
      %v2847 = vrot.slane %v2845, 7
      %v2848 = vor.u32 %v2844, %v2847
      %v2849 = vsel %vm2761, %v2840, %v2848
      %v2850 = vrot.slane %v2848, 4
      %v2852 = vshrl.u32 %v2759, 16
      %v2854 = vrot.slane %v2852, 6
      %v2855 = vshll.u32 %v2759, 16
      %v2857 = vrot.slane %v2855, 7
      %v2858 = vor.u32 %v2854, %v2857
      %v2859 = vsel %vm2761, %v2850, %v2858
      %v2860 = vrot.slane %v2858, 4
      %vm2872 = vcmask 257025
      %vm2873 = vsmask.f32 7942
      %vm2874 = vmand %vm2872, %vm2873
      %v2875 = vld [vmem:[%s466 + $0x4] sm:$0xe]
      %v2876 = vsel %vm2874, %v2769, %v2875
      %2877 = vst [vmem:[%s466 + $0x4] sm:$0xe] %v2876
      %2878 = vst.msk [vmem:[%s466 + $0x8] sm:$0xf] %vm2742, %v2779
      %2879 = vst.msk [vmem:[%s466 + $0xc] sm:$0xf] %vm2742, %v2789
      %2880 = vst.msk [vmem:[%s466 + $0x10] sm:$0xf] %vm2742, %v2799
      %2881 = vst.msk [vmem:[%s466 + $0x14] sm:$0xf] %vm2742, %v2809
      %2882 = vst.msk [vmem:[%s466 + $0x18] sm:$0xf] %vm2742, %v2819
      %2883 = vst.msk [vmem:[%s466 + $0x1c] sm:$0xf] %vm2742, %v2829
      %2884 = vst.msk [vmem:[%s466 + $0x20] sm:$0xf] %vm2742, %v2839
      %2885 = vst.msk [vmem:[%s466 + $0x24] sm:$0xf] %vm2742, %v2849
      %2886 = vst.msk [vmem:[%s466 + $0x28] sm:$0xf] %vm2742, %v2859
      %v2887 = vld [vmem:[%s466 + $0x2c] sm:$0x3]
      %v2888 = vsel %vm2746, %v2860, %v2887
      %2889 = vst [vmem:[%s466 + $0x2c] sm:$0x3] %v2888
      %v2890 = vld [vmem:[%s466 + $0x2c] sm:$0xe]
      %v2891 = vsel %vm2874, 0, %v2890
      %2892 = vst [vmem:[%s466 + $0x2c] sm:$0xe] %v2891
      %2893 = vst.msk [vmem:[%s466 + $0x30] sm:$0xf] %vm2742, 0
      %vm2894 = vcmask 256000
      %2895 = vst.msk [vmem:[%s466 + $0x34] sm:$0x7] %vm2894, 0
      %v2896 = vsel %vm872, %v2732, 0.0
      %v2897 = vsel %vm872, %v2733, 0.0
      %v2898 = vadd.f32 %v2896, %v2897
      %v2899 = vsel %vm872, %v2734, 0.0
      %v2900 = vadd.f32 %v2898, %v2899
      %v2901 = vsel %vm872, %v2735, 0.0
      %v2902 = vadd.f32 %v2900, %v2901
      %v2903 = vsel %vm872, %v2736, 0.0
      %v2904 = vadd.f32 %v2902, %v2903
      %v2905 = vsel %vm872, %v2737, 0.0
      %v2906 = vadd.f32 %v2904, %v2905
      %v2907 = vsel %vm872, %v2738, 0.0
      %v2908 = vadd.f32 %v2906, %v2907
      %v2909 = vsel %vm872, %v2739, 0.0
      %v2910 = vadd.f32 %v2908, %v2909
      %v2911 = vsel %vm872, %v2740, 0.0
      %v2912 = vadd.f32 %v2910, %v2911
      %v2913 = vsel %vm872, %v2741, 0.0
      %v2914 = vadd.f32 %v2912, %v2913
      %v2915 = vrot.slane %v2914, 4
      %v2916 = vadd.f32 %v2914, %v2915
      %v2917 = vrot.slane %v2916, 2
      %v2918 = vadd.f32 %v2916, %v2917
      %v2919 = vrot.slane %v2918, 1
      %v2920 = vadd.f32 %v2918, %v2919
      %vm2921 = vcmask 253952
      %2922 = vst.msk [vmem:[%s474] sm:$0x1] %vm2921, %v2920
      %v2923 = vmul.f32 %v2732, %v2732
      %v2924 = vmul.f32 %v2733, %v2733
      %v2925 = vmul.f32 %v2734, %v2734
      %v2926 = vmul.f32 %v2735, %v2735
      %v2927 = vmul.f32 %v2736, %v2736
      %v2928 = vmul.f32 %v2737, %v2737
      %v2929 = vmul.f32 %v2738, %v2738
      %v2930 = vmul.f32 %v2739, %v2739
      %v2931 = vmul.f32 %v2740, %v2740
      %v2932 = vmul.f32 %v2741, %v2741
      %v2933 = vsel %vm872, %v2923, 0.0
      %v2934 = vsel %vm872, %v2924, 0.0
      %v2935 = vadd.f32 %v2933, %v2934
      %v2936 = vsel %vm872, %v2925, 0.0
      %v2937 = vadd.f32 %v2935, %v2936
      %v2938 = vsel %vm872, %v2926, 0.0
      %v2939 = vadd.f32 %v2937, %v2938
      %v2940 = vsel %vm872, %v2927, 0.0
      %v2941 = vadd.f32 %v2939, %v2940
      %v2942 = vsel %vm872, %v2928, 0.0
      %v2943 = vadd.f32 %v2941, %v2942
      %v2944 = vsel %vm872, %v2929, 0.0
      %v2945 = vadd.f32 %v2943, %v2944
      %v2946 = vsel %vm872, %v2930, 0.0
      %v2947 = vadd.f32 %v2945, %v2946
      %v2948 = vsel %vm872, %v2931, 0.0
      %v2949 = vadd.f32 %v2947, %v2948
      %v2950 = vsel %vm872, %v2932, 0.0
      %v2951 = vadd.f32 %v2949, %v2950
      %v2952 = vrot.slane %v2951, 4
      %v2953 = vadd.f32 %v2951, %v2952
      %v2954 = vrot.slane %v2953, 2
      %v2955 = vadd.f32 %v2953, %v2954
      %v2956 = vrot.slane %v2955, 1
      %v2957 = vadd.f32 %v2955, %v2956
      %2958 = vst.msk [vmem:[%s474 + $0x1] sm:$0x1] %vm2921, %v2957
      %p2959 = scmp.lt.s32.totalorder %s22, 1
      %s2960 = scalar_select %p2959, %s22, 1
      %p2961 = scmp.lt.s32.totalorder %s23, 3
      %s2962 = scalar_select %p2961, %s23, 3
      %s2963 = smul.addr %s2962, 14
      %s2964 = smul.addr %s2960, 56
      %s2965 = sadd.s32 %s2963, %s2964
      %s2966 = smul.addr %s2965, 4
      %s2967 = scalar_lea.vmem %s5, %s2966
      %p2968 = scmp.lt.s32.totalorder %s22, 1
      %s2969 = scalar_select %p2968, %s22, 1
      %p2970 = scmp.lt.s32.totalorder %s23, 3
      %s2971 = scalar_select %p2970, %s23, 3
      %s2972 = smul.addr %s2969, 4
      %s2973 = sadd.s32 %s2971, %s2972
      %s2974 = smul.addr %s2973, 2
      %s2975 = scalar_lea.vmem %s6, %s2974
      // Predicated region
      $region41: #{basic_block_forward.3} parent=39 // pred_check
        %p2976 = pneg %p204
      $region42: #{basic_block_forward.3} parent=39 // pred_check_branch
        %2978 = sbr.rel (%p2976) target = $region44
      $region43: #{basic_block_forward.3} parent=39 // pred_region
        _
      $region44: #{basic_block_forward.3} parent=39 // pred_fallthru
        _
      // Predicated region
      $region45: #{basic_block_forward.3} parent=39 // pred_check
        %p2979 = pneg %p232
      $region46: #{basic_block_forward.3} parent=39 // pred_check_branch
        %2981 = sbr.rel (%p2979) target = $region48
      $region47: #{basic_block_forward.3} parent=39 // pred_region
        _
      $region48: #{basic_block_forward.3} parent=39 // pred_fallthru
        _
    $region40: #{basic_block_forward.3} parent=5 // pred_fallthru
      _
    %p2982 = scmp.le.s32.totalorder 2, %s13
    // Predicated region
    $region49: #{basic_block_forward.3} parent=5 // pred_check
      %p2983 = pneg %p2982
    $region50: #{basic_block_forward.3} parent=5 // pred_check_branch
      %2985 = sbr.rel (%p2983) target = $region52
    $region51: #{basic_block_forward.3} parent=5 // pred_region
      %s2986 = ssub.s32 %s13, 2
      // Predicated region
      $region53: #{basic_block_forward.3} parent=51 // pred_check
        %p2987 = pneg %p210
      $region54: #{basic_block_forward.3} parent=51 // pred_check_branch
        %2989 = sbr.rel (%p2987) target = $region56
      $region55: #{basic_block_forward.3} parent=51 // pred_region
        %p2990 = scmp.lt.s32.totalorder %s24, 1
        %s2991 = scalar_select %p2990, %s24, 1
        %p2992 = scmp.lt.s32.totalorder %s25, 3
        %s2993 = scalar_select %p2992, %s25, 3
        %s2994 = smul.addr %s2993, 14
        %s2995 = smul.addr %s2991, 56
        %s2996 = sadd.s32 %s2994, %s2995
        %s2997 = smul.addr %s2996, 4
        %s2998 = scalar_lea.vmem %s5, %s2997
      $region56: #{basic_block_forward.3} parent=51 // pred_fallthru
        _
      // Predicated region
      $region57: #{basic_block_forward.3} parent=51 // pred_check
        %p2999 = pneg %p238
      $region58: #{basic_block_forward.3} parent=51 // pred_check_branch
        %3001 = sbr.rel (%p2999) target = $region60
      $region59: #{basic_block_forward.3} parent=51 // pred_region
        %p3002 = scmp.lt.s32.totalorder %s24, 1
        %s3003 = scalar_select %p3002, %s24, 1
        %p3004 = scmp.lt.s32.totalorder %s25, 3
        %s3005 = scalar_select %p3004, %s25, 3
        %s3006 = smul.addr %s3003, 4
        %s3007 = sadd.s32 %s3005, %s3006
        %s3008 = smul.addr %s3007, 2
        %s3009 = scalar_lea.vmem %s6, %s3008
      $region60: #{basic_block_forward.3} parent=51 // pred_fallthru
        _
    $region52: #{basic_block_forward.3} parent=5 // pred_fallthru
      _
  $region6: #{basic_block_forward.3} parent=0 // loop_footer
    %s17 = sadd.s32 1, %s13
  $region7: #{basic_block_forward.3} parent=0 // loop_footer_branch
    %12 = sbr.rel target = $region3
  $region8: #{basic_block_forward.3} parent=0 // loop_exit
    _

</llo_original>
